<compile_context>
chip_gen: v6e
topology: v6e:2x2x1
jax: 0.10.0
libtpu: 0.0.40
codegen_flags: <defaults>
</compile_context>

<pallas_src>
import functools
import math

import jax
import jax.numpy as jnp
from jax.experimental import pallas as pl
from jax.experimental.pallas import tpu as pltpu

EPS = 1e-5
EXPANSION = 4
_LANE = 128


# ---------------------------------------------------------------------------
# small helpers
# ---------------------------------------------------------------------------
def _ru(x, m):
    return ((x + m - 1) // m) * m


def _pad_last(a, size):
    pad = size - a.shape[-1]
    if pad == 0:
        return a
    widths = [(0, 0)] * (a.ndim - 1) + [(0, pad)]
    return jnp.pad(a, widths)


def _pad2(a, rows, cols):
    return jnp.pad(a, ((0, rows - a.shape[0]), (0, cols - a.shape[1])))


def _nbytes(shape, dtype):
    return math.prod(shape) * jnp.dtype(dtype).itemsize


def _vmem_budget_bytes():
    """Per-generation VMEM target: ~60% of physical, capped at 96 MiB
    (~77 MiB on 128 MiB v5e/v6e, ~38 MiB on v7x's 64 MiB per-TC VMEM)."""
    try:
        cap = int(pltpu.get_tpu_info().vmem_capacity_bytes)
    except Exception:
        cap = 128 << 20
    return int(min(cap * 3 // 5, 96 << 20))


def _pick_row_tile(nhw, per_row_bytes, const_bytes, budget):
    """Largest row tile whose double-buffered pipeline blocks (+ the resident,
    also double-buffered, weights) fit the VMEM budget with headroom.
    Multiple of 256 when possible (MXU M tile), multiple of 8 always."""
    avail = budget - 2 * const_bytes - (6 << 20)
    tr = max(avail // (2 * per_row_bytes), 8)
    tr = int(min(tr, 4096))
    nhw8 = _ru(nhw, 8)
    if tr >= nhw8:
        return nhw8
    if tr >= 256:
        return (tr // 256) * 256
    return (tr // 8) * 8


def _vmem_limit(block_bytes, scratch_bytes, budget):
    est = 2 * block_bytes + scratch_bytes + (4 << 20)
    return int(min(max(est, 16 << 20), budget))


def _bn_coeffs(s, ss, count, gamma, beta):
    """(sum, sumsq) -> per-channel (a, b) so that train-mode bn(y) = y*a + b."""
    mean = s / count
    var = jnp.maximum(ss / count - mean * mean, 0.0)
    inv = jax.lax.rsqrt(var + EPS)
    a = gamma.reshape(-1) * inv
    b = beta.reshape(-1) - mean * a
    return (a.reshape(1, -1).astype(jnp.float32),
            b.reshape(1, -1).astype(jnp.float32))


# ---------------------------------------------------------------------------
# stage 1: conv1 (1x1) fused with the projection shortcut (1x1) + partial stats
# ---------------------------------------------------------------------------
def _stage1_kernel(p_dim, has_proj, x_ref, w_ref, *out_refs):
    if has_proj:
        y1_ref, ysc_ref, s_ref, sq_ref = out_refs
    else:
        y1_ref, s_ref, sq_ref = out_refs
    xb = x_ref[...].astype(jnp.bfloat16)                       # MXU eats bf16
    y = jnp.dot(xb, w_ref[...], preferred_element_type=jnp.float32)
    s_ref[0] = jnp.sum(y, axis=0, keepdims=True)
    sq_ref[0] = jnp.sum(y * y, axis=0, keepdims=True)
    if has_proj:
        y1_ref[...] = y[:, :p_dim].astype(y1_ref.dtype)
        ysc_ref[...] = y[:, p_dim:].astype(ysc_ref.dtype)
    else:
        y1_ref[...] = y.astype(y1_ref.dtype)


# ---------------------------------------------------------------------------
# stage 2: bn1 + relu + 3x3 conv (kw-slab im2col, 3 * K=3P matmuls) + stats
# ---------------------------------------------------------------------------
def _stage2_kernel(H, W, P, y1_ref, a1_ref, b1_ref, w2_ref, y2_ref, s_ref,
                   sq_ref, col_ref):
    f32, bf16 = jnp.float32, jnp.bfloat16
    a1 = a1_ref[...].reshape(1, 1, P)
    b1 = b1_ref[...].reshape(1, 1, P)
    # BN + ReLU in fp32, cast to bf16 only for the MXU / the slab.
    h1 = jnp.maximum(y1_ref[0].astype(f32) * a1 + b1, 0.0).astype(bf16)

    # kw-concatenated im2col slab (H+2, W, 3P): channel block kw holds the
    # input shifted by (kw-1) along W; rows 0 and H+1 are the zero H-halo.
    zrow = jnp.zeros((1, W, 3 * P), bf16)
    zcol = jnp.zeros((H, 1, P), bf16)
    col_ref[pl.ds(0, 1)] = zrow
    col_ref[pl.ds(H + 1, 1)] = zrow
    col_ref[pl.ds(1, H), pl.ds(0, W), pl.ds(0, P)] = jnp.concatenate(
        [zcol, h1[:, :W - 1, :]], axis=1)                     # tap in[w-1]
    col_ref[pl.ds(1, H), pl.ds(0, W), pl.ds(P, P)] = h1       # tap in[w]
    col_ref[pl.ds(1, H), pl.ds(0, W), pl.ds(2 * P, P)] = jnp.concatenate(
        [h1[:, 1:, :], zcol], axis=1)                         # tap in[w+1]

    # Three accumulating K=3P matmuls over the kh row windows (vs one 9P slab:
    # 3x less scratch and ~3x less copy traffic; K=3P still fills the MXU).
    y2 = jnp.dot(col_ref[pl.ds(0, H)].reshape(H * W, 3 * P), w2_ref[0],
                 preferred_element_type=f32)
    for kh in (1, 2):
        y2 = y2 + jnp.dot(col_ref[pl.ds(kh, H)].reshape(H * W, 3 * P),
                          w2_ref[kh], preferred_element_type=f32)

    y2_ref[0] = y2.reshape(H, W, P).astype(y2_ref.dtype)
    s_ref[0] = jnp.sum(y2, axis=0, keepdims=True)
    sq_ref[0] = jnp.sum(y2 * y2, axis=0, keepdims=True)


# ---------------------------------------------------------------------------
# stage 3: bn2 + relu + conv3 (1x1) + partial stats
# ---------------------------------------------------------------------------
def _stage3_kernel(tr, nhw, needs_mask, y2_ref, a2_ref, b2_ref, w3_ref,
                   y3_ref, s_ref, sq_ref):
    h2 = jnp.maximum(
        y2_ref[...].astype(jnp.float32) * a2_ref[...] + b2_ref[...], 0.0)
    if needs_mask:  # zero the rows past NHW so they don't pollute bn3 stats
        row0 = pl.program_id(0) * tr
        rows = row0 + jax.lax.broadcasted_iota(jnp.int32, (tr, 1), 0)
        h2 = jnp.where(rows < nhw, h2, 0.0)
    y3 = jnp.dot(h2.astype(jnp.bfloat16), w3_ref[...],
                 preferred_element_type=jnp.float32)
    y3_ref[...] = y3.astype(y3_ref.dtype)
    s_ref[0] = jnp.sum(y3, axis=0, keepdims=True)
    sq_ref[0] = jnp.sum(y3 * y3, axis=0, keepdims=True)


# ---------------------------------------------------------------------------
# stage 4: bn3 + shortcut-bn + residual add + relu (pure elementwise, fp32)
# ---------------------------------------------------------------------------
def _stage4_kernel(has_proj, y3_ref, a3_ref, b3_ref, sc_ref, *rest):
    f32 = jnp.float32
    if has_proj:
        as_ref, bs_ref, o_ref = rest
        sc = sc_ref[...].astype(f32) * as_ref[...] + bs_ref[...]
    else:
        (o_ref,) = rest
        sc = sc_ref[...].astype(f32)
    o_ref[...] = jnp.maximum(
        y3_ref[...].astype(f32) * a3_ref[...] + b3_ref[...] + sc, 0.0)


# ---------------------------------------------------------------------------
# forward pass (NHWC is the native layout)
# ---------------------------------------------------------------------------
def bottleneck_forward_nhwc(x_nhwc, params, *, has_proj, stride=1):
    """x_nhwc: (N, H, W, Cin) float32 -> (N, H, W, expansion*planes) float32."""
    # TODO(synk): stride > 1 (spatial subsampling in conv2 + shortcut) and
    # eval-mode (running-stats) BN are not implemented in-kernel.
    assert stride == 1
    w1, g1, b1, w2, g2, b2, w3, g3, b3 = params[:9]
    N, H, W, Cin = x_nhwc.shape
    P = w1.shape[1]
    Cout = w3.shape[1]
    if not has_proj:
        assert Cin == Cout, "identity shortcut requires in_planes == expansion*planes"

    Cin_p, P_p, Cout_p = _ru(Cin, _LANE), _ru(P, _LANE), _ru(Cout, _LANE)
    NHW = N * H * W
    f32, bf16 = jnp.float32, jnp.bfloat16
    C1 = P_p + (Cout_p if has_proj else 0)

    # ---- VMEM-budget-aware row tiling ---------------------------------------
    budget = _vmem_budget_bytes()
    x_itm = 2 if has_proj else 4      # identity keeps x fp32 (stage-4 residual)
    per_row = max(
        x_itm * Cin_p + 2 * P_p + (2 * Cout_p if has_proj else 0),   # stage 1
        2 * P_p + 2 * Cout_p,                                        # stage 3
        2 * Cout_p + (2 if has_proj else 4) * Cout_p + 4 * Cout_p)   # stage 4
    const_b = max(2 * Cin_p * C1, 2 * P_p * Cout_p)
    TR = _pick_row_tile(NHW, per_row, const_b, budget)
    NHW_pad = _ru(NHW, TR)
    G = NHW_pad // TR
    needs_mask = NHW_pad != NHW

    # ---- pad channels (lane-dense) + rows (row-tile-dense) ------------------
    x_rows = x_nhwc.reshape(NHW, Cin)
    x_dt = bf16 if has_proj else f32
    x_p = jnp.pad(x_rows.astype(x_dt), ((0, NHW_pad - NHW), (0, Cin_p - Cin)))
    w1_p = _pad2(w1, Cin_p, P_p).astype(bf16)
    w3_p = _pad2(w3, P_p, Cout_p).astype(bf16)
    w2_p = jnp.zeros((3, 3, P_p, P_p), f32).at[:, :, :P, :P].set(w2)
    w2_k = w2_p.reshape(3, 3 * P_p, P_p).astype(bf16)   # rows: [kw][cin] per kh
    g1_p, b1_p = _pad_last(g1.reshape(-1), P_p), _pad_last(b1.reshape(-1), P_p)
    g2_p, b2_p = _pad_last(g2.reshape(-1), P_p), _pad_last(b2.reshape(-1), P_p)
    g3_p, b3_p = _pad_last(g3.reshape(-1), Cout_p), _pad_last(b3.reshape(-1), Cout_p)
    if has_proj:
        ws, gs, bs = params[9:12]
        ws_p = _pad2(ws, Cin_p, Cout_p).astype(bf16)
        gs_p, bs_p = _pad_last(gs.reshape(-1), Cout_p), _pad_last(bs.reshape(-1), Cout_p)
        w_cat = jnp.concatenate([w1_p, ws_p], axis=1)    # fused conv1 + proj
    else:
        w_cat = w1_p

    # ---- stage 1 ------------------------------------------------------------
    s1_out_shape = [jax.ShapeDtypeStruct((NHW_pad, P_p), bf16)]
    s1_out_specs = [pl.BlockSpec((TR, P_p), lambda i: (i, 0))]
    if has_proj:
        s1_out_shape.append(jax.ShapeDtypeStruct((NHW_pad, Cout_p), bf16))
        s1_out_specs.append(pl.BlockSpec((TR, Cout_p), lambda i: (i, 0)))
    s1_out_shape += [jax.ShapeDtypeStruct((G, 1, C1), f32)] * 2
    s1_out_specs += [pl.BlockSpec((1, 1, C1), lambda i: (i, 0, 0))] * 2

    blk1 = (_nbytes((TR, Cin_p), x_dt) + _nbytes((Cin_p, C1), bf16)
            + _nbytes((TR, P_p), bf16)
            + (_nbytes((TR, Cout_p), bf16) if has_proj else 0)
            + 2 * _nbytes((1, 1, C1), f32))
    s1 = pl.pallas_call(
        functools.partial(_stage1_kernel, P_p, has_proj),
        grid=(G,),
        in_specs=[pl.BlockSpec((TR, Cin_p), lambda i: (i, 0)),
                  pl.BlockSpec((Cin_p, C1), lambda i: (0, 0))],
        out_specs=tuple(s1_out_specs),
        out_shape=tuple(s1_out_shape),
        compiler_params=pltpu.CompilerParams(
            dimension_semantics=("parallel",),
            vmem_limit_bytes=_vmem_limit(blk1, 0, budget)),
        cost_estimate=pl.CostEstimate(
            flops=2 * NHW_pad * Cin_p * C1, transcendentals=0,
            bytes_accessed=_nbytes((NHW_pad, Cin_p), x_dt)
            + _nbytes((NHW_pad, C1), bf16) + _nbytes((Cin_p, C1), bf16)),
    )(x_p, w_cat)
    if has_proj:
        y1, ysc, st_s1, st_q1 = s1
    else:
        y1, st_s1, st_q1 = s1
        ysc = None
    s1_sum = st_s1.sum(axis=(0, 1))                           # (C1,)
    s1_sq = st_q1.sum(axis=(0, 1))
    a1c, b1c = _bn_coeffs(s1_sum[:P_p], s1_sq[:P_p], NHW, g1_p, b1_p)
    if has_proj:
        asc, bsc = _bn_coeffs(s1_sum[P_p:], s1_sq[P_p:], NHW, gs_p, bs_p)

    # ---- stage 2 ------------------------------------------------------------
    # TODO(synk): large feature maps on v7x would benefit from (N, H-tile)
    # retiling with an explicit 1-row halo; whole-image blocks are used here.
    y1_img = y1[:NHW].reshape(N, H, W, P_p)
    blk2 = (2 * _nbytes((1, H, W, P_p), bf16) + _nbytes((3, 3 * P_p, P_p), bf16)
            + 2 * _nbytes((1, P_p), f32) + 2 * _nbytes((1, 1, P_p), f32))
    col_bytes = _nbytes((H + 2, W, 3 * P_p), bf16)
    y2_img, st_s2, st_q2 = pl.pallas_call(
        functools.partial(_stage2_kernel, H, W, P_p),
        grid=(N,),
        in_specs=[pl.BlockSpec((1, H, W, P_p), lambda n: (n, 0, 0, 0)),
                  pl.BlockSpec((1, P_p), lambda n: (0, 0)),
                  pl.BlockSpec((1, P_p), lambda n: (0, 0)),
                  pl.BlockSpec((3, 3 * P_p, P_p), lambda n: (0, 0, 0))],
        out_specs=(pl.BlockSpec((1, H, W, P_p), lambda n: (n, 0, 0, 0)),
                   pl.BlockSpec((1, 1, P_p), lambda n: (n, 0, 0)),
                   pl.BlockSpec((1, 1, P_p), lambda n: (n, 0, 0))),
        out_shape=(jax.ShapeDtypeStruct((N, H, W, P_p), bf16),
                   jax.ShapeDtypeStruct((N, 1, P_p), f32),
                   jax.ShapeDtypeStruct((N, 1, P_p), f32)),
        scratch_shapes=[pltpu.VMEM((H + 2, W, 3 * P_p), bf16)],
        compiler_params=pltpu.CompilerParams(
            dimension_semantics=("parallel",),
            vmem_limit_bytes=_vmem_limit(blk2, col_bytes, budget)),
        cost_estimate=pl.CostEstimate(
            flops=2 * NHW * 9 * P_p * P_p, transcendentals=0,
            bytes_accessed=2 * _nbytes((N, H, W, P_p), bf16)
            + _nbytes((3, 3 * P_p, P_p), bf16)),
    )(y1_img, a1c, b1c, w2_k)
    a2c, b2c = _bn_coeffs(st_s2.sum(axis=(0, 1)), st_q2.sum(axis=(0, 1)),
                          NHW, g2_p, b2_p)

    # ---- stage 3 ------------------------------------------------------------
    y2_rows = y2_img.reshape(NHW, P_p)
    if needs_mask:
        y2_rows = jnp.pad(y2_rows, ((0, NHW_pad - NHW), (0, 0)))
    blk3 = (_nbytes((TR, P_p), bf16) + _nbytes((P_p, Cout_p), bf16)
            + _nbytes((TR, Cout_p), bf16) + 2 * _nbytes((1, 1, Cout_p), f32))
    y3, st_s3, st_q3 = pl.pallas_call(
        functools.partial(_stage3_kernel, TR, NHW, needs_mask),
        grid=(G,),
        in_specs=[pl.BlockSpec((TR, P_p), lambda i: (i, 0)),
                  pl.BlockSpec((1, P_p), lambda i: (0, 0)),
                  pl.BlockSpec((1, P_p), lambda i: (0, 0)),
                  pl.BlockSpec((P_p, Cout_p), lambda i: (0, 0))],
        out_specs=(pl.BlockSpec((TR, Cout_p), lambda i: (i, 0)),
                   pl.BlockSpec((1, 1, Cout_p), lambda i: (i, 0, 0)),
                   pl.BlockSpec((1, 1, Cout_p), lambda i: (i, 0, 0))),
        out_shape=(jax.ShapeDtypeStruct((NHW_pad, Cout_p), bf16),
                   jax.ShapeDtypeStruct((G, 1, Cout_p), f32),
                   jax.ShapeDtypeStruct((G, 1, Cout_p), f32)),
        compiler_params=pltpu.CompilerParams(
            dimension_semantics=("parallel",),
            vmem_limit_bytes=_vmem_limit(blk3, 0, budget)),
        cost_estimate=pl.CostEstimate(
            flops=2 * NHW_pad * P_p * Cout_p, transcendentals=0,
            bytes_accessed=_nbytes((NHW_pad, P_p), bf16)
            + _nbytes((NHW_pad, Cout_p), bf16) + _nbytes((P_p, Cout_p), bf16)),
    )(y2_rows, a2c, b2c, w3_p)
    a3c, b3c = _bn_coeffs(st_s3.sum(axis=(0, 1)), st_q3.sum(axis=(0, 1)),
                          NHW, g3_p, b3_p)

    # ---- stage 4 ------------------------------------------------------------
    sc_arr = ysc if has_proj else x_p            # bf16 (proj) / fp32 (identity)
    s4_inputs = [y3, a3c, b3c, sc_arr]
    s4_specs = [pl.BlockSpec((TR, Cout_p), lambda i: (i, 0)),
                pl.BlockSpec((1, Cout_p), lambda i: (0, 0)),
                pl.BlockSpec((1, Cout_p), lambda i: (0, 0)),
                pl.BlockSpec((TR, Cout_p), lambda i: (i, 0))]
    if has_proj:
        s4_inputs += [asc, bsc]
        s4_specs += [pl.BlockSpec((1, Cout_p), lambda i: (0, 0)),
                     pl.BlockSpec((1, Cout_p), lambda i: (0, 0))]
    blk4 = (_nbytes((TR, Cout_p), bf16)
            + _nbytes((TR, Cout_p), sc_arr.dtype)
            + _nbytes((TR, Cout_p), f32))
    out_rows = pl.pallas_call(
        functools.partial(_stage4_kernel, has_proj),
        grid=(G,),
        in_specs=s4_specs,
        out_specs=pl.BlockSpec((TR, Cout_p), lambda i: (i, 0)),
        out_shape=jax.ShapeDtypeStruct((NHW_pad, Cout_p), f32),
        compiler_params=pltpu.CompilerParams(
            dimension_semantics=("parallel",),
            vmem_limit_bytes=_vmem_limit(blk4, 0, budget)),
        cost_estimate=pl.CostEstimate(
            flops=4 * NHW_pad * Cout_p, transcendentals=0,
            bytes_accessed=_nbytes((NHW_pad, Cout_p), bf16)
            + _nbytes((NHW_pad, Cout_p), sc_arr.dtype)
            + _nbytes((NHW_pad, Cout_p), f32)),
    )(*s4_inputs)

    out = out_rows[:NHW].reshape(N, H, W, Cout_p)
    if Cout_p != Cout:
        out = out[..., :Cout]
    return out


def bottleneck_forward(x_nchw, params, *, has_proj, stride=1):
    """PyTorch-layout (NCHW) wrapper.  A full NHWC network should call
    bottleneck_forward_nhwc directly and skip the two boundary transposes
    (two fewer full HBM round trips per block; matters most on v5e)."""
    x_nhwc = jnp.transpose(x_nchw, (0, 2, 3, 1))
    out = bottleneck_forward_nhwc(x_nhwc, params, has_proj=has_proj, stride=stride)
    return jnp.transpose(out, (0, 3, 1, 2))


# ---------------------------------------------------------------------------
# parameters + pure-JAX reference (for verification)
# ---------------------------------------------------------------------------
def init_params(key, in_planes, planes, expansion=EXPANSION):
    """Deterministic synthetic parameters (shapes match the PyTorch module).

    Conv weights are stored channels-last:
      w1: (in_planes, planes), w2: (3, 3, planes, planes),
      w3: (planes, 4*planes), ws: (in_planes, 4*planes).
    BN gamma=1, beta=0 (PyTorch default init), stored as (1, C).
    """
    cout = expansion * planes
    ks = jax.random.split(key, 4)
    s = 0.1
    w1 = s * jax.random.normal(ks[0], (in_planes, planes), jnp.float32)
    w2 = s * jax.random.normal(ks[1], (3, 3, planes, planes), jnp.float32)
    w3 = s * jax.random.normal(ks[2], (planes, cout), jnp.float32)
    g1, b1 = jnp.ones((1, planes), jnp.float32), jnp.zeros((1, planes), jnp.float32)
    g2, b2 = jnp.ones((1, planes), jnp.float32), jnp.zeros((1, planes), jnp.float32)
    g3, b3 = jnp.ones((1, cout), jnp.float32), jnp.zeros((1, cout), jnp.float32)

    has_proj = (in_planes != cout)  # stride == 1 case
    params = [w1, g1, b1, w2, g2, b2, w3, g3, b3]
    if has_proj:
        ws = s * jax.random.normal(ks[3], (in_planes, cout), jnp.float32)
        gs, bs = jnp.ones((1, cout), jnp.float32), jnp.zeros((1, cout), jnp.float32)
        params += [ws, gs, bs]
    return tuple(params), has_proj


def bottleneck_reference_nhwc(x, params, *, has_proj, matmul_dtype=jnp.float32):
    """Pure-jnp reference (train-mode BN).  matmul_dtype=bfloat16 emulates the
    kernel's MXU precision for a tight structural check."""
    w1, g1, b1, w2, g2, b2, w3, g3, b3 = params[:9]
    N, H, W, Cin = x.shape
    P, Cout = w1.shape[1], w3.shape[1]
    md = matmul_dtype

    def bn(y, g, b):
        m = jnp.mean(y, axis=0, keepdims=True)
        v = jnp.mean((y - m) ** 2, axis=0, keepdims=True)
        return (y - m) * jax.lax.rsqrt(v + EPS) * g + b

    def mm(a, w):
        return jnp.dot(a.astype(md), w.astype(md),
                       preferred_element_type=jnp.float32)

    x2 = x.reshape(-1, Cin).astype(jnp.float32)
    h1 = jnp.maximum(bn(mm(x2, w1), g1, b1), 0.0).reshape(N, H, W, P)
    hp = jnp.pad(h1, ((0, 0), (1, 1), (1, 1), (0, 0)))
    y2 = jnp.zeros((N, H, W, P), jnp.float32)
    for kh in range(3):
        for kw in range(3):
            y2 = y2 + jnp.einsum(
                "nhwc,cd->nhwd",
                hp[:, kh:kh + H, kw:kw + W, :].astype(md),
                w2[kh, kw].astype(md),
                preferred_element_type=jnp.float32)
    h2 = jnp.maximum(bn(y2.reshape(-1, P), g2, b2), 0.0)
    y3 = bn(mm(h2, w3), g3, b3)
    if has_proj:
        ws, gs, bs = params[9:12]
        sc = bn(mm(x2, ws), gs, bs)
    else:
        sc = x2
    return jnp.maximum(y3 + sc, 0.0).reshape(N, H, W, Cout)


if __name__ == "__main__":
    key = jax.random.PRNGKey(0)
    kx_a, kp_a, kx_b, kp_b = jax.random.split(key, 4)

    fwd = jax.jit(bottleneck_forward, static_argnames=("has_proj", "stride"))

    # ---- Config A: projection shortcut (in_planes != expansion*planes) -----
    N, Cin, H, W = 2, 4, 16, 16
    planes = 4
    x = jax.random.normal(kx_a, (N, Cin, H, W), jnp.float32)
    params, has_proj = init_params(kp_a, Cin, planes)

    out = jax.block_until_ready(fwd(x, params, has_proj=has_proj))
    assert out.shape == (N, EXPANSION * planes, H, W), out.shape
    assert bool(jnp.all(jnp.isfinite(out)))
    assert bool(jnp.all(out >= 0.0))  # final ReLU

    x_nhwc = jnp.transpose(x, (0, 2, 3, 1))
    ref_bf16 = jnp.transpose(
        bottleneck_reference_nhwc(x_nhwc, params, has_proj=has_proj,
                                  matmul_dtype=jnp.bfloat16), (0, 3, 1, 2))
    ref_f32 = jnp.transpose(
        bottleneck_reference_nhwc(x_nhwc, params, has_proj=has_proj),
        (0, 3, 1, 2))
    err_bf16 = float(jnp.max(jnp.abs(out - ref_bf16)))
    mean_bf16 = float(jnp.mean(jnp.abs(out - ref_bf16)))
    err_f32 = float(jnp.max(jnp.abs(out - ref_f32)))
    # bf16 matmuls + bf16 inter-stage activations => slightly looser bounds.
    assert err_bf16 < 2e-1, err_bf16   # structural check vs bf16-matmul ref
    assert mean_bf16 < 2e-2, mean_bf16
    assert err_f32 < 5e-1, err_f32     # loose fp32-semantics sanity check

    # ---- Config B: identity shortcut (in_planes == expansion*planes) -------
    Cin_b = EXPANSION * planes
    x_b = jax.random.normal(kx_b, (N, Cin_b, H, W), jnp.float32)
    params_b, has_proj_b = init_params(kp_b, Cin_b, planes)
    out_b = jax.block_until_ready(fwd(x_b, params_b, has_proj=has_proj_b))
    assert out_b.shape == (N, EXPANSION * planes, H, W)
    assert bool(jnp.all(out_b >= 0.0))
    ref_b = jnp.transpose(
        bottleneck_reference_nhwc(jnp.transpose(x_b, (0, 2, 3, 1)), params_b,
                                  has_proj=has_proj_b,
                                  matmul_dtype=jnp.bfloat16), (0, 3, 1, 2))
    err_b = float(jnp.max(jnp.abs(out_b - ref_b)))
    mean_b = float(jnp.mean(jnp.abs(out_b - ref_b)))
    assert err_b < 2e-1, err_b
    assert mean_b < 2e-2, mean_b

    print("KERNEL_OK")
</pallas_src>

<mosaic_0001>
module attributes {stable_mosaic.version = 11 : i64} {
  func.func @_stage1_kernel(%arg0: i32, %arg1: memref<512x128xbf16, #tpu.memory_space<vmem>>, %arg2: memref<128x256xbf16, #tpu.memory_space<vmem>>, %arg3: memref<512x128xbf16, #tpu.memory_space<vmem>>, %arg4: memref<512x128xbf16, #tpu.memory_space<vmem>>, %arg5: memref<1x1x256xf32, #tpu.memory_space<vmem>>, %arg6: memref<1x1x256xf32, #tpu.memory_space<vmem>>) attributes {dimension_semantics = [#tpu.dimension_semantics<parallel>], iteration_bounds = array<i64: 1>, scalar_prefetch = 0 : i64, scratch_operands = 0 : i64, tpu.core_type = #tpu.core_type<tc>, window_params = [{transform_indices = @transform_0, window_bounds = array<i64: 512, 128>}, {pipeline_mode = #tpu.pipeline_mode<synchronous>, transform_indices = @transform_1, window_bounds = array<i64: 128, 256>}, {transform_indices = @transform_2, window_bounds = array<i64: 512, 128>}, {transform_indices = @transform_3, window_bounds = array<i64: 512, 128>}, {transform_indices = @transform_4, window_bounds = array<i64: 1, 1, 256>}, {transform_indices = @transform_5, window_bounds = array<i64: 1, 1, 256>}]} {
    %c0 = arith.constant 0 : index
    %c0_0 = arith.constant 0 : index
    %0 = vector.load %arg1[%c0, %c0_0] : memref<512x128xbf16, #tpu.memory_space<vmem>>, vector<512x128xbf16>
    %c0_1 = arith.constant 0 : index
    %c0_2 = arith.constant 0 : index
    %1 = vector.load %arg2[%c0_1, %c0_2] : memref<128x256xbf16, #tpu.memory_space<vmem>>, vector<128x256xbf16>
    %cst = arith.constant dense<0.000000e+00> : vector<512x256xf32>
    %2 = tpu.matmul %0, %1, %cst {dimension_numbers = #tpu.dot_dimension_numbers<[1], [0], [0], [1], [0, 0, 1, 1], [], []>} : vector<512x128xbf16>, vector<128x256xbf16>, vector<512x256xf32> -> vector<512x256xf32>
    %cst_3 = arith.constant dense<0.000000e+00> : vector<256xf32>
    %3 = vector.multi_reduction <add>, %2, %cst_3 [0] : vector<512x256xf32> to vector<256xf32>
    %4 = vector.shape_cast %3 : vector<256xf32> to vector<1x256xf32>
    %c0_4 = arith.constant 0 : index
    %c0_5 = arith.constant 0 : index
    %c0_6 = arith.constant 0 : index
    %5 = vector.load %arg5[%c0_4, %c0_5, %c0_6] : memref<1x1x256xf32, #tpu.memory_space<vmem>>, vector<1x1x256xf32>
    %6 = vector.shape_cast %5 : vector<1x1x256xf32> to vector<1x256xf32>
    %7 = vector.shape_cast %4 : vector<1x256xf32> to vector<1x1x256xf32>
    tpu.vector_store %arg5[%c0_4, %c0_5, %c0_6], %7 {strides = array<i32>} : memref<1x1x256xf32, #tpu.memory_space<vmem>>, vector<1x1x256xf32>,
    %8 = arith.mulf %2, %2 : vector<512x256xf32>
    %cst_7 = arith.constant dense<0.000000e+00> : vector<256xf32>
    %9 = vector.multi_reduction <add>, %8, %cst_7 [0] : vector<512x256xf32> to vector<256xf32>
    %10 = vector.shape_cast %9 : vector<256xf32> to vector<1x256xf32>
    %c0_8 = arith.constant 0 : index
    %c0_9 = arith.constant 0 : index
    %c0_10 = arith.constant 0 : index
    %11 = vector.load %arg6[%c0_8, %c0_9, %c0_10] : memref<1x1x256xf32, #tpu.memory_space<vmem>>, vector<1x1x256xf32>
    %12 = vector.shape_cast %11 : vector<1x1x256xf32> to vector<1x256xf32>
    %13 = vector.shape_cast %10 : vector<1x256xf32> to vector<1x1x256xf32>
    tpu.vector_store %arg6[%c0_8, %c0_9, %c0_10], %13 {strides = array<i32>} : memref<1x1x256xf32, #tpu.memory_space<vmem>>, vector<1x1x256xf32>,
    %14 = vector.extract_strided_slice %2 {offsets = [0, 0], sizes = [512, 128], strides = [1, 1]} : vector<512x256xf32> to vector<512x128xf32>
    %15 = arith.truncf %14 : vector<512x128xf32> to vector<512x128xbf16>
    %c0_11 = arith.constant 0 : index
    %c0_12 = arith.constant 0 : index
    %16 = vector.load %arg3[%c0_11, %c0_12] : memref<512x128xbf16, #tpu.memory_space<vmem>>, vector<512x128xbf16>
    tpu.vector_store %arg3[%c0_11, %c0_12], %15 {strides = array<i32>} : memref<512x128xbf16, #tpu.memory_space<vmem>>, vector<512x128xbf16>,
    %17 = vector.extract_strided_slice %2 {offsets = [0, 128], sizes = [512, 128], strides = [1, 1]} : vector<512x256xf32> to vector<512x128xf32>
    %18 = arith.truncf %17 : vector<512x128xf32> to vector<512x128xbf16>
    %c0_13 = arith.constant 0 : index
    %c0_14 = arith.constant 0 : index
    %19 = vector.load %arg4[%c0_13, %c0_14] : memref<512x128xbf16, #tpu.memory_space<vmem>>, vector<512x128xbf16>
    tpu.vector_store %arg4[%c0_13, %c0_14], %18 {strides = array<i32>} : memref<512x128xbf16, #tpu.memory_space<vmem>>, vector<512x128xbf16>,
    return
  }
  func.func @transform_0(%arg0: i32) -> (i32, i32) {
    %c0_i32 = arith.constant 0 : i32
    %c0_i32_0 = arith.constant 0 : i32
    return %arg0, %c0_i32 : i32, i32
  }
  func.func @transform_1(%arg0: i32) -> (i32, i32) {
    %c0_i32 = arith.constant 0 : i32
    %c0_i32_0 = arith.constant 0 : i32
    %c0_i32_1 = arith.constant 0 : i32
    return %c0_i32, %c0_i32_0 : i32, i32
  }
  func.func @transform_2(%arg0: i32) -> (i32, i32) {
    %c0_i32 = arith.constant 0 : i32
    %c0_i32_0 = arith.constant 0 : i32
    return %arg0, %c0_i32 : i32, i32
  }
  func.func @transform_3(%arg0: i32) -> (i32, i32) {
    %c0_i32 = arith.constant 0 : i32
    %c0_i32_0 = arith.constant 0 : i32
    return %arg0, %c0_i32 : i32, i32
  }
  func.func @transform_4(%arg0: i32) -> (i32, i32, i32) {
    %c0_i32 = arith.constant 0 : i32
    %c0_i32_0 = arith.constant 0 : i32
    %c0_i32_1 = arith.constant 0 : i32
    return %arg0, %c0_i32, %c0_i32_0 : i32, i32, i32
  }
  func.func @transform_5(%arg0: i32) -> (i32, i32, i32) {
    %c0_i32 = arith.constant 0 : i32
    %c0_i32_0 = arith.constant 0 : i32
    %c0_i32_1 = arith.constant 0 : i32
    return %arg0, %c0_i32, %c0_i32_0 : i32, i32, i32
  }
}

module attributes {stable_mosaic.version = 11 : i64} {
  func.func @_stage2_kernel(%arg0: i32, %arg1: memref<1x16x16x128xbf16, #tpu.memory_space<vmem>>, %arg2: memref<1x128xf32, #tpu.memory_space<vmem>>, %arg3: memref<1x128xf32, #tpu.memory_space<vmem>>, %arg4: memref<3x384x128xbf16, #tpu.memory_space<vmem>>, %arg5: memref<1x16x16x128xbf16, #tpu.memory_space<vmem>>, %arg6: memref<1x1x128xf32, #tpu.memory_space<vmem>>, %arg7: memref<1x1x128xf32, #tpu.memory_space<vmem>>, %arg8: memref<18x16x384xbf16, #tpu.memory_space<vmem>>) attributes {dimension_semantics = [#tpu.dimension_semantics<parallel>], iteration_bounds = array<i64: 2>, scalar_prefetch = 0 : i64, scratch_operands = 1 : i64, tpu.core_type = #tpu.core_type<tc>, window_params = [{transform_indices = @transform_0, window_bounds = array<i64: 1, 16, 16, 128>}, {pipeline_mode = #tpu.pipeline_mode<synchronous>, transform_indices = @transform_1, window_bounds = array<i64: 1, 128>}, {pipeline_mode = #tpu.pipeline_mode<synchronous>, transform_indices = @transform_2, window_bounds = array<i64: 1, 128>}, {pipeline_mode = #tpu.pipeline_mode<synchronous>, transform_indices = @transform_3, window_bounds = array<i64: 3, 384, 128>}, {transform_indices = @transform_4, window_bounds = array<i64: 1, 16, 16, 128>}, {transform_indices = @transform_5, window_bounds = array<i64: 1, 1, 128>}, {transform_indices = @transform_6, window_bounds = array<i64: 1, 1, 128>}]} {
    %c0 = arith.constant 0 : index
    %c0_0 = arith.constant 0 : index
    %0 = vector.load %arg2[%c0, %c0_0] : memref<1x128xf32, #tpu.memory_space<vmem>>, vector<1x128xf32>
    %1 = vector.shape_cast %0 : vector<1x128xf32> to vector<1x1x128xf32>
    %c0_1 = arith.constant 0 : index
    %c0_2 = arith.constant 0 : index
    %2 = vector.load %arg3[%c0_1, %c0_2] : memref<1x128xf32, #tpu.memory_space<vmem>>, vector<1x128xf32>
    %3 = vector.shape_cast %2 : vector<1x128xf32> to vector<1x1x128xf32>
    %c0_3 = arith.constant 0 : index
    %c0_4 = arith.constant 0 : index
    %c0_5 = arith.constant 0 : index
    %c0_6 = arith.constant 0 : index
    %4 = vector.load %arg1[%c0_3, %c0_4, %c0_5, %c0_6] : memref<1x16x16x128xbf16, #tpu.memory_space<vmem>>, vector<1x16x16x128xbf16>
    %5 = vector.shape_cast %4 : vector<1x16x16x128xbf16> to vector<16x16x128xbf16>
    %6 = arith.extf %5 : vector<16x16x128xbf16> to vector<16x16x128xf32>
    %7 = vector.broadcast %1 : vector<1x1x128xf32> to vector<16x16x128xf32>
    %8 = arith.mulf %6, %7 : vector<16x16x128xf32>
    %9 = vector.broadcast %3 : vector<1x1x128xf32> to vector<16x16x128xf32>
    %10 = arith.addf %8, %9 : vector<16x16x128xf32>
    %cst = arith.constant 0.000000e+00 : f32
    %11 = vector.broadcast %cst : f32 to vector<16x16x128xf32>
    %12 = arith.maximumf %10, %11 : vector<16x16x128xf32>
    %13 = arith.truncf %12 : vector<16x16x128xf32> to vector<16x16x128xbf16>
    %cst_7 = arith.constant 0.000000e+00 : bf16
    %14 = vector.broadcast %cst_7 : bf16 to vector<1x16x384xbf16>
    %cst_8 = arith.constant 0.000000e+00 : bf16
    %15 = vector.broadcast %cst_8 : bf16 to vector<16x1x128xbf16>
    %c0_9 = arith.constant 0 : index
    %c0_10 = arith.constant 0 : index
    %c0_11 = arith.constant 0 : index
    %16 = vector.load %arg8[%c0_9, %c0_10, %c0_11] : memref<18x16x384xbf16, #tpu.memory_space<vmem>>, vector<1x16x384xbf16>
    tpu.vector_store %arg8[%c0_9, %c0_10, %c0_11], %14 {strides = array<i32>} : memref<18x16x384xbf16, #tpu.memory_space<vmem>>, vector<1x16x384xbf16>,
    %c17 = arith.constant 17 : index
    %c0_12 = arith.constant 0 : index
    %c0_13 = arith.constant 0 : index
    %17 = vector.load %arg8[%c17, %c0_12, %c0_13] : memref<18x16x384xbf16, #tpu.memory_space<vmem>>, vector<1x16x384xbf16>
    tpu.vector_store %arg8[%c17, %c0_12, %c0_13], %14 {strides = array<i32>} : memref<18x16x384xbf16, #tpu.memory_space<vmem>>, vector<1x16x384xbf16>,
    %18 = vector.extract_strided_slice %13 {offsets = [0, 0, 0], sizes = [16, 15, 128], strides = [1, 1, 1]} : vector<16x16x128xbf16> to vector<16x15x128xbf16>
    %19 = tpu.concatenate %15, %18 in 1 : vector<16x1x128xbf16>, vector<16x15x128xbf16> -> vector<16x16x128xbf16>
    %c1 = arith.constant 1 : index
    %c0_14 = arith.constant 0 : index
    %c0_15 = arith.constant 0 : index
    %20 = vector.load %arg8[%c1, %c0_14, %c0_15] : memref<18x16x384xbf16, #tpu.memory_space<vmem>>, vector<16x16x128xbf16>
    tpu.vector_store %arg8[%c1, %c0_14, %c0_15], %19 {strides = array<i32>} : memref<18x16x384xbf16, #tpu.memory_space<vmem>>, vector<16x16x128xbf16>,
    %c1_16 = arith.constant 1 : index
    %c0_17 = arith.constant 0 : index
    %c128 = arith.constant 128 : index
    %21 = vector.load %arg8[%c1_16, %c0_17, %c128] : memref<18x16x384xbf16, #tpu.memory_space<vmem>>, vector<16x16x128xbf16>
    tpu.vector_store %arg8[%c1_16, %c0_17, %c128], %13 {strides = array<i32>} : memref<18x16x384xbf16, #tpu.memory_space<vmem>>, vector<16x16x128xbf16>,
    %22 = vector.extract_strided_slice %13 {offsets = [0, 1, 0], sizes = [16, 15, 128], strides = [1, 1, 1]} : vector<16x16x128xbf16> to vector<16x15x128xbf16>
    %23 = tpu.concatenate %22, %15 in 1 : vector<16x15x128xbf16>, vector<16x1x128xbf16> -> vector<16x16x128xbf16>
    %c1_18 = arith.constant 1 : index
    %c0_19 = arith.constant 0 : index
    %c256 = arith.constant 256 : index
    %24 = vector.load %arg8[%c1_18, %c0_19, %c256] : memref<18x16x384xbf16, #tpu.memory_space<vmem>>, vector<16x16x128xbf16>
    tpu.vector_store %arg8[%c1_18, %c0_19, %c256], %23 {strides = array<i32>} : memref<18x16x384xbf16, #tpu.memory_space<vmem>>, vector<16x16x128xbf16>,
    %c0_20 = arith.constant 0 : index
    %c0_21 = arith.constant 0 : index
    %c0_22 = arith.constant 0 : index
    %25 = vector.load %arg8[%c0_20, %c0_21, %c0_22] : memref<18x16x384xbf16, #tpu.memory_space<vmem>>, vector<16x16x384xbf16>
    %26 = vector.shape_cast %25 : vector<16x16x384xbf16> to vector<256x384xbf16>
    %c0_23 = arith.constant 0 : index
    %c0_24 = arith.constant 0 : index
    %c0_25 = arith.constant 0 : index
    %27 = vector.load %arg4[%c0_23, %c0_24, %c0_25] : memref<3x384x128xbf16, #tpu.memory_space<vmem>>, vector<1x384x128xbf16>
    %28 = vector.shape_cast %27 : vector<1x384x128xbf16> to vector<384x128xbf16>
    %cst_26 = arith.constant dense<0.000000e+00> : vector<256x128xf32>
    %29 = tpu.matmul %26, %28, %cst_26 {dimension_numbers = #tpu.dot_dimension_numbers<[1], [0], [0], [1], [0, 0, 1, 1], [], []>} : vector<256x384xbf16>, vector<384x128xbf16>, vector<256x128xf32> -> vector<256x128xf32>
    %c1_27 = arith.constant 1 : index
    %c0_28 = arith.constant 0 : index
    %c0_29 = arith.constant 0 : index
    %30 = vector.load %arg8[%c1_27, %c0_28, %c0_29] : memref<18x16x384xbf16, #tpu.memory_space<vmem>>, vector<16x16x384xbf16>
    %31 = vector.shape_cast %30 : vector<16x16x384xbf16> to vector<256x384xbf16>
    %c1_30 = arith.constant 1 : index
    %c0_31 = arith.constant 0 : index
    %c0_32 = arith.constant 0 : index
    %32 = vector.load %arg4[%c1_30, %c0_31, %c0_32] : memref<3x384x128xbf16, #tpu.memory_space<vmem>>, vector<1x384x128xbf16>
    %33 = vector.shape_cast %32 : vector<1x384x128xbf16> to vector<384x128xbf16>
    %cst_33 = arith.constant dense<0.000000e+00> : vector<256x128xf32>
    %34 = tpu.matmul %31, %33, %cst_33 {dimension_numbers = #tpu.dot_dimension_numbers<[1], [0], [0], [1], [0, 0, 1, 1], [], []>} : vector<256x384xbf16>, vector<384x128xbf16>, vector<256x128xf32> -> vector<256x128xf32>
    %35 = arith.addf %29, %34 : vector<256x128xf32>
    %c2 = arith.constant 2 : index
    %c0_34 = arith.constant 0 : index
    %c0_35 = arith.constant 0 : index
    %36 = vector.load %arg8[%c2, %c0_34, %c0_35] : memref<18x16x384xbf16, #tpu.memory_space<vmem>>, vector<16x16x384xbf16>
    %37 = vector.shape_cast %36 : vector<16x16x384xbf16> to vector<256x384xbf16>
    %c2_36 = arith.constant 2 : index
    %c0_37 = arith.constant 0 : index
    %c0_38 = arith.constant 0 : index
    %38 = vector.load %arg4[%c2_36, %c0_37, %c0_38] : memref<3x384x128xbf16, #tpu.memory_space<vmem>>, vector<1x384x128xbf16>
    %39 = vector.shape_cast %38 : vector<1x384x128xbf16> to vector<384x128xbf16>
    %cst_39 = arith.constant dense<0.000000e+00> : vector<256x128xf32>
    %40 = tpu.matmul %37, %39, %cst_39 {dimension_numbers = #tpu.dot_dimension_numbers<[1], [0], [0], [1], [0, 0, 1, 1], [], []>} : vector<256x384xbf16>, vector<384x128xbf16>, vector<256x128xf32> -> vector<256x128xf32>
    %41 = arith.addf %35, %40 : vector<256x128xf32>
    %42 = vector.shape_cast %41 : vector<256x128xf32> to vector<16x16x128xf32>
    %43 = arith.truncf %42 : vector<16x16x128xf32> to vector<16x16x128xbf16>
    %c0_40 = arith.constant 0 : index
    %c0_41 = arith.constant 0 : index
    %c0_42 = arith.constant 0 : index
    %c0_43 = arith.constant 0 : index
    %44 = vector.load %arg5[%c0_40, %c0_41, %c0_42, %c0_43] : memref<1x16x16x128xbf16, #tpu.memory_space<vmem>>, vector<1x16x16x128xbf16>
    %45 = vector.shape_cast %44 : vector<1x16x16x128xbf16> to vector<16x16x128xbf16>
    %46 = vector.shape_cast %43 : vector<16x16x128xbf16> to vector<1x16x16x128xbf16>
    tpu.vector_store %arg5[%c0_40, %c0_41, %c0_42, %c0_43], %46 {strides = array<i32>} : memref<1x16x16x128xbf16, #tpu.memory_space<vmem>>, vector<1x16x16x128xbf16>,
    %cst_44 = arith.constant dense<0.000000e+00> : vector<128xf32>
    %47 = vector.multi_reduction <add>, %41, %cst_44 [0] : vector<256x128xf32> to vector<128xf32>
    %48 = vector.shape_cast %47 : vector<128xf32> to vector<1x128xf32>
    %c0_45 = arith.constant 0 : index
    %c0_46 = arith.constant 0 : index
    %c0_47 = arith.constant 0 : index
    %49 = vector.load %arg6[%c0_45, %c0_46, %c0_47] : memref<1x1x128xf32, #tpu.memory_space<vmem>>, vector<1x1x128xf32>
    %50 = vector.shape_cast %49 : vector<1x1x128xf32> to vector<1x128xf32>
    %51 = vector.shape_cast %48 : vector<1x128xf32> to vector<1x1x128xf32>
    tpu.vector_store %arg6[%c0_45, %c0_46, %c0_47], %51 {strides = array<i32>} : memref<1x1x128xf32, #tpu.memory_space<vmem>>, vector<1x1x128xf32>,
    %52 = arith.mulf %41, %41 : vector<256x128xf32>
    %cst_48 = arith.constant dense<0.000000e+00> : vector<128xf32>
    %53 = vector.multi_reduction <add>, %52, %cst_48 [0] : vector<256x128xf32> to vector<128xf32>
    %54 = vector.shape_cast %53 : vector<128xf32> to vector<1x128xf32>
    %c0_49 = arith.constant 0 : index
    %c0_50 = arith.constant 0 : index
    %c0_51 = arith.constant 0 : index
    %55 = vector.load %arg7[%c0_49, %c0_50, %c0_51] : memref<1x1x128xf32, #tpu.memory_space<vmem>>, vector<1x1x128xf32>
    %56 = vector.shape_cast %55 : vector<1x1x128xf32> to vector<1x128xf32>
    %57 = vector.shape_cast %54 : vector<1x128xf32> to vector<1x1x128xf32>
    tpu.vector_store %arg7[%c0_49, %c0_50, %c0_51], %57 {strides = array<i32>} : memref<1x1x128xf32, #tpu.memory_space<vmem>>, vector<1x1x128xf32>,
    return
  }
  func.func @transform_0(%arg0: i32) -> (i32, i32, i32, i32) {
    %c0_i32 = arith.constant 0 : i32
    %c0_i32_0 = arith.constant 0 : i32
    %c0_i32_1 = arith.constant 0 : i32
    %c0_i32_2 = arith.constant 0 : i32
    return %arg0, %c0_i32, %c0_i32_0, %c0_i32_1 : i32, i32, i32, i32
  }
  func.func @transform_1(%arg0: i32) -> (i32, i32) {
    %c0_i32 = arith.constant 0 : i32
    %c0_i32_0 = arith.constant 0 : i32
    %c0_i32_1 = arith.constant 0 : i32
    return %c0_i32, %c0_i32_0 : i32, i32
  }
  func.func @transform_2(%arg0: i32) -> (i32, i32) {
    %c0_i32 = arith.constant 0 : i32
    %c0_i32_0 = arith.constant 0 : i32
    %c0_i32_1 = arith.constant 0 : i32
    return %c0_i32, %c0_i32_0 : i32, i32
  }
  func.func @transform_3(%arg0: i32) -> (i32, i32, i32) {
    %c0_i32 = arith.constant 0 : i32
    %c0_i32_0 = arith.constant 0 : i32
    %c0_i32_1 = arith.constant 0 : i32
    %c0_i32_2 = arith.constant 0 : i32
    return %c0_i32, %c0_i32_0, %c0_i32_1 : i32, i32, i32
  }
  func.func @transform_4(%arg0: i32) -> (i32, i32, i32, i32) {
    %c0_i32 = arith.constant 0 : i32
    %c0_i32_0 = arith.constant 0 : i32
    %c0_i32_1 = arith.constant 0 : i32
    %c0_i32_2 = arith.constant 0 : i32
    return %arg0, %c0_i32, %c0_i32_0, %c0_i32_1 : i32, i32, i32, i32
  }
  func.func @transform_5(%arg0: i32) -> (i32, i32, i32) {
    %c0_i32 = arith.constant 0 : i32
    %c0_i32_0 = arith.constant 0 : i32
    %c0_i32_1 = arith.constant 0 : i32
    return %arg0, %c0_i32, %c0_i32_0 : i32, i32, i32
  }
  func.func @transform_6(%arg0: i32) -> (i32, i32, i32) {
    %c0_i32 = arith.constant 0 : i32
    %c0_i32_0 = arith.constant 0 : i32
    %c0_i32_1 = arith.constant 0 : i32
    return %arg0, %c0_i32, %c0_i32_0 : i32, i32, i32
  }
}

module attributes {stable_mosaic.version = 11 : i64} {
  func.func @_stage3_kernel(%arg0: i32, %arg1: memref<512x128xbf16, #tpu.memory_space<vmem>>, %arg2: memref<1x128xf32, #tpu.memory_space<vmem>>, %arg3: memref<1x128xf32, #tpu.memory_space<vmem>>, %arg4: memref<128x128xbf16, #tpu.memory_space<vmem>>, %arg5: memref<512x128xbf16, #tpu.memory_space<vmem>>, %arg6: memref<1x1x128xf32, #tpu.memory_space<vmem>>, %arg7: memref<1x1x128xf32, #tpu.memory_space<vmem>>) attributes {dimension_semantics = [#tpu.dimension_semantics<parallel>], iteration_bounds = array<i64: 1>, scalar_prefetch = 0 : i64, scratch_operands = 0 : i64, tpu.core_type = #tpu.core_type<tc>, window_params = [{transform_indices = @transform_0, window_bounds = array<i64: 512, 128>}, {pipeline_mode = #tpu.pipeline_mode<synchronous>, transform_indices = @transform_1, window_bounds = array<i64: 1, 128>}, {pipeline_mode = #tpu.pipeline_mode<synchronous>, transform_indices = @transform_2, window_bounds = array<i64: 1, 128>}, {pipeline_mode = #tpu.pipeline_mode<synchronous>, transform_indices = @transform_3, window_bounds = array<i64: 128, 128>}, {transform_indices = @transform_4, window_bounds = array<i64: 512, 128>}, {transform_indices = @transform_5, window_bounds = array<i64: 1, 1, 128>}, {transform_indices = @transform_6, window_bounds = array<i64: 1, 1, 128>}]} {
    %c0 = arith.constant 0 : index
    %c0_0 = arith.constant 0 : index
    %0 = vector.load %arg1[%c0, %c0_0] : memref<512x128xbf16, #tpu.memory_space<vmem>>, vector<512x128xbf16>
    %1 = arith.extf %0 : vector<512x128xbf16> to vector<512x128xf32>
    %c0_1 = arith.constant 0 : index
    %c0_2 = arith.constant 0 : index
    %2 = vector.load %arg2[%c0_1, %c0_2] : memref<1x128xf32, #tpu.memory_space<vmem>>, vector<1x128xf32>
    %3 = vector.broadcast %2 : vector<1x128xf32> to vector<512x128xf32>
    %4 = arith.mulf %1, %3 : vector<512x128xf32>
    %c0_3 = arith.constant 0 : index
    %c0_4 = arith.constant 0 : index
    %5 = vector.load %arg3[%c0_3, %c0_4] : memref<1x128xf32, #tpu.memory_space<vmem>>, vector<1x128xf32>
    %6 = vector.broadcast %5 : vector<1x128xf32> to vector<512x128xf32>
    %7 = arith.addf %4, %6 : vector<512x128xf32>
    %cst = arith.constant 0.000000e+00 : f32
    %8 = vector.broadcast %cst : f32 to vector<512x128xf32>
    %9 = arith.maximumf %7, %8 : vector<512x128xf32>
    %10 = arith.truncf %9 : vector<512x128xf32> to vector<512x128xbf16>
    %c0_5 = arith.constant 0 : index
    %c0_6 = arith.constant 0 : index
    %11 = vector.load %arg4[%c0_5, %c0_6] : memref<128x128xbf16, #tpu.memory_space<vmem>>, vector<128x128xbf16>
    %cst_7 = arith.constant dense<0.000000e+00> : vector<512x128xf32>
    %12 = tpu.matmul %10, %11, %cst_7 {dimension_numbers = #tpu.dot_dimension_numbers<[1], [0], [0], [1], [0, 0, 1, 1], [], []>} : vector<512x128xbf16>, vector<128x128xbf16>, vector<512x128xf32> -> vector<512x128xf32>
    %13 = arith.truncf %12 : vector<512x128xf32> to vector<512x128xbf16>
    %c0_8 = arith.constant 0 : index
    %c0_9 = arith.constant 0 : index
    %14 = vector.load %arg5[%c0_8, %c0_9] : memref<512x128xbf16, #tpu.memory_space<vmem>>, vector<512x128xbf16>
    tpu.vector_store %arg5[%c0_8, %c0_9], %13 {strides = array<i32>} : memref<512x128xbf16, #tpu.memory_space<vmem>>, vector<512x128xbf16>,
    %cst_10 = arith.constant dense<0.000000e+00> : vector<128xf32>
    %15 = vector.multi_reduction <add>, %12, %cst_10 [0] : vector<512x128xf32> to vector<128xf32>
    %16 = vector.shape_cast %15 : vector<128xf32> to vector<1x128xf32>
    %c0_11 = arith.constant 0 : index
    %c0_12 = arith.constant 0 : index
    %c0_13 = arith.constant 0 : index
    %17 = vector.load %arg6[%c0_11, %c0_12, %c0_13] : memref<1x1x128xf32, #tpu.memory_space<vmem>>, vector<1x1x128xf32>
    %18 = vector.shape_cast %17 : vector<1x1x128xf32> to vector<1x128xf32>
    %19 = vector.shape_cast %16 : vector<1x128xf32> to vector<1x1x128xf32>
    tpu.vector_store %arg6[%c0_11, %c0_12, %c0_13], %19 {strides = array<i32>} : memref<1x1x128xf32, #tpu.memory_space<vmem>>, vector<1x1x128xf32>,
    %20 = arith.mulf %12, %12 : vector<512x128xf32>
    %cst_14 = arith.constant dense<0.000000e+00> : vector<128xf32>
    %21 = vector.multi_reduction <add>, %20, %cst_14 [0] : vector<512x128xf32> to vector<128xf32>
    %22 = vector.shape_cast %21 : vector<128xf32> to vector<1x128xf32>
    %c0_15 = arith.constant 0 : index
    %c0_16 = arith.constant 0 : index
    %c0_17 = arith.constant 0 : index
    %23 = vector.load %arg7[%c0_15, %c0_16, %c0_17] : memref<1x1x128xf32, #tpu.memory_space<vmem>>, vector<1x1x128xf32>
    %24 = vector.shape_cast %23 : vector<1x1x128xf32> to vector<1x128xf32>
    %25 = vector.shape_cast %22 : vector<1x128xf32> to vector<1x1x128xf32>
    tpu.vector_store %arg7[%c0_15, %c0_16, %c0_17], %25 {strides = array<i32>} : memref<1x1x128xf32, #tpu.memory_space<vmem>>, vector<1x1x128xf32>,
    return
  }
  func.func @transform_0(%arg0: i32) -> (i32, i32) {
    %c0_i32 = arith.constant 0 : i32
    %c0_i32_0 = arith.constant 0 : i32
    return %arg0, %c0_i32 : i32, i32
  }
  func.func @transform_1(%arg0: i32) -> (i32, i32) {
    %c0_i32 = arith.constant 0 : i32
    %c0_i32_0 = arith.constant 0 : i32
    %c0_i32_1 = arith.constant 0 : i32
    return %c0_i32, %c0_i32_0 : i32, i32
  }
  func.func @transform_2(%arg0: i32) -> (i32, i32) {
    %c0_i32 = arith.constant 0 : i32
    %c0_i32_0 = arith.constant 0 : i32
    %c0_i32_1 = arith.constant 0 : i32
    return %c0_i32, %c0_i32_0 : i32, i32
  }
  func.func @transform_3(%arg0: i32) -> (i32, i32) {
    %c0_i32 = arith.constant 0 : i32
    %c0_i32_0 = arith.constant 0 : i32
    %c0_i32_1 = arith.constant 0 : i32
    return %c0_i32, %c0_i32_0 : i32, i32
  }
  func.func @transform_4(%arg0: i32) -> (i32, i32) {
    %c0_i32 = arith.constant 0 : i32
    %c0_i32_0 = arith.constant 0 : i32
    return %arg0, %c0_i32 : i32, i32
  }
  func.func @transform_5(%arg0: i32) -> (i32, i32, i32) {
    %c0_i32 = arith.constant 0 : i32
    %c0_i32_0 = arith.constant 0 : i32
    %c0_i32_1 = arith.constant 0 : i32
    return %arg0, %c0_i32, %c0_i32_0 : i32, i32, i32
  }
  func.func @transform_6(%arg0: i32) -> (i32, i32, i32) {
    %c0_i32 = arith.constant 0 : i32
    %c0_i32_0 = arith.constant 0 : i32
    %c0_i32_1 = arith.constant 0 : i32
    return %arg0, %c0_i32, %c0_i32_0 : i32, i32, i32
  }
}

module attributes {stable_mosaic.version = 11 : i64} {
  func.func @_stage4_kernel(%arg0: i32, %arg1: memref<512x128xbf16, #tpu.memory_space<vmem>>, %arg2: memref<1x128xf32, #tpu.memory_space<vmem>>, %arg3: memref<1x128xf32, #tpu.memory_space<vmem>>, %arg4: memref<512x128xbf16, #tpu.memory_space<vmem>>, %arg5: memref<1x128xf32, #tpu.memory_space<vmem>>, %arg6: memref<1x128xf32, #tpu.memory_space<vmem>>, %arg7: memref<512x128xf32, #tpu.memory_space<vmem>>) attributes {dimension_semantics = [#tpu.dimension_semantics<parallel>], iteration_bounds = array<i64: 1>, scalar_prefetch = 0 : i64, scratch_operands = 0 : i64, tpu.core_type = #tpu.core_type<tc>, window_params = [{transform_indices = @transform_0, window_bounds = array<i64: 512, 128>}, {pipeline_mode = #tpu.pipeline_mode<synchronous>, transform_indices = @transform_1, window_bounds = array<i64: 1, 128>}, {pipeline_mode = #tpu.pipeline_mode<synchronous>, transform_indices = @transform_2, window_bounds = array<i64: 1, 128>}, {transform_indices = @transform_3, window_bounds = array<i64: 512, 128>}, {pipeline_mode = #tpu.pipeline_mode<synchronous>, transform_indices = @transform_4, window_bounds = array<i64: 1, 128>}, {pipeline_mode = #tpu.pipeline_mode<synchronous>, transform_indices = @transform_5, window_bounds = array<i64: 1, 128>}, {transform_indices = @transform_6, window_bounds = array<i64: 512, 128>}]} {
    %c0 = arith.constant 0 : index
    %c0_0 = arith.constant 0 : index
    %0 = vector.load %arg4[%c0, %c0_0] : memref<512x128xbf16, #tpu.memory_space<vmem>>, vector<512x128xbf16>
    %1 = arith.extf %0 : vector<512x128xbf16> to vector<512x128xf32>
    %c0_1 = arith.constant 0 : index
    %c0_2 = arith.constant 0 : index
    %2 = vector.load %arg5[%c0_1, %c0_2] : memref<1x128xf32, #tpu.memory_space<vmem>>, vector<1x128xf32>
    %3 = vector.broadcast %2 : vector<1x128xf32> to vector<512x128xf32>
    %4 = arith.mulf %1, %3 : vector<512x128xf32>
    %c0_3 = arith.constant 0 : index
    %c0_4 = arith.constant 0 : index
    %5 = vector.load %arg6[%c0_3, %c0_4] : memref<1x128xf32, #tpu.memory_space<vmem>>, vector<1x128xf32>
    %6 = vector.broadcast %5 : vector<1x128xf32> to vector<512x128xf32>
    %7 = arith.addf %4, %6 : vector<512x128xf32>
    %c0_5 = arith.constant 0 : index
    %c0_6 = arith.constant 0 : index
    %8 = vector.load %arg1[%c0_5, %c0_6] : memref<512x128xbf16, #tpu.memory_space<vmem>>, vector<512x128xbf16>
    %9 = arith.extf %8 : vector<512x128xbf16> to vector<512x128xf32>
    %c0_7 = arith.constant 0 : index
    %c0_8 = arith.constant 0 : index
    %10 = vector.load %arg2[%c0_7, %c0_8] : memref<1x128xf32, #tpu.memory_space<vmem>>, vector<1x128xf32>
    %11 = vector.broadcast %10 : vector<1x128xf32> to vector<512x128xf32>
    %12 = arith.mulf %9, %11 : vector<512x128xf32>
    %c0_9 = arith.constant 0 : index
    %c0_10 = arith.constant 0 : index
    %13 = vector.load %arg3[%c0_9, %c0_10] : memref<1x128xf32, #tpu.memory_space<vmem>>, vector<1x128xf32>
    %14 = vector.broadcast %13 : vector<1x128xf32> to vector<512x128xf32>
    %15 = arith.addf %12, %14 : vector<512x128xf32>
    %16 = arith.addf %15, %7 : vector<512x128xf32>
    %cst = arith.constant 0.000000e+00 : f32
    %17 = vector.broadcast %cst : f32 to vector<512x128xf32>
    %18 = arith.maximumf %16, %17 : vector<512x128xf32>
    %c0_11 = arith.constant 0 : index
    %c0_12 = arith.constant 0 : index
    %19 = vector.load %arg7[%c0_11, %c0_12] : memref<512x128xf32, #tpu.memory_space<vmem>>, vector<512x128xf32>
    tpu.vector_store %arg7[%c0_11, %c0_12], %18 {strides = array<i32>} : memref<512x128xf32, #tpu.memory_space<vmem>>, vector<512x128xf32>,
    return
  }
  func.func @transform_0(%arg0: i32) -> (i32, i32) {
    %c0_i32 = arith.constant 0 : i32
    %c0_i32_0 = arith.constant 0 : i32
    return %arg0, %c0_i32 : i32, i32
  }
  func.func @transform_1(%arg0: i32) -> (i32, i32) {
    %c0_i32 = arith.constant 0 : i32
    %c0_i32_0 = arith.constant 0 : i32
    %c0_i32_1 = arith.constant 0 : i32
    return %c0_i32, %c0_i32_0 : i32, i32
  }
  func.func @transform_2(%arg0: i32) -> (i32, i32) {
    %c0_i32 = arith.constant 0 : i32
    %c0_i32_0 = arith.constant 0 : i32
    %c0_i32_1 = arith.constant 0 : i32
    return %c0_i32, %c0_i32_0 : i32, i32
  }
  func.func @transform_3(%arg0: i32) -> (i32, i32) {
    %c0_i32 = arith.constant 0 : i32
    %c0_i32_0 = arith.constant 0 : i32
    return %arg0, %c0_i32 : i32, i32
  }
  func.func @transform_4(%arg0: i32) -> (i32, i32) {
    %c0_i32 = arith.constant 0 : i32
    %c0_i32_0 = arith.constant 0 : i32
    %c0_i32_1 = arith.constant 0 : i32
    return %c0_i32, %c0_i32_0 : i32, i32
  }
  func.func @transform_5(%arg0: i32) -> (i32, i32) {
    %c0_i32 = arith.constant 0 : i32
    %c0_i32_0 = arith.constant 0 : i32
    %c0_i32_1 = arith.constant 0 : i32
    return %c0_i32, %c0_i32_0 : i32, i32
  }
  func.func @transform_6(%arg0: i32) -> (i32, i32) {
    %c0_i32 = arith.constant 0 : i32
    %c0_i32_0 = arith.constant 0 : i32
    return %arg0, %c0_i32 : i32, i32
  }
}

</mosaic_0001>

<llo_original>
// kernel: bottleneck_forward.6
$region0: #{bottleneck_forward.6}
  #allocation0 [shape = 'u32[]', space=smem, size = 0x4, offset = 0x4, fixed_abs, tag = 'smem constant byte address 0x4 - core index']
  #allocation1 [shape = 'u32[144,128]{1,0:T(1,128)}', space=vmem, size = 0x12000, scoped, tag = 'internal scratch']
  %s0 = inlined_call_operand.vmem [shape: bf16[512,128], index: 0, kind: input, shape index: {}]
  %s1 = inlined_call_operand.vmem [shape: f32[1,128], index: 1, kind: input, shape index: {}]
  %s2 = inlined_call_operand.vmem [shape: f32[1,128], index: 2, kind: input, shape index: {}]
  %s3 = inlined_call_operand.vmem [shape: bf16[128,128], index: 3, kind: input, shape index: {}]
  %s4 = inlined_call_operand.vmem [shape: bf16[512,128], index: 4, kind: output, shape index: {0}]
  %s5 = inlined_call_operand.vmem [shape: f32[1,1,128], index: 5, kind: output, shape index: {1}]
  %s6 = inlined_call_operand.vmem [shape: f32[1,1,128], index: 6, kind: output, shape index: {2}]
  %7 = xla_tuple %s4, %s5, %s6
  %s8 = sld [smem:[#allocation0]]
  $region42: #{bottleneck_forward.6} parent=0
    _
  %s10 = ssub.s32 1, %s8
  %s11 = scalar_select 0, %s10, %s8
  // Predicated region
  $region2: #{bottleneck_forward.6} parent=0 // pred_check
    _
  $region3: #{bottleneck_forward.6} parent=0 // pred_check_branch
    %13 = sbr.rel (0) target = $region5
  $region4: #{bottleneck_forward.6} parent=0 // pred_region
    _
  $region5: #{bottleneck_forward.6} parent=0 // pred_fallthru
    _
  // Predicated region
  $region6: #{bottleneck_forward.6} parent=0 // pred_check
    _
  $region7: #{bottleneck_forward.6} parent=0 // pred_check_branch
    %15 = sbr.rel (0) target = $region9
  $region8: #{bottleneck_forward.6} parent=0 // pred_region
    _
  $region9: #{bottleneck_forward.6} parent=0 // pred_fallthru
    _
  // Predicated region
  $region10: #{bottleneck_forward.6} parent=0 // pred_check
    _
  $region11: #{bottleneck_forward.6} parent=0 // pred_check_branch
    %17 = sbr.rel (0) target = $region13
  $region12: #{bottleneck_forward.6} parent=0 // pred_region
    _
  $region13: #{bottleneck_forward.6} parent=0 // pred_fallthru
    _
  // Predicated region
  $region14: #{bottleneck_forward.6} parent=0 // pred_check
    _
  $region15: #{bottleneck_forward.6} parent=0 // pred_check_branch
    %19 = sbr.rel (0) target = $region17
  $region16: #{bottleneck_forward.6} parent=0 // pred_region
    _
  $region17: #{bottleneck_forward.6} parent=0 // pred_fallthru
    _
  %v21 = vld [vmem:[%s0] sm:$0xf]
  %v22 = vld [vmem:[%s0 + $0x4] sm:$0xf]
  %v23 = vld [vmem:[%s0 + $0x8] sm:$0xf]
  %v24 = vld [vmem:[%s0 + $0xc] sm:$0xf]
  %v25 = vld [vmem:[%s0 + $0x10] sm:$0xf]
  %v26 = vld [vmem:[%s0 + $0x14] sm:$0xf]
  %v27 = vld [vmem:[%s0 + $0x18] sm:$0xf]
  %v28 = vld [vmem:[%s0 + $0x1c] sm:$0xf]
  %v29 = vld [vmem:[%s0 + $0x20] sm:$0xf]
  %v30 = vld [vmem:[%s0 + $0x24] sm:$0xf]
  %v31 = vld [vmem:[%s0 + $0x28] sm:$0xf]
  %v32 = vld [vmem:[%s0 + $0x2c] sm:$0xf]
  %v33 = vld [vmem:[%s0 + $0x30] sm:$0xf]
  %v34 = vld [vmem:[%s0 + $0x34] sm:$0xf]
  %v35 = vld [vmem:[%s0 + $0x38] sm:$0xf]
  %v36 = vld [vmem:[%s0 + $0x3c] sm:$0xf]
  %v37 = vld [vmem:[%s0 + $0x40] sm:$0xf]
  %v38 = vld [vmem:[%s0 + $0x44] sm:$0xf]
  %v39 = vld [vmem:[%s0 + $0x48] sm:$0xf]
  %v40 = vld [vmem:[%s0 + $0x4c] sm:$0xf]
  %v41 = vld [vmem:[%s0 + $0x50] sm:$0xf]
  %v42 = vld [vmem:[%s0 + $0x54] sm:$0xf]
  %v43 = vld [vmem:[%s0 + $0x58] sm:$0xf]
  %v44 = vld [vmem:[%s0 + $0x5c] sm:$0xf]
  %v45 = vld [vmem:[%s0 + $0x60] sm:$0xf]
  %v46 = vld [vmem:[%s0 + $0x64] sm:$0xf]
  %v47 = vld [vmem:[%s0 + $0x68] sm:$0xf]
  %v48 = vld [vmem:[%s0 + $0x6c] sm:$0xf]
  %v49 = vld [vmem:[%s0 + $0x70] sm:$0xf]
  %v50 = vld [vmem:[%s0 + $0x74] sm:$0xf]
  %v51 = vld [vmem:[%s0 + $0x78] sm:$0xf]
  %v52 = vld [vmem:[%s0 + $0x7c] sm:$0xf]
  %v53 = vld [vmem:[%s0 + $0x80] sm:$0xf]
  %v54 = vld [vmem:[%s0 + $0x84] sm:$0xf]
  %v55 = vld [vmem:[%s0 + $0x88] sm:$0xf]
  %v56 = vld [vmem:[%s0 + $0x8c] sm:$0xf]
  %v57 = vld [vmem:[%s0 + $0x90] sm:$0xf]
  %v58 = vld [vmem:[%s0 + $0x94] sm:$0xf]
  %v59 = vld [vmem:[%s0 + $0x98] sm:$0xf]
  %v60 = vld [vmem:[%s0 + $0x9c] sm:$0xf]
  %v61 = vld [vmem:[%s0 + $0xa0] sm:$0xf]
  %v62 = vld [vmem:[%s0 + $0xa4] sm:$0xf]
  %v63 = vld [vmem:[%s0 + $0xa8] sm:$0xf]
  %v64 = vld [vmem:[%s0 + $0xac] sm:$0xf]
  %v65 = vld [vmem:[%s0 + $0xb0] sm:$0xf]
  %v66 = vld [vmem:[%s0 + $0xb4] sm:$0xf]
  %v67 = vld [vmem:[%s0 + $0xb8] sm:$0xf]
  %v68 = vld [vmem:[%s0 + $0xbc] sm:$0xf]
  %v69 = vld [vmem:[%s0 + $0xc0] sm:$0xf]
  %v70 = vld [vmem:[%s0 + $0xc4] sm:$0xf]
  %v71 = vld [vmem:[%s0 + $0xc8] sm:$0xf]
  %v72 = vld [vmem:[%s0 + $0xcc] sm:$0xf]
  %v73 = vld [vmem:[%s0 + $0xd0] sm:$0xf]
  %v74 = vld [vmem:[%s0 + $0xd4] sm:$0xf]
  %v75 = vld [vmem:[%s0 + $0xd8] sm:$0xf]
  %v76 = vld [vmem:[%s0 + $0xdc] sm:$0xf]
  %v77 = vld [vmem:[%s0 + $0xe0] sm:$0xf]
  %v78 = vld [vmem:[%s0 + $0xe4] sm:$0xf]
  %v79 = vld [vmem:[%s0 + $0xe8] sm:$0xf]
  %v80 = vld [vmem:[%s0 + $0xec] sm:$0xf]
  %v81 = vld [vmem:[%s0 + $0xf0] sm:$0xf]
  %v82 = vld [vmem:[%s0 + $0xf4] sm:$0xf]
  %v83 = vld [vmem:[%s0 + $0xf8] sm:$0xf]
  %v84 = vld [vmem:[%s0 + $0xfc] sm:$0xf]
  %v85 = vunpack.c.l.bf16 %v21
  %v86 = vunpack.c.l.bf16 %v22
  %v87 = vunpack.c.l.bf16 %v23
  %v88 = vunpack.c.l.bf16 %v24
  %v89 = vunpack.c.l.bf16 %v25
  %v90 = vunpack.c.l.bf16 %v26
  %v91 = vunpack.c.l.bf16 %v27
  %v92 = vunpack.c.l.bf16 %v28
  %v93 = vunpack.c.l.bf16 %v29
  %v94 = vunpack.c.l.bf16 %v30
  %v95 = vunpack.c.l.bf16 %v31
  %v96 = vunpack.c.l.bf16 %v32
  %v97 = vunpack.c.l.bf16 %v33
  %v98 = vunpack.c.l.bf16 %v34
  %v99 = vunpack.c.l.bf16 %v35
  %v100 = vunpack.c.l.bf16 %v36
  %v101 = vunpack.c.l.bf16 %v37
  %v102 = vunpack.c.l.bf16 %v38
  %v103 = vunpack.c.l.bf16 %v39
  %v104 = vunpack.c.l.bf16 %v40
  %v105 = vunpack.c.l.bf16 %v41
  %v106 = vunpack.c.l.bf16 %v42
  %v107 = vunpack.c.l.bf16 %v43
  %v108 = vunpack.c.l.bf16 %v44
  %v109 = vunpack.c.l.bf16 %v45
  %v110 = vunpack.c.l.bf16 %v46
  %v111 = vunpack.c.l.bf16 %v47
  %v112 = vunpack.c.l.bf16 %v48
  %v113 = vunpack.c.l.bf16 %v49
  %v114 = vunpack.c.l.bf16 %v50
  %v115 = vunpack.c.l.bf16 %v51
  %v116 = vunpack.c.l.bf16 %v52
  %v117 = vunpack.c.l.bf16 %v53
  %v118 = vunpack.c.l.bf16 %v54
  %v119 = vunpack.c.l.bf16 %v55
  %v120 = vunpack.c.l.bf16 %v56
  %v121 = vunpack.c.l.bf16 %v57
  %v122 = vunpack.c.l.bf16 %v58
  %v123 = vunpack.c.l.bf16 %v59
  %v124 = vunpack.c.l.bf16 %v60
  %v125 = vunpack.c.l.bf16 %v61
  %v126 = vunpack.c.l.bf16 %v62
  %v127 = vunpack.c.l.bf16 %v63
  %v128 = vunpack.c.l.bf16 %v64
  %v129 = vunpack.c.l.bf16 %v65
  %v130 = vunpack.c.l.bf16 %v66
  %v131 = vunpack.c.l.bf16 %v67
  %v132 = vunpack.c.l.bf16 %v68
  %v133 = vunpack.c.l.bf16 %v69
  %v134 = vunpack.c.l.bf16 %v70
  %v135 = vunpack.c.l.bf16 %v71
  %v136 = vunpack.c.l.bf16 %v72
  %v137 = vunpack.c.l.bf16 %v73
  %v138 = vunpack.c.l.bf16 %v74
  %v139 = vunpack.c.l.bf16 %v75
  %v140 = vunpack.c.l.bf16 %v76
  %v141 = vunpack.c.l.bf16 %v77
  %v142 = vunpack.c.l.bf16 %v78
  %v143 = vunpack.c.l.bf16 %v79
  %v144 = vunpack.c.l.bf16 %v80
  %v145 = vunpack.c.l.bf16 %v81
  %v146 = vunpack.c.l.bf16 %v82
  %v147 = vunpack.c.l.bf16 %v83
  %v148 = vunpack.c.l.bf16 %v84
  %v149 = vld [vmem:[%s1] sm:$0x1]
  %v151 = vlaneseq
  %v152 = vshrl.u32 %v151, 7
  %v153 = vsub.s32 0, %v152
  %v154 = vrot.slane %v149, %v153
  %v156 = vmul.f32 %v85, %v154
  %v157 = vmul.f32 %v86, %v154
  %v158 = vmul.f32 %v87, %v154
  %v159 = vmul.f32 %v88, %v154
  %v160 = vmul.f32 %v89, %v154
  %v161 = vmul.f32 %v90, %v154
  %v162 = vmul.f32 %v91, %v154
  %v163 = vmul.f32 %v92, %v154
  %v164 = vmul.f32 %v93, %v154
  %v165 = vmul.f32 %v94, %v154
  %v166 = vmul.f32 %v95, %v154
  %v167 = vmul.f32 %v96, %v154
  %v168 = vmul.f32 %v97, %v154
  %v169 = vmul.f32 %v98, %v154
  %v170 = vmul.f32 %v99, %v154
  %v171 = vmul.f32 %v100, %v154
  %v172 = vmul.f32 %v101, %v154
  %v173 = vmul.f32 %v102, %v154
  %v174 = vmul.f32 %v103, %v154
  %v175 = vmul.f32 %v104, %v154
  %v176 = vmul.f32 %v105, %v154
  %v177 = vmul.f32 %v106, %v154
  %v178 = vmul.f32 %v107, %v154
  %v179 = vmul.f32 %v108, %v154
  %v180 = vmul.f32 %v109, %v154
  %v181 = vmul.f32 %v110, %v154
  %v182 = vmul.f32 %v111, %v154
  %v183 = vmul.f32 %v112, %v154
  %v184 = vmul.f32 %v113, %v154
  %v185 = vmul.f32 %v114, %v154
  %v186 = vmul.f32 %v115, %v154
  %v187 = vmul.f32 %v116, %v154
  %v188 = vmul.f32 %v117, %v154
  %v189 = vmul.f32 %v118, %v154
  %v190 = vmul.f32 %v119, %v154
  %v191 = vmul.f32 %v120, %v154
  %v192 = vmul.f32 %v121, %v154
  %v193 = vmul.f32 %v122, %v154
  %v194 = vmul.f32 %v123, %v154
  %v195 = vmul.f32 %v124, %v154
  %v196 = vmul.f32 %v125, %v154
  %v197 = vmul.f32 %v126, %v154
  %v198 = vmul.f32 %v127, %v154
  %v199 = vmul.f32 %v128, %v154
  %v200 = vmul.f32 %v129, %v154
  %v201 = vmul.f32 %v130, %v154
  %v202 = vmul.f32 %v131, %v154
  %v203 = vmul.f32 %v132, %v154
  %v204 = vmul.f32 %v133, %v154
  %v205 = vmul.f32 %v134, %v154
  %v206 = vmul.f32 %v135, %v154
  %v207 = vmul.f32 %v136, %v154
  %v208 = vmul.f32 %v137, %v154
  %v209 = vmul.f32 %v138, %v154
  %v210 = vmul.f32 %v139, %v154
  %v211 = vmul.f32 %v140, %v154
  %v212 = vmul.f32 %v141, %v154
  %v213 = vmul.f32 %v142, %v154
  %v214 = vmul.f32 %v143, %v154
  %v215 = vmul.f32 %v144, %v154
  %v216 = vmul.f32 %v145, %v154
  %v217 = vmul.f32 %v146, %v154
  %v218 = vmul.f32 %v147, %v154
  %v219 = vmul.f32 %v148, %v154
  %v220 = vld [vmem:[%s2] sm:$0x1]
  %v222 = vlaneseq
  %v223 = vshrl.u32 %v222, 7
  %v224 = vsub.s32 0, %v223
  %v225 = vrot.slane %v220, %v224
  %v227 = vadd.f32 %v156, %v225
  %v228 = vadd.f32 %v157, %v225
  %v229 = vadd.f32 %v158, %v225
  %v230 = vadd.f32 %v159, %v225
  %v231 = vadd.f32 %v160, %v225
  %v232 = vadd.f32 %v161, %v225
  %v233 = vadd.f32 %v162, %v225
  %v234 = vadd.f32 %v163, %v225
  %v235 = vadd.f32 %v164, %v225
  %v236 = vadd.f32 %v165, %v225
  %v237 = vadd.f32 %v166, %v225
  %v238 = vadd.f32 %v167, %v225
  %v239 = vadd.f32 %v168, %v225
  %v240 = vadd.f32 %v169, %v225
  %v241 = vadd.f32 %v170, %v225
  %v242 = vadd.f32 %v171, %v225
  %v243 = vadd.f32 %v172, %v225
  %v244 = vadd.f32 %v173, %v225
  %v245 = vadd.f32 %v174, %v225
  %v246 = vadd.f32 %v175, %v225
  %v247 = vadd.f32 %v176, %v225
  %v248 = vadd.f32 %v177, %v225
  %v249 = vadd.f32 %v178, %v225
  %v250 = vadd.f32 %v179, %v225
  %v251 = vadd.f32 %v180, %v225
  %v252 = vadd.f32 %v181, %v225
  %v253 = vadd.f32 %v182, %v225
  %v254 = vadd.f32 %v183, %v225
  %v255 = vadd.f32 %v184, %v225
  %v256 = vadd.f32 %v185, %v225
  %v257 = vadd.f32 %v186, %v225
  %v258 = vadd.f32 %v187, %v225
  %v259 = vadd.f32 %v188, %v225
  %v260 = vadd.f32 %v189, %v225
  %v261 = vadd.f32 %v190, %v225
  %v262 = vadd.f32 %v191, %v225
  %v263 = vadd.f32 %v192, %v225
  %v264 = vadd.f32 %v193, %v225
  %v265 = vadd.f32 %v194, %v225
  %v266 = vadd.f32 %v195, %v225
  %v267 = vadd.f32 %v196, %v225
  %v268 = vadd.f32 %v197, %v225
  %v269 = vadd.f32 %v198, %v225
  %v270 = vadd.f32 %v199, %v225
  %v271 = vadd.f32 %v200, %v225
  %v272 = vadd.f32 %v201, %v225
  %v273 = vadd.f32 %v202, %v225
  %v274 = vadd.f32 %v203, %v225
  %v275 = vadd.f32 %v204, %v225
  %v276 = vadd.f32 %v205, %v225
  %v277 = vadd.f32 %v206, %v225
  %v278 = vadd.f32 %v207, %v225
  %v279 = vadd.f32 %v208, %v225
  %v280 = vadd.f32 %v209, %v225
  %v281 = vadd.f32 %v210, %v225
  %v282 = vadd.f32 %v211, %v225
  %v283 = vadd.f32 %v212, %v225
  %v284 = vadd.f32 %v213, %v225
  %v285 = vadd.f32 %v214, %v225
  %v286 = vadd.f32 %v215, %v225
  %v287 = vadd.f32 %v216, %v225
  %v288 = vadd.f32 %v217, %v225
  %v289 = vadd.f32 %v218, %v225
  %v290 = vadd.f32 %v219, %v225
  %v291 = vmax.f32 %v227, 0.0
  %v292 = vmax.f32 %v228, 0.0
  %v293 = vmax.f32 %v229, 0.0
  %v294 = vmax.f32 %v230, 0.0
  %v295 = vmax.f32 %v231, 0.0
  %v296 = vmax.f32 %v232, 0.0
  %v297 = vmax.f32 %v233, 0.0
  %v298 = vmax.f32 %v234, 0.0
  %v299 = vmax.f32 %v235, 0.0
  %v300 = vmax.f32 %v236, 0.0
  %v301 = vmax.f32 %v237, 0.0
  %v302 = vmax.f32 %v238, 0.0
  %v303 = vmax.f32 %v239, 0.0
  %v304 = vmax.f32 %v240, 0.0
  %v305 = vmax.f32 %v241, 0.0
  %v306 = vmax.f32 %v242, 0.0
  %v307 = vmax.f32 %v243, 0.0
  %v308 = vmax.f32 %v244, 0.0
  %v309 = vmax.f32 %v245, 0.0
  %v310 = vmax.f32 %v246, 0.0
  %v311 = vmax.f32 %v247, 0.0
  %v312 = vmax.f32 %v248, 0.0
  %v313 = vmax.f32 %v249, 0.0
  %v314 = vmax.f32 %v250, 0.0
  %v315 = vmax.f32 %v251, 0.0
  %v316 = vmax.f32 %v252, 0.0
  %v317 = vmax.f32 %v253, 0.0
  %v318 = vmax.f32 %v254, 0.0
  %v319 = vmax.f32 %v255, 0.0
  %v320 = vmax.f32 %v256, 0.0
  %v321 = vmax.f32 %v257, 0.0
  %v322 = vmax.f32 %v258, 0.0
  %v323 = vmax.f32 %v259, 0.0
  %v324 = vmax.f32 %v260, 0.0
  %v325 = vmax.f32 %v261, 0.0
  %v326 = vmax.f32 %v262, 0.0
  %v327 = vmax.f32 %v263, 0.0
  %v328 = vmax.f32 %v264, 0.0
  %v329 = vmax.f32 %v265, 0.0
  %v330 = vmax.f32 %v266, 0.0
  %v331 = vmax.f32 %v267, 0.0
  %v332 = vmax.f32 %v268, 0.0
  %v333 = vmax.f32 %v269, 0.0
  %v334 = vmax.f32 %v270, 0.0
  %v335 = vmax.f32 %v271, 0.0
  %v336 = vmax.f32 %v272, 0.0
  %v337 = vmax.f32 %v273, 0.0
  %v338 = vmax.f32 %v274, 0.0
  %v339 = vmax.f32 %v275, 0.0
  %v340 = vmax.f32 %v276, 0.0
  %v341 = vmax.f32 %v277, 0.0
  %v342 = vmax.f32 %v278, 0.0
  %v343 = vmax.f32 %v279, 0.0
  %v344 = vmax.f32 %v280, 0.0
  %v345 = vmax.f32 %v281, 0.0
  %v346 = vmax.f32 %v282, 0.0
  %v347 = vmax.f32 %v283, 0.0
  %v348 = vmax.f32 %v284, 0.0
  %v349 = vmax.f32 %v285, 0.0
  %v350 = vmax.f32 %v286, 0.0
  %v351 = vmax.f32 %v287, 0.0
  %v352 = vmax.f32 %v288, 0.0
  %v353 = vmax.f32 %v289, 0.0
  %v354 = vmax.f32 %v290, 0.0
  %v355 = vpack.c.bf16 %v292, %v291
  %v356 = vpack.c.bf16 %v294, %v293
  %v357 = vpack.c.bf16 %v296, %v295
  %v358 = vpack.c.bf16 %v298, %v297
  %v359 = vpack.c.bf16 %v300, %v299
  %v360 = vpack.c.bf16 %v302, %v301
  %v361 = vpack.c.bf16 %v304, %v303
  %v362 = vpack.c.bf16 %v306, %v305
  %v363 = vpack.c.bf16 %v308, %v307
  %v364 = vpack.c.bf16 %v310, %v309
  %v365 = vpack.c.bf16 %v312, %v311
  %v366 = vpack.c.bf16 %v314, %v313
  %v367 = vpack.c.bf16 %v316, %v315
  %v368 = vpack.c.bf16 %v318, %v317
  %v369 = vpack.c.bf16 %v320, %v319
  %v370 = vpack.c.bf16 %v322, %v321
  %v371 = vpack.c.bf16 %v324, %v323
  %v372 = vpack.c.bf16 %v326, %v325
  %v373 = vpack.c.bf16 %v328, %v327
  %v374 = vpack.c.bf16 %v330, %v329
  %v375 = vpack.c.bf16 %v332, %v331
  %v376 = vpack.c.bf16 %v334, %v333
  %v377 = vpack.c.bf16 %v336, %v335
  %v378 = vpack.c.bf16 %v338, %v337
  %v379 = vpack.c.bf16 %v340, %v339
  %v380 = vpack.c.bf16 %v342, %v341
  %v381 = vpack.c.bf16 %v344, %v343
  %v382 = vpack.c.bf16 %v346, %v345
  %v383 = vpack.c.bf16 %v348, %v347
  %v384 = vpack.c.bf16 %v350, %v349
  %v385 = vpack.c.bf16 %v352, %v351
  %v386 = vpack.c.bf16 %v354, %v353
  %v387 = vld [vmem:[%s3] sm:$0xf]
  %v388 = vld [vmem:[%s3 + $0x4] sm:$0xf]
  %v389 = vld [vmem:[%s3 + $0x8] sm:$0xf]
  %v390 = vld [vmem:[%s3 + $0xc] sm:$0xf]
  %v391 = vld [vmem:[%s3 + $0x10] sm:$0xf]
  %v392 = vld [vmem:[%s3 + $0x14] sm:$0xf]
  %v393 = vld [vmem:[%s3 + $0x18] sm:$0xf]
  %v394 = vld [vmem:[%s3 + $0x1c] sm:$0xf]
  %v395 = vld [vmem:[%s3 + $0x20] sm:$0xf]
  %v396 = vld [vmem:[%s3 + $0x24] sm:$0xf]
  %v397 = vld [vmem:[%s3 + $0x28] sm:$0xf]
  %v398 = vld [vmem:[%s3 + $0x2c] sm:$0xf]
  %v399 = vld [vmem:[%s3 + $0x30] sm:$0xf]
  %v400 = vld [vmem:[%s3 + $0x34] sm:$0xf]
  %v401 = vld [vmem:[%s3 + $0x38] sm:$0xf]
  %v402 = vld [vmem:[%s3 + $0x3c] sm:$0xf]
  %v419 = vunpack.c.l.b16 %v387
  %v420 = vunpack.c.l.b16 %v388
  %v421 = vunpack.c.l.b16 %v389
  %v422 = vunpack.c.l.b16 %v390
  %v423 = vunpack.c.l.b16 %v391
  %v424 = vunpack.c.l.b16 %v392
  %v425 = vunpack.c.l.b16 %v393
  %v426 = vunpack.c.l.b16 %v394
  %v427 = vunpack.c.l.b16 %v395
  %v428 = vunpack.c.l.b16 %v396
  %v429 = vunpack.c.l.b16 %v397
  %v430 = vunpack.c.l.b16 %v398
  %v431 = vunpack.c.l.b16 %v399
  %v432 = vunpack.c.l.b16 %v400
  %v433 = vunpack.c.l.b16 %v401
  %v434 = vunpack.c.l.b16 %v402
  %v435 = vpack.c.b16 %v420, %v419
  %v436 = vpack.c.b16 %v422, %v421
  %v437 = vpack.c.b16 %v424, %v423
  %v438 = vpack.c.b16 %v426, %v425
  %v439 = vpack.c.b16 %v428, %v427
  %v440 = vpack.c.b16 %v430, %v429
  %v441 = vpack.c.b16 %v432, %v431
  %v442 = vpack.c.b16 %v434, %v433
  %451 = vmatprep.subr.bf16.mxu0 0
  %452 = vmatpush1.bf16.msra.mxu0 %v442
  %453 = vmatprep.subr.bf16.mxu0 0
  %454 = vmatpush1.bf16.msra.mxu0 %v441
  %455 = vmatprep.subr.bf16.mxu0 0
  %456 = vmatpush1.bf16.msra.mxu0 %v440
  %457 = vmatprep.subr.bf16.mxu0 0
  %458 = vmatpush1.bf16.msra.mxu0 %v439
  %459 = vmatprep.subr.bf16.mxu0 0
  %460 = vmatpush1.bf16.msra.mxu0 %v438
  %461 = vmatprep.subr.bf16.mxu0 0
  %462 = vmatpush1.bf16.msra.mxu0 %v437
  %463 = vmatprep.subr.bf16.mxu0 0
  %464 = vmatpush1.bf16.msra.mxu0 %v436
  %465 = vmatprep.subr.bf16.mxu0 0
  %466 = vmatpush1.bf16.msra.mxu0 %v435
  %467 = vmatprep.subr.bf16.mxu0 0
  %468 = vmatpush2.bf16.msra.mxu0 0
  %469 = vmatprep.subr.bf16.mxu0 0
  %470 = vmatpush2.bf16.msra.mxu0 0
  %471 = vmatprep.subr.bf16.mxu0 0
  %472 = vmatpush2.bf16.msra.mxu0 0
  %473 = vmatprep.subr.bf16.mxu0 0
  %474 = vmatpush2.bf16.msra.mxu0 0
  %475 = vmatprep.subr.bf16.mxu0 0
  %476 = vmatpush2.bf16.msra.mxu0 0
  %477 = vmatprep.subr.bf16.mxu0 0
  %478 = vmatpush2.bf16.msra.mxu0 0
  %479 = vmatprep.subr.bf16.mxu0 0
  %480 = vmatpush2.bf16.msra.mxu0 0
  %481 = vmatprep.subr.bf16.mxu0 0
  %482 = vmatpush2.bf16.msra.mxu0 0
  %483 = vmatprep.mubr.bf16.mxu0 0
  %484 = vmatmul.mubr.bf16.gmra.mxu0 %v355
  %v485 = vpop.f32.mrf.mxu0
  %v486 = vadd.f32 0.0, %v485
  %v487 = vpop.f32.mrf.mxu0
  %v488 = vpop.f32.mrf.mxu0
  %v489 = vadd.f32 0.0, %v488
  %v490 = vpop.f32.mrf.mxu0
  %491 = vmatprep.mubr.bf16.mxu0 0
  %492 = vmatmul.mubr.bf16.gmra.mxu0 %v356
  %v493 = vpop.f32.mrf.mxu0
  %v494 = vadd.f32 0.0, %v493
  %v495 = vpop.f32.mrf.mxu0
  %v496 = vpop.f32.mrf.mxu0
  %v497 = vadd.f32 0.0, %v496
  %v498 = vpop.f32.mrf.mxu0
  %499 = vmatprep.mubr.bf16.mxu0 0
  %500 = vmatmul.mubr.bf16.gmra.mxu0 %v357
  %v501 = vpop.f32.mrf.mxu0
  %v502 = vadd.f32 0.0, %v501
  %v503 = vpop.f32.mrf.mxu0
  %v504 = vpop.f32.mrf.mxu0
  %v505 = vadd.f32 0.0, %v504
  %v506 = vpop.f32.mrf.mxu0
  %507 = vmatprep.mubr.bf16.mxu0 0
  %508 = vmatmul.mubr.bf16.gmra.mxu0 %v358
  %v509 = vpop.f32.mrf.mxu0
  %v510 = vadd.f32 0.0, %v509
  %v511 = vpop.f32.mrf.mxu0
  %v512 = vpop.f32.mrf.mxu0
  %v513 = vadd.f32 0.0, %v512
  %v514 = vpop.f32.mrf.mxu0
  %515 = vmatprep.mubr.bf16.mxu0 0
  %516 = vmatmul.mubr.bf16.gmra.mxu0 %v359
  %v517 = vpop.f32.mrf.mxu0
  %v518 = vadd.f32 0.0, %v517
  %v519 = vpop.f32.mrf.mxu0
  %v520 = vpop.f32.mrf.mxu0
  %v521 = vadd.f32 0.0, %v520
  %v522 = vpop.f32.mrf.mxu0
  %523 = vmatprep.mubr.bf16.mxu0 0
  %524 = vmatmul.mubr.bf16.gmra.mxu0 %v360
  %v525 = vpop.f32.mrf.mxu0
  %v526 = vadd.f32 0.0, %v525
  %v527 = vpop.f32.mrf.mxu0
  %v528 = vpop.f32.mrf.mxu0
  %v529 = vadd.f32 0.0, %v528
  %v530 = vpop.f32.mrf.mxu0
  %531 = vmatprep.mubr.bf16.mxu0 0
  %532 = vmatmul.mubr.bf16.gmra.mxu0 %v361
  %v533 = vpop.f32.mrf.mxu0
  %v534 = vadd.f32 0.0, %v533
  %v535 = vpop.f32.mrf.mxu0
  %v536 = vpop.f32.mrf.mxu0
  %v537 = vadd.f32 0.0, %v536
  %v538 = vpop.f32.mrf.mxu0
  %539 = vmatprep.mubr.bf16.mxu0 0
  %540 = vmatmul.mubr.bf16.gmra.mxu0 %v362
  %v541 = vpop.f32.mrf.mxu0
  %v542 = vadd.f32 0.0, %v541
  %v543 = vpop.f32.mrf.mxu0
  %v544 = vpop.f32.mrf.mxu0
  %v545 = vadd.f32 0.0, %v544
  %v546 = vpop.f32.mrf.mxu0
  %547 = vmatprep.mubr.bf16.mxu0 0
  %548 = vmatmul.mubr.bf16.gmra.mxu0 %v363
  %v549 = vpop.f32.mrf.mxu0
  %v550 = vadd.f32 0.0, %v549
  %v551 = vpop.f32.mrf.mxu0
  %v552 = vpop.f32.mrf.mxu0
  %v553 = vadd.f32 0.0, %v552
  %v554 = vpop.f32.mrf.mxu0
  %555 = vmatprep.mubr.bf16.mxu0 0
  %556 = vmatmul.mubr.bf16.gmra.mxu0 %v364
  %v557 = vpop.f32.mrf.mxu0
  %v558 = vadd.f32 0.0, %v557
  %v559 = vpop.f32.mrf.mxu0
  %v560 = vpop.f32.mrf.mxu0
  %v561 = vadd.f32 0.0, %v560
  %v562 = vpop.f32.mrf.mxu0
  %563 = vmatprep.mubr.bf16.mxu0 0
  %564 = vmatmul.mubr.bf16.gmra.mxu0 %v365
  %v565 = vpop.f32.mrf.mxu0
  %v566 = vadd.f32 0.0, %v565
  %v567 = vpop.f32.mrf.mxu0
  %v568 = vpop.f32.mrf.mxu0
  %v569 = vadd.f32 0.0, %v568
  %v570 = vpop.f32.mrf.mxu0
  %571 = vmatprep.mubr.bf16.mxu0 0
  %572 = vmatmul.mubr.bf16.gmra.mxu0 %v366
  %v573 = vpop.f32.mrf.mxu0
  %v574 = vadd.f32 0.0, %v573
  %v575 = vpop.f32.mrf.mxu0
  %v576 = vpop.f32.mrf.mxu0
  %v577 = vadd.f32 0.0, %v576
  %v578 = vpop.f32.mrf.mxu0
  %579 = vmatprep.mubr.bf16.mxu0 0
  %580 = vmatmul.mubr.bf16.gmra.mxu0 %v367
  %v581 = vpop.f32.mrf.mxu0
  %v582 = vadd.f32 0.0, %v581
  %v583 = vpop.f32.mrf.mxu0
  %v584 = vpop.f32.mrf.mxu0
  %v585 = vadd.f32 0.0, %v584
  %v586 = vpop.f32.mrf.mxu0
  %587 = vmatprep.mubr.bf16.mxu0 0
  %588 = vmatmul.mubr.bf16.gmra.mxu0 %v368
  %v589 = vpop.f32.mrf.mxu0
  %v590 = vadd.f32 0.0, %v589
  %v591 = vpop.f32.mrf.mxu0
  %v592 = vpop.f32.mrf.mxu0
  %v593 = vadd.f32 0.0, %v592
  %v594 = vpop.f32.mrf.mxu0
  %595 = vmatprep.mubr.bf16.mxu0 0
  %596 = vmatmul.mubr.bf16.gmra.mxu0 %v369
  %v597 = vpop.f32.mrf.mxu0
  %v598 = vadd.f32 0.0, %v597
  %v599 = vpop.f32.mrf.mxu0
  %v600 = vpop.f32.mrf.mxu0
  %v601 = vadd.f32 0.0, %v600
  %v602 = vpop.f32.mrf.mxu0
  %603 = vmatprep.mubr.bf16.mxu0 0
  %604 = vmatmul.mubr.bf16.gmra.mxu0 %v370
  %v605 = vpop.f32.mrf.mxu0
  %v606 = vadd.f32 0.0, %v605
  %v607 = vpop.f32.mrf.mxu0
  %v608 = vpop.f32.mrf.mxu0
  %v609 = vadd.f32 0.0, %v608
  %v610 = vpop.f32.mrf.mxu0
  %611 = vmatprep.mubr.bf16.mxu0 0
  %612 = vmatmul.mubr.bf16.gmra.mxu0 %v371
  %v613 = vpop.f32.mrf.mxu0
  %v614 = vadd.f32 0.0, %v613
  %v615 = vpop.f32.mrf.mxu0
  %v616 = vpop.f32.mrf.mxu0
  %v617 = vadd.f32 0.0, %v616
  %v618 = vpop.f32.mrf.mxu0
  %619 = vmatprep.mubr.bf16.mxu0 0
  %620 = vmatmul.mubr.bf16.gmra.mxu0 %v372
  %v621 = vpop.f32.mrf.mxu0
  %v622 = vadd.f32 0.0, %v621
  %v623 = vpop.f32.mrf.mxu0
  %v624 = vpop.f32.mrf.mxu0
  %v625 = vadd.f32 0.0, %v624
  %v626 = vpop.f32.mrf.mxu0
  %627 = vmatprep.mubr.bf16.mxu0 0
  %628 = vmatmul.mubr.bf16.gmra.mxu0 %v373
  %v629 = vpop.f32.mrf.mxu0
  %v630 = vadd.f32 0.0, %v629
  %v631 = vpop.f32.mrf.mxu0
  %v632 = vpop.f32.mrf.mxu0
  %v633 = vadd.f32 0.0, %v632
  %v634 = vpop.f32.mrf.mxu0
  %635 = vmatprep.mubr.bf16.mxu0 0
  %636 = vmatmul.mubr.bf16.gmra.mxu0 %v374
  %v637 = vpop.f32.mrf.mxu0
  %v638 = vadd.f32 0.0, %v637
  %v639 = vpop.f32.mrf.mxu0
  %v640 = vpop.f32.mrf.mxu0
  %v641 = vadd.f32 0.0, %v640
  %v642 = vpop.f32.mrf.mxu0
  %643 = vmatprep.mubr.bf16.mxu0 0
  %644 = vmatmul.mubr.bf16.gmra.mxu0 %v375
  %v645 = vpop.f32.mrf.mxu0
  %v646 = vadd.f32 0.0, %v645
  %v647 = vpop.f32.mrf.mxu0
  %v648 = vpop.f32.mrf.mxu0
  %v649 = vadd.f32 0.0, %v648
  %v650 = vpop.f32.mrf.mxu0
  %651 = vmatprep.mubr.bf16.mxu0 0
  %652 = vmatmul.mubr.bf16.gmra.mxu0 %v376
  %v653 = vpop.f32.mrf.mxu0
  %v654 = vadd.f32 0.0, %v653
  %v655 = vpop.f32.mrf.mxu0
  %v656 = vpop.f32.mrf.mxu0
  %v657 = vadd.f32 0.0, %v656
  %v658 = vpop.f32.mrf.mxu0
  %659 = vmatprep.mubr.bf16.mxu0 0
  %660 = vmatmul.mubr.bf16.gmra.mxu0 %v377
  %v661 = vpop.f32.mrf.mxu0
  %v662 = vadd.f32 0.0, %v661
  %v663 = vpop.f32.mrf.mxu0
  %v664 = vpop.f32.mrf.mxu0
  %v665 = vadd.f32 0.0, %v664
  %v666 = vpop.f32.mrf.mxu0
  %667 = vmatprep.mubr.bf16.mxu0 0
  %668 = vmatmul.mubr.bf16.gmra.mxu0 %v378
  %v669 = vpop.f32.mrf.mxu0
  %v670 = vadd.f32 0.0, %v669
  %v671 = vpop.f32.mrf.mxu0
  %v672 = vpop.f32.mrf.mxu0
  %v673 = vadd.f32 0.0, %v672
  %v674 = vpop.f32.mrf.mxu0
  %675 = vmatprep.mubr.bf16.mxu0 0
  %676 = vmatmul.mubr.bf16.gmra.mxu0 %v379
  %v677 = vpop.f32.mrf.mxu0
  %v678 = vadd.f32 0.0, %v677
  %v679 = vpop.f32.mrf.mxu0
  %v680 = vpop.f32.mrf.mxu0
  %v681 = vadd.f32 0.0, %v680
  %v682 = vpop.f32.mrf.mxu0
  %683 = vmatprep.mubr.bf16.mxu0 0
  %684 = vmatmul.mubr.bf16.gmra.mxu0 %v380
  %v685 = vpop.f32.mrf.mxu0
  %v686 = vadd.f32 0.0, %v685
  %v687 = vpop.f32.mrf.mxu0
  %v688 = vpop.f32.mrf.mxu0
  %v689 = vadd.f32 0.0, %v688
  %v690 = vpop.f32.mrf.mxu0
  %691 = vmatprep.mubr.bf16.mxu0 0
  %692 = vmatmul.mubr.bf16.gmra.mxu0 %v381
  %v693 = vpop.f32.mrf.mxu0
  %v694 = vadd.f32 0.0, %v693
  %v695 = vpop.f32.mrf.mxu0
  %v696 = vpop.f32.mrf.mxu0
  %v697 = vadd.f32 0.0, %v696
  %v698 = vpop.f32.mrf.mxu0
  %699 = vmatprep.mubr.bf16.mxu0 0
  %700 = vmatmul.mubr.bf16.gmra.mxu0 %v382
  %v701 = vpop.f32.mrf.mxu0
  %v702 = vadd.f32 0.0, %v701
  %v703 = vpop.f32.mrf.mxu0
  %v704 = vpop.f32.mrf.mxu0
  %v705 = vadd.f32 0.0, %v704
  %v706 = vpop.f32.mrf.mxu0
  %707 = vmatprep.mubr.bf16.mxu0 0
  %708 = vmatmul.mubr.bf16.gmra.mxu0 %v383
  %v709 = vpop.f32.mrf.mxu0
  %v710 = vadd.f32 0.0, %v709
  %v711 = vpop.f32.mrf.mxu0
  %v712 = vpop.f32.mrf.mxu0
  %v713 = vadd.f32 0.0, %v712
  %v714 = vpop.f32.mrf.mxu0
  %715 = vmatprep.mubr.bf16.mxu0 0
  %716 = vmatmul.mubr.bf16.gmra.mxu0 %v384
  %v717 = vpop.f32.mrf.mxu0
  %v718 = vadd.f32 0.0, %v717
  %v719 = vpop.f32.mrf.mxu0
  %v720 = vpop.f32.mrf.mxu0
  %v721 = vadd.f32 0.0, %v720
  %v722 = vpop.f32.mrf.mxu0
  %723 = vmatprep.mubr.bf16.mxu0 0
  %724 = vmatmul.mubr.bf16.gmra.mxu0 %v385
  %v725 = vpop.f32.mrf.mxu0
  %v726 = vadd.f32 0.0, %v725
  %v727 = vpop.f32.mrf.mxu0
  %v728 = vpop.f32.mrf.mxu0
  %v729 = vadd.f32 0.0, %v728
  %v730 = vpop.f32.mrf.mxu0
  %731 = vmatprep.mubr.bf16.mxu0 0
  %732 = vmatmul.mubr.bf16.gmra.mxu0 %v386
  %v733 = vpop.f32.mrf.mxu0
  %v734 = vadd.f32 0.0, %v733
  %v735 = vpop.f32.mrf.mxu0
  %v736 = vpop.f32.mrf.mxu0
  %v737 = vadd.f32 0.0, %v736
  %v738 = vpop.f32.mrf.mxu0
  %739 = vdwg.mxu0
  %v740 = vpack.c.bf16 %v489, %v486
  %v741 = vpack.c.bf16 %v497, %v494
  %v742 = vpack.c.bf16 %v505, %v502
  %v743 = vpack.c.bf16 %v513, %v510
  %v744 = vpack.c.bf16 %v521, %v518
  %v745 = vpack.c.bf16 %v529, %v526
  %v746 = vpack.c.bf16 %v537, %v534
  %v747 = vpack.c.bf16 %v545, %v542
  %v748 = vpack.c.bf16 %v553, %v550
  %v749 = vpack.c.bf16 %v561, %v558
  %v750 = vpack.c.bf16 %v569, %v566
  %v751 = vpack.c.bf16 %v577, %v574
  %v752 = vpack.c.bf16 %v585, %v582
  %v753 = vpack.c.bf16 %v593, %v590
  %v754 = vpack.c.bf16 %v601, %v598
  %v755 = vpack.c.bf16 %v609, %v606
  %v756 = vpack.c.bf16 %v617, %v614
  %v757 = vpack.c.bf16 %v625, %v622
  %v758 = vpack.c.bf16 %v633, %v630
  %v759 = vpack.c.bf16 %v641, %v638
  %v760 = vpack.c.bf16 %v649, %v646
  %v761 = vpack.c.bf16 %v657, %v654
  %v762 = vpack.c.bf16 %v665, %v662
  %v763 = vpack.c.bf16 %v673, %v670
  %v764 = vpack.c.bf16 %v681, %v678
  %v765 = vpack.c.bf16 %v689, %v686
  %v766 = vpack.c.bf16 %v697, %v694
  %v767 = vpack.c.bf16 %v705, %v702
  %v768 = vpack.c.bf16 %v713, %v710
  %v769 = vpack.c.bf16 %v721, %v718
  %v770 = vpack.c.bf16 %v729, %v726
  %v771 = vpack.c.bf16 %v737, %v734
  %v804 = vunpack.c.l.b16 %v740
  %v805 = vunpack.c.h.b16 %v740
  %v806 = vunpack.c.l.b16 %v741
  %v807 = vunpack.c.h.b16 %v741
  %v808 = vunpack.c.l.b16 %v742
  %v809 = vunpack.c.h.b16 %v742
  %v810 = vunpack.c.l.b16 %v743
  %v811 = vunpack.c.h.b16 %v743
  %v812 = vunpack.c.l.b16 %v744
  %v813 = vunpack.c.h.b16 %v744
  %v814 = vunpack.c.l.b16 %v745
  %v815 = vunpack.c.h.b16 %v745
  %v816 = vunpack.c.l.b16 %v746
  %v817 = vunpack.c.h.b16 %v746
  %v818 = vunpack.c.l.b16 %v747
  %v819 = vunpack.c.h.b16 %v747
  %v820 = vunpack.c.l.b16 %v748
  %v821 = vunpack.c.h.b16 %v748
  %v822 = vunpack.c.l.b16 %v749
  %v823 = vunpack.c.h.b16 %v749
  %v824 = vunpack.c.l.b16 %v750
  %v825 = vunpack.c.h.b16 %v750
  %v826 = vunpack.c.l.b16 %v751
  %v827 = vunpack.c.h.b16 %v751
  %v828 = vunpack.c.l.b16 %v752
  %v829 = vunpack.c.h.b16 %v752
  %v830 = vunpack.c.l.b16 %v753
  %v831 = vunpack.c.h.b16 %v753
  %v832 = vunpack.c.l.b16 %v754
  %v833 = vunpack.c.h.b16 %v754
  %v834 = vunpack.c.l.b16 %v755
  %v835 = vunpack.c.h.b16 %v755
  %v836 = vunpack.c.l.b16 %v756
  %v837 = vunpack.c.h.b16 %v756
  %v838 = vunpack.c.l.b16 %v757
  %v839 = vunpack.c.h.b16 %v757
  %v840 = vunpack.c.l.b16 %v758
  %v841 = vunpack.c.h.b16 %v758
  %v842 = vunpack.c.l.b16 %v759
  %v843 = vunpack.c.h.b16 %v759
  %v844 = vunpack.c.l.b16 %v760
  %v845 = vunpack.c.h.b16 %v760
  %v846 = vunpack.c.l.b16 %v761
  %v847 = vunpack.c.h.b16 %v761
  %v848 = vunpack.c.l.b16 %v762
  %v849 = vunpack.c.h.b16 %v762
  %v850 = vunpack.c.l.b16 %v763
  %v851 = vunpack.c.h.b16 %v763
  %v852 = vunpack.c.l.b16 %v764
  %v853 = vunpack.c.h.b16 %v764
  %v854 = vunpack.c.l.b16 %v765
  %v855 = vunpack.c.h.b16 %v765
  %v856 = vunpack.c.l.b16 %v766
  %v857 = vunpack.c.h.b16 %v766
  %v858 = vunpack.c.l.b16 %v767
  %v859 = vunpack.c.h.b16 %v767
  %v860 = vunpack.c.l.b16 %v768
  %v861 = vunpack.c.h.b16 %v768
  %v862 = vunpack.c.l.b16 %v769
  %v863 = vunpack.c.h.b16 %v769
  %v864 = vunpack.c.l.b16 %v770
  %v865 = vunpack.c.h.b16 %v770
  %v866 = vunpack.c.l.b16 %v771
  %v867 = vunpack.c.h.b16 %v771
  %v868 = vpack.c.b16 %v804, %v804
  %v869 = vpack.c.b16 %v805, %v805
  %v870 = vpack.c.b16 %v806, %v806
  %v871 = vpack.c.b16 %v807, %v807
  %v872 = vpack.c.b16 %v808, %v808
  %v873 = vpack.c.b16 %v809, %v809
  %v874 = vpack.c.b16 %v810, %v810
  %v875 = vpack.c.b16 %v811, %v811
  %v876 = vpack.c.b16 %v812, %v812
  %v877 = vpack.c.b16 %v813, %v813
  %v878 = vpack.c.b16 %v814, %v814
  %v879 = vpack.c.b16 %v815, %v815
  %v880 = vpack.c.b16 %v816, %v816
  %v881 = vpack.c.b16 %v817, %v817
  %v882 = vpack.c.b16 %v818, %v818
  %v883 = vpack.c.b16 %v819, %v819
  %v884 = vpack.c.b16 %v820, %v820
  %v885 = vpack.c.b16 %v821, %v821
  %v886 = vpack.c.b16 %v822, %v822
  %v887 = vpack.c.b16 %v823, %v823
  %v888 = vpack.c.b16 %v824, %v824
  %v889 = vpack.c.b16 %v825, %v825
  %v890 = vpack.c.b16 %v826, %v826
  %v891 = vpack.c.b16 %v827, %v827
  %v892 = vpack.c.b16 %v828, %v828
  %v893 = vpack.c.b16 %v829, %v829
  %v894 = vpack.c.b16 %v830, %v830
  %v895 = vpack.c.b16 %v831, %v831
  %v896 = vpack.c.b16 %v832, %v832
  %v897 = vpack.c.b16 %v833, %v833
  %v898 = vpack.c.b16 %v834, %v834
  %v899 = vpack.c.b16 %v835, %v835
  %v900 = vpack.c.b16 %v836, %v836
  %v901 = vpack.c.b16 %v837, %v837
  %v902 = vpack.c.b16 %v838, %v838
  %v903 = vpack.c.b16 %v839, %v839
  %v904 = vpack.c.b16 %v840, %v840
  %v905 = vpack.c.b16 %v841, %v841
  %v906 = vpack.c.b16 %v842, %v842
  %v907 = vpack.c.b16 %v843, %v843
  %v908 = vpack.c.b16 %v844, %v844
  %v909 = vpack.c.b16 %v845, %v845
  %v910 = vpack.c.b16 %v846, %v846
  %v911 = vpack.c.b16 %v847, %v847
  %v912 = vpack.c.b16 %v848, %v848
  %v913 = vpack.c.b16 %v849, %v849
  %v914 = vpack.c.b16 %v850, %v850
  %v915 = vpack.c.b16 %v851, %v851
  %v916 = vpack.c.b16 %v852, %v852
  %v917 = vpack.c.b16 %v853, %v853
  %v918 = vpack.c.b16 %v854, %v854
  %v919 = vpack.c.b16 %v855, %v855
  %v920 = vpack.c.b16 %v856, %v856
  %v921 = vpack.c.b16 %v857, %v857
  %v922 = vpack.c.b16 %v858, %v858
  %v923 = vpack.c.b16 %v859, %v859
  %v924 = vpack.c.b16 %v860, %v860
  %v925 = vpack.c.b16 %v861, %v861
  %v926 = vpack.c.b16 %v862, %v862
  %v927 = vpack.c.b16 %v863, %v863
  %v928 = vpack.c.b16 %v864, %v864
  %v929 = vpack.c.b16 %v865, %v865
  %v930 = vpack.c.b16 %v866, %v866
  %v931 = vpack.c.b16 %v867, %v867
  %996 = vst [vmem:[%s4] sm:$0xf] %v868
  %997 = vst [vmem:[%s4 + $0x4] sm:$0xf] %v869
  %998 = vst [vmem:[%s4 + $0x8] sm:$0xf] %v870
  %999 = vst [vmem:[%s4 + $0xc] sm:$0xf] %v871
  %1000 = vst [vmem:[%s4 + $0x10] sm:$0xf] %v872
  %1001 = vst [vmem:[%s4 + $0x14] sm:$0xf] %v873
  %1002 = vst [vmem:[%s4 + $0x18] sm:$0xf] %v874
  %1003 = vst [vmem:[%s4 + $0x1c] sm:$0xf] %v875
  %1004 = vst [vmem:[%s4 + $0x20] sm:$0xf] %v876
  %1005 = vst [vmem:[%s4 + $0x24] sm:$0xf] %v877
  %1006 = vst [vmem:[%s4 + $0x28] sm:$0xf] %v878
  %1007 = vst [vmem:[%s4 + $0x2c] sm:$0xf] %v879
  %1008 = vst [vmem:[%s4 + $0x30] sm:$0xf] %v880
  %1009 = vst [vmem:[%s4 + $0x34] sm:$0xf] %v881
  %1010 = vst [vmem:[%s4 + $0x38] sm:$0xf] %v882
  %1011 = vst [vmem:[%s4 + $0x3c] sm:$0xf] %v883
  %1012 = vst [vmem:[%s4 + $0x40] sm:$0xf] %v884
  %1013 = vst [vmem:[%s4 + $0x44] sm:$0xf] %v885
  %1014 = vst [vmem:[%s4 + $0x48] sm:$0xf] %v886
  %1015 = vst [vmem:[%s4 + $0x4c] sm:$0xf] %v887
  %1016 = vst [vmem:[%s4 + $0x50] sm:$0xf] %v888
  %1017 = vst [vmem:[%s4 + $0x54] sm:$0xf] %v889
  %1018 = vst [vmem:[%s4 + $0x58] sm:$0xf] %v890
  %1019 = vst [vmem:[%s4 + $0x5c] sm:$0xf] %v891
  %1020 = vst [vmem:[%s4 + $0x60] sm:$0xf] %v892
  %1021 = vst [vmem:[%s4 + $0x64] sm:$0xf] %v893
  %1022 = vst [vmem:[%s4 + $0x68] sm:$0xf] %v894
  %1023 = vst [vmem:[%s4 + $0x6c] sm:$0xf] %v895
  %1024 = vst [vmem:[%s4 + $0x70] sm:$0xf] %v896
  %1025 = vst [vmem:[%s4 + $0x74] sm:$0xf] %v897
  %1026 = vst [vmem:[%s4 + $0x78] sm:$0xf] %v898
  %1027 = vst [vmem:[%s4 + $0x7c] sm:$0xf] %v899
  %1028 = vst [vmem:[%s4 + $0x80] sm:$0xf] %v900
  %1029 = vst [vmem:[%s4 + $0x84] sm:$0xf] %v901
  %1030 = vst [vmem:[%s4 + $0x88] sm:$0xf] %v902
  %1031 = vst [vmem:[%s4 + $0x8c] sm:$0xf] %v903
  %1032 = vst [vmem:[%s4 + $0x90] sm:$0xf] %v904
  %1033 = vst [vmem:[%s4 + $0x94] sm:$0xf] %v905
  %1034 = vst [vmem:[%s4 + $0x98] sm:$0xf] %v906
  %1035 = vst [vmem:[%s4 + $0x9c] sm:$0xf] %v907
  %1036 = vst [vmem:[%s4 + $0xa0] sm:$0xf] %v908
  %1037 = vst [vmem:[%s4 + $0xa4] sm:$0xf] %v909
  %1038 = vst [vmem:[%s4 + $0xa8] sm:$0xf] %v910
  %1039 = vst [vmem:[%s4 + $0xac] sm:$0xf] %v911
  %1040 = vst [vmem:[%s4 + $0xb0] sm:$0xf] %v912
  %1041 = vst [vmem:[%s4 + $0xb4] sm:$0xf] %v913
  %1042 = vst [vmem:[%s4 + $0xb8] sm:$0xf] %v914
  %1043 = vst [vmem:[%s4 + $0xbc] sm:$0xf] %v915
  %1044 = vst [vmem:[%s4 + $0xc0] sm:$0xf] %v916
  %1045 = vst [vmem:[%s4 + $0xc4] sm:$0xf] %v917
  %1046 = vst [vmem:[%s4 + $0xc8] sm:$0xf] %v918
  %1047 = vst [vmem:[%s4 + $0xcc] sm:$0xf] %v919
  %1048 = vst [vmem:[%s4 + $0xd0] sm:$0xf] %v920
  %1049 = vst [vmem:[%s4 + $0xd4] sm:$0xf] %v921
  %1050 = vst [vmem:[%s4 + $0xd8] sm:$0xf] %v922
  %1051 = vst [vmem:[%s4 + $0xdc] sm:$0xf] %v923
  %1052 = vst [vmem:[%s4 + $0xe0] sm:$0xf] %v924
  %1053 = vst [vmem:[%s4 + $0xe4] sm:$0xf] %v925
  %1054 = vst [vmem:[%s4 + $0xe8] sm:$0xf] %v926
  %1055 = vst [vmem:[%s4 + $0xec] sm:$0xf] %v927
  %1056 = vst [vmem:[%s4 + $0xf0] sm:$0xf] %v928
  %1057 = vst [vmem:[%s4 + $0xf4] sm:$0xf] %v929
  %1058 = vst [vmem:[%s4 + $0xf8] sm:$0xf] %v930
  %1059 = vst [vmem:[%s4 + $0xfc] sm:$0xf] %v931
  %v1060 = vadd.f32 %v486, %v489
  %v1061 = vadd.f32 %v1060, %v494
  %v1062 = vadd.f32 %v1061, %v497
  %v1063 = vadd.f32 %v1062, %v502
  %v1064 = vadd.f32 %v1063, %v505
  %v1065 = vadd.f32 %v1064, %v510
  %v1066 = vadd.f32 %v1065, %v513
  %v1067 = vadd.f32 %v1066, %v518
  %v1068 = vadd.f32 %v1067, %v521
  %v1069 = vadd.f32 %v1068, %v526
  %v1070 = vadd.f32 %v1069, %v529
  %v1071 = vadd.f32 %v1070, %v534
  %v1072 = vadd.f32 %v1071, %v537
  %v1073 = vadd.f32 %v1072, %v542
  %v1074 = vadd.f32 %v1073, %v545
  %v1075 = vadd.f32 %v1074, %v550
  %v1076 = vadd.f32 %v1075, %v553
  %v1077 = vadd.f32 %v1076, %v558
  %v1078 = vadd.f32 %v1077, %v561
  %v1079 = vadd.f32 %v1078, %v566
  %v1080 = vadd.f32 %v1079, %v569
  %v1081 = vadd.f32 %v1080, %v574
  %v1082 = vadd.f32 %v1081, %v577
  %v1083 = vadd.f32 %v1082, %v582
  %v1084 = vadd.f32 %v1083, %v585
  %v1085 = vadd.f32 %v1084, %v590
  %v1086 = vadd.f32 %v1085, %v593
  %v1087 = vadd.f32 %v1086, %v598
  %v1088 = vadd.f32 %v1087, %v601
  %v1089 = vadd.f32 %v1088, %v606
  %v1090 = vadd.f32 %v1089, %v609
  %v1091 = vadd.f32 %v1090, %v614
  %v1092 = vadd.f32 %v1091, %v617
  %v1093 = vadd.f32 %v1092, %v622
  %v1094 = vadd.f32 %v1093, %v625
  %v1095 = vadd.f32 %v1094, %v630
  %v1096 = vadd.f32 %v1095, %v633
  %v1097 = vadd.f32 %v1096, %v638
  %v1098 = vadd.f32 %v1097, %v641
  %v1099 = vadd.f32 %v1098, %v646
  %v1100 = vadd.f32 %v1099, %v649
  %v1101 = vadd.f32 %v1100, %v654
  %v1102 = vadd.f32 %v1101, %v657
  %v1103 = vadd.f32 %v1102, %v662
  %v1104 = vadd.f32 %v1103, %v665
  %v1105 = vadd.f32 %v1104, %v670
  %v1106 = vadd.f32 %v1105, %v673
  %v1107 = vadd.f32 %v1106, %v678
  %v1108 = vadd.f32 %v1107, %v681
  %v1109 = vadd.f32 %v1108, %v686
  %v1110 = vadd.f32 %v1109, %v689
  %v1111 = vadd.f32 %v1110, %v694
  %v1112 = vadd.f32 %v1111, %v697
  %v1113 = vadd.f32 %v1112, %v702
  %v1114 = vadd.f32 %v1113, %v705
  %v1115 = vadd.f32 %v1114, %v710
  %v1116 = vadd.f32 %v1115, %v713
  %v1117 = vadd.f32 %v1116, %v718
  %v1118 = vadd.f32 %v1117, %v721
  %v1119 = vadd.f32 %v1118, %v726
  %v1120 = vadd.f32 %v1119, %v729
  %v1121 = vadd.f32 %v1120, %v734
  %v1122 = vadd.f32 %v1121, %v737
  %v1123 = vrot.slane %v1122, 4
  %v1124 = vadd.f32 %v1122, %v1123
  %v1125 = vrot.slane %v1124, 2
  %v1126 = vadd.f32 %v1124, %v1125
  %v1127 = vrot.slane %v1126, 1
  %v1128 = vadd.f32 %v1126, %v1127
  %1129 = vst [vmem:[%s5] sm:$0x1] %v1128
  %v1130 = vmul.f32 %v486, %v486
  %v1131 = vmul.f32 %v489, %v489
  %v1132 = vmul.f32 %v494, %v494
  %v1133 = vmul.f32 %v497, %v497
  %v1134 = vmul.f32 %v502, %v502
  %v1135 = vmul.f32 %v505, %v505
  %v1136 = vmul.f32 %v510, %v510
  %v1137 = vmul.f32 %v513, %v513
  %v1138 = vmul.f32 %v518, %v518
  %v1139 = vmul.f32 %v521, %v521
  %v1140 = vmul.f32 %v526, %v526
  %v1141 = vmul.f32 %v529, %v529
  %v1142 = vmul.f32 %v534, %v534
  %v1143 = vmul.f32 %v537, %v537
  %v1144 = vmul.f32 %v542, %v542
  %v1145 = vmul.f32 %v545, %v545
  %v1146 = vmul.f32 %v550, %v550
  %v1147 = vmul.f32 %v553, %v553
  %v1148 = vmul.f32 %v558, %v558
  %v1149 = vmul.f32 %v561, %v561
  %v1150 = vmul.f32 %v566, %v566
  %v1151 = vmul.f32 %v569, %v569
  %v1152 = vmul.f32 %v574, %v574
  %v1153 = vmul.f32 %v577, %v577
  %v1154 = vmul.f32 %v582, %v582
  %v1155 = vmul.f32 %v585, %v585
  %v1156 = vmul.f32 %v590, %v590
  %v1157 = vmul.f32 %v593, %v593
  %v1158 = vmul.f32 %v598, %v598
  %v1159 = vmul.f32 %v601, %v601
  %v1160 = vmul.f32 %v606, %v606
  %v1161 = vmul.f32 %v609, %v609
  %v1162 = vmul.f32 %v614, %v614
  %v1163 = vmul.f32 %v617, %v617
  %v1164 = vmul.f32 %v622, %v622
  %v1165 = vmul.f32 %v625, %v625
  %v1166 = vmul.f32 %v630, %v630
  %v1167 = vmul.f32 %v633, %v633
  %v1168 = vmul.f32 %v638, %v638
  %v1169 = vmul.f32 %v641, %v641
  %v1170 = vmul.f32 %v646, %v646
  %v1171 = vmul.f32 %v649, %v649
  %v1172 = vmul.f32 %v654, %v654
  %v1173 = vmul.f32 %v657, %v657
  %v1174 = vmul.f32 %v662, %v662
  %v1175 = vmul.f32 %v665, %v665
  %v1176 = vmul.f32 %v670, %v670
  %v1177 = vmul.f32 %v673, %v673
  %v1178 = vmul.f32 %v678, %v678
  %v1179 = vmul.f32 %v681, %v681
  %v1180 = vmul.f32 %v686, %v686
  %v1181 = vmul.f32 %v689, %v689
  %v1182 = vmul.f32 %v694, %v694
  %v1183 = vmul.f32 %v697, %v697
  %v1184 = vmul.f32 %v702, %v702
  %v1185 = vmul.f32 %v705, %v705
  %v1186 = vmul.f32 %v710, %v710
  %v1187 = vmul.f32 %v713, %v713
  %v1188 = vmul.f32 %v718, %v718
  %v1189 = vmul.f32 %v721, %v721
  %v1190 = vmul.f32 %v726, %v726
  %v1191 = vmul.f32 %v729, %v729
  %v1192 = vmul.f32 %v734, %v734
  %v1193 = vmul.f32 %v737, %v737
  %v1194 = vadd.f32 %v1130, %v1131
  %v1195 = vadd.f32 %v1194, %v1132
  %v1196 = vadd.f32 %v1195, %v1133
  %v1197 = vadd.f32 %v1196, %v1134
  %v1198 = vadd.f32 %v1197, %v1135
  %v1199 = vadd.f32 %v1198, %v1136
  %v1200 = vadd.f32 %v1199, %v1137
  %v1201 = vadd.f32 %v1200, %v1138
  %v1202 = vadd.f32 %v1201, %v1139
  %v1203 = vadd.f32 %v1202, %v1140
  %v1204 = vadd.f32 %v1203, %v1141
  %v1205 = vadd.f32 %v1204, %v1142
  %v1206 = vadd.f32 %v1205, %v1143
  %v1207 = vadd.f32 %v1206, %v1144
  %v1208 = vadd.f32 %v1207, %v1145
  %v1209 = vadd.f32 %v1208, %v1146
  %v1210 = vadd.f32 %v1209, %v1147
  %v1211 = vadd.f32 %v1210, %v1148
  %v1212 = vadd.f32 %v1211, %v1149
  %v1213 = vadd.f32 %v1212, %v1150
  %v1214 = vadd.f32 %v1213, %v1151
  %v1215 = vadd.f32 %v1214, %v1152
  %v1216 = vadd.f32 %v1215, %v1153
  %v1217 = vadd.f32 %v1216, %v1154
  %v1218 = vadd.f32 %v1217, %v1155
  %v1219 = vadd.f32 %v1218, %v1156
  %v1220 = vadd.f32 %v1219, %v1157
  %v1221 = vadd.f32 %v1220, %v1158
  %v1222 = vadd.f32 %v1221, %v1159
  %v1223 = vadd.f32 %v1222, %v1160
  %v1224 = vadd.f32 %v1223, %v1161
  %v1225 = vadd.f32 %v1224, %v1162
  %v1226 = vadd.f32 %v1225, %v1163
  %v1227 = vadd.f32 %v1226, %v1164
  %v1228 = vadd.f32 %v1227, %v1165
  %v1229 = vadd.f32 %v1228, %v1166
  %v1230 = vadd.f32 %v1229, %v1167
  %v1231 = vadd.f32 %v1230, %v1168
  %v1232 = vadd.f32 %v1231, %v1169
  %v1233 = vadd.f32 %v1232, %v1170
  %v1234 = vadd.f32 %v1233, %v1171
  %v1235 = vadd.f32 %v1234, %v1172
  %v1236 = vadd.f32 %v1235, %v1173
  %v1237 = vadd.f32 %v1236, %v1174
  %v1238 = vadd.f32 %v1237, %v1175
  %v1239 = vadd.f32 %v1238, %v1176
  %v1240 = vadd.f32 %v1239, %v1177
  %v1241 = vadd.f32 %v1240, %v1178
  %v1242 = vadd.f32 %v1241, %v1179
  %v1243 = vadd.f32 %v1242, %v1180
  %v1244 = vadd.f32 %v1243, %v1181
  %v1245 = vadd.f32 %v1244, %v1182
  %v1246 = vadd.f32 %v1245, %v1183
  %v1247 = vadd.f32 %v1246, %v1184
  %v1248 = vadd.f32 %v1247, %v1185
  %v1249 = vadd.f32 %v1248, %v1186
  %v1250 = vadd.f32 %v1249, %v1187
  %v1251 = vadd.f32 %v1250, %v1188
  %v1252 = vadd.f32 %v1251, %v1189
  %v1253 = vadd.f32 %v1252, %v1190
  %v1254 = vadd.f32 %v1253, %v1191
  %v1255 = vadd.f32 %v1254, %v1192
  %v1256 = vadd.f32 %v1255, %v1193
  %v1257 = vrot.slane %v1256, 4
  %v1258 = vadd.f32 %v1256, %v1257
  %v1259 = vrot.slane %v1258, 2
  %v1260 = vadd.f32 %v1258, %v1259
  %v1261 = vrot.slane %v1260, 1
  %v1262 = vadd.f32 %v1260, %v1261
  %1263 = vst [vmem:[%s6] sm:$0x1] %v1262
  // Predicated region
  $region18: #{bottleneck_forward.6} parent=0 // pred_check
    _
  $region19: #{bottleneck_forward.6} parent=0 // pred_check_branch
    %1265 = sbr.rel (0) target = $region21
  $region20: #{bottleneck_forward.6} parent=0 // pred_region
    _
  $region21: #{bottleneck_forward.6} parent=0 // pred_fallthru
    _
  // Predicated region
  $region22: #{bottleneck_forward.6} parent=0 // pred_check
    _
  $region23: #{bottleneck_forward.6} parent=0 // pred_check_branch
    %1267 = sbr.rel (0) target = $region25
  $region24: #{bottleneck_forward.6} parent=0 // pred_region
    _
  $region25: #{bottleneck_forward.6} parent=0 // pred_fallthru
    _
  // Predicated region
  $region26: #{bottleneck_forward.6} parent=0 // pred_check
    _
  $region27: #{bottleneck_forward.6} parent=0 // pred_check_branch
    %1269 = sbr.rel (0) target = $region29
  $region28: #{bottleneck_forward.6} parent=0 // pred_region
    _
  $region29: #{bottleneck_forward.6} parent=0 // pred_fallthru
    _
  // Predicated region
  $region30: #{bottleneck_forward.6} parent=0 // pred_check
    _
  $region31: #{bottleneck_forward.6} parent=0 // pred_check_branch
    %1271 = sbr.rel (0) target = $region33
  $region32: #{bottleneck_forward.6} parent=0 // pred_region
    _
  $region33: #{bottleneck_forward.6} parent=0 // pred_fallthru
    _
  // Predicated region
  $region34: #{bottleneck_forward.6} parent=0 // pred_check
    _
  $region35: #{bottleneck_forward.6} parent=0 // pred_check_branch
    %1273 = sbr.rel (0) target = $region37
  $region36: #{bottleneck_forward.6} parent=0 // pred_region
    _
  $region37: #{bottleneck_forward.6} parent=0 // pred_fallthru
    _
  // Predicated region
  $region38: #{bottleneck_forward.6} parent=0 // pred_check
    _
  $region39: #{bottleneck_forward.6} parent=0 // pred_check_branch
    %1275 = sbr.rel (0) target = $region41
  $region40: #{bottleneck_forward.6} parent=0 // pred_region
    _
  $region41: #{bottleneck_forward.6} parent=0 // pred_fallthru
    _

// kernel: bottleneck_forward.7
$region0: #{bottleneck_forward.7}
  #allocation0 [shape = 'u32[]', space=smem, size = 0x4, offset = 0x4, fixed_abs, tag = 'smem constant byte address 0x4 - core index']
  #allocation1 [shape = 'u32[144,128]{1,0:T(1,128)}', space=vmem, size = 0x12000, scoped, tag = 'internal scratch']
  %s0 = inlined_call_operand.vmem [shape: bf16[512,128], index: 0, kind: input, shape index: {}]
  %s1 = inlined_call_operand.vmem [shape: f32[1,128], index: 1, kind: input, shape index: {}]
  %s2 = inlined_call_operand.vmem [shape: f32[1,128], index: 2, kind: input, shape index: {}]
  %s3 = inlined_call_operand.vmem [shape: bf16[512,128], index: 3, kind: input, shape index: {}]
  %s4 = inlined_call_operand.vmem [shape: f32[1,128], index: 4, kind: input, shape index: {}]
  %s5 = inlined_call_operand.vmem [shape: f32[1,128], index: 5, kind: input, shape index: {}]
  %s6 = inlined_call_operand.vmem [shape: f32[512,128], index: 6, kind: output, shape index: {}]
  %s7 = sld [smem:[#allocation0]]
  $region34: #{bottleneck_forward.7} parent=0
    _
  %s9 = ssub.s32 1, %s7
  %s10 = scalar_select 0, %s9, %s7
  // Predicated region
  $region2: #{bottleneck_forward.7} parent=0 // pred_check
    _
  $region3: #{bottleneck_forward.7} parent=0 // pred_check_branch
    %12 = sbr.rel (0) target = $region5
  $region4: #{bottleneck_forward.7} parent=0 // pred_region
    _
  $region5: #{bottleneck_forward.7} parent=0 // pred_fallthru
    _
  // Predicated region
  $region6: #{bottleneck_forward.7} parent=0 // pred_check
    _
  $region7: #{bottleneck_forward.7} parent=0 // pred_check_branch
    %14 = sbr.rel (0) target = $region9
  $region8: #{bottleneck_forward.7} parent=0 // pred_region
    _
  $region9: #{bottleneck_forward.7} parent=0 // pred_fallthru
    _
  // Predicated region
  $region10: #{bottleneck_forward.7} parent=0 // pred_check
    _
  $region11: #{bottleneck_forward.7} parent=0 // pred_check_branch
    %16 = sbr.rel (0) target = $region13
  $region12: #{bottleneck_forward.7} parent=0 // pred_region
    _
  $region13: #{bottleneck_forward.7} parent=0 // pred_fallthru
    _
  // Predicated region
  $region14: #{bottleneck_forward.7} parent=0 // pred_check
    _
  $region15: #{bottleneck_forward.7} parent=0 // pred_check_branch
    %18 = sbr.rel (0) target = $region17
  $region16: #{bottleneck_forward.7} parent=0 // pred_region
    _
  $region17: #{bottleneck_forward.7} parent=0 // pred_fallthru
    _
  // Predicated region
  $region18: #{bottleneck_forward.7} parent=0 // pred_check
    _
  $region19: #{bottleneck_forward.7} parent=0 // pred_check_branch
    %20 = sbr.rel (0) target = $region21
  $region20: #{bottleneck_forward.7} parent=0 // pred_region
    _
  $region21: #{bottleneck_forward.7} parent=0 // pred_fallthru
    _
  // Predicated region
  $region22: #{bottleneck_forward.7} parent=0 // pred_check
    _
  $region23: #{bottleneck_forward.7} parent=0 // pred_check_branch
    %22 = sbr.rel (0) target = $region25
  $region24: #{bottleneck_forward.7} parent=0 // pred_region
    _
  $region25: #{bottleneck_forward.7} parent=0 // pred_fallthru
    _
  %v23 = vld [vmem:[%s3] sm:$0xf]
  %v24 = vld [vmem:[%s3 + $0x4] sm:$0xf]
  %v25 = vld [vmem:[%s3 + $0x8] sm:$0xf]
  %v26 = vld [vmem:[%s3 + $0xc] sm:$0xf]
  %v27 = vld [vmem:[%s3 + $0x10] sm:$0xf]
  %v28 = vld [vmem:[%s3 + $0x14] sm:$0xf]
  %v29 = vld [vmem:[%s3 + $0x18] sm:$0xf]
  %v30 = vld [vmem:[%s3 + $0x1c] sm:$0xf]
  %v31 = vld [vmem:[%s3 + $0x20] sm:$0xf]
  %v32 = vld [vmem:[%s3 + $0x24] sm:$0xf]
  %v33 = vld [vmem:[%s3 + $0x28] sm:$0xf]
  %v34 = vld [vmem:[%s3 + $0x2c] sm:$0xf]
  %v35 = vld [vmem:[%s3 + $0x30] sm:$0xf]
  %v36 = vld [vmem:[%s3 + $0x34] sm:$0xf]
  %v37 = vld [vmem:[%s3 + $0x38] sm:$0xf]
  %v38 = vld [vmem:[%s3 + $0x3c] sm:$0xf]
  %v39 = vld [vmem:[%s3 + $0x40] sm:$0xf]
  %v40 = vld [vmem:[%s3 + $0x44] sm:$0xf]
  %v41 = vld [vmem:[%s3 + $0x48] sm:$0xf]
  %v42 = vld [vmem:[%s3 + $0x4c] sm:$0xf]
  %v43 = vld [vmem:[%s3 + $0x50] sm:$0xf]
  %v44 = vld [vmem:[%s3 + $0x54] sm:$0xf]
  %v45 = vld [vmem:[%s3 + $0x58] sm:$0xf]
  %v46 = vld [vmem:[%s3 + $0x5c] sm:$0xf]
  %v47 = vld [vmem:[%s3 + $0x60] sm:$0xf]
  %v48 = vld [vmem:[%s3 + $0x64] sm:$0xf]
  %v49 = vld [vmem:[%s3 + $0x68] sm:$0xf]
  %v50 = vld [vmem:[%s3 + $0x6c] sm:$0xf]
  %v51 = vld [vmem:[%s3 + $0x70] sm:$0xf]
  %v52 = vld [vmem:[%s3 + $0x74] sm:$0xf]
  %v53 = vld [vmem:[%s3 + $0x78] sm:$0xf]
  %v54 = vld [vmem:[%s3 + $0x7c] sm:$0xf]
  %v55 = vld [vmem:[%s3 + $0x80] sm:$0xf]
  %v56 = vld [vmem:[%s3 + $0x84] sm:$0xf]
  %v57 = vld [vmem:[%s3 + $0x88] sm:$0xf]
  %v58 = vld [vmem:[%s3 + $0x8c] sm:$0xf]
  %v59 = vld [vmem:[%s3 + $0x90] sm:$0xf]
  %v60 = vld [vmem:[%s3 + $0x94] sm:$0xf]
  %v61 = vld [vmem:[%s3 + $0x98] sm:$0xf]
  %v62 = vld [vmem:[%s3 + $0x9c] sm:$0xf]
  %v63 = vld [vmem:[%s3 + $0xa0] sm:$0xf]
  %v64 = vld [vmem:[%s3 + $0xa4] sm:$0xf]
  %v65 = vld [vmem:[%s3 + $0xa8] sm:$0xf]
  %v66 = vld [vmem:[%s3 + $0xac] sm:$0xf]
  %v67 = vld [vmem:[%s3 + $0xb0] sm:$0xf]
  %v68 = vld [vmem:[%s3 + $0xb4] sm:$0xf]
  %v69 = vld [vmem:[%s3 + $0xb8] sm:$0xf]
  %v70 = vld [vmem:[%s3 + $0xbc] sm:$0xf]
  %v71 = vld [vmem:[%s3 + $0xc0] sm:$0xf]
  %v72 = vld [vmem:[%s3 + $0xc4] sm:$0xf]
  %v73 = vld [vmem:[%s3 + $0xc8] sm:$0xf]
  %v74 = vld [vmem:[%s3 + $0xcc] sm:$0xf]
  %v75 = vld [vmem:[%s3 + $0xd0] sm:$0xf]
  %v76 = vld [vmem:[%s3 + $0xd4] sm:$0xf]
  %v77 = vld [vmem:[%s3 + $0xd8] sm:$0xf]
  %v78 = vld [vmem:[%s3 + $0xdc] sm:$0xf]
  %v79 = vld [vmem:[%s3 + $0xe0] sm:$0xf]
  %v80 = vld [vmem:[%s3 + $0xe4] sm:$0xf]
  %v81 = vld [vmem:[%s3 + $0xe8] sm:$0xf]
  %v82 = vld [vmem:[%s3 + $0xec] sm:$0xf]
  %v83 = vld [vmem:[%s3 + $0xf0] sm:$0xf]
  %v84 = vld [vmem:[%s3 + $0xf4] sm:$0xf]
  %v85 = vld [vmem:[%s3 + $0xf8] sm:$0xf]
  %v86 = vld [vmem:[%s3 + $0xfc] sm:$0xf]
  %v87 = vunpack.c.l.bf16 %v23
  %v88 = vunpack.c.l.bf16 %v24
  %v89 = vunpack.c.l.bf16 %v25
  %v90 = vunpack.c.l.bf16 %v26
  %v91 = vunpack.c.l.bf16 %v27
  %v92 = vunpack.c.l.bf16 %v28
  %v93 = vunpack.c.l.bf16 %v29
  %v94 = vunpack.c.l.bf16 %v30
  %v95 = vunpack.c.l.bf16 %v31
  %v96 = vunpack.c.l.bf16 %v32
  %v97 = vunpack.c.l.bf16 %v33
  %v98 = vunpack.c.l.bf16 %v34
  %v99 = vunpack.c.l.bf16 %v35
  %v100 = vunpack.c.l.bf16 %v36
  %v101 = vunpack.c.l.bf16 %v37
  %v102 = vunpack.c.l.bf16 %v38
  %v103 = vunpack.c.l.bf16 %v39
  %v104 = vunpack.c.l.bf16 %v40
  %v105 = vunpack.c.l.bf16 %v41
  %v106 = vunpack.c.l.bf16 %v42
  %v107 = vunpack.c.l.bf16 %v43
  %v108 = vunpack.c.l.bf16 %v44
  %v109 = vunpack.c.l.bf16 %v45
  %v110 = vunpack.c.l.bf16 %v46
  %v111 = vunpack.c.l.bf16 %v47
  %v112 = vunpack.c.l.bf16 %v48
  %v113 = vunpack.c.l.bf16 %v49
  %v114 = vunpack.c.l.bf16 %v50
  %v115 = vunpack.c.l.bf16 %v51
  %v116 = vunpack.c.l.bf16 %v52
  %v117 = vunpack.c.l.bf16 %v53
  %v118 = vunpack.c.l.bf16 %v54
  %v119 = vunpack.c.l.bf16 %v55
  %v120 = vunpack.c.l.bf16 %v56
  %v121 = vunpack.c.l.bf16 %v57
  %v122 = vunpack.c.l.bf16 %v58
  %v123 = vunpack.c.l.bf16 %v59
  %v124 = vunpack.c.l.bf16 %v60
  %v125 = vunpack.c.l.bf16 %v61
  %v126 = vunpack.c.l.bf16 %v62
  %v127 = vunpack.c.l.bf16 %v63
  %v128 = vunpack.c.l.bf16 %v64
  %v129 = vunpack.c.l.bf16 %v65
  %v130 = vunpack.c.l.bf16 %v66
  %v131 = vunpack.c.l.bf16 %v67
  %v132 = vunpack.c.l.bf16 %v68
  %v133 = vunpack.c.l.bf16 %v69
  %v134 = vunpack.c.l.bf16 %v70
  %v135 = vunpack.c.l.bf16 %v71
  %v136 = vunpack.c.l.bf16 %v72
  %v137 = vunpack.c.l.bf16 %v73
  %v138 = vunpack.c.l.bf16 %v74
  %v139 = vunpack.c.l.bf16 %v75
  %v140 = vunpack.c.l.bf16 %v76
  %v141 = vunpack.c.l.bf16 %v77
  %v142 = vunpack.c.l.bf16 %v78
  %v143 = vunpack.c.l.bf16 %v79
  %v144 = vunpack.c.l.bf16 %v80
  %v145 = vunpack.c.l.bf16 %v81
  %v146 = vunpack.c.l.bf16 %v82
  %v147 = vunpack.c.l.bf16 %v83
  %v148 = vunpack.c.l.bf16 %v84
  %v149 = vunpack.c.l.bf16 %v85
  %v150 = vunpack.c.l.bf16 %v86
  %v151 = vld [vmem:[%s4] sm:$0x1]
  %v153 = vlaneseq
  %v154 = vshrl.u32 %v153, 7
  %v155 = vsub.s32 0, %v154
  %v156 = vrot.slane %v151, %v155
  %v158 = vmul.f32 %v87, %v156
  %v159 = vmul.f32 %v88, %v156
  %v160 = vmul.f32 %v89, %v156
  %v161 = vmul.f32 %v90, %v156
  %v162 = vmul.f32 %v91, %v156
  %v163 = vmul.f32 %v92, %v156
  %v164 = vmul.f32 %v93, %v156
  %v165 = vmul.f32 %v94, %v156
  %v166 = vmul.f32 %v95, %v156
  %v167 = vmul.f32 %v96, %v156
  %v168 = vmul.f32 %v97, %v156
  %v169 = vmul.f32 %v98, %v156
  %v170 = vmul.f32 %v99, %v156
  %v171 = vmul.f32 %v100, %v156
  %v172 = vmul.f32 %v101, %v156
  %v173 = vmul.f32 %v102, %v156
  %v174 = vmul.f32 %v103, %v156
  %v175 = vmul.f32 %v104, %v156
  %v176 = vmul.f32 %v105, %v156
  %v177 = vmul.f32 %v106, %v156
  %v178 = vmul.f32 %v107, %v156
  %v179 = vmul.f32 %v108, %v156
  %v180 = vmul.f32 %v109, %v156
  %v181 = vmul.f32 %v110, %v156
  %v182 = vmul.f32 %v111, %v156
  %v183 = vmul.f32 %v112, %v156
  %v184 = vmul.f32 %v113, %v156
  %v185 = vmul.f32 %v114, %v156
  %v186 = vmul.f32 %v115, %v156
  %v187 = vmul.f32 %v116, %v156
  %v188 = vmul.f32 %v117, %v156
  %v189 = vmul.f32 %v118, %v156
  %v190 = vmul.f32 %v119, %v156
  %v191 = vmul.f32 %v120, %v156
  %v192 = vmul.f32 %v121, %v156
  %v193 = vmul.f32 %v122, %v156
  %v194 = vmul.f32 %v123, %v156
  %v195 = vmul.f32 %v124, %v156
  %v196 = vmul.f32 %v125, %v156
  %v197 = vmul.f32 %v126, %v156
  %v198 = vmul.f32 %v127, %v156
  %v199 = vmul.f32 %v128, %v156
  %v200 = vmul.f32 %v129, %v156
  %v201 = vmul.f32 %v130, %v156
  %v202 = vmul.f32 %v131, %v156
  %v203 = vmul.f32 %v132, %v156
  %v204 = vmul.f32 %v133, %v156
  %v205 = vmul.f32 %v134, %v156
  %v206 = vmul.f32 %v135, %v156
  %v207 = vmul.f32 %v136, %v156
  %v208 = vmul.f32 %v137, %v156
  %v209 = vmul.f32 %v138, %v156
  %v210 = vmul.f32 %v139, %v156
  %v211 = vmul.f32 %v140, %v156
  %v212 = vmul.f32 %v141, %v156
  %v213 = vmul.f32 %v142, %v156
  %v214 = vmul.f32 %v143, %v156
  %v215 = vmul.f32 %v144, %v156
  %v216 = vmul.f32 %v145, %v156
  %v217 = vmul.f32 %v146, %v156
  %v218 = vmul.f32 %v147, %v156
  %v219 = vmul.f32 %v148, %v156
  %v220 = vmul.f32 %v149, %v156
  %v221 = vmul.f32 %v150, %v156
  %v222 = vld [vmem:[%s5] sm:$0x1]
  %v224 = vlaneseq
  %v225 = vshrl.u32 %v224, 7
  %v226 = vsub.s32 0, %v225
  %v227 = vrot.slane %v222, %v226
  %v229 = vadd.f32 %v158, %v227
  %v230 = vadd.f32 %v159, %v227
  %v231 = vadd.f32 %v160, %v227
  %v232 = vadd.f32 %v161, %v227
  %v233 = vadd.f32 %v162, %v227
  %v234 = vadd.f32 %v163, %v227
  %v235 = vadd.f32 %v164, %v227
  %v236 = vadd.f32 %v165, %v227
  %v237 = vadd.f32 %v166, %v227
  %v238 = vadd.f32 %v167, %v227
  %v239 = vadd.f32 %v168, %v227
  %v240 = vadd.f32 %v169, %v227
  %v241 = vadd.f32 %v170, %v227
  %v242 = vadd.f32 %v171, %v227
  %v243 = vadd.f32 %v172, %v227
  %v244 = vadd.f32 %v173, %v227
  %v245 = vadd.f32 %v174, %v227
  %v246 = vadd.f32 %v175, %v227
  %v247 = vadd.f32 %v176, %v227
  %v248 = vadd.f32 %v177, %v227
  %v249 = vadd.f32 %v178, %v227
  %v250 = vadd.f32 %v179, %v227
  %v251 = vadd.f32 %v180, %v227
  %v252 = vadd.f32 %v181, %v227
  %v253 = vadd.f32 %v182, %v227
  %v254 = vadd.f32 %v183, %v227
  %v255 = vadd.f32 %v184, %v227
  %v256 = vadd.f32 %v185, %v227
  %v257 = vadd.f32 %v186, %v227
  %v258 = vadd.f32 %v187, %v227
  %v259 = vadd.f32 %v188, %v227
  %v260 = vadd.f32 %v189, %v227
  %v261 = vadd.f32 %v190, %v227
  %v262 = vadd.f32 %v191, %v227
  %v263 = vadd.f32 %v192, %v227
  %v264 = vadd.f32 %v193, %v227
  %v265 = vadd.f32 %v194, %v227
  %v266 = vadd.f32 %v195, %v227
  %v267 = vadd.f32 %v196, %v227
  %v268 = vadd.f32 %v197, %v227
  %v269 = vadd.f32 %v198, %v227
  %v270 = vadd.f32 %v199, %v227
  %v271 = vadd.f32 %v200, %v227
  %v272 = vadd.f32 %v201, %v227
  %v273 = vadd.f32 %v202, %v227
  %v274 = vadd.f32 %v203, %v227
  %v275 = vadd.f32 %v204, %v227
  %v276 = vadd.f32 %v205, %v227
  %v277 = vadd.f32 %v206, %v227
  %v278 = vadd.f32 %v207, %v227
  %v279 = vadd.f32 %v208, %v227
  %v280 = vadd.f32 %v209, %v227
  %v281 = vadd.f32 %v210, %v227
  %v282 = vadd.f32 %v211, %v227
  %v283 = vadd.f32 %v212, %v227
  %v284 = vadd.f32 %v213, %v227
  %v285 = vadd.f32 %v214, %v227
  %v286 = vadd.f32 %v215, %v227
  %v287 = vadd.f32 %v216, %v227
  %v288 = vadd.f32 %v217, %v227
  %v289 = vadd.f32 %v218, %v227
  %v290 = vadd.f32 %v219, %v227
  %v291 = vadd.f32 %v220, %v227
  %v292 = vadd.f32 %v221, %v227
  %v293 = vld [vmem:[%s0] sm:$0xf]
  %v294 = vld [vmem:[%s0 + $0x4] sm:$0xf]
  %v295 = vld [vmem:[%s0 + $0x8] sm:$0xf]
  %v296 = vld [vmem:[%s0 + $0xc] sm:$0xf]
  %v297 = vld [vmem:[%s0 + $0x10] sm:$0xf]
  %v298 = vld [vmem:[%s0 + $0x14] sm:$0xf]
  %v299 = vld [vmem:[%s0 + $0x18] sm:$0xf]
  %v300 = vld [vmem:[%s0 + $0x1c] sm:$0xf]
  %v301 = vld [vmem:[%s0 + $0x20] sm:$0xf]
  %v302 = vld [vmem:[%s0 + $0x24] sm:$0xf]
  %v303 = vld [vmem:[%s0 + $0x28] sm:$0xf]
  %v304 = vld [vmem:[%s0 + $0x2c] sm:$0xf]
  %v305 = vld [vmem:[%s0 + $0x30] sm:$0xf]
  %v306 = vld [vmem:[%s0 + $0x34] sm:$0xf]
  %v307 = vld [vmem:[%s0 + $0x38] sm:$0xf]
  %v308 = vld [vmem:[%s0 + $0x3c] sm:$0xf]
  %v309 = vld [vmem:[%s0 + $0x40] sm:$0xf]
  %v310 = vld [vmem:[%s0 + $0x44] sm:$0xf]
  %v311 = vld [vmem:[%s0 + $0x48] sm:$0xf]
  %v312 = vld [vmem:[%s0 + $0x4c] sm:$0xf]
  %v313 = vld [vmem:[%s0 + $0x50] sm:$0xf]
  %v314 = vld [vmem:[%s0 + $0x54] sm:$0xf]
  %v315 = vld [vmem:[%s0 + $0x58] sm:$0xf]
  %v316 = vld [vmem:[%s0 + $0x5c] sm:$0xf]
  %v317 = vld [vmem:[%s0 + $0x60] sm:$0xf]
  %v318 = vld [vmem:[%s0 + $0x64] sm:$0xf]
  %v319 = vld [vmem:[%s0 + $0x68] sm:$0xf]
  %v320 = vld [vmem:[%s0 + $0x6c] sm:$0xf]
  %v321 = vld [vmem:[%s0 + $0x70] sm:$0xf]
  %v322 = vld [vmem:[%s0 + $0x74] sm:$0xf]
  %v323 = vld [vmem:[%s0 + $0x78] sm:$0xf]
  %v324 = vld [vmem:[%s0 + $0x7c] sm:$0xf]
  %v325 = vld [vmem:[%s0 + $0x80] sm:$0xf]
  %v326 = vld [vmem:[%s0 + $0x84] sm:$0xf]
  %v327 = vld [vmem:[%s0 + $0x88] sm:$0xf]
  %v328 = vld [vmem:[%s0 + $0x8c] sm:$0xf]
  %v329 = vld [vmem:[%s0 + $0x90] sm:$0xf]
  %v330 = vld [vmem:[%s0 + $0x94] sm:$0xf]
  %v331 = vld [vmem:[%s0 + $0x98] sm:$0xf]
  %v332 = vld [vmem:[%s0 + $0x9c] sm:$0xf]
  %v333 = vld [vmem:[%s0 + $0xa0] sm:$0xf]
  %v334 = vld [vmem:[%s0 + $0xa4] sm:$0xf]
  %v335 = vld [vmem:[%s0 + $0xa8] sm:$0xf]
  %v336 = vld [vmem:[%s0 + $0xac] sm:$0xf]
  %v337 = vld [vmem:[%s0 + $0xb0] sm:$0xf]
  %v338 = vld [vmem:[%s0 + $0xb4] sm:$0xf]
  %v339 = vld [vmem:[%s0 + $0xb8] sm:$0xf]
  %v340 = vld [vmem:[%s0 + $0xbc] sm:$0xf]
  %v341 = vld [vmem:[%s0 + $0xc0] sm:$0xf]
  %v342 = vld [vmem:[%s0 + $0xc4] sm:$0xf]
  %v343 = vld [vmem:[%s0 + $0xc8] sm:$0xf]
  %v344 = vld [vmem:[%s0 + $0xcc] sm:$0xf]
  %v345 = vld [vmem:[%s0 + $0xd0] sm:$0xf]
  %v346 = vld [vmem:[%s0 + $0xd4] sm:$0xf]
  %v347 = vld [vmem:[%s0 + $0xd8] sm:$0xf]
  %v348 = vld [vmem:[%s0 + $0xdc] sm:$0xf]
  %v349 = vld [vmem:[%s0 + $0xe0] sm:$0xf]
  %v350 = vld [vmem:[%s0 + $0xe4] sm:$0xf]
  %v351 = vld [vmem:[%s0 + $0xe8] sm:$0xf]
  %v352 = vld [vmem:[%s0 + $0xec] sm:$0xf]
  %v353 = vld [vmem:[%s0 + $0xf0] sm:$0xf]
  %v354 = vld [vmem:[%s0 + $0xf4] sm:$0xf]
  %v355 = vld [vmem:[%s0 + $0xf8] sm:$0xf]
  %v356 = vld [vmem:[%s0 + $0xfc] sm:$0xf]
  %v357 = vunpack.c.l.bf16 %v293
  %v358 = vunpack.c.l.bf16 %v294
  %v359 = vunpack.c.l.bf16 %v295
  %v360 = vunpack.c.l.bf16 %v296
  %v361 = vunpack.c.l.bf16 %v297
  %v362 = vunpack.c.l.bf16 %v298
  %v363 = vunpack.c.l.bf16 %v299
  %v364 = vunpack.c.l.bf16 %v300
  %v365 = vunpack.c.l.bf16 %v301
  %v366 = vunpack.c.l.bf16 %v302
  %v367 = vunpack.c.l.bf16 %v303
  %v368 = vunpack.c.l.bf16 %v304
  %v369 = vunpack.c.l.bf16 %v305
  %v370 = vunpack.c.l.bf16 %v306
  %v371 = vunpack.c.l.bf16 %v307
  %v372 = vunpack.c.l.bf16 %v308
  %v373 = vunpack.c.l.bf16 %v309
  %v374 = vunpack.c.l.bf16 %v310
  %v375 = vunpack.c.l.bf16 %v311
  %v376 = vunpack.c.l.bf16 %v312
  %v377 = vunpack.c.l.bf16 %v313
  %v378 = vunpack.c.l.bf16 %v314
  %v379 = vunpack.c.l.bf16 %v315
  %v380 = vunpack.c.l.bf16 %v316
  %v381 = vunpack.c.l.bf16 %v317
  %v382 = vunpack.c.l.bf16 %v318
  %v383 = vunpack.c.l.bf16 %v319
  %v384 = vunpack.c.l.bf16 %v320
  %v385 = vunpack.c.l.bf16 %v321
  %v386 = vunpack.c.l.bf16 %v322
  %v387 = vunpack.c.l.bf16 %v323
  %v388 = vunpack.c.l.bf16 %v324
  %v389 = vunpack.c.l.bf16 %v325
  %v390 = vunpack.c.l.bf16 %v326
  %v391 = vunpack.c.l.bf16 %v327
  %v392 = vunpack.c.l.bf16 %v328
  %v393 = vunpack.c.l.bf16 %v329
  %v394 = vunpack.c.l.bf16 %v330
  %v395 = vunpack.c.l.bf16 %v331
  %v396 = vunpack.c.l.bf16 %v332
  %v397 = vunpack.c.l.bf16 %v333
  %v398 = vunpack.c.l.bf16 %v334
  %v399 = vunpack.c.l.bf16 %v335
  %v400 = vunpack.c.l.bf16 %v336
  %v401 = vunpack.c.l.bf16 %v337
  %v402 = vunpack.c.l.bf16 %v338
  %v403 = vunpack.c.l.bf16 %v339
  %v404 = vunpack.c.l.bf16 %v340
  %v405 = vunpack.c.l.bf16 %v341
  %v406 = vunpack.c.l.bf16 %v342
  %v407 = vunpack.c.l.bf16 %v343
  %v408 = vunpack.c.l.bf16 %v344
  %v409 = vunpack.c.l.bf16 %v345
  %v410 = vunpack.c.l.bf16 %v346
  %v411 = vunpack.c.l.bf16 %v347
  %v412 = vunpack.c.l.bf16 %v348
  %v413 = vunpack.c.l.bf16 %v349
  %v414 = vunpack.c.l.bf16 %v350
  %v415 = vunpack.c.l.bf16 %v351
  %v416 = vunpack.c.l.bf16 %v352
  %v417 = vunpack.c.l.bf16 %v353
  %v418 = vunpack.c.l.bf16 %v354
  %v419 = vunpack.c.l.bf16 %v355
  %v420 = vunpack.c.l.bf16 %v356
  %v421 = vld [vmem:[%s1] sm:$0x1]
  %v423 = vlaneseq
  %v424 = vshrl.u32 %v423, 7
  %v425 = vsub.s32 0, %v424
  %v426 = vrot.slane %v421, %v425
  %v428 = vmul.f32 %v357, %v426
  %v429 = vmul.f32 %v358, %v426
  %v430 = vmul.f32 %v359, %v426
  %v431 = vmul.f32 %v360, %v426
  %v432 = vmul.f32 %v361, %v426
  %v433 = vmul.f32 %v362, %v426
  %v434 = vmul.f32 %v363, %v426
  %v435 = vmul.f32 %v364, %v426
  %v436 = vmul.f32 %v365, %v426
  %v437 = vmul.f32 %v366, %v426
  %v438 = vmul.f32 %v367, %v426
  %v439 = vmul.f32 %v368, %v426
  %v440 = vmul.f32 %v369, %v426
  %v441 = vmul.f32 %v370, %v426
  %v442 = vmul.f32 %v371, %v426
  %v443 = vmul.f32 %v372, %v426
  %v444 = vmul.f32 %v373, %v426
  %v445 = vmul.f32 %v374, %v426
  %v446 = vmul.f32 %v375, %v426
  %v447 = vmul.f32 %v376, %v426
  %v448 = vmul.f32 %v377, %v426
  %v449 = vmul.f32 %v378, %v426
  %v450 = vmul.f32 %v379, %v426
  %v451 = vmul.f32 %v380, %v426
  %v452 = vmul.f32 %v381, %v426
  %v453 = vmul.f32 %v382, %v426
  %v454 = vmul.f32 %v383, %v426
  %v455 = vmul.f32 %v384, %v426
  %v456 = vmul.f32 %v385, %v426
  %v457 = vmul.f32 %v386, %v426
  %v458 = vmul.f32 %v387, %v426
  %v459 = vmul.f32 %v388, %v426
  %v460 = vmul.f32 %v389, %v426
  %v461 = vmul.f32 %v390, %v426
  %v462 = vmul.f32 %v391, %v426
  %v463 = vmul.f32 %v392, %v426
  %v464 = vmul.f32 %v393, %v426
  %v465 = vmul.f32 %v394, %v426
  %v466 = vmul.f32 %v395, %v426
  %v467 = vmul.f32 %v396, %v426
  %v468 = vmul.f32 %v397, %v426
  %v469 = vmul.f32 %v398, %v426
  %v470 = vmul.f32 %v399, %v426
  %v471 = vmul.f32 %v400, %v426
  %v472 = vmul.f32 %v401, %v426
  %v473 = vmul.f32 %v402, %v426
  %v474 = vmul.f32 %v403, %v426
  %v475 = vmul.f32 %v404, %v426
  %v476 = vmul.f32 %v405, %v426
  %v477 = vmul.f32 %v406, %v426
  %v478 = vmul.f32 %v407, %v426
  %v479 = vmul.f32 %v408, %v426
  %v480 = vmul.f32 %v409, %v426
  %v481 = vmul.f32 %v410, %v426
  %v482 = vmul.f32 %v411, %v426
  %v483 = vmul.f32 %v412, %v426
  %v484 = vmul.f32 %v413, %v426
  %v485 = vmul.f32 %v414, %v426
  %v486 = vmul.f32 %v415, %v426
  %v487 = vmul.f32 %v416, %v426
  %v488 = vmul.f32 %v417, %v426
  %v489 = vmul.f32 %v418, %v426
  %v490 = vmul.f32 %v419, %v426
  %v491 = vmul.f32 %v420, %v426
  %v492 = vld [vmem:[%s2] sm:$0x1]
  %v494 = vlaneseq
  %v495 = vshrl.u32 %v494, 7
  %v496 = vsub.s32 0, %v495
  %v497 = vrot.slane %v492, %v496
  %v499 = vadd.f32 %v428, %v497
  %v500 = vadd.f32 %v429, %v497
  %v501 = vadd.f32 %v430, %v497
  %v502 = vadd.f32 %v431, %v497
  %v503 = vadd.f32 %v432, %v497
  %v504 = vadd.f32 %v433, %v497
  %v505 = vadd.f32 %v434, %v497
  %v506 = vadd.f32 %v435, %v497
  %v507 = vadd.f32 %v436, %v497
  %v508 = vadd.f32 %v437, %v497
  %v509 = vadd.f32 %v438, %v497
  %v510 = vadd.f32 %v439, %v497
  %v511 = vadd.f32 %v440, %v497
  %v512 = vadd.f32 %v441, %v497
  %v513 = vadd.f32 %v442, %v497
  %v514 = vadd.f32 %v443, %v497
  %v515 = vadd.f32 %v444, %v497
  %v516 = vadd.f32 %v445, %v497
  %v517 = vadd.f32 %v446, %v497
  %v518 = vadd.f32 %v447, %v497
  %v519 = vadd.f32 %v448, %v497
  %v520 = vadd.f32 %v449, %v497
  %v521 = vadd.f32 %v450, %v497
  %v522 = vadd.f32 %v451, %v497
  %v523 = vadd.f32 %v452, %v497
  %v524 = vadd.f32 %v453, %v497
  %v525 = vadd.f32 %v454, %v497
  %v526 = vadd.f32 %v455, %v497
  %v527 = vadd.f32 %v456, %v497
  %v528 = vadd.f32 %v457, %v497
  %v529 = vadd.f32 %v458, %v497
  %v530 = vadd.f32 %v459, %v497
  %v531 = vadd.f32 %v460, %v497
  %v532 = vadd.f32 %v461, %v497
  %v533 = vadd.f32 %v462, %v497
  %v534 = vadd.f32 %v463, %v497
  %v535 = vadd.f32 %v464, %v497
  %v536 = vadd.f32 %v465, %v497
  %v537 = vadd.f32 %v466, %v497
  %v538 = vadd.f32 %v467, %v497
  %v539 = vadd.f32 %v468, %v497
  %v540 = vadd.f32 %v469, %v497
  %v541 = vadd.f32 %v470, %v497
  %v542 = vadd.f32 %v471, %v497
  %v543 = vadd.f32 %v472, %v497
  %v544 = vadd.f32 %v473, %v497
  %v545 = vadd.f32 %v474, %v497
  %v546 = vadd.f32 %v475, %v497
  %v547 = vadd.f32 %v476, %v497
  %v548 = vadd.f32 %v477, %v497
  %v549 = vadd.f32 %v478, %v497
  %v550 = vadd.f32 %v479, %v497
  %v551 = vadd.f32 %v480, %v497
  %v552 = vadd.f32 %v481, %v497
  %v553 = vadd.f32 %v482, %v497
  %v554 = vadd.f32 %v483, %v497
  %v555 = vadd.f32 %v484, %v497
  %v556 = vadd.f32 %v485, %v497
  %v557 = vadd.f32 %v486, %v497
  %v558 = vadd.f32 %v487, %v497
  %v559 = vadd.f32 %v488, %v497
  %v560 = vadd.f32 %v489, %v497
  %v561 = vadd.f32 %v490, %v497
  %v562 = vadd.f32 %v491, %v497
  %v563 = vadd.f32 %v499, %v229
  %v564 = vadd.f32 %v500, %v230
  %v565 = vadd.f32 %v501, %v231
  %v566 = vadd.f32 %v502, %v232
  %v567 = vadd.f32 %v503, %v233
  %v568 = vadd.f32 %v504, %v234
  %v569 = vadd.f32 %v505, %v235
  %v570 = vadd.f32 %v506, %v236
  %v571 = vadd.f32 %v507, %v237
  %v572 = vadd.f32 %v508, %v238
  %v573 = vadd.f32 %v509, %v239
  %v574 = vadd.f32 %v510, %v240
  %v575 = vadd.f32 %v511, %v241
  %v576 = vadd.f32 %v512, %v242
  %v577 = vadd.f32 %v513, %v243
  %v578 = vadd.f32 %v514, %v244
  %v579 = vadd.f32 %v515, %v245
  %v580 = vadd.f32 %v516, %v246
  %v581 = vadd.f32 %v517, %v247
  %v582 = vadd.f32 %v518, %v248
  %v583 = vadd.f32 %v519, %v249
  %v584 = vadd.f32 %v520, %v250
  %v585 = vadd.f32 %v521, %v251
  %v586 = vadd.f32 %v522, %v252
  %v587 = vadd.f32 %v523, %v253
  %v588 = vadd.f32 %v524, %v254
  %v589 = vadd.f32 %v525, %v255
  %v590 = vadd.f32 %v526, %v256
  %v591 = vadd.f32 %v527, %v257
  %v592 = vadd.f32 %v528, %v258
  %v593 = vadd.f32 %v529, %v259
  %v594 = vadd.f32 %v530, %v260
  %v595 = vadd.f32 %v531, %v261
  %v596 = vadd.f32 %v532, %v262
  %v597 = vadd.f32 %v533, %v263
  %v598 = vadd.f32 %v534, %v264
  %v599 = vadd.f32 %v535, %v265
  %v600 = vadd.f32 %v536, %v266
  %v601 = vadd.f32 %v537, %v267
  %v602 = vadd.f32 %v538, %v268
  %v603 = vadd.f32 %v539, %v269
  %v604 = vadd.f32 %v540, %v270
  %v605 = vadd.f32 %v541, %v271
  %v606 = vadd.f32 %v542, %v272
  %v607 = vadd.f32 %v543, %v273
  %v608 = vadd.f32 %v544, %v274
  %v609 = vadd.f32 %v545, %v275
  %v610 = vadd.f32 %v546, %v276
  %v611 = vadd.f32 %v547, %v277
  %v612 = vadd.f32 %v548, %v278
  %v613 = vadd.f32 %v549, %v279
  %v614 = vadd.f32 %v550, %v280
  %v615 = vadd.f32 %v551, %v281
  %v616 = vadd.f32 %v552, %v282
  %v617 = vadd.f32 %v553, %v283
  %v618 = vadd.f32 %v554, %v284
  %v619 = vadd.f32 %v555, %v285
  %v620 = vadd.f32 %v556, %v286
  %v621 = vadd.f32 %v557, %v287
  %v622 = vadd.f32 %v558, %v288
  %v623 = vadd.f32 %v559, %v289
  %v624 = vadd.f32 %v560, %v290
  %v625 = vadd.f32 %v561, %v291
  %v626 = vadd.f32 %v562, %v292
  %v627 = vmax.f32 %v563, 0.0
  %v628 = vmax.f32 %v564, 0.0
  %v629 = vmax.f32 %v565, 0.0
  %v630 = vmax.f32 %v566, 0.0
  %v631 = vmax.f32 %v567, 0.0
  %v632 = vmax.f32 %v568, 0.0
  %v633 = vmax.f32 %v569, 0.0
  %v634 = vmax.f32 %v570, 0.0
  %v635 = vmax.f32 %v571, 0.0
  %v636 = vmax.f32 %v572, 0.0
  %v637 = vmax.f32 %v573, 0.0
  %v638 = vmax.f32 %v574, 0.0
  %v639 = vmax.f32 %v575, 0.0
  %v640 = vmax.f32 %v576, 0.0
  %v641 = vmax.f32 %v577, 0.0
  %v642 = vmax.f32 %v578, 0.0
  %v643 = vmax.f32 %v579, 0.0
  %v644 = vmax.f32 %v580, 0.0
  %v645 = vmax.f32 %v581, 0.0
  %v646 = vmax.f32 %v582, 0.0
  %v647 = vmax.f32 %v583, 0.0
  %v648 = vmax.f32 %v584, 0.0
  %v649 = vmax.f32 %v585, 0.0
  %v650 = vmax.f32 %v586, 0.0
  %v651 = vmax.f32 %v587, 0.0
  %v652 = vmax.f32 %v588, 0.0
  %v653 = vmax.f32 %v589, 0.0
  %v654 = vmax.f32 %v590, 0.0
  %v655 = vmax.f32 %v591, 0.0
  %v656 = vmax.f32 %v592, 0.0
  %v657 = vmax.f32 %v593, 0.0
  %v658 = vmax.f32 %v594, 0.0
  %v659 = vmax.f32 %v595, 0.0
  %v660 = vmax.f32 %v596, 0.0
  %v661 = vmax.f32 %v597, 0.0
  %v662 = vmax.f32 %v598, 0.0
  %v663 = vmax.f32 %v599, 0.0
  %v664 = vmax.f32 %v600, 0.0
  %v665 = vmax.f32 %v601, 0.0
  %v666 = vmax.f32 %v602, 0.0
  %v667 = vmax.f32 %v603, 0.0
  %v668 = vmax.f32 %v604, 0.0
  %v669 = vmax.f32 %v605, 0.0
  %v670 = vmax.f32 %v606, 0.0
  %v671 = vmax.f32 %v607, 0.0
  %v672 = vmax.f32 %v608, 0.0
  %v673 = vmax.f32 %v609, 0.0
  %v674 = vmax.f32 %v610, 0.0
  %v675 = vmax.f32 %v611, 0.0
  %v676 = vmax.f32 %v612, 0.0
  %v677 = vmax.f32 %v613, 0.0
  %v678 = vmax.f32 %v614, 0.0
  %v679 = vmax.f32 %v615, 0.0
  %v680 = vmax.f32 %v616, 0.0
  %v681 = vmax.f32 %v617, 0.0
  %v682 = vmax.f32 %v618, 0.0
  %v683 = vmax.f32 %v619, 0.0
  %v684 = vmax.f32 %v620, 0.0
  %v685 = vmax.f32 %v621, 0.0
  %v686 = vmax.f32 %v622, 0.0
  %v687 = vmax.f32 %v623, 0.0
  %v688 = vmax.f32 %v624, 0.0
  %v689 = vmax.f32 %v625, 0.0
  %v690 = vmax.f32 %v626, 0.0
  %691 = vst [vmem:[%s6] sm:$0xff] %v627
  %692 = vst [vmem:[%s6 + $0x8] sm:$0xff] %v628
  %693 = vst [vmem:[%s6 + $0x10] sm:$0xff] %v629
  %694 = vst [vmem:[%s6 + $0x18] sm:$0xff] %v630
  %695 = vst [vmem:[%s6 + $0x20] sm:$0xff] %v631
  %696 = vst [vmem:[%s6 + $0x28] sm:$0xff] %v632
  %697 = vst [vmem:[%s6 + $0x30] sm:$0xff] %v633
  %698 = vst [vmem:[%s6 + $0x38] sm:$0xff] %v634
  %699 = vst [vmem:[%s6 + $0x40] sm:$0xff] %v635
  %700 = vst [vmem:[%s6 + $0x48] sm:$0xff] %v636
  %701 = vst [vmem:[%s6 + $0x50] sm:$0xff] %v637
  %702 = vst [vmem:[%s6 + $0x58] sm:$0xff] %v638
  %703 = vst [vmem:[%s6 + $0x60] sm:$0xff] %v639
  %704 = vst [vmem:[%s6 + $0x68] sm:$0xff] %v640
  %705 = vst [vmem:[%s6 + $0x70] sm:$0xff] %v641
  %706 = vst [vmem:[%s6 + $0x78] sm:$0xff] %v642
  %707 = vst [vmem:[%s6 + $0x80] sm:$0xff] %v643
  %708 = vst [vmem:[%s6 + $0x88] sm:$0xff] %v644
  %709 = vst [vmem:[%s6 + $0x90] sm:$0xff] %v645
  %710 = vst [vmem:[%s6 + $0x98] sm:$0xff] %v646
  %711 = vst [vmem:[%s6 + $0xa0] sm:$0xff] %v647
  %712 = vst [vmem:[%s6 + $0xa8] sm:$0xff] %v648
  %713 = vst [vmem:[%s6 + $0xb0] sm:$0xff] %v649
  %714 = vst [vmem:[%s6 + $0xb8] sm:$0xff] %v650
  %715 = vst [vmem:[%s6 + $0xc0] sm:$0xff] %v651
  %716 = vst [vmem:[%s6 + $0xc8] sm:$0xff] %v652
  %717 = vst [vmem:[%s6 + $0xd0] sm:$0xff] %v653
  %718 = vst [vmem:[%s6 + $0xd8] sm:$0xff] %v654
  %719 = vst [vmem:[%s6 + $0xe0] sm:$0xff] %v655
  %720 = vst [vmem:[%s6 + $0xe8] sm:$0xff] %v656
  %721 = vst [vmem:[%s6 + $0xf0] sm:$0xff] %v657
  %722 = vst [vmem:[%s6 + $0xf8] sm:$0xff] %v658
  %723 = vst [vmem:[%s6 + $0x100] sm:$0xff] %v659
  %724 = vst [vmem:[%s6 + $0x108] sm:$0xff] %v660
  %725 = vst [vmem:[%s6 + $0x110] sm:$0xff] %v661
  %726 = vst [vmem:[%s6 + $0x118] sm:$0xff] %v662
  %727 = vst [vmem:[%s6 + $0x120] sm:$0xff] %v663
  %728 = vst [vmem:[%s6 + $0x128] sm:$0xff] %v664
  %729 = vst [vmem:[%s6 + $0x130] sm:$0xff] %v665
  %730 = vst [vmem:[%s6 + $0x138] sm:$0xff] %v666
  %731 = vst [vmem:[%s6 + $0x140] sm:$0xff] %v667
  %732 = vst [vmem:[%s6 + $0x148] sm:$0xff] %v668
  %733 = vst [vmem:[%s6 + $0x150] sm:$0xff] %v669
  %734 = vst [vmem:[%s6 + $0x158] sm:$0xff] %v670
  %735 = vst [vmem:[%s6 + $0x160] sm:$0xff] %v671
  %736 = vst [vmem:[%s6 + $0x168] sm:$0xff] %v672
  %737 = vst [vmem:[%s6 + $0x170] sm:$0xff] %v673
  %738 = vst [vmem:[%s6 + $0x178] sm:$0xff] %v674
  %739 = vst [vmem:[%s6 + $0x180] sm:$0xff] %v675
  %740 = vst [vmem:[%s6 + $0x188] sm:$0xff] %v676
  %741 = vst [vmem:[%s6 + $0x190] sm:$0xff] %v677
  %742 = vst [vmem:[%s6 + $0x198] sm:$0xff] %v678
  %743 = vst [vmem:[%s6 + $0x1a0] sm:$0xff] %v679
  %744 = vst [vmem:[%s6 + $0x1a8] sm:$0xff] %v680
  %745 = vst [vmem:[%s6 + $0x1b0] sm:$0xff] %v681
  %746 = vst [vmem:[%s6 + $0x1b8] sm:$0xff] %v682
  %747 = vst [vmem:[%s6 + $0x1c0] sm:$0xff] %v683
  %748 = vst [vmem:[%s6 + $0x1c8] sm:$0xff] %v684
  %749 = vst [vmem:[%s6 + $0x1d0] sm:$0xff] %v685
  %750 = vst [vmem:[%s6 + $0x1d8] sm:$0xff] %v686
  %751 = vst [vmem:[%s6 + $0x1e0] sm:$0xff] %v687
  %752 = vst [vmem:[%s6 + $0x1e8] sm:$0xff] %v688
  %753 = vst [vmem:[%s6 + $0x1f0] sm:$0xff] %v689
  %754 = vst [vmem:[%s6 + $0x1f8] sm:$0xff] %v690
  // Predicated region
  $region26: #{bottleneck_forward.7} parent=0 // pred_check
    _
  $region27: #{bottleneck_forward.7} parent=0 // pred_check_branch
    %756 = sbr.rel (0) target = $region29
  $region28: #{bottleneck_forward.7} parent=0 // pred_region
    _
  $region29: #{bottleneck_forward.7} parent=0 // pred_fallthru
    _
  // Predicated region
  $region30: #{bottleneck_forward.7} parent=0 // pred_check
    _
  $region31: #{bottleneck_forward.7} parent=0 // pred_check_branch
    %758 = sbr.rel (0) target = $region33
  $region32: #{bottleneck_forward.7} parent=0 // pred_region
    _
  $region33: #{bottleneck_forward.7} parent=0 // pred_fallthru
    _

// kernel: bottleneck_forward.4
$region0: #{bottleneck_forward.4}
  #allocation0 [shape = 'u32[]', space=smem, size = 0x4, offset = 0x4, fixed_abs, tag = 'smem constant byte address 0x4 - core index']
  #allocation1 [shape = 'u32[144,128]{1,0:T(1,128)}', space=vmem, size = 0x12000, scoped, tag = 'internal scratch']
  %s0 = inlined_call_operand.vmem [shape: bf16[512,128], index: 0, kind: input, shape index: {}]
  %s1 = inlined_call_operand.vmem [shape: bf16[128,256], index: 1, kind: input, shape index: {}]
  %s2 = inlined_call_operand.vmem [shape: bf16[512,128], index: 2, kind: output, shape index: {0}]
  %s3 = inlined_call_operand.vmem [shape: bf16[512,128], index: 3, kind: output, shape index: {1}]
  %s4 = inlined_call_operand.vmem [shape: f32[1,1,256], index: 4, kind: output, shape index: {2}]
  %s5 = inlined_call_operand.vmem [shape: f32[1,1,256], index: 5, kind: output, shape index: {3}]
  %6 = xla_tuple %s2, %s3, %s4, %s5
  %s7 = sld [smem:[#allocation0]]
  $region42: #{bottleneck_forward.4} parent=0
    _
  %s9 = ssub.s32 1, %s7
  %s10 = scalar_select 0, %s9, %s7
  // Predicated region
  $region2: #{bottleneck_forward.4} parent=0 // pred_check
    _
  $region3: #{bottleneck_forward.4} parent=0 // pred_check_branch
    %12 = sbr.rel (0) target = $region5
  $region4: #{bottleneck_forward.4} parent=0 // pred_region
    _
  $region5: #{bottleneck_forward.4} parent=0 // pred_fallthru
    _
  // Predicated region
  $region6: #{bottleneck_forward.4} parent=0 // pred_check
    _
  $region7: #{bottleneck_forward.4} parent=0 // pred_check_branch
    %14 = sbr.rel (0) target = $region9
  $region8: #{bottleneck_forward.4} parent=0 // pred_region
    _
  $region9: #{bottleneck_forward.4} parent=0 // pred_fallthru
    _
  %v16 = vld [vmem:[%s0] sm:$0xf]
  %v17 = vld [vmem:[%s0 + $0x4] sm:$0xf]
  %v18 = vld [vmem:[%s0 + $0x8] sm:$0xf]
  %v19 = vld [vmem:[%s0 + $0xc] sm:$0xf]
  %v20 = vld [vmem:[%s0 + $0x10] sm:$0xf]
  %v21 = vld [vmem:[%s0 + $0x14] sm:$0xf]
  %v22 = vld [vmem:[%s0 + $0x18] sm:$0xf]
  %v23 = vld [vmem:[%s0 + $0x1c] sm:$0xf]
  %v24 = vld [vmem:[%s0 + $0x20] sm:$0xf]
  %v25 = vld [vmem:[%s0 + $0x24] sm:$0xf]
  %v26 = vld [vmem:[%s0 + $0x28] sm:$0xf]
  %v27 = vld [vmem:[%s0 + $0x2c] sm:$0xf]
  %v28 = vld [vmem:[%s0 + $0x30] sm:$0xf]
  %v29 = vld [vmem:[%s0 + $0x34] sm:$0xf]
  %v30 = vld [vmem:[%s0 + $0x38] sm:$0xf]
  %v31 = vld [vmem:[%s0 + $0x3c] sm:$0xf]
  %v32 = vld [vmem:[%s0 + $0x40] sm:$0xf]
  %v33 = vld [vmem:[%s0 + $0x44] sm:$0xf]
  %v34 = vld [vmem:[%s0 + $0x48] sm:$0xf]
  %v35 = vld [vmem:[%s0 + $0x4c] sm:$0xf]
  %v36 = vld [vmem:[%s0 + $0x50] sm:$0xf]
  %v37 = vld [vmem:[%s0 + $0x54] sm:$0xf]
  %v38 = vld [vmem:[%s0 + $0x58] sm:$0xf]
  %v39 = vld [vmem:[%s0 + $0x5c] sm:$0xf]
  %v40 = vld [vmem:[%s0 + $0x60] sm:$0xf]
  %v41 = vld [vmem:[%s0 + $0x64] sm:$0xf]
  %v42 = vld [vmem:[%s0 + $0x68] sm:$0xf]
  %v43 = vld [vmem:[%s0 + $0x6c] sm:$0xf]
  %v44 = vld [vmem:[%s0 + $0x70] sm:$0xf]
  %v45 = vld [vmem:[%s0 + $0x74] sm:$0xf]
  %v46 = vld [vmem:[%s0 + $0x78] sm:$0xf]
  %v47 = vld [vmem:[%s0 + $0x7c] sm:$0xf]
  %v48 = vld [vmem:[%s0 + $0x80] sm:$0xf]
  %v49 = vld [vmem:[%s0 + $0x84] sm:$0xf]
  %v50 = vld [vmem:[%s0 + $0x88] sm:$0xf]
  %v51 = vld [vmem:[%s0 + $0x8c] sm:$0xf]
  %v52 = vld [vmem:[%s0 + $0x90] sm:$0xf]
  %v53 = vld [vmem:[%s0 + $0x94] sm:$0xf]
  %v54 = vld [vmem:[%s0 + $0x98] sm:$0xf]
  %v55 = vld [vmem:[%s0 + $0x9c] sm:$0xf]
  %v56 = vld [vmem:[%s0 + $0xa0] sm:$0xf]
  %v57 = vld [vmem:[%s0 + $0xa4] sm:$0xf]
  %v58 = vld [vmem:[%s0 + $0xa8] sm:$0xf]
  %v59 = vld [vmem:[%s0 + $0xac] sm:$0xf]
  %v60 = vld [vmem:[%s0 + $0xb0] sm:$0xf]
  %v61 = vld [vmem:[%s0 + $0xb4] sm:$0xf]
  %v62 = vld [vmem:[%s0 + $0xb8] sm:$0xf]
  %v63 = vld [vmem:[%s0 + $0xbc] sm:$0xf]
  %v64 = vld [vmem:[%s0 + $0xc0] sm:$0xf]
  %v65 = vld [vmem:[%s0 + $0xc4] sm:$0xf]
  %v66 = vld [vmem:[%s0 + $0xc8] sm:$0xf]
  %v67 = vld [vmem:[%s0 + $0xcc] sm:$0xf]
  %v68 = vld [vmem:[%s0 + $0xd0] sm:$0xf]
  %v69 = vld [vmem:[%s0 + $0xd4] sm:$0xf]
  %v70 = vld [vmem:[%s0 + $0xd8] sm:$0xf]
  %v71 = vld [vmem:[%s0 + $0xdc] sm:$0xf]
  %v72 = vld [vmem:[%s0 + $0xe0] sm:$0xf]
  %v73 = vld [vmem:[%s0 + $0xe4] sm:$0xf]
  %v74 = vld [vmem:[%s0 + $0xe8] sm:$0xf]
  %v75 = vld [vmem:[%s0 + $0xec] sm:$0xf]
  %v76 = vld [vmem:[%s0 + $0xf0] sm:$0xf]
  %v77 = vld [vmem:[%s0 + $0xf4] sm:$0xf]
  %v78 = vld [vmem:[%s0 + $0xf8] sm:$0xf]
  %v79 = vld [vmem:[%s0 + $0xfc] sm:$0xf]
  %v80 = vld [vmem:[%s1] sm:$0xff]
  %v81 = vld [vmem:[%s1 + $0x8] sm:$0xff]
  %v82 = vld [vmem:[%s1 + $0x10] sm:$0xff]
  %v83 = vld [vmem:[%s1 + $0x18] sm:$0xff]
  %v84 = vld [vmem:[%s1 + $0x20] sm:$0xff]
  %v85 = vld [vmem:[%s1 + $0x28] sm:$0xff]
  %v86 = vld [vmem:[%s1 + $0x30] sm:$0xff]
  %v87 = vld [vmem:[%s1 + $0x38] sm:$0xff]
  %v88 = vld [vmem:[%s1 + $0x40] sm:$0xff]
  %v89 = vld [vmem:[%s1 + $0x48] sm:$0xff]
  %v90 = vld [vmem:[%s1 + $0x50] sm:$0xff]
  %v91 = vld [vmem:[%s1 + $0x58] sm:$0xff]
  %v92 = vld [vmem:[%s1 + $0x60] sm:$0xff]
  %v93 = vld [vmem:[%s1 + $0x68] sm:$0xff]
  %v94 = vld [vmem:[%s1 + $0x70] sm:$0xff]
  %v95 = vld [vmem:[%s1 + $0x78] sm:$0xff]
  %v160 = vunpack.c.l.b16 %v16
  %v161 = vunpack.c.l.b16 %v17
  %v162 = vunpack.c.l.b16 %v18
  %v163 = vunpack.c.l.b16 %v19
  %v164 = vunpack.c.l.b16 %v20
  %v165 = vunpack.c.l.b16 %v21
  %v166 = vunpack.c.l.b16 %v22
  %v167 = vunpack.c.l.b16 %v23
  %v168 = vunpack.c.l.b16 %v24
  %v169 = vunpack.c.l.b16 %v25
  %v170 = vunpack.c.l.b16 %v26
  %v171 = vunpack.c.l.b16 %v27
  %v172 = vunpack.c.l.b16 %v28
  %v173 = vunpack.c.l.b16 %v29
  %v174 = vunpack.c.l.b16 %v30
  %v175 = vunpack.c.l.b16 %v31
  %v176 = vunpack.c.l.b16 %v32
  %v177 = vunpack.c.l.b16 %v33
  %v178 = vunpack.c.l.b16 %v34
  %v179 = vunpack.c.l.b16 %v35
  %v180 = vunpack.c.l.b16 %v36
  %v181 = vunpack.c.l.b16 %v37
  %v182 = vunpack.c.l.b16 %v38
  %v183 = vunpack.c.l.b16 %v39
  %v184 = vunpack.c.l.b16 %v40
  %v185 = vunpack.c.l.b16 %v41
  %v186 = vunpack.c.l.b16 %v42
  %v187 = vunpack.c.l.b16 %v43
  %v188 = vunpack.c.l.b16 %v44
  %v189 = vunpack.c.l.b16 %v45
  %v190 = vunpack.c.l.b16 %v46
  %v191 = vunpack.c.l.b16 %v47
  %v192 = vunpack.c.l.b16 %v48
  %v193 = vunpack.c.l.b16 %v49
  %v194 = vunpack.c.l.b16 %v50
  %v195 = vunpack.c.l.b16 %v51
  %v196 = vunpack.c.l.b16 %v52
  %v197 = vunpack.c.l.b16 %v53
  %v198 = vunpack.c.l.b16 %v54
  %v199 = vunpack.c.l.b16 %v55
  %v200 = vunpack.c.l.b16 %v56
  %v201 = vunpack.c.l.b16 %v57
  %v202 = vunpack.c.l.b16 %v58
  %v203 = vunpack.c.l.b16 %v59
  %v204 = vunpack.c.l.b16 %v60
  %v205 = vunpack.c.l.b16 %v61
  %v206 = vunpack.c.l.b16 %v62
  %v207 = vunpack.c.l.b16 %v63
  %v208 = vunpack.c.l.b16 %v64
  %v209 = vunpack.c.l.b16 %v65
  %v210 = vunpack.c.l.b16 %v66
  %v211 = vunpack.c.l.b16 %v67
  %v212 = vunpack.c.l.b16 %v68
  %v213 = vunpack.c.l.b16 %v69
  %v214 = vunpack.c.l.b16 %v70
  %v215 = vunpack.c.l.b16 %v71
  %v216 = vunpack.c.l.b16 %v72
  %v217 = vunpack.c.l.b16 %v73
  %v218 = vunpack.c.l.b16 %v74
  %v219 = vunpack.c.l.b16 %v75
  %v220 = vunpack.c.l.b16 %v76
  %v221 = vunpack.c.l.b16 %v77
  %v222 = vunpack.c.l.b16 %v78
  %v223 = vunpack.c.l.b16 %v79
  %v224 = vpack.c.b16 %v161, %v160
  %v225 = vpack.c.b16 %v163, %v162
  %v226 = vpack.c.b16 %v165, %v164
  %v227 = vpack.c.b16 %v167, %v166
  %v228 = vpack.c.b16 %v169, %v168
  %v229 = vpack.c.b16 %v171, %v170
  %v230 = vpack.c.b16 %v173, %v172
  %v231 = vpack.c.b16 %v175, %v174
  %v232 = vpack.c.b16 %v177, %v176
  %v233 = vpack.c.b16 %v179, %v178
  %v234 = vpack.c.b16 %v181, %v180
  %v235 = vpack.c.b16 %v183, %v182
  %v236 = vpack.c.b16 %v185, %v184
  %v237 = vpack.c.b16 %v187, %v186
  %v238 = vpack.c.b16 %v189, %v188
  %v239 = vpack.c.b16 %v191, %v190
  %v240 = vpack.c.b16 %v193, %v192
  %v241 = vpack.c.b16 %v195, %v194
  %v242 = vpack.c.b16 %v197, %v196
  %v243 = vpack.c.b16 %v199, %v198
  %v244 = vpack.c.b16 %v201, %v200
  %v245 = vpack.c.b16 %v203, %v202
  %v246 = vpack.c.b16 %v205, %v204
  %v247 = vpack.c.b16 %v207, %v206
  %v248 = vpack.c.b16 %v209, %v208
  %v249 = vpack.c.b16 %v211, %v210
  %v250 = vpack.c.b16 %v213, %v212
  %v251 = vpack.c.b16 %v215, %v214
  %v252 = vpack.c.b16 %v217, %v216
  %v253 = vpack.c.b16 %v219, %v218
  %v254 = vpack.c.b16 %v221, %v220
  %v255 = vpack.c.b16 %v223, %v222
  %v304 = vunpack.c.l.b16 %v80
  %v305 = vunpack.c.h.b16 %v80
  %v306 = vunpack.c.l.b16 %v81
  %v307 = vunpack.c.h.b16 %v81
  %v308 = vunpack.c.l.b16 %v82
  %v309 = vunpack.c.h.b16 %v82
  %v310 = vunpack.c.l.b16 %v83
  %v311 = vunpack.c.h.b16 %v83
  %v312 = vunpack.c.l.b16 %v84
  %v313 = vunpack.c.h.b16 %v84
  %v314 = vunpack.c.l.b16 %v85
  %v315 = vunpack.c.h.b16 %v85
  %v316 = vunpack.c.l.b16 %v86
  %v317 = vunpack.c.h.b16 %v86
  %v318 = vunpack.c.l.b16 %v87
  %v319 = vunpack.c.h.b16 %v87
  %v320 = vunpack.c.l.b16 %v88
  %v321 = vunpack.c.h.b16 %v88
  %v322 = vunpack.c.l.b16 %v89
  %v323 = vunpack.c.h.b16 %v89
  %v324 = vunpack.c.l.b16 %v90
  %v325 = vunpack.c.h.b16 %v90
  %v326 = vunpack.c.l.b16 %v91
  %v327 = vunpack.c.h.b16 %v91
  %v328 = vunpack.c.l.b16 %v92
  %v329 = vunpack.c.h.b16 %v92
  %v330 = vunpack.c.l.b16 %v93
  %v331 = vunpack.c.h.b16 %v93
  %v332 = vunpack.c.l.b16 %v94
  %v333 = vunpack.c.h.b16 %v94
  %v334 = vunpack.c.l.b16 %v95
  %v335 = vunpack.c.h.b16 %v95
  %v336 = vpack.c.b16 %v306, %v304
  %v337 = vpack.c.b16 %v307, %v305
  %v338 = vpack.c.b16 %v310, %v308
  %v339 = vpack.c.b16 %v311, %v309
  %v340 = vpack.c.b16 %v314, %v312
  %v341 = vpack.c.b16 %v315, %v313
  %v342 = vpack.c.b16 %v318, %v316
  %v343 = vpack.c.b16 %v319, %v317
  %v344 = vpack.c.b16 %v322, %v320
  %v345 = vpack.c.b16 %v323, %v321
  %v346 = vpack.c.b16 %v326, %v324
  %v347 = vpack.c.b16 %v327, %v325
  %v348 = vpack.c.b16 %v330, %v328
  %v349 = vpack.c.b16 %v331, %v329
  %v350 = vpack.c.b16 %v334, %v332
  %v351 = vpack.c.b16 %v335, %v333
  %368 = vmatprep.subr.bf16.mxu0 %v351
  %369 = vmatpush1.bf16.msra.mxu0 %v350
  %370 = vmatprep.subr.bf16.mxu0 %v349
  %371 = vmatpush1.bf16.msra.mxu0 %v348
  %372 = vmatprep.subr.bf16.mxu0 %v347
  %373 = vmatpush1.bf16.msra.mxu0 %v346
  %374 = vmatprep.subr.bf16.mxu0 %v345
  %375 = vmatpush1.bf16.msra.mxu0 %v344
  %376 = vmatprep.subr.bf16.mxu0 %v343
  %377 = vmatpush1.bf16.msra.mxu0 %v342
  %378 = vmatprep.subr.bf16.mxu0 %v341
  %379 = vmatpush1.bf16.msra.mxu0 %v340
  %380 = vmatprep.subr.bf16.mxu0 %v339
  %381 = vmatpush1.bf16.msra.mxu0 %v338
  %382 = vmatprep.subr.bf16.mxu0 %v337
  %383 = vmatpush1.bf16.msra.mxu0 %v336
  %384 = vmatprep.subr.bf16.mxu0 0
  %385 = vmatpush2.bf16.msra.mxu0 0
  %386 = vmatprep.subr.bf16.mxu0 0
  %387 = vmatpush2.bf16.msra.mxu0 0
  %388 = vmatprep.subr.bf16.mxu0 0
  %389 = vmatpush2.bf16.msra.mxu0 0
  %390 = vmatprep.subr.bf16.mxu0 0
  %391 = vmatpush2.bf16.msra.mxu0 0
  %392 = vmatprep.subr.bf16.mxu0 0
  %393 = vmatpush2.bf16.msra.mxu0 0
  %394 = vmatprep.subr.bf16.mxu0 0
  %395 = vmatpush2.bf16.msra.mxu0 0
  %396 = vmatprep.subr.bf16.mxu0 0
  %397 = vmatpush2.bf16.msra.mxu0 0
  %398 = vmatprep.subr.bf16.mxu0 0
  %399 = vmatpush2.bf16.msra.mxu0 0
  %400 = vmatprep.mubr.bf16.mxu0 0
  %401 = vmatmul.mubr.bf16.gmra.mxu0 %v224
  %v402 = vpop.f32.mrf.mxu0
  %v403 = vadd.f32 0.0, %v402
  %v404 = vpop.f32.mrf.mxu0
  %v405 = vadd.f32 0.0, %v404
  %v406 = vpop.f32.mrf.mxu0
  %v407 = vadd.f32 0.0, %v406
  %v408 = vpop.f32.mrf.mxu0
  %v409 = vadd.f32 0.0, %v408
  %410 = vmatprep.mubr.bf16.mxu0 0
  %411 = vmatmul.mubr.bf16.gmra.mxu0 %v225
  %v412 = vpop.f32.mrf.mxu0
  %v413 = vadd.f32 0.0, %v412
  %v414 = vpop.f32.mrf.mxu0
  %v415 = vadd.f32 0.0, %v414
  %v416 = vpop.f32.mrf.mxu0
  %v417 = vadd.f32 0.0, %v416
  %v418 = vpop.f32.mrf.mxu0
  %v419 = vadd.f32 0.0, %v418
  %420 = vmatprep.mubr.bf16.mxu0 0
  %421 = vmatmul.mubr.bf16.gmra.mxu0 %v226
  %v422 = vpop.f32.mrf.mxu0
  %v423 = vadd.f32 0.0, %v422
  %v424 = vpop.f32.mrf.mxu0
  %v425 = vadd.f32 0.0, %v424
  %v426 = vpop.f32.mrf.mxu0
  %v427 = vadd.f32 0.0, %v426
  %v428 = vpop.f32.mrf.mxu0
  %v429 = vadd.f32 0.0, %v428
  %430 = vmatprep.mubr.bf16.mxu0 0
  %431 = vmatmul.mubr.bf16.gmra.mxu0 %v227
  %v432 = vpop.f32.mrf.mxu0
  %v433 = vadd.f32 0.0, %v432
  %v434 = vpop.f32.mrf.mxu0
  %v435 = vadd.f32 0.0, %v434
  %v436 = vpop.f32.mrf.mxu0
  %v437 = vadd.f32 0.0, %v436
  %v438 = vpop.f32.mrf.mxu0
  %v439 = vadd.f32 0.0, %v438
  %440 = vmatprep.mubr.bf16.mxu0 0
  %441 = vmatmul.mubr.bf16.gmra.mxu0 %v228
  %v442 = vpop.f32.mrf.mxu0
  %v443 = vadd.f32 0.0, %v442
  %v444 = vpop.f32.mrf.mxu0
  %v445 = vadd.f32 0.0, %v444
  %v446 = vpop.f32.mrf.mxu0
  %v447 = vadd.f32 0.0, %v446
  %v448 = vpop.f32.mrf.mxu0
  %v449 = vadd.f32 0.0, %v448
  %450 = vmatprep.mubr.bf16.mxu0 0
  %451 = vmatmul.mubr.bf16.gmra.mxu0 %v229
  %v452 = vpop.f32.mrf.mxu0
  %v453 = vadd.f32 0.0, %v452
  %v454 = vpop.f32.mrf.mxu0
  %v455 = vadd.f32 0.0, %v454
  %v456 = vpop.f32.mrf.mxu0
  %v457 = vadd.f32 0.0, %v456
  %v458 = vpop.f32.mrf.mxu0
  %v459 = vadd.f32 0.0, %v458
  %460 = vmatprep.mubr.bf16.mxu0 0
  %461 = vmatmul.mubr.bf16.gmra.mxu0 %v230
  %v462 = vpop.f32.mrf.mxu0
  %v463 = vadd.f32 0.0, %v462
  %v464 = vpop.f32.mrf.mxu0
  %v465 = vadd.f32 0.0, %v464
  %v466 = vpop.f32.mrf.mxu0
  %v467 = vadd.f32 0.0, %v466
  %v468 = vpop.f32.mrf.mxu0
  %v469 = vadd.f32 0.0, %v468
  %470 = vmatprep.mubr.bf16.mxu0 0
  %471 = vmatmul.mubr.bf16.gmra.mxu0 %v231
  %v472 = vpop.f32.mrf.mxu0
  %v473 = vadd.f32 0.0, %v472
  %v474 = vpop.f32.mrf.mxu0
  %v475 = vadd.f32 0.0, %v474
  %v476 = vpop.f32.mrf.mxu0
  %v477 = vadd.f32 0.0, %v476
  %v478 = vpop.f32.mrf.mxu0
  %v479 = vadd.f32 0.0, %v478
  %480 = vmatprep.mubr.bf16.mxu0 0
  %481 = vmatmul.mubr.bf16.gmra.mxu0 %v232
  %v482 = vpop.f32.mrf.mxu0
  %v483 = vadd.f32 0.0, %v482
  %v484 = vpop.f32.mrf.mxu0
  %v485 = vadd.f32 0.0, %v484
  %v486 = vpop.f32.mrf.mxu0
  %v487 = vadd.f32 0.0, %v486
  %v488 = vpop.f32.mrf.mxu0
  %v489 = vadd.f32 0.0, %v488
  %490 = vmatprep.mubr.bf16.mxu0 0
  %491 = vmatmul.mubr.bf16.gmra.mxu0 %v233
  %v492 = vpop.f32.mrf.mxu0
  %v493 = vadd.f32 0.0, %v492
  %v494 = vpop.f32.mrf.mxu0
  %v495 = vadd.f32 0.0, %v494
  %v496 = vpop.f32.mrf.mxu0
  %v497 = vadd.f32 0.0, %v496
  %v498 = vpop.f32.mrf.mxu0
  %v499 = vadd.f32 0.0, %v498
  %500 = vmatprep.mubr.bf16.mxu0 0
  %501 = vmatmul.mubr.bf16.gmra.mxu0 %v234
  %v502 = vpop.f32.mrf.mxu0
  %v503 = vadd.f32 0.0, %v502
  %v504 = vpop.f32.mrf.mxu0
  %v505 = vadd.f32 0.0, %v504
  %v506 = vpop.f32.mrf.mxu0
  %v507 = vadd.f32 0.0, %v506
  %v508 = vpop.f32.mrf.mxu0
  %v509 = vadd.f32 0.0, %v508
  %510 = vmatprep.mubr.bf16.mxu0 0
  %511 = vmatmul.mubr.bf16.gmra.mxu0 %v235
  %v512 = vpop.f32.mrf.mxu0
  %v513 = vadd.f32 0.0, %v512
  %v514 = vpop.f32.mrf.mxu0
  %v515 = vadd.f32 0.0, %v514
  %v516 = vpop.f32.mrf.mxu0
  %v517 = vadd.f32 0.0, %v516
  %v518 = vpop.f32.mrf.mxu0
  %v519 = vadd.f32 0.0, %v518
  %520 = vmatprep.mubr.bf16.mxu0 0
  %521 = vmatmul.mubr.bf16.gmra.mxu0 %v236
  %v522 = vpop.f32.mrf.mxu0
  %v523 = vadd.f32 0.0, %v522
  %v524 = vpop.f32.mrf.mxu0
  %v525 = vadd.f32 0.0, %v524
  %v526 = vpop.f32.mrf.mxu0
  %v527 = vadd.f32 0.0, %v526
  %v528 = vpop.f32.mrf.mxu0
  %v529 = vadd.f32 0.0, %v528
  %530 = vmatprep.mubr.bf16.mxu0 0
  %531 = vmatmul.mubr.bf16.gmra.mxu0 %v237
  %v532 = vpop.f32.mrf.mxu0
  %v533 = vadd.f32 0.0, %v532
  %v534 = vpop.f32.mrf.mxu0
  %v535 = vadd.f32 0.0, %v534
  %v536 = vpop.f32.mrf.mxu0
  %v537 = vadd.f32 0.0, %v536
  %v538 = vpop.f32.mrf.mxu0
  %v539 = vadd.f32 0.0, %v538
  %540 = vmatprep.mubr.bf16.mxu0 0
  %541 = vmatmul.mubr.bf16.gmra.mxu0 %v238
  %v542 = vpop.f32.mrf.mxu0
  %v543 = vadd.f32 0.0, %v542
  %v544 = vpop.f32.mrf.mxu0
  %v545 = vadd.f32 0.0, %v544
  %v546 = vpop.f32.mrf.mxu0
  %v547 = vadd.f32 0.0, %v546
  %v548 = vpop.f32.mrf.mxu0
  %v549 = vadd.f32 0.0, %v548
  %550 = vmatprep.mubr.bf16.mxu0 0
  %551 = vmatmul.mubr.bf16.gmra.mxu0 %v239
  %v552 = vpop.f32.mrf.mxu0
  %v553 = vadd.f32 0.0, %v552
  %v554 = vpop.f32.mrf.mxu0
  %v555 = vadd.f32 0.0, %v554
  %v556 = vpop.f32.mrf.mxu0
  %v557 = vadd.f32 0.0, %v556
  %v558 = vpop.f32.mrf.mxu0
  %v559 = vadd.f32 0.0, %v558
  %560 = vmatprep.mubr.bf16.mxu0 0
  %561 = vmatmul.mubr.bf16.gmra.mxu0 %v240
  %v562 = vpop.f32.mrf.mxu0
  %v563 = vadd.f32 0.0, %v562
  %v564 = vpop.f32.mrf.mxu0
  %v565 = vadd.f32 0.0, %v564
  %v566 = vpop.f32.mrf.mxu0
  %v567 = vadd.f32 0.0, %v566
  %v568 = vpop.f32.mrf.mxu0
  %v569 = vadd.f32 0.0, %v568
  %570 = vmatprep.mubr.bf16.mxu0 0
  %571 = vmatmul.mubr.bf16.gmra.mxu0 %v241
  %v572 = vpop.f32.mrf.mxu0
  %v573 = vadd.f32 0.0, %v572
  %v574 = vpop.f32.mrf.mxu0
  %v575 = vadd.f32 0.0, %v574
  %v576 = vpop.f32.mrf.mxu0
  %v577 = vadd.f32 0.0, %v576
  %v578 = vpop.f32.mrf.mxu0
  %v579 = vadd.f32 0.0, %v578
  %580 = vmatprep.mubr.bf16.mxu0 0
  %581 = vmatmul.mubr.bf16.gmra.mxu0 %v242
  %v582 = vpop.f32.mrf.mxu0
  %v583 = vadd.f32 0.0, %v582
  %v584 = vpop.f32.mrf.mxu0
  %v585 = vadd.f32 0.0, %v584
  %v586 = vpop.f32.mrf.mxu0
  %v587 = vadd.f32 0.0, %v586
  %v588 = vpop.f32.mrf.mxu0
  %v589 = vadd.f32 0.0, %v588
  %590 = vmatprep.mubr.bf16.mxu0 0
  %591 = vmatmul.mubr.bf16.gmra.mxu0 %v243
  %v592 = vpop.f32.mrf.mxu0
  %v593 = vadd.f32 0.0, %v592
  %v594 = vpop.f32.mrf.mxu0
  %v595 = vadd.f32 0.0, %v594
  %v596 = vpop.f32.mrf.mxu0
  %v597 = vadd.f32 0.0, %v596
  %v598 = vpop.f32.mrf.mxu0
  %v599 = vadd.f32 0.0, %v598
  %600 = vmatprep.mubr.bf16.mxu0 0
  %601 = vmatmul.mubr.bf16.gmra.mxu0 %v244
  %v602 = vpop.f32.mrf.mxu0
  %v603 = vadd.f32 0.0, %v602
  %v604 = vpop.f32.mrf.mxu0
  %v605 = vadd.f32 0.0, %v604
  %v606 = vpop.f32.mrf.mxu0
  %v607 = vadd.f32 0.0, %v606
  %v608 = vpop.f32.mrf.mxu0
  %v609 = vadd.f32 0.0, %v608
  %610 = vmatprep.mubr.bf16.mxu0 0
  %611 = vmatmul.mubr.bf16.gmra.mxu0 %v245
  %v612 = vpop.f32.mrf.mxu0
  %v613 = vadd.f32 0.0, %v612
  %v614 = vpop.f32.mrf.mxu0
  %v615 = vadd.f32 0.0, %v614
  %v616 = vpop.f32.mrf.mxu0
  %v617 = vadd.f32 0.0, %v616
  %v618 = vpop.f32.mrf.mxu0
  %v619 = vadd.f32 0.0, %v618
  %620 = vmatprep.mubr.bf16.mxu0 0
  %621 = vmatmul.mubr.bf16.gmra.mxu0 %v246
  %v622 = vpop.f32.mrf.mxu0
  %v623 = vadd.f32 0.0, %v622
  %v624 = vpop.f32.mrf.mxu0
  %v625 = vadd.f32 0.0, %v624
  %v626 = vpop.f32.mrf.mxu0
  %v627 = vadd.f32 0.0, %v626
  %v628 = vpop.f32.mrf.mxu0
  %v629 = vadd.f32 0.0, %v628
  %630 = vmatprep.mubr.bf16.mxu0 0
  %631 = vmatmul.mubr.bf16.gmra.mxu0 %v247
  %v632 = vpop.f32.mrf.mxu0
  %v633 = vadd.f32 0.0, %v632
  %v634 = vpop.f32.mrf.mxu0
  %v635 = vadd.f32 0.0, %v634
  %v636 = vpop.f32.mrf.mxu0
  %v637 = vadd.f32 0.0, %v636
  %v638 = vpop.f32.mrf.mxu0
  %v639 = vadd.f32 0.0, %v638
  %640 = vmatprep.mubr.bf16.mxu0 0
  %641 = vmatmul.mubr.bf16.gmra.mxu0 %v248
  %v642 = vpop.f32.mrf.mxu0
  %v643 = vadd.f32 0.0, %v642
  %v644 = vpop.f32.mrf.mxu0
  %v645 = vadd.f32 0.0, %v644
  %v646 = vpop.f32.mrf.mxu0
  %v647 = vadd.f32 0.0, %v646
  %v648 = vpop.f32.mrf.mxu0
  %v649 = vadd.f32 0.0, %v648
  %650 = vmatprep.mubr.bf16.mxu0 0
  %651 = vmatmul.mubr.bf16.gmra.mxu0 %v249
  %v652 = vpop.f32.mrf.mxu0
  %v653 = vadd.f32 0.0, %v652
  %v654 = vpop.f32.mrf.mxu0
  %v655 = vadd.f32 0.0, %v654
  %v656 = vpop.f32.mrf.mxu0
  %v657 = vadd.f32 0.0, %v656
  %v658 = vpop.f32.mrf.mxu0
  %v659 = vadd.f32 0.0, %v658
  %660 = vmatprep.mubr.bf16.mxu0 0
  %661 = vmatmul.mubr.bf16.gmra.mxu0 %v250
  %v662 = vpop.f32.mrf.mxu0
  %v663 = vadd.f32 0.0, %v662
  %v664 = vpop.f32.mrf.mxu0
  %v665 = vadd.f32 0.0, %v664
  %v666 = vpop.f32.mrf.mxu0
  %v667 = vadd.f32 0.0, %v666
  %v668 = vpop.f32.mrf.mxu0
  %v669 = vadd.f32 0.0, %v668
  %670 = vmatprep.mubr.bf16.mxu0 0
  %671 = vmatmul.mubr.bf16.gmra.mxu0 %v251
  %v672 = vpop.f32.mrf.mxu0
  %v673 = vadd.f32 0.0, %v672
  %v674 = vpop.f32.mrf.mxu0
  %v675 = vadd.f32 0.0, %v674
  %v676 = vpop.f32.mrf.mxu0
  %v677 = vadd.f32 0.0, %v676
  %v678 = vpop.f32.mrf.mxu0
  %v679 = vadd.f32 0.0, %v678
  %680 = vmatprep.mubr.bf16.mxu0 0
  %681 = vmatmul.mubr.bf16.gmra.mxu0 %v252
  %v682 = vpop.f32.mrf.mxu0
  %v683 = vadd.f32 0.0, %v682
  %v684 = vpop.f32.mrf.mxu0
  %v685 = vadd.f32 0.0, %v684
  %v686 = vpop.f32.mrf.mxu0
  %v687 = vadd.f32 0.0, %v686
  %v688 = vpop.f32.mrf.mxu0
  %v689 = vadd.f32 0.0, %v688
  %690 = vmatprep.mubr.bf16.mxu0 0
  %691 = vmatmul.mubr.bf16.gmra.mxu0 %v253
  %v692 = vpop.f32.mrf.mxu0
  %v693 = vadd.f32 0.0, %v692
  %v694 = vpop.f32.mrf.mxu0
  %v695 = vadd.f32 0.0, %v694
  %v696 = vpop.f32.mrf.mxu0
  %v697 = vadd.f32 0.0, %v696
  %v698 = vpop.f32.mrf.mxu0
  %v699 = vadd.f32 0.0, %v698
  %700 = vmatprep.mubr.bf16.mxu0 0
  %701 = vmatmul.mubr.bf16.gmra.mxu0 %v254
  %v702 = vpop.f32.mrf.mxu0
  %v703 = vadd.f32 0.0, %v702
  %v704 = vpop.f32.mrf.mxu0
  %v705 = vadd.f32 0.0, %v704
  %v706 = vpop.f32.mrf.mxu0
  %v707 = vadd.f32 0.0, %v706
  %v708 = vpop.f32.mrf.mxu0
  %v709 = vadd.f32 0.0, %v708
  %710 = vmatprep.mubr.bf16.mxu0 0
  %711 = vmatmul.mubr.bf16.gmra.mxu0 %v255
  %v712 = vpop.f32.mrf.mxu0
  %v713 = vadd.f32 0.0, %v712
  %v714 = vpop.f32.mrf.mxu0
  %v715 = vadd.f32 0.0, %v714
  %v716 = vpop.f32.mrf.mxu0
  %v717 = vadd.f32 0.0, %v716
  %v718 = vpop.f32.mrf.mxu0
  %v719 = vadd.f32 0.0, %v718
  %720 = vdwg.mxu0
  %v721 = vadd.f32 %v403, %v407
  %v722 = vadd.f32 %v721, %v413
  %v723 = vadd.f32 %v722, %v417
  %v724 = vadd.f32 %v723, %v423
  %v725 = vadd.f32 %v724, %v427
  %v726 = vadd.f32 %v725, %v433
  %v727 = vadd.f32 %v726, %v437
  %v728 = vadd.f32 %v727, %v443
  %v729 = vadd.f32 %v728, %v447
  %v730 = vadd.f32 %v729, %v453
  %v731 = vadd.f32 %v730, %v457
  %v732 = vadd.f32 %v731, %v463
  %v733 = vadd.f32 %v732, %v467
  %v734 = vadd.f32 %v733, %v473
  %v735 = vadd.f32 %v734, %v477
  %v736 = vadd.f32 %v735, %v483
  %v737 = vadd.f32 %v736, %v487
  %v738 = vadd.f32 %v737, %v493
  %v739 = vadd.f32 %v738, %v497
  %v740 = vadd.f32 %v739, %v503
  %v741 = vadd.f32 %v740, %v507
  %v742 = vadd.f32 %v741, %v513
  %v743 = vadd.f32 %v742, %v517
  %v744 = vadd.f32 %v743, %v523
  %v745 = vadd.f32 %v744, %v527
  %v746 = vadd.f32 %v745, %v533
  %v747 = vadd.f32 %v746, %v537
  %v748 = vadd.f32 %v747, %v543
  %v749 = vadd.f32 %v748, %v547
  %v750 = vadd.f32 %v749, %v553
  %v751 = vadd.f32 %v750, %v557
  %v752 = vadd.f32 %v751, %v563
  %v753 = vadd.f32 %v752, %v567
  %v754 = vadd.f32 %v753, %v573
  %v755 = vadd.f32 %v754, %v577
  %v756 = vadd.f32 %v755, %v583
  %v757 = vadd.f32 %v756, %v587
  %v758 = vadd.f32 %v757, %v593
  %v759 = vadd.f32 %v758, %v597
  %v760 = vadd.f32 %v759, %v603
  %v761 = vadd.f32 %v760, %v607
  %v762 = vadd.f32 %v761, %v613
  %v763 = vadd.f32 %v762, %v617
  %v764 = vadd.f32 %v763, %v623
  %v765 = vadd.f32 %v764, %v627
  %v766 = vadd.f32 %v765, %v633
  %v767 = vadd.f32 %v766, %v637
  %v768 = vadd.f32 %v767, %v643
  %v769 = vadd.f32 %v768, %v647
  %v770 = vadd.f32 %v769, %v653
  %v771 = vadd.f32 %v770, %v657
  %v772 = vadd.f32 %v771, %v663
  %v773 = vadd.f32 %v772, %v667
  %v774 = vadd.f32 %v773, %v673
  %v775 = vadd.f32 %v774, %v677
  %v776 = vadd.f32 %v775, %v683
  %v777 = vadd.f32 %v776, %v687
  %v778 = vadd.f32 %v777, %v693
  %v779 = vadd.f32 %v778, %v697
  %v780 = vadd.f32 %v779, %v703
  %v781 = vadd.f32 %v780, %v707
  %v782 = vadd.f32 %v781, %v713
  %v783 = vadd.f32 %v782, %v717
  %v784 = vrot.slane %v783, 4
  %v785 = vadd.f32 %v783, %v784
  %v786 = vrot.slane %v785, 2
  %v787 = vadd.f32 %v785, %v786
  %v788 = vrot.slane %v787, 1
  %v789 = vadd.f32 %v787, %v788
  %v790 = vadd.f32 %v405, %v409
  %v791 = vadd.f32 %v790, %v415
  %v792 = vadd.f32 %v791, %v419
  %v793 = vadd.f32 %v792, %v425
  %v794 = vadd.f32 %v793, %v429
  %v795 = vadd.f32 %v794, %v435
  %v796 = vadd.f32 %v795, %v439
  %v797 = vadd.f32 %v796, %v445
  %v798 = vadd.f32 %v797, %v449
  %v799 = vadd.f32 %v798, %v455
  %v800 = vadd.f32 %v799, %v459
  %v801 = vadd.f32 %v800, %v465
  %v802 = vadd.f32 %v801, %v469
  %v803 = vadd.f32 %v802, %v475
  %v804 = vadd.f32 %v803, %v479
  %v805 = vadd.f32 %v804, %v485
  %v806 = vadd.f32 %v805, %v489
  %v807 = vadd.f32 %v806, %v495
  %v808 = vadd.f32 %v807, %v499
  %v809 = vadd.f32 %v808, %v505
  %v810 = vadd.f32 %v809, %v509
  %v811 = vadd.f32 %v810, %v515
  %v812 = vadd.f32 %v811, %v519
  %v813 = vadd.f32 %v812, %v525
  %v814 = vadd.f32 %v813, %v529
  %v815 = vadd.f32 %v814, %v535
  %v816 = vadd.f32 %v815, %v539
  %v817 = vadd.f32 %v816, %v545
  %v818 = vadd.f32 %v817, %v549
  %v819 = vadd.f32 %v818, %v555
  %v820 = vadd.f32 %v819, %v559
  %v821 = vadd.f32 %v820, %v565
  %v822 = vadd.f32 %v821, %v569
  %v823 = vadd.f32 %v822, %v575
  %v824 = vadd.f32 %v823, %v579
  %v825 = vadd.f32 %v824, %v585
  %v826 = vadd.f32 %v825, %v589
  %v827 = vadd.f32 %v826, %v595
  %v828 = vadd.f32 %v827, %v599
  %v829 = vadd.f32 %v828, %v605
  %v830 = vadd.f32 %v829, %v609
  %v831 = vadd.f32 %v830, %v615
  %v832 = vadd.f32 %v831, %v619
  %v833 = vadd.f32 %v832, %v625
  %v834 = vadd.f32 %v833, %v629
  %v835 = vadd.f32 %v834, %v635
  %v836 = vadd.f32 %v835, %v639
  %v837 = vadd.f32 %v836, %v645
  %v838 = vadd.f32 %v837, %v649
  %v839 = vadd.f32 %v838, %v655
  %v840 = vadd.f32 %v839, %v659
  %v841 = vadd.f32 %v840, %v665
  %v842 = vadd.f32 %v841, %v669
  %v843 = vadd.f32 %v842, %v675
  %v844 = vadd.f32 %v843, %v679
  %v845 = vadd.f32 %v844, %v685
  %v846 = vadd.f32 %v845, %v689
  %v847 = vadd.f32 %v846, %v695
  %v848 = vadd.f32 %v847, %v699
  %v849 = vadd.f32 %v848, %v705
  %v850 = vadd.f32 %v849, %v709
  %v851 = vadd.f32 %v850, %v715
  %v852 = vadd.f32 %v851, %v719
  %v853 = vrot.slane %v852, 4
  %v854 = vadd.f32 %v852, %v853
  %v855 = vrot.slane %v854, 2
  %v856 = vadd.f32 %v854, %v855
  %v857 = vrot.slane %v856, 1
  %v858 = vadd.f32 %v856, %v857
  %v861 = vcombine.low %v789, %v858
  %v863 = vunpack.c.l.s4 1966171168
  %v864 = vunpack.c.0.s8 %v863
  %v865 = vlaneseq
  %v866 = vshrl.u32 %v865, 7
  %v867 = vsub.s32 %v864, %v866
  %v868 = vrot.slane %v861, %v867
  %v870 = vunpack.c.l.s4 1966171168
  %v871 = vunpack.c.0.s8 %v870
  %v872 = vlaneseq
  %v873 = vshrl.u32 %v872, 7
  %v874 = vsub.s32 %v871, %v873
  %v875 = vrot.slane %v868, %v874
  %v877 = vlaneseq
  %vm878 = vcmp.ge.s32.totalorder %v877, 0
  %vm879 = vcmp.lt.s32.totalorder %v877, 256
  %vm880 = vmand %vm878, %vm879
  %881 = vst.msk [vmem:[%s4] sm:$0x3] %vm880, %v875
  %v882 = vmul.f32 %v403, %v403
  %v883 = vmul.f32 %v405, %v405
  %v884 = vmul.f32 %v407, %v407
  %v885 = vmul.f32 %v409, %v409
  %v886 = vmul.f32 %v413, %v413
  %v887 = vmul.f32 %v415, %v415
  %v888 = vmul.f32 %v417, %v417
  %v889 = vmul.f32 %v419, %v419
  %v890 = vmul.f32 %v423, %v423
  %v891 = vmul.f32 %v425, %v425
  %v892 = vmul.f32 %v427, %v427
  %v893 = vmul.f32 %v429, %v429
  %v894 = vmul.f32 %v433, %v433
  %v895 = vmul.f32 %v435, %v435
  %v896 = vmul.f32 %v437, %v437
  %v897 = vmul.f32 %v439, %v439
  %v898 = vmul.f32 %v443, %v443
  %v899 = vmul.f32 %v445, %v445
  %v900 = vmul.f32 %v447, %v447
  %v901 = vmul.f32 %v449, %v449
  %v902 = vmul.f32 %v453, %v453
  %v903 = vmul.f32 %v455, %v455
  %v904 = vmul.f32 %v457, %v457
  %v905 = vmul.f32 %v459, %v459
  %v906 = vmul.f32 %v463, %v463
  %v907 = vmul.f32 %v465, %v465
  %v908 = vmul.f32 %v467, %v467
  %v909 = vmul.f32 %v469, %v469
  %v910 = vmul.f32 %v473, %v473
  %v911 = vmul.f32 %v475, %v475
  %v912 = vmul.f32 %v477, %v477
  %v913 = vmul.f32 %v479, %v479
  %v914 = vmul.f32 %v483, %v483
  %v915 = vmul.f32 %v485, %v485
  %v916 = vmul.f32 %v487, %v487
  %v917 = vmul.f32 %v489, %v489
  %v918 = vmul.f32 %v493, %v493
  %v919 = vmul.f32 %v495, %v495
  %v920 = vmul.f32 %v497, %v497
  %v921 = vmul.f32 %v499, %v499
  %v922 = vmul.f32 %v503, %v503
  %v923 = vmul.f32 %v505, %v505
  %v924 = vmul.f32 %v507, %v507
  %v925 = vmul.f32 %v509, %v509
  %v926 = vmul.f32 %v513, %v513
  %v927 = vmul.f32 %v515, %v515
  %v928 = vmul.f32 %v517, %v517
  %v929 = vmul.f32 %v519, %v519
  %v930 = vmul.f32 %v523, %v523
  %v931 = vmul.f32 %v525, %v525
  %v932 = vmul.f32 %v527, %v527
  %v933 = vmul.f32 %v529, %v529
  %v934 = vmul.f32 %v533, %v533
  %v935 = vmul.f32 %v535, %v535
  %v936 = vmul.f32 %v537, %v537
  %v937 = vmul.f32 %v539, %v539
  %v938 = vmul.f32 %v543, %v543
  %v939 = vmul.f32 %v545, %v545
  %v940 = vmul.f32 %v547, %v547
  %v941 = vmul.f32 %v549, %v549
  %v942 = vmul.f32 %v553, %v553
  %v943 = vmul.f32 %v555, %v555
  %v944 = vmul.f32 %v557, %v557
  %v945 = vmul.f32 %v559, %v559
  %v946 = vmul.f32 %v563, %v563
  %v947 = vmul.f32 %v565, %v565
  %v948 = vmul.f32 %v567, %v567
  %v949 = vmul.f32 %v569, %v569
  %v950 = vmul.f32 %v573, %v573
  %v951 = vmul.f32 %v575, %v575
  %v952 = vmul.f32 %v577, %v577
  %v953 = vmul.f32 %v579, %v579
  %v954 = vmul.f32 %v583, %v583
  %v955 = vmul.f32 %v585, %v585
  %v956 = vmul.f32 %v587, %v587
  %v957 = vmul.f32 %v589, %v589
  %v958 = vmul.f32 %v593, %v593
  %v959 = vmul.f32 %v595, %v595
  %v960 = vmul.f32 %v597, %v597
  %v961 = vmul.f32 %v599, %v599
  %v962 = vmul.f32 %v603, %v603
  %v963 = vmul.f32 %v605, %v605
  %v964 = vmul.f32 %v607, %v607
  %v965 = vmul.f32 %v609, %v609
  %v966 = vmul.f32 %v613, %v613
  %v967 = vmul.f32 %v615, %v615
  %v968 = vmul.f32 %v617, %v617
  %v969 = vmul.f32 %v619, %v619
  %v970 = vmul.f32 %v623, %v623
  %v971 = vmul.f32 %v625, %v625
  %v972 = vmul.f32 %v627, %v627
  %v973 = vmul.f32 %v629, %v629
  %v974 = vmul.f32 %v633, %v633
  %v975 = vmul.f32 %v635, %v635
  %v976 = vmul.f32 %v637, %v637
  %v977 = vmul.f32 %v639, %v639
  %v978 = vmul.f32 %v643, %v643
  %v979 = vmul.f32 %v645, %v645
  %v980 = vmul.f32 %v647, %v647
  %v981 = vmul.f32 %v649, %v649
  %v982 = vmul.f32 %v653, %v653
  %v983 = vmul.f32 %v655, %v655
  %v984 = vmul.f32 %v657, %v657
  %v985 = vmul.f32 %v659, %v659
  %v986 = vmul.f32 %v663, %v663
  %v987 = vmul.f32 %v665, %v665
  %v988 = vmul.f32 %v667, %v667
  %v989 = vmul.f32 %v669, %v669
  %v990 = vmul.f32 %v673, %v673
  %v991 = vmul.f32 %v675, %v675
  %v992 = vmul.f32 %v677, %v677
  %v993 = vmul.f32 %v679, %v679
  %v994 = vmul.f32 %v683, %v683
  %v995 = vmul.f32 %v685, %v685
  %v996 = vmul.f32 %v687, %v687
  %v997 = vmul.f32 %v689, %v689
  %v998 = vmul.f32 %v693, %v693
  %v999 = vmul.f32 %v695, %v695
  %v1000 = vmul.f32 %v697, %v697
  %v1001 = vmul.f32 %v699, %v699
  %v1002 = vmul.f32 %v703, %v703
  %v1003 = vmul.f32 %v705, %v705
  %v1004 = vmul.f32 %v707, %v707
  %v1005 = vmul.f32 %v709, %v709
  %v1006 = vmul.f32 %v713, %v713
  %v1007 = vmul.f32 %v715, %v715
  %v1008 = vmul.f32 %v717, %v717
  %v1009 = vmul.f32 %v719, %v719
  %v1010 = vadd.f32 %v882, %v884
  %v1011 = vadd.f32 %v1010, %v886
  %v1012 = vadd.f32 %v1011, %v888
  %v1013 = vadd.f32 %v1012, %v890
  %v1014 = vadd.f32 %v1013, %v892
  %v1015 = vadd.f32 %v1014, %v894
  %v1016 = vadd.f32 %v1015, %v896
  %v1017 = vadd.f32 %v1016, %v898
  %v1018 = vadd.f32 %v1017, %v900
  %v1019 = vadd.f32 %v1018, %v902
  %v1020 = vadd.f32 %v1019, %v904
  %v1021 = vadd.f32 %v1020, %v906
  %v1022 = vadd.f32 %v1021, %v908
  %v1023 = vadd.f32 %v1022, %v910
  %v1024 = vadd.f32 %v1023, %v912
  %v1025 = vadd.f32 %v1024, %v914
  %v1026 = vadd.f32 %v1025, %v916
  %v1027 = vadd.f32 %v1026, %v918
  %v1028 = vadd.f32 %v1027, %v920
  %v1029 = vadd.f32 %v1028, %v922
  %v1030 = vadd.f32 %v1029, %v924
  %v1031 = vadd.f32 %v1030, %v926
  %v1032 = vadd.f32 %v1031, %v928
  %v1033 = vadd.f32 %v1032, %v930
  %v1034 = vadd.f32 %v1033, %v932
  %v1035 = vadd.f32 %v1034, %v934
  %v1036 = vadd.f32 %v1035, %v936
  %v1037 = vadd.f32 %v1036, %v938
  %v1038 = vadd.f32 %v1037, %v940
  %v1039 = vadd.f32 %v1038, %v942
  %v1040 = vadd.f32 %v1039, %v944
  %v1041 = vadd.f32 %v1040, %v946
  %v1042 = vadd.f32 %v1041, %v948
  %v1043 = vadd.f32 %v1042, %v950
  %v1044 = vadd.f32 %v1043, %v952
  %v1045 = vadd.f32 %v1044, %v954
  %v1046 = vadd.f32 %v1045, %v956
  %v1047 = vadd.f32 %v1046, %v958
  %v1048 = vadd.f32 %v1047, %v960
  %v1049 = vadd.f32 %v1048, %v962
  %v1050 = vadd.f32 %v1049, %v964
  %v1051 = vadd.f32 %v1050, %v966
  %v1052 = vadd.f32 %v1051, %v968
  %v1053 = vadd.f32 %v1052, %v970
  %v1054 = vadd.f32 %v1053, %v972
  %v1055 = vadd.f32 %v1054, %v974
  %v1056 = vadd.f32 %v1055, %v976
  %v1057 = vadd.f32 %v1056, %v978
  %v1058 = vadd.f32 %v1057, %v980
  %v1059 = vadd.f32 %v1058, %v982
  %v1060 = vadd.f32 %v1059, %v984
  %v1061 = vadd.f32 %v1060, %v986
  %v1062 = vadd.f32 %v1061, %v988
  %v1063 = vadd.f32 %v1062, %v990
  %v1064 = vadd.f32 %v1063, %v992
  %v1065 = vadd.f32 %v1064, %v994
  %v1066 = vadd.f32 %v1065, %v996
  %v1067 = vadd.f32 %v1066, %v998
  %v1068 = vadd.f32 %v1067, %v1000
  %v1069 = vadd.f32 %v1068, %v1002
  %v1070 = vadd.f32 %v1069, %v1004
  %v1071 = vadd.f32 %v1070, %v1006
  %v1072 = vadd.f32 %v1071, %v1008
  %v1073 = vrot.slane %v1072, 4
  %v1074 = vadd.f32 %v1072, %v1073
  %v1075 = vrot.slane %v1074, 2
  %v1076 = vadd.f32 %v1074, %v1075
  %v1077 = vrot.slane %v1076, 1
  %v1078 = vadd.f32 %v1076, %v1077
  %v1079 = vadd.f32 %v883, %v885
  %v1080 = vadd.f32 %v1079, %v887
  %v1081 = vadd.f32 %v1080, %v889
  %v1082 = vadd.f32 %v1081, %v891
  %v1083 = vadd.f32 %v1082, %v893
  %v1084 = vadd.f32 %v1083, %v895
  %v1085 = vadd.f32 %v1084, %v897
  %v1086 = vadd.f32 %v1085, %v899
  %v1087 = vadd.f32 %v1086, %v901
  %v1088 = vadd.f32 %v1087, %v903
  %v1089 = vadd.f32 %v1088, %v905
  %v1090 = vadd.f32 %v1089, %v907
  %v1091 = vadd.f32 %v1090, %v909
  %v1092 = vadd.f32 %v1091, %v911
  %v1093 = vadd.f32 %v1092, %v913
  %v1094 = vadd.f32 %v1093, %v915
  %v1095 = vadd.f32 %v1094, %v917
  %v1096 = vadd.f32 %v1095, %v919
  %v1097 = vadd.f32 %v1096, %v921
  %v1098 = vadd.f32 %v1097, %v923
  %v1099 = vadd.f32 %v1098, %v925
  %v1100 = vadd.f32 %v1099, %v927
  %v1101 = vadd.f32 %v1100, %v929
  %v1102 = vadd.f32 %v1101, %v931
  %v1103 = vadd.f32 %v1102, %v933
  %v1104 = vadd.f32 %v1103, %v935
  %v1105 = vadd.f32 %v1104, %v937
  %v1106 = vadd.f32 %v1105, %v939
  %v1107 = vadd.f32 %v1106, %v941
  %v1108 = vadd.f32 %v1107, %v943
  %v1109 = vadd.f32 %v1108, %v945
  %v1110 = vadd.f32 %v1109, %v947
  %v1111 = vadd.f32 %v1110, %v949
  %v1112 = vadd.f32 %v1111, %v951
  %v1113 = vadd.f32 %v1112, %v953
  %v1114 = vadd.f32 %v1113, %v955
  %v1115 = vadd.f32 %v1114, %v957
  %v1116 = vadd.f32 %v1115, %v959
  %v1117 = vadd.f32 %v1116, %v961
  %v1118 = vadd.f32 %v1117, %v963
  %v1119 = vadd.f32 %v1118, %v965
  %v1120 = vadd.f32 %v1119, %v967
  %v1121 = vadd.f32 %v1120, %v969
  %v1122 = vadd.f32 %v1121, %v971
  %v1123 = vadd.f32 %v1122, %v973
  %v1124 = vadd.f32 %v1123, %v975
  %v1125 = vadd.f32 %v1124, %v977
  %v1126 = vadd.f32 %v1125, %v979
  %v1127 = vadd.f32 %v1126, %v981
  %v1128 = vadd.f32 %v1127, %v983
  %v1129 = vadd.f32 %v1128, %v985
  %v1130 = vadd.f32 %v1129, %v987
  %v1131 = vadd.f32 %v1130, %v989
  %v1132 = vadd.f32 %v1131, %v991
  %v1133 = vadd.f32 %v1132, %v993
  %v1134 = vadd.f32 %v1133, %v995
  %v1135 = vadd.f32 %v1134, %v997
  %v1136 = vadd.f32 %v1135, %v999
  %v1137 = vadd.f32 %v1136, %v1001
  %v1138 = vadd.f32 %v1137, %v1003
  %v1139 = vadd.f32 %v1138, %v1005
  %v1140 = vadd.f32 %v1139, %v1007
  %v1141 = vadd.f32 %v1140, %v1009
  %v1142 = vrot.slane %v1141, 4
  %v1143 = vadd.f32 %v1141, %v1142
  %v1144 = vrot.slane %v1143, 2
  %v1145 = vadd.f32 %v1143, %v1144
  %v1146 = vrot.slane %v1145, 1
  %v1147 = vadd.f32 %v1145, %v1146
  %v1150 = vcombine.low %v1078, %v1147
  %v1152 = vunpack.c.l.s4 1966171168
  %v1153 = vunpack.c.0.s8 %v1152
  %v1154 = vlaneseq
  %v1155 = vshrl.u32 %v1154, 7
  %v1156 = vsub.s32 %v1153, %v1155
  %v1157 = vrot.slane %v1150, %v1156
  %v1159 = vunpack.c.l.s4 1966171168
  %v1160 = vunpack.c.0.s8 %v1159
  %v1161 = vlaneseq
  %v1162 = vshrl.u32 %v1161, 7
  %v1163 = vsub.s32 %v1160, %v1162
  %v1164 = vrot.slane %v1157, %v1163
  %1166 = vst.msk [vmem:[%s5] sm:$0x3] %vm880, %v1164
  %v1167 = vpack.c.bf16 %v407, %v403
  %v1168 = vpack.c.bf16 %v417, %v413
  %v1169 = vpack.c.bf16 %v427, %v423
  %v1170 = vpack.c.bf16 %v437, %v433
  %v1171 = vpack.c.bf16 %v447, %v443
  %v1172 = vpack.c.bf16 %v457, %v453
  %v1173 = vpack.c.bf16 %v467, %v463
  %v1174 = vpack.c.bf16 %v477, %v473
  %v1175 = vpack.c.bf16 %v487, %v483
  %v1176 = vpack.c.bf16 %v497, %v493
  %v1177 = vpack.c.bf16 %v507, %v503
  %v1178 = vpack.c.bf16 %v517, %v513
  %v1179 = vpack.c.bf16 %v527, %v523
  %v1180 = vpack.c.bf16 %v537, %v533
  %v1181 = vpack.c.bf16 %v547, %v543
  %v1182 = vpack.c.bf16 %v557, %v553
  %v1183 = vpack.c.bf16 %v567, %v563
  %v1184 = vpack.c.bf16 %v577, %v573
  %v1185 = vpack.c.bf16 %v587, %v583
  %v1186 = vpack.c.bf16 %v597, %v593
  %v1187 = vpack.c.bf16 %v607, %v603
  %v1188 = vpack.c.bf16 %v617, %v613
  %v1189 = vpack.c.bf16 %v627, %v623
  %v1190 = vpack.c.bf16 %v637, %v633
  %v1191 = vpack.c.bf16 %v647, %v643
  %v1192 = vpack.c.bf16 %v657, %v653
  %v1193 = vpack.c.bf16 %v667, %v663
  %v1194 = vpack.c.bf16 %v677, %v673
  %v1195 = vpack.c.bf16 %v687, %v683
  %v1196 = vpack.c.bf16 %v697, %v693
  %v1197 = vpack.c.bf16 %v707, %v703
  %v1198 = vpack.c.bf16 %v717, %v713
  %v1231 = vunpack.c.l.b16 %v1167
  %v1232 = vunpack.c.h.b16 %v1167
  %v1233 = vunpack.c.l.b16 %v1168
  %v1234 = vunpack.c.h.b16 %v1168
  %v1235 = vunpack.c.l.b16 %v1169
  %v1236 = vunpack.c.h.b16 %v1169
  %v1237 = vunpack.c.l.b16 %v1170
  %v1238 = vunpack.c.h.b16 %v1170
  %v1239 = vunpack.c.l.b16 %v1171
  %v1240 = vunpack.c.h.b16 %v1171
  %v1241 = vunpack.c.l.b16 %v1172
  %v1242 = vunpack.c.h.b16 %v1172
  %v1243 = vunpack.c.l.b16 %v1173
  %v1244 = vunpack.c.h.b16 %v1173
  %v1245 = vunpack.c.l.b16 %v1174
  %v1246 = vunpack.c.h.b16 %v1174
  %v1247 = vunpack.c.l.b16 %v1175
  %v1248 = vunpack.c.h.b16 %v1175
  %v1249 = vunpack.c.l.b16 %v1176
  %v1250 = vunpack.c.h.b16 %v1176
  %v1251 = vunpack.c.l.b16 %v1177
  %v1252 = vunpack.c.h.b16 %v1177
  %v1253 = vunpack.c.l.b16 %v1178
  %v1254 = vunpack.c.h.b16 %v1178
  %v1255 = vunpack.c.l.b16 %v1179
  %v1256 = vunpack.c.h.b16 %v1179
  %v1257 = vunpack.c.l.b16 %v1180
  %v1258 = vunpack.c.h.b16 %v1180
  %v1259 = vunpack.c.l.b16 %v1181
  %v1260 = vunpack.c.h.b16 %v1181
  %v1261 = vunpack.c.l.b16 %v1182
  %v1262 = vunpack.c.h.b16 %v1182
  %v1263 = vunpack.c.l.b16 %v1183
  %v1264 = vunpack.c.h.b16 %v1183
  %v1265 = vunpack.c.l.b16 %v1184
  %v1266 = vunpack.c.h.b16 %v1184
  %v1267 = vunpack.c.l.b16 %v1185
  %v1268 = vunpack.c.h.b16 %v1185
  %v1269 = vunpack.c.l.b16 %v1186
  %v1270 = vunpack.c.h.b16 %v1186
  %v1271 = vunpack.c.l.b16 %v1187
  %v1272 = vunpack.c.h.b16 %v1187
  %v1273 = vunpack.c.l.b16 %v1188
  %v1274 = vunpack.c.h.b16 %v1188
  %v1275 = vunpack.c.l.b16 %v1189
  %v1276 = vunpack.c.h.b16 %v1189
  %v1277 = vunpack.c.l.b16 %v1190
  %v1278 = vunpack.c.h.b16 %v1190
  %v1279 = vunpack.c.l.b16 %v1191
  %v1280 = vunpack.c.h.b16 %v1191
  %v1281 = vunpack.c.l.b16 %v1192
  %v1282 = vunpack.c.h.b16 %v1192
  %v1283 = vunpack.c.l.b16 %v1193
  %v1284 = vunpack.c.h.b16 %v1193
  %v1285 = vunpack.c.l.b16 %v1194
  %v1286 = vunpack.c.h.b16 %v1194
  %v1287 = vunpack.c.l.b16 %v1195
  %v1288 = vunpack.c.h.b16 %v1195
  %v1289 = vunpack.c.l.b16 %v1196
  %v1290 = vunpack.c.h.b16 %v1196
  %v1291 = vunpack.c.l.b16 %v1197
  %v1292 = vunpack.c.h.b16 %v1197
  %v1293 = vunpack.c.l.b16 %v1198
  %v1294 = vunpack.c.h.b16 %v1198
  %v1295 = vpack.c.b16 %v1231, %v1231
  %v1296 = vpack.c.b16 %v1232, %v1232
  %v1297 = vpack.c.b16 %v1233, %v1233
  %v1298 = vpack.c.b16 %v1234, %v1234
  %v1299 = vpack.c.b16 %v1235, %v1235
  %v1300 = vpack.c.b16 %v1236, %v1236
  %v1301 = vpack.c.b16 %v1237, %v1237
  %v1302 = vpack.c.b16 %v1238, %v1238
  %v1303 = vpack.c.b16 %v1239, %v1239
  %v1304 = vpack.c.b16 %v1240, %v1240
  %v1305 = vpack.c.b16 %v1241, %v1241
  %v1306 = vpack.c.b16 %v1242, %v1242
  %v1307 = vpack.c.b16 %v1243, %v1243
  %v1308 = vpack.c.b16 %v1244, %v1244
  %v1309 = vpack.c.b16 %v1245, %v1245
  %v1310 = vpack.c.b16 %v1246, %v1246
  %v1311 = vpack.c.b16 %v1247, %v1247
  %v1312 = vpack.c.b16 %v1248, %v1248
  %v1313 = vpack.c.b16 %v1249, %v1249
  %v1314 = vpack.c.b16 %v1250, %v1250
  %v1315 = vpack.c.b16 %v1251, %v1251
  %v1316 = vpack.c.b16 %v1252, %v1252
  %v1317 = vpack.c.b16 %v1253, %v1253
  %v1318 = vpack.c.b16 %v1254, %v1254
  %v1319 = vpack.c.b16 %v1255, %v1255
  %v1320 = vpack.c.b16 %v1256, %v1256
  %v1321 = vpack.c.b16 %v1257, %v1257
  %v1322 = vpack.c.b16 %v1258, %v1258
  %v1323 = vpack.c.b16 %v1259, %v1259
  %v1324 = vpack.c.b16 %v1260, %v1260
  %v1325 = vpack.c.b16 %v1261, %v1261
  %v1326 = vpack.c.b16 %v1262, %v1262
  %v1327 = vpack.c.b16 %v1263, %v1263
  %v1328 = vpack.c.b16 %v1264, %v1264
  %v1329 = vpack.c.b16 %v1265, %v1265
  %v1330 = vpack.c.b16 %v1266, %v1266
  %v1331 = vpack.c.b16 %v1267, %v1267
  %v1332 = vpack.c.b16 %v1268, %v1268
  %v1333 = vpack.c.b16 %v1269, %v1269
  %v1334 = vpack.c.b16 %v1270, %v1270
  %v1335 = vpack.c.b16 %v1271, %v1271
  %v1336 = vpack.c.b16 %v1272, %v1272
  %v1337 = vpack.c.b16 %v1273, %v1273
  %v1338 = vpack.c.b16 %v1274, %v1274
  %v1339 = vpack.c.b16 %v1275, %v1275
  %v1340 = vpack.c.b16 %v1276, %v1276
  %v1341 = vpack.c.b16 %v1277, %v1277
  %v1342 = vpack.c.b16 %v1278, %v1278
  %v1343 = vpack.c.b16 %v1279, %v1279
  %v1344 = vpack.c.b16 %v1280, %v1280
  %v1345 = vpack.c.b16 %v1281, %v1281
  %v1346 = vpack.c.b16 %v1282, %v1282
  %v1347 = vpack.c.b16 %v1283, %v1283
  %v1348 = vpack.c.b16 %v1284, %v1284
  %v1349 = vpack.c.b16 %v1285, %v1285
  %v1350 = vpack.c.b16 %v1286, %v1286
  %v1351 = vpack.c.b16 %v1287, %v1287
  %v1352 = vpack.c.b16 %v1288, %v1288
  %v1353 = vpack.c.b16 %v1289, %v1289
  %v1354 = vpack.c.b16 %v1290, %v1290
  %v1355 = vpack.c.b16 %v1291, %v1291
  %v1356 = vpack.c.b16 %v1292, %v1292
  %v1357 = vpack.c.b16 %v1293, %v1293
  %v1358 = vpack.c.b16 %v1294, %v1294
  %1423 = vst [vmem:[%s2] sm:$0xf] %v1295
  %1424 = vst [vmem:[%s2 + $0x4] sm:$0xf] %v1296
  %1425 = vst [vmem:[%s2 + $0x8] sm:$0xf] %v1297
  %1426 = vst [vmem:[%s2 + $0xc] sm:$0xf] %v1298
  %1427 = vst [vmem:[%s2 + $0x10] sm:$0xf] %v1299
  %1428 = vst [vmem:[%s2 + $0x14] sm:$0xf] %v1300
  %1429 = vst [vmem:[%s2 + $0x18] sm:$0xf] %v1301
  %1430 = vst [vmem:[%s2 + $0x1c] sm:$0xf] %v1302
  %1431 = vst [vmem:[%s2 + $0x20] sm:$0xf] %v1303
  %1432 = vst [vmem:[%s2 + $0x24] sm:$0xf] %v1304
  %1433 = vst [vmem:[%s2 + $0x28] sm:$0xf] %v1305
  %1434 = vst [vmem:[%s2 + $0x2c] sm:$0xf] %v1306
  %1435 = vst [vmem:[%s2 + $0x30] sm:$0xf] %v1307
  %1436 = vst [vmem:[%s2 + $0x34] sm:$0xf] %v1308
  %1437 = vst [vmem:[%s2 + $0x38] sm:$0xf] %v1309
  %1438 = vst [vmem:[%s2 + $0x3c] sm:$0xf] %v1310
  %1439 = vst [vmem:[%s2 + $0x40] sm:$0xf] %v1311
  %1440 = vst [vmem:[%s2 + $0x44] sm:$0xf] %v1312
  %1441 = vst [vmem:[%s2 + $0x48] sm:$0xf] %v1313
  %1442 = vst [vmem:[%s2 + $0x4c] sm:$0xf] %v1314
  %1443 = vst [vmem:[%s2 + $0x50] sm:$0xf] %v1315
  %1444 = vst [vmem:[%s2 + $0x54] sm:$0xf] %v1316
  %1445 = vst [vmem:[%s2 + $0x58] sm:$0xf] %v1317
  %1446 = vst [vmem:[%s2 + $0x5c] sm:$0xf] %v1318
  %1447 = vst [vmem:[%s2 + $0x60] sm:$0xf] %v1319
  %1448 = vst [vmem:[%s2 + $0x64] sm:$0xf] %v1320
  %1449 = vst [vmem:[%s2 + $0x68] sm:$0xf] %v1321
  %1450 = vst [vmem:[%s2 + $0x6c] sm:$0xf] %v1322
  %1451 = vst [vmem:[%s2 + $0x70] sm:$0xf] %v1323
  %1452 = vst [vmem:[%s2 + $0x74] sm:$0xf] %v1324
  %1453 = vst [vmem:[%s2 + $0x78] sm:$0xf] %v1325
  %1454 = vst [vmem:[%s2 + $0x7c] sm:$0xf] %v1326
  %1455 = vst [vmem:[%s2 + $0x80] sm:$0xf] %v1327
  %1456 = vst [vmem:[%s2 + $0x84] sm:$0xf] %v1328
  %1457 = vst [vmem:[%s2 + $0x88] sm:$0xf] %v1329
  %1458 = vst [vmem:[%s2 + $0x8c] sm:$0xf] %v1330
  %1459 = vst [vmem:[%s2 + $0x90] sm:$0xf] %v1331
  %1460 = vst [vmem:[%s2 + $0x94] sm:$0xf] %v1332
  %1461 = vst [vmem:[%s2 + $0x98] sm:$0xf] %v1333
  %1462 = vst [vmem:[%s2 + $0x9c] sm:$0xf] %v1334
  %1463 = vst [vmem:[%s2 + $0xa0] sm:$0xf] %v1335
  %1464 = vst [vmem:[%s2 + $0xa4] sm:$0xf] %v1336
  %1465 = vst [vmem:[%s2 + $0xa8] sm:$0xf] %v1337
  %1466 = vst [vmem:[%s2 + $0xac] sm:$0xf] %v1338
  %1467 = vst [vmem:[%s2 + $0xb0] sm:$0xf] %v1339
  %1468 = vst [vmem:[%s2 + $0xb4] sm:$0xf] %v1340
  %1469 = vst [vmem:[%s2 + $0xb8] sm:$0xf] %v1341
  %1470 = vst [vmem:[%s2 + $0xbc] sm:$0xf] %v1342
  %1471 = vst [vmem:[%s2 + $0xc0] sm:$0xf] %v1343
  %1472 = vst [vmem:[%s2 + $0xc4] sm:$0xf] %v1344
  %1473 = vst [vmem:[%s2 + $0xc8] sm:$0xf] %v1345
  %1474 = vst [vmem:[%s2 + $0xcc] sm:$0xf] %v1346
  %1475 = vst [vmem:[%s2 + $0xd0] sm:$0xf] %v1347
  %1476 = vst [vmem:[%s2 + $0xd4] sm:$0xf] %v1348
  %1477 = vst [vmem:[%s2 + $0xd8] sm:$0xf] %v1349
  %1478 = vst [vmem:[%s2 + $0xdc] sm:$0xf] %v1350
  %1479 = vst [vmem:[%s2 + $0xe0] sm:$0xf] %v1351
  %1480 = vst [vmem:[%s2 + $0xe4] sm:$0xf] %v1352
  %1481 = vst [vmem:[%s2 + $0xe8] sm:$0xf] %v1353
  %1482 = vst [vmem:[%s2 + $0xec] sm:$0xf] %v1354
  %1483 = vst [vmem:[%s2 + $0xf0] sm:$0xf] %v1355
  %1484 = vst [vmem:[%s2 + $0xf4] sm:$0xf] %v1356
  %1485 = vst [vmem:[%s2 + $0xf8] sm:$0xf] %v1357
  %1486 = vst [vmem:[%s2 + $0xfc] sm:$0xf] %v1358
  %v1487 = vpack.c.bf16 %v409, %v405
  %v1488 = vpack.c.bf16 %v419, %v415
  %v1489 = vpack.c.bf16 %v429, %v425
  %v1490 = vpack.c.bf16 %v439, %v435
  %v1491 = vpack.c.bf16 %v449, %v445
  %v1492 = vpack.c.bf16 %v459, %v455
  %v1493 = vpack.c.bf16 %v469, %v465
  %v1494 = vpack.c.bf16 %v479, %v475
  %v1495 = vpack.c.bf16 %v489, %v485
  %v1496 = vpack.c.bf16 %v499, %v495
  %v1497 = vpack.c.bf16 %v509, %v505
  %v1498 = vpack.c.bf16 %v519, %v515
  %v1499 = vpack.c.bf16 %v529, %v525
  %v1500 = vpack.c.bf16 %v539, %v535
  %v1501 = vpack.c.bf16 %v549, %v545
  %v1502 = vpack.c.bf16 %v559, %v555
  %v1503 = vpack.c.bf16 %v569, %v565
  %v1504 = vpack.c.bf16 %v579, %v575
  %v1505 = vpack.c.bf16 %v589, %v585
  %v1506 = vpack.c.bf16 %v599, %v595
  %v1507 = vpack.c.bf16 %v609, %v605
  %v1508 = vpack.c.bf16 %v619, %v615
  %v1509 = vpack.c.bf16 %v629, %v625
  %v1510 = vpack.c.bf16 %v639, %v635
  %v1511 = vpack.c.bf16 %v649, %v645
  %v1512 = vpack.c.bf16 %v659, %v655
  %v1513 = vpack.c.bf16 %v669, %v665
  %v1514 = vpack.c.bf16 %v679, %v675
  %v1515 = vpack.c.bf16 %v689, %v685
  %v1516 = vpack.c.bf16 %v699, %v695
  %v1517 = vpack.c.bf16 %v709, %v705
  %v1518 = vpack.c.bf16 %v719, %v715
  %v1551 = vunpack.c.l.b16 %v1487
  %v1552 = vunpack.c.h.b16 %v1487
  %v1553 = vunpack.c.l.b16 %v1488
  %v1554 = vunpack.c.h.b16 %v1488
  %v1555 = vunpack.c.l.b16 %v1489
  %v1556 = vunpack.c.h.b16 %v1489
  %v1557 = vunpack.c.l.b16 %v1490
  %v1558 = vunpack.c.h.b16 %v1490
  %v1559 = vunpack.c.l.b16 %v1491
  %v1560 = vunpack.c.h.b16 %v1491
  %v1561 = vunpack.c.l.b16 %v1492
  %v1562 = vunpack.c.h.b16 %v1492
  %v1563 = vunpack.c.l.b16 %v1493
  %v1564 = vunpack.c.h.b16 %v1493
  %v1565 = vunpack.c.l.b16 %v1494
  %v1566 = vunpack.c.h.b16 %v1494
  %v1567 = vunpack.c.l.b16 %v1495
  %v1568 = vunpack.c.h.b16 %v1495
  %v1569 = vunpack.c.l.b16 %v1496
  %v1570 = vunpack.c.h.b16 %v1496
  %v1571 = vunpack.c.l.b16 %v1497
  %v1572 = vunpack.c.h.b16 %v1497
  %v1573 = vunpack.c.l.b16 %v1498
  %v1574 = vunpack.c.h.b16 %v1498
  %v1575 = vunpack.c.l.b16 %v1499
  %v1576 = vunpack.c.h.b16 %v1499
  %v1577 = vunpack.c.l.b16 %v1500
  %v1578 = vunpack.c.h.b16 %v1500
  %v1579 = vunpack.c.l.b16 %v1501
  %v1580 = vunpack.c.h.b16 %v1501
  %v1581 = vunpack.c.l.b16 %v1502
  %v1582 = vunpack.c.h.b16 %v1502
  %v1583 = vunpack.c.l.b16 %v1503
  %v1584 = vunpack.c.h.b16 %v1503
  %v1585 = vunpack.c.l.b16 %v1504
  %v1586 = vunpack.c.h.b16 %v1504
  %v1587 = vunpack.c.l.b16 %v1505
  %v1588 = vunpack.c.h.b16 %v1505
  %v1589 = vunpack.c.l.b16 %v1506
  %v1590 = vunpack.c.h.b16 %v1506
  %v1591 = vunpack.c.l.b16 %v1507
  %v1592 = vunpack.c.h.b16 %v1507
  %v1593 = vunpack.c.l.b16 %v1508
  %v1594 = vunpack.c.h.b16 %v1508
  %v1595 = vunpack.c.l.b16 %v1509
  %v1596 = vunpack.c.h.b16 %v1509
  %v1597 = vunpack.c.l.b16 %v1510
  %v1598 = vunpack.c.h.b16 %v1510
  %v1599 = vunpack.c.l.b16 %v1511
  %v1600 = vunpack.c.h.b16 %v1511
  %v1601 = vunpack.c.l.b16 %v1512
  %v1602 = vunpack.c.h.b16 %v1512
  %v1603 = vunpack.c.l.b16 %v1513
  %v1604 = vunpack.c.h.b16 %v1513
  %v1605 = vunpack.c.l.b16 %v1514
  %v1606 = vunpack.c.h.b16 %v1514
  %v1607 = vunpack.c.l.b16 %v1515
  %v1608 = vunpack.c.h.b16 %v1515
  %v1609 = vunpack.c.l.b16 %v1516
  %v1610 = vunpack.c.h.b16 %v1516
  %v1611 = vunpack.c.l.b16 %v1517
  %v1612 = vunpack.c.h.b16 %v1517
  %v1613 = vunpack.c.l.b16 %v1518
  %v1614 = vunpack.c.h.b16 %v1518
  %v1615 = vpack.c.b16 %v1551, %v1551
  %v1616 = vpack.c.b16 %v1552, %v1552
  %v1617 = vpack.c.b16 %v1553, %v1553
  %v1618 = vpack.c.b16 %v1554, %v1554
  %v1619 = vpack.c.b16 %v1555, %v1555
  %v1620 = vpack.c.b16 %v1556, %v1556
  %v1621 = vpack.c.b16 %v1557, %v1557
  %v1622 = vpack.c.b16 %v1558, %v1558
  %v1623 = vpack.c.b16 %v1559, %v1559
  %v1624 = vpack.c.b16 %v1560, %v1560
  %v1625 = vpack.c.b16 %v1561, %v1561
  %v1626 = vpack.c.b16 %v1562, %v1562
  %v1627 = vpack.c.b16 %v1563, %v1563
  %v1628 = vpack.c.b16 %v1564, %v1564
  %v1629 = vpack.c.b16 %v1565, %v1565
  %v1630 = vpack.c.b16 %v1566, %v1566
  %v1631 = vpack.c.b16 %v1567, %v1567
  %v1632 = vpack.c.b16 %v1568, %v1568
  %v1633 = vpack.c.b16 %v1569, %v1569
  %v1634 = vpack.c.b16 %v1570, %v1570
  %v1635 = vpack.c.b16 %v1571, %v1571
  %v1636 = vpack.c.b16 %v1572, %v1572
  %v1637 = vpack.c.b16 %v1573, %v1573
  %v1638 = vpack.c.b16 %v1574, %v1574
  %v1639 = vpack.c.b16 %v1575, %v1575
  %v1640 = vpack.c.b16 %v1576, %v1576
  %v1641 = vpack.c.b16 %v1577, %v1577
  %v1642 = vpack.c.b16 %v1578, %v1578
  %v1643 = vpack.c.b16 %v1579, %v1579
  %v1644 = vpack.c.b16 %v1580, %v1580
  %v1645 = vpack.c.b16 %v1581, %v1581
  %v1646 = vpack.c.b16 %v1582, %v1582
  %v1647 = vpack.c.b16 %v1583, %v1583
  %v1648 = vpack.c.b16 %v1584, %v1584
  %v1649 = vpack.c.b16 %v1585, %v1585
  %v1650 = vpack.c.b16 %v1586, %v1586
  %v1651 = vpack.c.b16 %v1587, %v1587
  %v1652 = vpack.c.b16 %v1588, %v1588
  %v1653 = vpack.c.b16 %v1589, %v1589
  %v1654 = vpack.c.b16 %v1590, %v1590
  %v1655 = vpack.c.b16 %v1591, %v1591
  %v1656 = vpack.c.b16 %v1592, %v1592
  %v1657 = vpack.c.b16 %v1593, %v1593
  %v1658 = vpack.c.b16 %v1594, %v1594
  %v1659 = vpack.c.b16 %v1595, %v1595
  %v1660 = vpack.c.b16 %v1596, %v1596
  %v1661 = vpack.c.b16 %v1597, %v1597
  %v1662 = vpack.c.b16 %v1598, %v1598
  %v1663 = vpack.c.b16 %v1599, %v1599
  %v1664 = vpack.c.b16 %v1600, %v1600
  %v1665 = vpack.c.b16 %v1601, %v1601
  %v1666 = vpack.c.b16 %v1602, %v1602
  %v1667 = vpack.c.b16 %v1603, %v1603
  %v1668 = vpack.c.b16 %v1604, %v1604
  %v1669 = vpack.c.b16 %v1605, %v1605
  %v1670 = vpack.c.b16 %v1606, %v1606
  %v1671 = vpack.c.b16 %v1607, %v1607
  %v1672 = vpack.c.b16 %v1608, %v1608
  %v1673 = vpack.c.b16 %v1609, %v1609
  %v1674 = vpack.c.b16 %v1610, %v1610
  %v1675 = vpack.c.b16 %v1611, %v1611
  %v1676 = vpack.c.b16 %v1612, %v1612
  %v1677 = vpack.c.b16 %v1613, %v1613
  %v1678 = vpack.c.b16 %v1614, %v1614
  %1743 = vst [vmem:[%s3] sm:$0xf] %v1615
  %1744 = vst [vmem:[%s3 + $0x4] sm:$0xf] %v1616
  %1745 = vst [vmem:[%s3 + $0x8] sm:$0xf] %v1617
  %1746 = vst [vmem:[%s3 + $0xc] sm:$0xf] %v1618
  %1747 = vst [vmem:[%s3 + $0x10] sm:$0xf] %v1619
  %1748 = vst [vmem:[%s3 + $0x14] sm:$0xf] %v1620
  %1749 = vst [vmem:[%s3 + $0x18] sm:$0xf] %v1621
  %1750 = vst [vmem:[%s3 + $0x1c] sm:$0xf] %v1622
  %1751 = vst [vmem:[%s3 + $0x20] sm:$0xf] %v1623
  %1752 = vst [vmem:[%s3 + $0x24] sm:$0xf] %v1624
  %1753 = vst [vmem:[%s3 + $0x28] sm:$0xf] %v1625
  %1754 = vst [vmem:[%s3 + $0x2c] sm:$0xf] %v1626
  %1755 = vst [vmem:[%s3 + $0x30] sm:$0xf] %v1627
  %1756 = vst [vmem:[%s3 + $0x34] sm:$0xf] %v1628
  %1757 = vst [vmem:[%s3 + $0x38] sm:$0xf] %v1629
  %1758 = vst [vmem:[%s3 + $0x3c] sm:$0xf] %v1630
  %1759 = vst [vmem:[%s3 + $0x40] sm:$0xf] %v1631
  %1760 = vst [vmem:[%s3 + $0x44] sm:$0xf] %v1632
  %1761 = vst [vmem:[%s3 + $0x48] sm:$0xf] %v1633
  %1762 = vst [vmem:[%s3 + $0x4c] sm:$0xf] %v1634
  %1763 = vst [vmem:[%s3 + $0x50] sm:$0xf] %v1635
  %1764 = vst [vmem:[%s3 + $0x54] sm:$0xf] %v1636
  %1765 = vst [vmem:[%s3 + $0x58] sm:$0xf] %v1637
  %1766 = vst [vmem:[%s3 + $0x5c] sm:$0xf] %v1638
  %1767 = vst [vmem:[%s3 + $0x60] sm:$0xf] %v1639
  %1768 = vst [vmem:[%s3 + $0x64] sm:$0xf] %v1640
  %1769 = vst [vmem:[%s3 + $0x68] sm:$0xf] %v1641
  %1770 = vst [vmem:[%s3 + $0x6c] sm:$0xf] %v1642
  %1771 = vst [vmem:[%s3 + $0x70] sm:$0xf] %v1643
  %1772 = vst [vmem:[%s3 + $0x74] sm:$0xf] %v1644
  %1773 = vst [vmem:[%s3 + $0x78] sm:$0xf] %v1645
  %1774 = vst [vmem:[%s3 + $0x7c] sm:$0xf] %v1646
  %1775 = vst [vmem:[%s3 + $0x80] sm:$0xf] %v1647
  %1776 = vst [vmem:[%s3 + $0x84] sm:$0xf] %v1648
  %1777 = vst [vmem:[%s3 + $0x88] sm:$0xf] %v1649
  %1778 = vst [vmem:[%s3 + $0x8c] sm:$0xf] %v1650
  %1779 = vst [vmem:[%s3 + $0x90] sm:$0xf] %v1651
  %1780 = vst [vmem:[%s3 + $0x94] sm:$0xf] %v1652
  %1781 = vst [vmem:[%s3 + $0x98] sm:$0xf] %v1653
  %1782 = vst [vmem:[%s3 + $0x9c] sm:$0xf] %v1654
  %1783 = vst [vmem:[%s3 + $0xa0] sm:$0xf] %v1655
  %1784 = vst [vmem:[%s3 + $0xa4] sm:$0xf] %v1656
  %1785 = vst [vmem:[%s3 + $0xa8] sm:$0xf] %v1657
  %1786 = vst [vmem:[%s3 + $0xac] sm:$0xf] %v1658
  %1787 = vst [vmem:[%s3 + $0xb0] sm:$0xf] %v1659
  %1788 = vst [vmem:[%s3 + $0xb4] sm:$0xf] %v1660
  %1789 = vst [vmem:[%s3 + $0xb8] sm:$0xf] %v1661
  %1790 = vst [vmem:[%s3 + $0xbc] sm:$0xf] %v1662
  %1791 = vst [vmem:[%s3 + $0xc0] sm:$0xf] %v1663
  %1792 = vst [vmem:[%s3 + $0xc4] sm:$0xf] %v1664
  %1793 = vst [vmem:[%s3 + $0xc8] sm:$0xf] %v1665
  %1794 = vst [vmem:[%s3 + $0xcc] sm:$0xf] %v1666
  %1795 = vst [vmem:[%s3 + $0xd0] sm:$0xf] %v1667
  %1796 = vst [vmem:[%s3 + $0xd4] sm:$0xf] %v1668
  %1797 = vst [vmem:[%s3 + $0xd8] sm:$0xf] %v1669
  %1798 = vst [vmem:[%s3 + $0xdc] sm:$0xf] %v1670
  %1799 = vst [vmem:[%s3 + $0xe0] sm:$0xf] %v1671
  %1800 = vst [vmem:[%s3 + $0xe4] sm:$0xf] %v1672
  %1801 = vst [vmem:[%s3 + $0xe8] sm:$0xf] %v1673
  %1802 = vst [vmem:[%s3 + $0xec] sm:$0xf] %v1674
  %1803 = vst [vmem:[%s3 + $0xf0] sm:$0xf] %v1675
  %1804 = vst [vmem:[%s3 + $0xf4] sm:$0xf] %v1676
  %1805 = vst [vmem:[%s3 + $0xf8] sm:$0xf] %v1677
  %1806 = vst [vmem:[%s3 + $0xfc] sm:$0xf] %v1678
  // Predicated region
  $region10: #{bottleneck_forward.4} parent=0 // pred_check
    _
  $region11: #{bottleneck_forward.4} parent=0 // pred_check_branch
    %1808 = sbr.rel (0) target = $region13
  $region12: #{bottleneck_forward.4} parent=0 // pred_region
    _
  $region13: #{bottleneck_forward.4} parent=0 // pred_fallthru
    _
  // Predicated region
  $region14: #{bottleneck_forward.4} parent=0 // pred_check
    _
  $region15: #{bottleneck_forward.4} parent=0 // pred_check_branch
    %1810 = sbr.rel (0) target = $region17
  $region16: #{bottleneck_forward.4} parent=0 // pred_region
    _
  $region17: #{bottleneck_forward.4} parent=0 // pred_fallthru
    _
  // Predicated region
  $region18: #{bottleneck_forward.4} parent=0 // pred_check
    _
  $region19: #{bottleneck_forward.4} parent=0 // pred_check_branch
    %1812 = sbr.rel (0) target = $region21
  $region20: #{bottleneck_forward.4} parent=0 // pred_region
    _
  $region21: #{bottleneck_forward.4} parent=0 // pred_fallthru
    _
  // Predicated region
  $region22: #{bottleneck_forward.4} parent=0 // pred_check
    _
  $region23: #{bottleneck_forward.4} parent=0 // pred_check_branch
    %1814 = sbr.rel (0) target = $region25
  $region24: #{bottleneck_forward.4} parent=0 // pred_region
    _
  $region25: #{bottleneck_forward.4} parent=0 // pred_fallthru
    _
  // Predicated region
  $region26: #{bottleneck_forward.4} parent=0 // pred_check
    _
  $region27: #{bottleneck_forward.4} parent=0 // pred_check_branch
    %1816 = sbr.rel (0) target = $region29
  $region28: #{bottleneck_forward.4} parent=0 // pred_region
    _
  $region29: #{bottleneck_forward.4} parent=0 // pred_fallthru
    _
  // Predicated region
  $region30: #{bottleneck_forward.4} parent=0 // pred_check
    _
  $region31: #{bottleneck_forward.4} parent=0 // pred_check_branch
    %1818 = sbr.rel (0) target = $region33
  $region32: #{bottleneck_forward.4} parent=0 // pred_region
    _
  $region33: #{bottleneck_forward.4} parent=0 // pred_fallthru
    _
  // Predicated region
  $region34: #{bottleneck_forward.4} parent=0 // pred_check
    _
  $region35: #{bottleneck_forward.4} parent=0 // pred_check_branch
    %1820 = sbr.rel (0) target = $region37
  $region36: #{bottleneck_forward.4} parent=0 // pred_region
    _
  $region37: #{bottleneck_forward.4} parent=0 // pred_fallthru
    _
  // Predicated region
  $region38: #{bottleneck_forward.4} parent=0 // pred_check
    _
  $region39: #{bottleneck_forward.4} parent=0 // pred_check_branch
    %1822 = sbr.rel (0) target = $region41
  $region40: #{bottleneck_forward.4} parent=0 // pred_region
    _
  $region41: #{bottleneck_forward.4} parent=0 // pred_fallthru
    _

// kernel: bottleneck_forward.5
$region0: #{bottleneck_forward.5}
  #allocation0 [shape = 'u32[]', space=smem, size = 0x4, offset = 0x4, fixed_abs, tag = 'smem constant byte address 0x4 - core index']
  #allocation1 [shape = 'u32[144,128]{1,0:T(1,128)}', space=vmem, size = 0x12000, scoped, tag = 'internal scratch']
  #allocation2 [shape = 'bf16[18,16,384]{2,1,0:T(8,128)(2,1)}', space=vmem, size = 0x36000, scoped, tag = 'scratch operand']
  %s0 = inlined_call_operand.vmem [shape: bf16[2,16,16,128], index: 0, kind: input, shape index: {}]
  %s1 = inlined_call_operand.vmem [shape: f32[1,128], index: 1, kind: input, shape index: {}]
  %s2 = inlined_call_operand.vmem [shape: f32[1,128], index: 2, kind: input, shape index: {}]
  %s3 = inlined_call_operand.vmem [shape: bf16[3,384,128], index: 3, kind: input, shape index: {}]
  %s4 = inlined_call_operand.vmem [shape: bf16[2,16,16,128], index: 4, kind: output, shape index: {0}]
  %s5 = inlined_call_operand.vmem [shape: f32[2,1,128], index: 5, kind: output, shape index: {1}]
  %s6 = inlined_call_operand.vmem [shape: f32[2,1,128], index: 6, kind: output, shape index: {2}]
  %7 = xla_tuple %s4, %s5, %s6
  %s8 = sld [smem:[#allocation0]]
  $region65: #{bottleneck_forward.5} parent=0
    _
  %s10 = ssub.s32 1, %s8
  %s11 = scalar_select 0, %s10, %s8
  loop: start=0, step=1, limit=4
  $region2: #{bottleneck_forward.5} parent=0 // loop_pre_header
    _
  $region3: #{bottleneck_forward.5} parent=0 // loop_header
    %s13 = sphi 0, %s17
    %p14 = scmp.ge.s32.totalorder %s13, 4
    %s23 = sphi 0, %s25
    %s26 = sphi 0, %s23
    %s27 = sphi 0, %s26
    %s43 = sphi 0, %s27
    %s47 = sphi 0, %s47
    %s49 = sphi 0, %s47
    %s50 = sphi 0, %s49
    %s64 = sphi 0, %s50
    %s68 = sphi 0, %s68
    %s70 = sphi 0, %s68
    %s71 = sphi 0, %s70
    %s85 = sphi 0, %s71
    %s89 = sphi 0, %s89
    %s91 = sphi 0, %s89
    %s92 = sphi 0, %s91
    %s106 = sphi 0, %s92
    %s112 = sphi 0, %s114
    %s115 = sphi 0, %s112
    %s116 = sphi 0, %s115
    %s132 = sphi 0, %s116
    %s138 = sphi 0, %s140
    %s141 = sphi 0, %s138
    %s142 = sphi 0, %s141
    %s158 = sphi 0, %s142
    %s164 = sphi 0, %s166
    %s167 = sphi 0, %s164
    %s168 = sphi 0, %s167
    %s184 = sphi 0, %s168
  $region4: #{bottleneck_forward.5} parent=0 // loop_header_branch
    %16 = sbr.rel (%p14) target = $region8
  $region5: #{bottleneck_forward.5} parent=0 // loop_body
    %s18 = ssub.s32 %s13, 1
    %s19 = ssub.s32 %s13, 2
    %s20 = sadd.s32 %s13, 1
    %s21 = ssub.s32 %s13, %s20
    %p22 = scmp.eq.s32.totalorder %s21, 0
    %s24 = sadd.s32 %s23, 1
    %s25 = scalar_select %p22, %s23, %s24
    %p28 = pneg %p22
    %p29 = scmp.eq.s32.totalorder %s13, 1
    %p30 = por %p28, %p29
    %p31 = scmp.ne.s32.totalorder %s23, %s26
    %p32 = scmp.eq.s32.totalorder %s13, 0
    %p33 = por %p31, %p32
    %p34 = scmp.ne.s32.totalorder %s23, %s26
    %p35 = scmp.eq.s32.totalorder %s18, 1
    %p36 = por %p34, %p35
    %p37 = scmp.ne.s32.totalorder %s26, %s27
    %p38 = scmp.eq.s32.totalorder %s18, 0
    %p39 = por %p37, %p38
    %p40 = scmp.ne.s32.totalorder %s26, %s27
    %p41 = scmp.eq.s32.totalorder %s19, 1
    %p42 = por %p40, %p41
    %p44 = scmp.ne.s32.totalorder %s27, %s43
    %p45 = scmp.eq.s32.totalorder %s19, 0
    %p46 = por %p44, %p45
    %s48 = sadd.s32 %s47, 1
    %p51 = scmp.eq.s32.totalorder %s13, 1
    %p52 = scmp.ne.s32.totalorder %s47, %s49
    %p53 = scmp.eq.s32.totalorder %s13, 0
    %p54 = por %p52, %p53
    %p55 = scmp.ne.s32.totalorder %s47, %s49
    %p56 = scmp.eq.s32.totalorder %s18, 1
    %p57 = por %p55, %p56
    %p58 = scmp.ne.s32.totalorder %s49, %s50
    %p59 = scmp.eq.s32.totalorder %s18, 0
    %p60 = por %p58, %p59
    %p61 = scmp.ne.s32.totalorder %s49, %s50
    %p62 = scmp.eq.s32.totalorder %s19, 1
    %p63 = por %p61, %p62
    %p65 = scmp.ne.s32.totalorder %s50, %s64
    %p66 = scmp.eq.s32.totalorder %s19, 0
    %p67 = por %p65, %p66
    %s69 = sadd.s32 %s68, 1
    %p72 = scmp.eq.s32.totalorder %s13, 1
    %p73 = scmp.ne.s32.totalorder %s68, %s70
    %p74 = scmp.eq.s32.totalorder %s13, 0
    %p75 = por %p73, %p74
    %p76 = scmp.ne.s32.totalorder %s68, %s70
    %p77 = scmp.eq.s32.totalorder %s18, 1
    %p78 = por %p76, %p77
    %p79 = scmp.ne.s32.totalorder %s70, %s71
    %p80 = scmp.eq.s32.totalorder %s18, 0
    %p81 = por %p79, %p80
    %p82 = scmp.ne.s32.totalorder %s70, %s71
    %p83 = scmp.eq.s32.totalorder %s19, 1
    %p84 = por %p82, %p83
    %p86 = scmp.ne.s32.totalorder %s71, %s85
    %p87 = scmp.eq.s32.totalorder %s19, 0
    %p88 = por %p86, %p87
    %s90 = sadd.s32 %s89, 1
    %p93 = scmp.eq.s32.totalorder %s13, 1
    %p94 = scmp.ne.s32.totalorder %s89, %s91
    %p95 = scmp.eq.s32.totalorder %s13, 0
    %p96 = por %p94, %p95
    %p97 = scmp.ne.s32.totalorder %s89, %s91
    %p98 = scmp.eq.s32.totalorder %s18, 1
    %p99 = por %p97, %p98
    %p100 = scmp.ne.s32.totalorder %s91, %s92
    %p101 = scmp.eq.s32.totalorder %s18, 0
    %p102 = por %p100, %p101
    %p103 = scmp.ne.s32.totalorder %s91, %s92
    %p104 = scmp.eq.s32.totalorder %s19, 1
    %p105 = por %p103, %p104
    %p107 = scmp.ne.s32.totalorder %s92, %s106
    %p108 = scmp.eq.s32.totalorder %s19, 0
    %p109 = por %p107, %p108
    %s110 = ssub.s32 %s13, %s20
    %p111 = scmp.eq.s32.totalorder %s110, 0
    %s113 = sadd.s32 %s112, 1
    %s114 = scalar_select %p111, %s112, %s113
    %p117 = pneg %p111
    %p118 = scmp.eq.s32.totalorder %s13, 1
    %p119 = por %p117, %p118
    %p120 = scmp.ne.s32.totalorder %s112, %s115
    %p121 = scmp.eq.s32.totalorder %s13, 0
    %p122 = por %p120, %p121
    %p123 = scmp.ne.s32.totalorder %s112, %s115
    %p124 = scmp.eq.s32.totalorder %s18, 1
    %p125 = por %p123, %p124
    %p126 = scmp.ne.s32.totalorder %s115, %s116
    %p127 = scmp.eq.s32.totalorder %s18, 0
    %p128 = por %p126, %p127
    %p129 = scmp.ne.s32.totalorder %s115, %s116
    %p130 = scmp.eq.s32.totalorder %s19, 1
    %p131 = por %p129, %p130
    %p133 = scmp.ne.s32.totalorder %s116, %s132
    %p134 = scmp.eq.s32.totalorder %s19, 0
    %p135 = por %p133, %p134
    %s136 = ssub.s32 %s13, %s20
    %p137 = scmp.eq.s32.totalorder %s136, 0
    %s139 = sadd.s32 %s138, 1
    %s140 = scalar_select %p137, %s138, %s139
    %p143 = pneg %p137
    %p144 = scmp.eq.s32.totalorder %s13, 1
    %p145 = por %p143, %p144
    %p146 = scmp.ne.s32.totalorder %s138, %s141
    %p147 = scmp.eq.s32.totalorder %s13, 0
    %p148 = por %p146, %p147
    %p149 = scmp.ne.s32.totalorder %s138, %s141
    %p150 = scmp.eq.s32.totalorder %s18, 1
    %p151 = por %p149, %p150
    %p152 = scmp.ne.s32.totalorder %s141, %s142
    %p153 = scmp.eq.s32.totalorder %s18, 0
    %p154 = por %p152, %p153
    %p155 = scmp.ne.s32.totalorder %s141, %s142
    %p156 = scmp.eq.s32.totalorder %s19, 1
    %p157 = por %p155, %p156
    %p159 = scmp.ne.s32.totalorder %s142, %s158
    %p160 = scmp.eq.s32.totalorder %s19, 0
    %p161 = por %p159, %p160
    %s162 = ssub.s32 %s13, %s20
    %p163 = scmp.eq.s32.totalorder %s162, 0
    %s165 = sadd.s32 %s164, 1
    %s166 = scalar_select %p163, %s164, %s165
    %p169 = pneg %p163
    %p170 = scmp.eq.s32.totalorder %s13, 1
    %p171 = por %p169, %p170
    %p172 = scmp.ne.s32.totalorder %s164, %s167
    %p173 = scmp.eq.s32.totalorder %s13, 0
    %p174 = por %p172, %p173
    %p175 = scmp.ne.s32.totalorder %s164, %s167
    %p176 = scmp.eq.s32.totalorder %s18, 1
    %p177 = por %p175, %p176
    %p178 = scmp.ne.s32.totalorder %s167, %s168
    %p179 = scmp.eq.s32.totalorder %s18, 0
    %p180 = por %p178, %p179
    %p181 = scmp.ne.s32.totalorder %s167, %s168
    %p182 = scmp.eq.s32.totalorder %s19, 1
    %p183 = por %p181, %p182
    %p185 = scmp.ne.s32.totalorder %s168, %s184
    %p186 = scmp.eq.s32.totalorder %s19, 0
    %p187 = por %p185, %p186
    %p188 = scmp.le.s32.totalorder 1, %s13
    %p189 = scmp.lt.s32.totalorder %s13, 3
    %p190 = pnand %p188, %p189
    %p191 = pneg %p190
    // Predicated region
    $region9: #{bottleneck_forward.5} parent=5 // pred_check
      _
    $region10: #{bottleneck_forward.5} parent=5 // pred_check_branch
      %193 = sbr.rel (%p190) target = $region12
    $region11: #{bottleneck_forward.5} parent=5 // pred_region
      %s194 = ssub.s32 %s13, 1
      // Predicated region
      $region13: #{bottleneck_forward.5} parent=11 // pred_check
        %p195 = pneg %p60
      $region14: #{bottleneck_forward.5} parent=11 // pred_check_branch
        %197 = sbr.rel (%p195) target = $region16
      $region15: #{bottleneck_forward.5} parent=11 // pred_region
        _
      $region16: #{bottleneck_forward.5} parent=11 // pred_fallthru
        _
      // Predicated region
      $region17: #{bottleneck_forward.5} parent=11 // pred_check
        %p198 = pneg %p81
      $region18: #{bottleneck_forward.5} parent=11 // pred_check_branch
        %200 = sbr.rel (%p198) target = $region20
      $region19: #{bottleneck_forward.5} parent=11 // pred_region
        _
      $region20: #{bottleneck_forward.5} parent=11 // pred_fallthru
        _
      // Predicated region
      $region21: #{bottleneck_forward.5} parent=11 // pred_check
        %p201 = pneg %p102
      $region22: #{bottleneck_forward.5} parent=11 // pred_check_branch
        %203 = sbr.rel (%p201) target = $region24
      $region23: #{bottleneck_forward.5} parent=11 // pred_region
        _
      $region24: #{bottleneck_forward.5} parent=11 // pred_fallthru
        _
    $region12: #{bottleneck_forward.5} parent=5 // pred_fallthru
      _
    %p204 = scmp.lt.s32.totalorder %s13, 2
    // Predicated region
    $region25: #{bottleneck_forward.5} parent=5 // pred_check
      %p205 = pneg %p204
    $region26: #{bottleneck_forward.5} parent=5 // pred_check_branch
      %207 = sbr.rel (%p205) target = $region28
    $region27: #{bottleneck_forward.5} parent=5 // pred_region
      // Predicated region
      $region29: #{bottleneck_forward.5} parent=27 // pred_check
        %p208 = pneg %p33
      $region30: #{bottleneck_forward.5} parent=27 // pred_check_branch
        %210 = sbr.rel (%p208) target = $region32
      $region31: #{bottleneck_forward.5} parent=27 // pred_region
        %p211 = scmp.lt.s32.totalorder %s13, 1
        %s212 = scalar_select %p211, %s13, 1
        %s213 = smul.addr %s212, 32
        %s214 = smul.addr %s213, 4
        %s215 = scalar_lea.vmem %s0, %s214
      $region32: #{bottleneck_forward.5} parent=27 // pred_fallthru
        _
    $region28: #{bottleneck_forward.5} parent=5 // pred_fallthru
      _
    %p216 = scmp.le.s32.totalorder 1, %s13
    %p217 = scmp.lt.s32.totalorder %s13, 3
    %p218 = pnand %p216, %p217
    %p219 = pneg %p218
    // Predicated region
    $region33: #{bottleneck_forward.5} parent=5 // pred_check
      _
    $region34: #{bottleneck_forward.5} parent=5 // pred_check_branch
      %221 = sbr.rel (%p218) target = $region36
    $region35: #{bottleneck_forward.5} parent=5 // pred_region
      %s222 = ssub.s32 %s13, 1
      %p223 = scmp.lt.s32.totalorder %s18, 1
      %s224 = scalar_select %p223, %s18, 1
      %s225 = smul.addr %s224, 32
      %s226 = smul.addr %s225, 4
      %s227 = scalar_lea.vmem %s0, %s226
      %p228 = pneg %p39
      %p229 = pneg %p36
      %p230 = pneg %p60
      %p231 = pneg %p57
      %p232 = pneg %p81
      %p233 = pneg %p78
      %p234 = pneg %p102
      %p235 = pneg %p99
      %p236 = pneg %p128
      %p237 = pneg %p125
      %p238 = scmp.lt.s32.totalorder %s18, 1
      %s239 = scalar_select %p238, %s18, 1
      %s240 = smul.addr %s239, 32
      %s241 = smul.addr %s240, 4
      %s242 = scalar_lea.vmem %s4, %s241
      %p243 = pneg %p154
      %p244 = pneg %p151
      %p245 = scmp.lt.s32.totalorder %s18, 1
      %s246 = scalar_select %p245, %s18, 1
      %s247 = scalar_lea.vmem %s5, %s246
      %p248 = pneg %p180
      %p249 = pneg %p177
      %p250 = scmp.lt.s32.totalorder %s18, 1
      %s251 = scalar_select %p250, %s18, 1
      %s252 = scalar_lea.vmem %s6, %s251
      %p253 = scmp.lt.s32.totalorder %s18, 1
      %s254 = scalar_select %p253, %s18, 1
      %s255 = smul.addr %s254, 32
      %s256 = smul.addr %s255, 4
      %s257 = scalar_lea.vmem %s0, %s256
      %p258 = scmp.lt.s32.totalorder %s18, 1
      %s259 = scalar_select %p258, %s18, 1
      %s260 = smul.addr %s259, 32
      %s261 = smul.addr %s260, 4
      %s262 = scalar_lea.vmem %s4, %s261
      %p263 = scmp.lt.s32.totalorder %s18, 1
      %s264 = scalar_select %p263, %s18, 1
      %s265 = scalar_lea.vmem %s5, %s264
      %p266 = scmp.lt.s32.totalorder %s18, 1
      %s267 = scalar_select %p266, %s18, 1
      %s268 = scalar_lea.vmem %s6, %s267
      %v270 = vld [vmem:[%s1] sm:$0x1]
      %v271 = vld [vmem:[%s2] sm:$0x1]
      %v272 = vld [vmem:[%s257] sm:$0xf]
      %v273 = vld [vmem:[%s257 + $0x4] sm:$0xf]
      %v274 = vld [vmem:[%s257 + $0x8] sm:$0xf]
      %v275 = vld [vmem:[%s257 + $0xc] sm:$0xf]
      %v276 = vld [vmem:[%s257 + $0x10] sm:$0xf]
      %v277 = vld [vmem:[%s257 + $0x14] sm:$0xf]
      %v278 = vld [vmem:[%s257 + $0x18] sm:$0xf]
      %v279 = vld [vmem:[%s257 + $0x1c] sm:$0xf]
      %v280 = vld [vmem:[%s257 + $0x20] sm:$0xf]
      %v281 = vld [vmem:[%s257 + $0x24] sm:$0xf]
      %v282 = vld [vmem:[%s257 + $0x28] sm:$0xf]
      %v283 = vld [vmem:[%s257 + $0x2c] sm:$0xf]
      %v284 = vld [vmem:[%s257 + $0x30] sm:$0xf]
      %v285 = vld [vmem:[%s257 + $0x34] sm:$0xf]
      %v286 = vld [vmem:[%s257 + $0x38] sm:$0xf]
      %v287 = vld [vmem:[%s257 + $0x3c] sm:$0xf]
      %v288 = vld [vmem:[%s257 + $0x40] sm:$0xf]
      %v289 = vld [vmem:[%s257 + $0x44] sm:$0xf]
      %v290 = vld [vmem:[%s257 + $0x48] sm:$0xf]
      %v291 = vld [vmem:[%s257 + $0x4c] sm:$0xf]
      %v292 = vld [vmem:[%s257 + $0x50] sm:$0xf]
      %v293 = vld [vmem:[%s257 + $0x54] sm:$0xf]
      %v294 = vld [vmem:[%s257 + $0x58] sm:$0xf]
      %v295 = vld [vmem:[%s257 + $0x5c] sm:$0xf]
      %v296 = vld [vmem:[%s257 + $0x60] sm:$0xf]
      %v297 = vld [vmem:[%s257 + $0x64] sm:$0xf]
      %v298 = vld [vmem:[%s257 + $0x68] sm:$0xf]
      %v299 = vld [vmem:[%s257 + $0x6c] sm:$0xf]
      %v300 = vld [vmem:[%s257 + $0x70] sm:$0xf]
      %v301 = vld [vmem:[%s257 + $0x74] sm:$0xf]
      %v302 = vld [vmem:[%s257 + $0x78] sm:$0xf]
      %v303 = vld [vmem:[%s257 + $0x7c] sm:$0xf]
      %v304 = vunpack.c.l.bf16 %v272
      %v305 = vunpack.c.l.bf16 %v273
      %v306 = vunpack.c.l.bf16 %v274
      %v307 = vunpack.c.l.bf16 %v275
      %v308 = vunpack.c.l.bf16 %v276
      %v309 = vunpack.c.l.bf16 %v277
      %v310 = vunpack.c.l.bf16 %v278
      %v311 = vunpack.c.l.bf16 %v279
      %v312 = vunpack.c.l.bf16 %v280
      %v313 = vunpack.c.l.bf16 %v281
      %v314 = vunpack.c.l.bf16 %v282
      %v315 = vunpack.c.l.bf16 %v283
      %v316 = vunpack.c.l.bf16 %v284
      %v317 = vunpack.c.l.bf16 %v285
      %v318 = vunpack.c.l.bf16 %v286
      %v319 = vunpack.c.l.bf16 %v287
      %v320 = vunpack.c.l.bf16 %v288
      %v321 = vunpack.c.l.bf16 %v289
      %v322 = vunpack.c.l.bf16 %v290
      %v323 = vunpack.c.l.bf16 %v291
      %v324 = vunpack.c.l.bf16 %v292
      %v325 = vunpack.c.l.bf16 %v293
      %v326 = vunpack.c.l.bf16 %v294
      %v327 = vunpack.c.l.bf16 %v295
      %v328 = vunpack.c.l.bf16 %v296
      %v329 = vunpack.c.l.bf16 %v297
      %v330 = vunpack.c.l.bf16 %v298
      %v331 = vunpack.c.l.bf16 %v299
      %v332 = vunpack.c.l.bf16 %v300
      %v333 = vunpack.c.l.bf16 %v301
      %v334 = vunpack.c.l.bf16 %v302
      %v335 = vunpack.c.l.bf16 %v303
      %v337 = vlaneseq
      %v338 = vshrl.u32 %v337, 7
      %v339 = vsub.s32 0, %v338
      %v340 = vrot.slane %v270, %v339
      %v342 = vmul.f32 %v304, %v340
      %v343 = vmul.f32 %v305, %v340
      %v344 = vmul.f32 %v306, %v340
      %v345 = vmul.f32 %v307, %v340
      %v346 = vmul.f32 %v308, %v340
      %v347 = vmul.f32 %v309, %v340
      %v348 = vmul.f32 %v310, %v340
      %v349 = vmul.f32 %v311, %v340
      %v350 = vmul.f32 %v312, %v340
      %v351 = vmul.f32 %v313, %v340
      %v352 = vmul.f32 %v314, %v340
      %v353 = vmul.f32 %v315, %v340
      %v354 = vmul.f32 %v316, %v340
      %v355 = vmul.f32 %v317, %v340
      %v356 = vmul.f32 %v318, %v340
      %v357 = vmul.f32 %v319, %v340
      %v358 = vmul.f32 %v320, %v340
      %v359 = vmul.f32 %v321, %v340
      %v360 = vmul.f32 %v322, %v340
      %v361 = vmul.f32 %v323, %v340
      %v362 = vmul.f32 %v324, %v340
      %v363 = vmul.f32 %v325, %v340
      %v364 = vmul.f32 %v326, %v340
      %v365 = vmul.f32 %v327, %v340
      %v366 = vmul.f32 %v328, %v340
      %v367 = vmul.f32 %v329, %v340
      %v368 = vmul.f32 %v330, %v340
      %v369 = vmul.f32 %v331, %v340
      %v370 = vmul.f32 %v332, %v340
      %v371 = vmul.f32 %v333, %v340
      %v372 = vmul.f32 %v334, %v340
      %v373 = vmul.f32 %v335, %v340
      %v375 = vlaneseq
      %v376 = vshrl.u32 %v375, 7
      %v377 = vsub.s32 0, %v376
      %v378 = vrot.slane %v271, %v377
      %v380 = vadd.f32 %v342, %v378
      %v381 = vadd.f32 %v343, %v378
      %v382 = vadd.f32 %v344, %v378
      %v383 = vadd.f32 %v345, %v378
      %v384 = vadd.f32 %v346, %v378
      %v385 = vadd.f32 %v347, %v378
      %v386 = vadd.f32 %v348, %v378
      %v387 = vadd.f32 %v349, %v378
      %v388 = vadd.f32 %v350, %v378
      %v389 = vadd.f32 %v351, %v378
      %v390 = vadd.f32 %v352, %v378
      %v391 = vadd.f32 %v353, %v378
      %v392 = vadd.f32 %v354, %v378
      %v393 = vadd.f32 %v355, %v378
      %v394 = vadd.f32 %v356, %v378
      %v395 = vadd.f32 %v357, %v378
      %v396 = vadd.f32 %v358, %v378
      %v397 = vadd.f32 %v359, %v378
      %v398 = vadd.f32 %v360, %v378
      %v399 = vadd.f32 %v361, %v378
      %v400 = vadd.f32 %v362, %v378
      %v401 = vadd.f32 %v363, %v378
      %v402 = vadd.f32 %v364, %v378
      %v403 = vadd.f32 %v365, %v378
      %v404 = vadd.f32 %v366, %v378
      %v405 = vadd.f32 %v367, %v378
      %v406 = vadd.f32 %v368, %v378
      %v407 = vadd.f32 %v369, %v378
      %v408 = vadd.f32 %v370, %v378
      %v409 = vadd.f32 %v371, %v378
      %v410 = vadd.f32 %v372, %v378
      %v411 = vadd.f32 %v373, %v378
      %v412 = vmax.f32 %v380, 0.0
      %v413 = vmax.f32 %v381, 0.0
      %v414 = vmax.f32 %v382, 0.0
      %v415 = vmax.f32 %v383, 0.0
      %v416 = vmax.f32 %v384, 0.0
      %v417 = vmax.f32 %v385, 0.0
      %v418 = vmax.f32 %v386, 0.0
      %v419 = vmax.f32 %v387, 0.0
      %v420 = vmax.f32 %v388, 0.0
      %v421 = vmax.f32 %v389, 0.0
      %v422 = vmax.f32 %v390, 0.0
      %v423 = vmax.f32 %v391, 0.0
      %v424 = vmax.f32 %v392, 0.0
      %v425 = vmax.f32 %v393, 0.0
      %v426 = vmax.f32 %v394, 0.0
      %v427 = vmax.f32 %v395, 0.0
      %v428 = vmax.f32 %v396, 0.0
      %v429 = vmax.f32 %v397, 0.0
      %v430 = vmax.f32 %v398, 0.0
      %v431 = vmax.f32 %v399, 0.0
      %v432 = vmax.f32 %v400, 0.0
      %v433 = vmax.f32 %v401, 0.0
      %v434 = vmax.f32 %v402, 0.0
      %v435 = vmax.f32 %v403, 0.0
      %v436 = vmax.f32 %v404, 0.0
      %v437 = vmax.f32 %v405, 0.0
      %v438 = vmax.f32 %v406, 0.0
      %v439 = vmax.f32 %v407, 0.0
      %v440 = vmax.f32 %v408, 0.0
      %v441 = vmax.f32 %v409, 0.0
      %v442 = vmax.f32 %v410, 0.0
      %v443 = vmax.f32 %v411, 0.0
      %v444 = vpack.c.bf16 %v413, %v412
      %v445 = vpack.c.bf16 %v415, %v414
      %v446 = vpack.c.bf16 %v417, %v416
      %v447 = vpack.c.bf16 %v419, %v418
      %v448 = vpack.c.bf16 %v421, %v420
      %v449 = vpack.c.bf16 %v423, %v422
      %v450 = vpack.c.bf16 %v425, %v424
      %v451 = vpack.c.bf16 %v427, %v426
      %v452 = vpack.c.bf16 %v429, %v428
      %v453 = vpack.c.bf16 %v431, %v430
      %v454 = vpack.c.bf16 %v433, %v432
      %v455 = vpack.c.bf16 %v435, %v434
      %v456 = vpack.c.bf16 %v437, %v436
      %v457 = vpack.c.bf16 %v439, %v438
      %v458 = vpack.c.bf16 %v441, %v440
      %v459 = vpack.c.bf16 %v443, %v442
      %460 = vst [vmem:[#allocation2] sm:$0xff] 0
      %461 = vst [vmem:[#allocation2 + $0x8] sm:$0xf] 0
      %462 = vst [vmem:[#allocation2 + $0xc] sm:$0xff] 0
      %463 = vst [vmem:[#allocation2 + $0x14] sm:$0xf] 0
      %s464 = scalar_lea.vmem [#allocation2], 408
      %465 = vst [vmem:[%s464] sm:$0xff] 0
      %466 = vst [vmem:[%s464 + $0x8] sm:$0xf] 0
      %467 = vst [vmem:[%s464 + $0xc] sm:$0xff] 0
      %468 = vst [vmem:[%s464 + $0x14] sm:$0xf] 0
      %v470 = vshrl.u32 %v444, 16
      %v472 = vrot.slane %v470, 7
      %v473 = vshll.u32 %v444, 16
      %v475 = vor.u32 %v472, %v473
      %v477 = vshrl.u32 %v445, 16
      %v479 = vrot.slane %v477, 7
      %v480 = vshll.u32 %v445, 16
      %v482 = vor.u32 %v479, %v480
      %v484 = vshrl.u32 %v446, 16
      %v486 = vrot.slane %v484, 7
      %v487 = vshll.u32 %v446, 16
      %v489 = vor.u32 %v486, %v487
      %v491 = vshrl.u32 %v447, 16
      %v493 = vrot.slane %v491, 7
      %v494 = vshll.u32 %v447, 16
      %v496 = vor.u32 %v493, %v494
      %v498 = vshrl.u32 %v448, 16
      %v500 = vrot.slane %v498, 7
      %v501 = vshll.u32 %v448, 16
      %v503 = vor.u32 %v500, %v501
      %v505 = vshrl.u32 %v449, 16
      %v507 = vrot.slane %v505, 7
      %v508 = vshll.u32 %v449, 16
      %v510 = vor.u32 %v507, %v508
      %v512 = vshrl.u32 %v450, 16
      %v514 = vrot.slane %v512, 7
      %v515 = vshll.u32 %v450, 16
      %v517 = vor.u32 %v514, %v515
      %v519 = vshrl.u32 %v451, 16
      %v521 = vrot.slane %v519, 7
      %v522 = vshll.u32 %v451, 16
      %v524 = vor.u32 %v521, %v522
      %v526 = vshrl.u32 %v452, 16
      %v528 = vrot.slane %v526, 7
      %v529 = vshll.u32 %v452, 16
      %v531 = vor.u32 %v528, %v529
      %v533 = vshrl.u32 %v453, 16
      %v535 = vrot.slane %v533, 7
      %v536 = vshll.u32 %v453, 16
      %v538 = vor.u32 %v535, %v536
      %v540 = vshrl.u32 %v454, 16
      %v542 = vrot.slane %v540, 7
      %v543 = vshll.u32 %v454, 16
      %v545 = vor.u32 %v542, %v543
      %v547 = vshrl.u32 %v455, 16
      %v549 = vrot.slane %v547, 7
      %v550 = vshll.u32 %v455, 16
      %v552 = vor.u32 %v549, %v550
      %v554 = vshrl.u32 %v456, 16
      %v556 = vrot.slane %v554, 7
      %v557 = vshll.u32 %v456, 16
      %v559 = vor.u32 %v556, %v557
      %v561 = vshrl.u32 %v457, 16
      %v563 = vrot.slane %v561, 7
      %v564 = vshll.u32 %v457, 16
      %v566 = vor.u32 %v563, %v564
      %v568 = vshrl.u32 %v458, 16
      %v570 = vrot.slane %v568, 7
      %v571 = vshll.u32 %v458, 16
      %v573 = vor.u32 %v570, %v571
      %v575 = vshrl.u32 %v459, 16
      %v577 = vrot.slane %v575, 7
      %v578 = vshll.u32 %v459, 16
      %v580 = vor.u32 %v577, %v578
      %vm597 = vcmask 1040384
      %vm598 = vsmask.f32 256
      %vm599 = vmand %vm597, %vm598
      %v600 = vsel %vm599, 0, %v475
      %v601 = vsel %vm599, 0, %v482
      %v602 = vsel %vm599, 0, %v489
      %v603 = vsel %vm599, 0, %v496
      %v604 = vsel %vm599, 0, %v503
      %v605 = vsel %vm599, 0, %v510
      %v606 = vsel %vm599, 0, %v517
      %v607 = vsel %vm599, 0, %v524
      %v608 = vsel %vm599, 0, %v531
      %v609 = vsel %vm599, 0, %v538
      %v610 = vsel %vm599, 0, %v545
      %v611 = vsel %vm599, 0, %v552
      %v612 = vsel %vm599, 0, %v559
      %v613 = vsel %vm599, 0, %v566
      %v614 = vsel %vm599, 0, %v573
      %v615 = vsel %vm599, 0, %v580
      %v632 = vunpack.c.l.b16 %v600
      %v633 = vunpack.c.h.b16 %v600
      %v634 = vunpack.c.l.b16 %v601
      %v635 = vunpack.c.h.b16 %v601
      %v636 = vunpack.c.l.b16 %v602
      %v637 = vunpack.c.h.b16 %v602
      %v638 = vunpack.c.l.b16 %v603
      %v639 = vunpack.c.h.b16 %v603
      %v640 = vunpack.c.l.b16 %v604
      %v641 = vunpack.c.h.b16 %v604
      %v642 = vunpack.c.l.b16 %v605
      %v643 = vunpack.c.h.b16 %v605
      %v644 = vunpack.c.l.b16 %v606
      %v645 = vunpack.c.h.b16 %v606
      %v646 = vunpack.c.l.b16 %v607
      %v647 = vunpack.c.h.b16 %v607
      %v648 = vunpack.c.l.b16 %v608
      %v649 = vunpack.c.h.b16 %v608
      %v650 = vunpack.c.l.b16 %v609
      %v651 = vunpack.c.h.b16 %v609
      %v652 = vunpack.c.l.b16 %v610
      %v653 = vunpack.c.h.b16 %v610
      %v654 = vunpack.c.l.b16 %v611
      %v655 = vunpack.c.h.b16 %v611
      %v656 = vunpack.c.l.b16 %v612
      %v657 = vunpack.c.h.b16 %v612
      %v658 = vunpack.c.l.b16 %v613
      %v659 = vunpack.c.h.b16 %v613
      %v660 = vunpack.c.l.b16 %v614
      %v661 = vunpack.c.h.b16 %v614
      %v662 = vunpack.c.l.b16 %v615
      %v663 = vunpack.c.h.b16 %v615
      %v664 = vpack.c.b16 %v632, %v632
      %v665 = vpack.c.b16 %v633, %v633
      %v666 = vpack.c.b16 %v634, %v634
      %v667 = vpack.c.b16 %v635, %v635
      %v668 = vpack.c.b16 %v636, %v636
      %v669 = vpack.c.b16 %v637, %v637
      %v670 = vpack.c.b16 %v638, %v638
      %v671 = vpack.c.b16 %v639, %v639
      %v672 = vpack.c.b16 %v640, %v640
      %v673 = vpack.c.b16 %v641, %v641
      %v674 = vpack.c.b16 %v642, %v642
      %v675 = vpack.c.b16 %v643, %v643
      %v676 = vpack.c.b16 %v644, %v644
      %v677 = vpack.c.b16 %v645, %v645
      %v678 = vpack.c.b16 %v646, %v646
      %v679 = vpack.c.b16 %v647, %v647
      %v680 = vpack.c.b16 %v648, %v648
      %v681 = vpack.c.b16 %v649, %v649
      %v682 = vpack.c.b16 %v650, %v650
      %v683 = vpack.c.b16 %v651, %v651
      %v684 = vpack.c.b16 %v652, %v652
      %v685 = vpack.c.b16 %v653, %v653
      %v686 = vpack.c.b16 %v654, %v654
      %v687 = vpack.c.b16 %v655, %v655
      %v688 = vpack.c.b16 %v656, %v656
      %v689 = vpack.c.b16 %v657, %v657
      %v690 = vpack.c.b16 %v658, %v658
      %v691 = vpack.c.b16 %v659, %v659
      %v692 = vpack.c.b16 %v660, %v660
      %v693 = vpack.c.b16 %v661, %v661
      %v694 = vpack.c.b16 %v662, %v662
      %v695 = vpack.c.b16 %v663, %v663
      %s728 = scalar_lea.vmem [#allocation2], 24
      %729 = vst [vmem:[%s728] sm:$0xf] %v664
      %730 = vst [vmem:[%s728 + $0xc] sm:$0xf] %v665
      %731 = vst [vmem:[%s728 + $0x18] sm:$0xf] %v666
      %732 = vst [vmem:[%s728 + $0x24] sm:$0xf] %v667
      %733 = vst [vmem:[%s728 + $0x30] sm:$0xf] %v668
      %734 = vst [vmem:[%s728 + $0x3c] sm:$0xf] %v669
      %735 = vst [vmem:[%s728 + $0x48] sm:$0xf] %v670
      %736 = vst [vmem:[%s728 + $0x54] sm:$0xf] %v671
      %737 = vst [vmem:[%s728 + $0x60] sm:$0xf] %v672
      %738 = vst [vmem:[%s728 + $0x6c] sm:$0xf] %v673
      %739 = vst [vmem:[%s728 + $0x78] sm:$0xf] %v674
      %740 = vst [vmem:[%s728 + $0x84] sm:$0xf] %v675
      %741 = vst [vmem:[%s728 + $0x90] sm:$0xf] %v676
      %742 = vst [vmem:[%s728 + $0x9c] sm:$0xf] %v677
      %743 = vst [vmem:[%s728 + $0xa8] sm:$0xf] %v678
      %744 = vst [vmem:[%s728 + $0xb4] sm:$0xf] %v679
      %745 = vst [vmem:[%s728 + $0xc0] sm:$0xf] %v680
      %746 = vst [vmem:[%s728 + $0xcc] sm:$0xf] %v681
      %747 = vst [vmem:[%s728 + $0xd8] sm:$0xf] %v682
      %748 = vst [vmem:[%s728 + $0xe4] sm:$0xf] %v683
      %749 = vst [vmem:[%s728 + $0xf0] sm:$0xf] %v684
      %750 = vst [vmem:[%s728 + $0xfc] sm:$0xf] %v685
      %751 = vst [vmem:[%s728 + $0x108] sm:$0xf] %v686
      %752 = vst [vmem:[%s728 + $0x114] sm:$0xf] %v687
      %753 = vst [vmem:[%s728 + $0x120] sm:$0xf] %v688
      %754 = vst [vmem:[%s728 + $0x12c] sm:$0xf] %v689
      %755 = vst [vmem:[%s728 + $0x138] sm:$0xf] %v690
      %756 = vst [vmem:[%s728 + $0x144] sm:$0xf] %v691
      %757 = vst [vmem:[%s728 + $0x150] sm:$0xf] %v692
      %758 = vst [vmem:[%s728 + $0x15c] sm:$0xf] %v693
      %759 = vst [vmem:[%s728 + $0x168] sm:$0xf] %v694
      %760 = vst [vmem:[%s728 + $0x174] sm:$0xf] %v695
      %v777 = vunpack.c.l.b16 %v444
      %v778 = vunpack.c.h.b16 %v444
      %v779 = vunpack.c.l.b16 %v445
      %v780 = vunpack.c.h.b16 %v445
      %v781 = vunpack.c.l.b16 %v446
      %v782 = vunpack.c.h.b16 %v446
      %v783 = vunpack.c.l.b16 %v447
      %v784 = vunpack.c.h.b16 %v447
      %v785 = vunpack.c.l.b16 %v448
      %v786 = vunpack.c.h.b16 %v448
      %v787 = vunpack.c.l.b16 %v449
      %v788 = vunpack.c.h.b16 %v449
      %v789 = vunpack.c.l.b16 %v450
      %v790 = vunpack.c.h.b16 %v450
      %v791 = vunpack.c.l.b16 %v451
      %v792 = vunpack.c.h.b16 %v451
      %v793 = vunpack.c.l.b16 %v452
      %v794 = vunpack.c.h.b16 %v452
      %v795 = vunpack.c.l.b16 %v453
      %v796 = vunpack.c.h.b16 %v453
      %v797 = vunpack.c.l.b16 %v454
      %v798 = vunpack.c.h.b16 %v454
      %v799 = vunpack.c.l.b16 %v455
      %v800 = vunpack.c.h.b16 %v455
      %v801 = vunpack.c.l.b16 %v456
      %v802 = vunpack.c.h.b16 %v456
      %v803 = vunpack.c.l.b16 %v457
      %v804 = vunpack.c.h.b16 %v457
      %v805 = vunpack.c.l.b16 %v458
      %v806 = vunpack.c.h.b16 %v458
      %v807 = vunpack.c.l.b16 %v459
      %v808 = vunpack.c.h.b16 %v459
      %v809 = vpack.c.b16 %v777, %v777
      %v810 = vpack.c.b16 %v778, %v778
      %v811 = vpack.c.b16 %v779, %v779
      %v812 = vpack.c.b16 %v780, %v780
      %v813 = vpack.c.b16 %v781, %v781
      %v814 = vpack.c.b16 %v782, %v782
      %v815 = vpack.c.b16 %v783, %v783
      %v816 = vpack.c.b16 %v784, %v784
      %v817 = vpack.c.b16 %v785, %v785
      %v818 = vpack.c.b16 %v786, %v786
      %v819 = vpack.c.b16 %v787, %v787
      %v820 = vpack.c.b16 %v788, %v788
      %v821 = vpack.c.b16 %v789, %v789
      %v822 = vpack.c.b16 %v790, %v790
      %v823 = vpack.c.b16 %v791, %v791
      %v824 = vpack.c.b16 %v792, %v792
      %v825 = vpack.c.b16 %v793, %v793
      %v826 = vpack.c.b16 %v794, %v794
      %v827 = vpack.c.b16 %v795, %v795
      %v828 = vpack.c.b16 %v796, %v796
      %v829 = vpack.c.b16 %v797, %v797
      %v830 = vpack.c.b16 %v798, %v798
      %v831 = vpack.c.b16 %v799, %v799
      %v832 = vpack.c.b16 %v800, %v800
      %v833 = vpack.c.b16 %v801, %v801
      %v834 = vpack.c.b16 %v802, %v802
      %v835 = vpack.c.b16 %v803, %v803
      %v836 = vpack.c.b16 %v804, %v804
      %v837 = vpack.c.b16 %v805, %v805
      %v838 = vpack.c.b16 %v806, %v806
      %v839 = vpack.c.b16 %v807, %v807
      %v840 = vpack.c.b16 %v808, %v808
      %873 = vst [vmem:[%s728 + $0x4] sm:$0xf] %v809
      %874 = vst [vmem:[%s728 + $0x10] sm:$0xf] %v810
      %875 = vst [vmem:[%s728 + $0x1c] sm:$0xf] %v811
      %876 = vst [vmem:[%s728 + $0x28] sm:$0xf] %v812
      %877 = vst [vmem:[%s728 + $0x34] sm:$0xf] %v813
      %878 = vst [vmem:[%s728 + $0x40] sm:$0xf] %v814
      %879 = vst [vmem:[%s728 + $0x4c] sm:$0xf] %v815
      %880 = vst [vmem:[%s728 + $0x58] sm:$0xf] %v816
      %881 = vst [vmem:[%s728 + $0x64] sm:$0xf] %v817
      %882 = vst [vmem:[%s728 + $0x70] sm:$0xf] %v818
      %883 = vst [vmem:[%s728 + $0x7c] sm:$0xf] %v819
      %884 = vst [vmem:[%s728 + $0x88] sm:$0xf] %v820
      %885 = vst [vmem:[%s728 + $0x94] sm:$0xf] %v821
      %886 = vst [vmem:[%s728 + $0xa0] sm:$0xf] %v822
      %887 = vst [vmem:[%s728 + $0xac] sm:$0xf] %v823
      %888 = vst [vmem:[%s728 + $0xb8] sm:$0xf] %v824
      %889 = vst [vmem:[%s728 + $0xc4] sm:$0xf] %v825
      %890 = vst [vmem:[%s728 + $0xd0] sm:$0xf] %v826
      %891 = vst [vmem:[%s728 + $0xdc] sm:$0xf] %v827
      %892 = vst [vmem:[%s728 + $0xe8] sm:$0xf] %v828
      %893 = vst [vmem:[%s728 + $0xf4] sm:$0xf] %v829
      %894 = vst [vmem:[%s728 + $0x100] sm:$0xf] %v830
      %895 = vst [vmem:[%s728 + $0x10c] sm:$0xf] %v831
      %896 = vst [vmem:[%s728 + $0x118] sm:$0xf] %v832
      %897 = vst [vmem:[%s728 + $0x124] sm:$0xf] %v833
      %898 = vst [vmem:[%s728 + $0x130] sm:$0xf] %v834
      %899 = vst [vmem:[%s728 + $0x13c] sm:$0xf] %v835
      %900 = vst [vmem:[%s728 + $0x148] sm:$0xf] %v836
      %901 = vst [vmem:[%s728 + $0x154] sm:$0xf] %v837
      %902 = vst [vmem:[%s728 + $0x160] sm:$0xf] %v838
      %903 = vst [vmem:[%s728 + $0x16c] sm:$0xf] %v839
      %904 = vst [vmem:[%s728 + $0x178] sm:$0xf] %v840
      %v905 = vrot.slane %v473, 1
      %v906 = vor.u32 %v470, %v905
      %v907 = vrot.slane %v480, 1
      %v908 = vor.u32 %v477, %v907
      %v909 = vrot.slane %v487, 1
      %v910 = vor.u32 %v484, %v909
      %v911 = vrot.slane %v494, 1
      %v912 = vor.u32 %v491, %v911
      %v913 = vrot.slane %v501, 1
      %v914 = vor.u32 %v498, %v913
      %v915 = vrot.slane %v508, 1
      %v916 = vor.u32 %v505, %v915
      %v917 = vrot.slane %v515, 1
      %v918 = vor.u32 %v512, %v917
      %v919 = vrot.slane %v522, 1
      %v920 = vor.u32 %v519, %v919
      %v921 = vrot.slane %v529, 1
      %v922 = vor.u32 %v526, %v921
      %v923 = vrot.slane %v536, 1
      %v924 = vor.u32 %v533, %v923
      %v925 = vrot.slane %v543, 1
      %v926 = vor.u32 %v540, %v925
      %v927 = vrot.slane %v550, 1
      %v928 = vor.u32 %v547, %v927
      %v929 = vrot.slane %v557, 1
      %v930 = vor.u32 %v554, %v929
      %v931 = vrot.slane %v564, 1
      %v932 = vor.u32 %v561, %v931
      %v933 = vrot.slane %v571, 1
      %v934 = vor.u32 %v568, %v933
      %v935 = vrot.slane %v578, 1
      %v936 = vor.u32 %v575, %v935
      %vm953 = vcmask 1047552
      %vm954 = vsmask.f32 7424
      %vm955 = vmand %vm953, %vm954
      %v956 = vsel %vm955, %v906, 0
      %v957 = vsel %vm955, %v908, 0
      %v958 = vsel %vm955, %v910, 0
      %v959 = vsel %vm955, %v912, 0
      %v960 = vsel %vm955, %v914, 0
      %v961 = vsel %vm955, %v916, 0
      %v962 = vsel %vm955, %v918, 0
      %v963 = vsel %vm955, %v920, 0
      %v964 = vsel %vm955, %v922, 0
      %v965 = vsel %vm955, %v924, 0
      %v966 = vsel %vm955, %v926, 0
      %v967 = vsel %vm955, %v928, 0
      %v968 = vsel %vm955, %v930, 0
      %v969 = vsel %vm955, %v932, 0
      %v970 = vsel %vm955, %v934, 0
      %v971 = vsel %vm955, %v936, 0
      %v988 = vunpack.c.l.b16 %v956
      %v989 = vunpack.c.h.b16 %v956
      %v990 = vunpack.c.l.b16 %v957
      %v991 = vunpack.c.h.b16 %v957
      %v992 = vunpack.c.l.b16 %v958
      %v993 = vunpack.c.h.b16 %v958
      %v994 = vunpack.c.l.b16 %v959
      %v995 = vunpack.c.h.b16 %v959
      %v996 = vunpack.c.l.b16 %v960
      %v997 = vunpack.c.h.b16 %v960
      %v998 = vunpack.c.l.b16 %v961
      %v999 = vunpack.c.h.b16 %v961
      %v1000 = vunpack.c.l.b16 %v962
      %v1001 = vunpack.c.h.b16 %v962
      %v1002 = vunpack.c.l.b16 %v963
      %v1003 = vunpack.c.h.b16 %v963
      %v1004 = vunpack.c.l.b16 %v964
      %v1005 = vunpack.c.h.b16 %v964
      %v1006 = vunpack.c.l.b16 %v965
      %v1007 = vunpack.c.h.b16 %v965
      %v1008 = vunpack.c.l.b16 %v966
      %v1009 = vunpack.c.h.b16 %v966
      %v1010 = vunpack.c.l.b16 %v967
      %v1011 = vunpack.c.h.b16 %v967
      %v1012 = vunpack.c.l.b16 %v968
      %v1013 = vunpack.c.h.b16 %v968
      %v1014 = vunpack.c.l.b16 %v969
      %v1015 = vunpack.c.h.b16 %v969
      %v1016 = vunpack.c.l.b16 %v970
      %v1017 = vunpack.c.h.b16 %v970
      %v1018 = vunpack.c.l.b16 %v971
      %v1019 = vunpack.c.h.b16 %v971
      %v1020 = vpack.c.b16 %v988, %v988
      %v1021 = vpack.c.b16 %v989, %v989
      %v1022 = vpack.c.b16 %v990, %v990
      %v1023 = vpack.c.b16 %v991, %v991
      %v1024 = vpack.c.b16 %v992, %v992
      %v1025 = vpack.c.b16 %v993, %v993
      %v1026 = vpack.c.b16 %v994, %v994
      %v1027 = vpack.c.b16 %v995, %v995
      %v1028 = vpack.c.b16 %v996, %v996
      %v1029 = vpack.c.b16 %v997, %v997
      %v1030 = vpack.c.b16 %v998, %v998
      %v1031 = vpack.c.b16 %v999, %v999
      %v1032 = vpack.c.b16 %v1000, %v1000
      %v1033 = vpack.c.b16 %v1001, %v1001
      %v1034 = vpack.c.b16 %v1002, %v1002
      %v1035 = vpack.c.b16 %v1003, %v1003
      %v1036 = vpack.c.b16 %v1004, %v1004
      %v1037 = vpack.c.b16 %v1005, %v1005
      %v1038 = vpack.c.b16 %v1006, %v1006
      %v1039 = vpack.c.b16 %v1007, %v1007
      %v1040 = vpack.c.b16 %v1008, %v1008
      %v1041 = vpack.c.b16 %v1009, %v1009
      %v1042 = vpack.c.b16 %v1010, %v1010
      %v1043 = vpack.c.b16 %v1011, %v1011
      %v1044 = vpack.c.b16 %v1012, %v1012
      %v1045 = vpack.c.b16 %v1013, %v1013
      %v1046 = vpack.c.b16 %v1014, %v1014
      %v1047 = vpack.c.b16 %v1015, %v1015
      %v1048 = vpack.c.b16 %v1016, %v1016
      %v1049 = vpack.c.b16 %v1017, %v1017
      %v1050 = vpack.c.b16 %v1018, %v1018
      %v1051 = vpack.c.b16 %v1019, %v1019
      %1084 = vst [vmem:[%s728 + $0x8] sm:$0xf] %v1020
      %1085 = vst [vmem:[%s728 + $0x14] sm:$0xf] %v1021
      %1086 = vst [vmem:[%s728 + $0x20] sm:$0xf] %v1022
      %1087 = vst [vmem:[%s728 + $0x2c] sm:$0xf] %v1023
      %1088 = vst [vmem:[%s728 + $0x38] sm:$0xf] %v1024
      %1089 = vst [vmem:[%s728 + $0x44] sm:$0xf] %v1025
      %1090 = vst [vmem:[%s728 + $0x50] sm:$0xf] %v1026
      %1091 = vst [vmem:[%s728 + $0x5c] sm:$0xf] %v1027
      %1092 = vst [vmem:[%s728 + $0x68] sm:$0xf] %v1028
      %1093 = vst [vmem:[%s728 + $0x74] sm:$0xf] %v1029
      %1094 = vst [vmem:[%s728 + $0x80] sm:$0xf] %v1030
      %1095 = vst [vmem:[%s728 + $0x8c] sm:$0xf] %v1031
      %1096 = vst [vmem:[%s728 + $0x98] sm:$0xf] %v1032
      %1097 = vst [vmem:[%s728 + $0xa4] sm:$0xf] %v1033
      %1098 = vst [vmem:[%s728 + $0xb0] sm:$0xf] %v1034
      %1099 = vst [vmem:[%s728 + $0xbc] sm:$0xf] %v1035
      %1100 = vst [vmem:[%s728 + $0xc8] sm:$0xf] %v1036
      %1101 = vst [vmem:[%s728 + $0xd4] sm:$0xf] %v1037
      %1102 = vst [vmem:[%s728 + $0xe0] sm:$0xf] %v1038
      %1103 = vst [vmem:[%s728 + $0xec] sm:$0xf] %v1039
      %1104 = vst [vmem:[%s728 + $0xf8] sm:$0xf] %v1040
      %1105 = vst [vmem:[%s728 + $0x104] sm:$0xf] %v1041
      %1106 = vst [vmem:[%s728 + $0x110] sm:$0xf] %v1042
      %1107 = vst [vmem:[%s728 + $0x11c] sm:$0xf] %v1043
      %1108 = vst [vmem:[%s728 + $0x128] sm:$0xf] %v1044
      %1109 = vst [vmem:[%s728 + $0x134] sm:$0xf] %v1045
      %1110 = vst [vmem:[%s728 + $0x140] sm:$0xf] %v1046
      %1111 = vst [vmem:[%s728 + $0x14c] sm:$0xf] %v1047
      %1112 = vst [vmem:[%s728 + $0x158] sm:$0xf] %v1048
      %1113 = vst [vmem:[%s728 + $0x164] sm:$0xf] %v1049
      %1114 = vst [vmem:[%s728 + $0x170] sm:$0xf] %v1050
      %1115 = vst [vmem:[%s728 + $0x17c] sm:$0xf] %v1051
      %v1116 = vld [vmem:[#allocation2] sm:$0xff]
      %v1117 = vld [vmem:[#allocation2 + $0x8] sm:$0xf]
      %v1118 = vld [vmem:[#allocation2 + $0xc] sm:$0xff]
      %v1119 = vld [vmem:[#allocation2 + $0x14] sm:$0xf]
      %v1120 = vld [vmem:[#allocation2 + $0x18] sm:$0xff]
      %v1121 = vld [vmem:[#allocation2 + $0x20] sm:$0xf]
      %v1122 = vld [vmem:[#allocation2 + $0x24] sm:$0xff]
      %v1123 = vld [vmem:[#allocation2 + $0x2c] sm:$0xf]
      %v1124 = vld [vmem:[#allocation2 + $0x30] sm:$0xff]
      %v1125 = vld [vmem:[#allocation2 + $0x38] sm:$0xf]
      %v1126 = vld [vmem:[#allocation2 + $0x3c] sm:$0xff]
      %v1127 = vld [vmem:[#allocation2 + $0x44] sm:$0xf]
      %v1128 = vld [vmem:[#allocation2 + $0x48] sm:$0xff]
      %v1129 = vld [vmem:[#allocation2 + $0x50] sm:$0xf]
      %v1130 = vld [vmem:[#allocation2 + $0x54] sm:$0xff]
      %v1131 = vld [vmem:[#allocation2 + $0x5c] sm:$0xf]
      %v1132 = vld [vmem:[#allocation2 + $0x60] sm:$0xff]
      %v1133 = vld [vmem:[#allocation2 + $0x68] sm:$0xf]
      %v1134 = vld [vmem:[#allocation2 + $0x6c] sm:$0xff]
      %v1135 = vld [vmem:[#allocation2 + $0x74] sm:$0xf]
      %v1136 = vld [vmem:[#allocation2 + $0x78] sm:$0xff]
      %v1137 = vld [vmem:[#allocation2 + $0x80] sm:$0xf]
      %v1138 = vld [vmem:[#allocation2 + $0x84] sm:$0xff]
      %v1139 = vld [vmem:[#allocation2 + $0x8c] sm:$0xf]
      %v1140 = vld [vmem:[#allocation2 + $0x90] sm:$0xff]
      %v1141 = vld [vmem:[#allocation2 + $0x98] sm:$0xf]
      %v1142 = vld [vmem:[#allocation2 + $0x9c] sm:$0xff]
      %v1143 = vld [vmem:[#allocation2 + $0xa4] sm:$0xf]
      %v1144 = vld [vmem:[#allocation2 + $0xa8] sm:$0xff]
      %v1145 = vld [vmem:[#allocation2 + $0xb0] sm:$0xf]
      %v1146 = vld [vmem:[#allocation2 + $0xb4] sm:$0xff]
      %v1147 = vld [vmem:[#allocation2 + $0xbc] sm:$0xf]
      %v1148 = vld [vmem:[#allocation2 + $0xc0] sm:$0xff]
      %v1149 = vld [vmem:[#allocation2 + $0xc8] sm:$0xf]
      %v1150 = vld [vmem:[#allocation2 + $0xcc] sm:$0xff]
      %v1151 = vld [vmem:[#allocation2 + $0xd4] sm:$0xf]
      %v1152 = vld [vmem:[#allocation2 + $0xd8] sm:$0xff]
      %v1153 = vld [vmem:[#allocation2 + $0xe0] sm:$0xf]
      %v1154 = vld [vmem:[#allocation2 + $0xe4] sm:$0xff]
      %v1155 = vld [vmem:[#allocation2 + $0xec] sm:$0xf]
      %v1156 = vld [vmem:[#allocation2 + $0xf0] sm:$0xff]
      %v1157 = vld [vmem:[#allocation2 + $0xf8] sm:$0xf]
      %v1158 = vld [vmem:[#allocation2 + $0xfc] sm:$0xff]
      %v1159 = vld [vmem:[#allocation2 + $0x104] sm:$0xf]
      %v1160 = vld [vmem:[#allocation2 + $0x108] sm:$0xff]
      %v1161 = vld [vmem:[#allocation2 + $0x110] sm:$0xf]
      %v1162 = vld [vmem:[#allocation2 + $0x114] sm:$0xff]
      %v1163 = vld [vmem:[#allocation2 + $0x11c] sm:$0xf]
      %v1164 = vld [vmem:[#allocation2 + $0x120] sm:$0xff]
      %v1165 = vld [vmem:[#allocation2 + $0x128] sm:$0xf]
      %v1166 = vld [vmem:[#allocation2 + $0x12c] sm:$0xff]
      %v1167 = vld [vmem:[#allocation2 + $0x134] sm:$0xf]
      %v1168 = vld [vmem:[#allocation2 + $0x138] sm:$0xff]
      %v1169 = vld [vmem:[#allocation2 + $0x140] sm:$0xf]
      %v1170 = vld [vmem:[#allocation2 + $0x144] sm:$0xff]
      %v1171 = vld [vmem:[#allocation2 + $0x14c] sm:$0xf]
      %v1172 = vld [vmem:[#allocation2 + $0x150] sm:$0xff]
      %v1173 = vld [vmem:[#allocation2 + $0x158] sm:$0xf]
      %v1174 = vld [vmem:[#allocation2 + $0x15c] sm:$0xff]
      %v1175 = vld [vmem:[#allocation2 + $0x164] sm:$0xf]
      %v1176 = vld [vmem:[#allocation2 + $0x168] sm:$0xff]
      %v1177 = vld [vmem:[#allocation2 + $0x170] sm:$0xf]
      %v1178 = vld [vmem:[#allocation2 + $0x174] sm:$0xff]
      %v1179 = vld [vmem:[#allocation2 + $0x17c] sm:$0xf]
      %v1180 = vld [vmem:[%s3] sm:$0xf]
      %v1181 = vld [vmem:[%s3 + $0x4] sm:$0xf]
      %v1182 = vld [vmem:[%s3 + $0x8] sm:$0xf]
      %v1183 = vld [vmem:[%s3 + $0xc] sm:$0xf]
      %v1184 = vld [vmem:[%s3 + $0x10] sm:$0xf]
      %v1185 = vld [vmem:[%s3 + $0x14] sm:$0xf]
      %v1186 = vld [vmem:[%s3 + $0x18] sm:$0xf]
      %v1187 = vld [vmem:[%s3 + $0x1c] sm:$0xf]
      %v1188 = vld [vmem:[%s3 + $0x20] sm:$0xf]
      %v1189 = vld [vmem:[%s3 + $0x24] sm:$0xf]
      %v1190 = vld [vmem:[%s3 + $0x28] sm:$0xf]
      %v1191 = vld [vmem:[%s3 + $0x2c] sm:$0xf]
      %v1192 = vld [vmem:[%s3 + $0x30] sm:$0xf]
      %v1193 = vld [vmem:[%s3 + $0x34] sm:$0xf]
      %v1194 = vld [vmem:[%s3 + $0x38] sm:$0xf]
      %v1195 = vld [vmem:[%s3 + $0x3c] sm:$0xf]
      %v1196 = vld [vmem:[%s3 + $0x40] sm:$0xf]
      %v1197 = vld [vmem:[%s3 + $0x44] sm:$0xf]
      %v1198 = vld [vmem:[%s3 + $0x48] sm:$0xf]
      %v1199 = vld [vmem:[%s3 + $0x4c] sm:$0xf]
      %v1200 = vld [vmem:[%s3 + $0x50] sm:$0xf]
      %v1201 = vld [vmem:[%s3 + $0x54] sm:$0xf]
      %v1202 = vld [vmem:[%s3 + $0x58] sm:$0xf]
      %v1203 = vld [vmem:[%s3 + $0x5c] sm:$0xf]
      %v1204 = vld [vmem:[%s3 + $0x60] sm:$0xf]
      %v1205 = vld [vmem:[%s3 + $0x64] sm:$0xf]
      %v1206 = vld [vmem:[%s3 + $0x68] sm:$0xf]
      %v1207 = vld [vmem:[%s3 + $0x6c] sm:$0xf]
      %v1208 = vld [vmem:[%s3 + $0x70] sm:$0xf]
      %v1209 = vld [vmem:[%s3 + $0x74] sm:$0xf]
      %v1210 = vld [vmem:[%s3 + $0x78] sm:$0xf]
      %v1211 = vld [vmem:[%s3 + $0x7c] sm:$0xf]
      %v1212 = vld [vmem:[%s3 + $0x80] sm:$0xf]
      %v1213 = vld [vmem:[%s3 + $0x84] sm:$0xf]
      %v1214 = vld [vmem:[%s3 + $0x88] sm:$0xf]
      %v1215 = vld [vmem:[%s3 + $0x8c] sm:$0xf]
      %v1216 = vld [vmem:[%s3 + $0x90] sm:$0xf]
      %v1217 = vld [vmem:[%s3 + $0x94] sm:$0xf]
      %v1218 = vld [vmem:[%s3 + $0x98] sm:$0xf]
      %v1219 = vld [vmem:[%s3 + $0x9c] sm:$0xf]
      %v1220 = vld [vmem:[%s3 + $0xa0] sm:$0xf]
      %v1221 = vld [vmem:[%s3 + $0xa4] sm:$0xf]
      %v1222 = vld [vmem:[%s3 + $0xa8] sm:$0xf]
      %v1223 = vld [vmem:[%s3 + $0xac] sm:$0xf]
      %v1224 = vld [vmem:[%s3 + $0xb0] sm:$0xf]
      %v1225 = vld [vmem:[%s3 + $0xb4] sm:$0xf]
      %v1226 = vld [vmem:[%s3 + $0xb8] sm:$0xf]
      %v1227 = vld [vmem:[%s3 + $0xbc] sm:$0xf]
      %v1228 = vld [vmem:[%s728] sm:$0xff]
      %v1229 = vld [vmem:[%s728 + $0x8] sm:$0xf]
      %v1230 = vld [vmem:[%s728 + $0xc] sm:$0xff]
      %v1231 = vld [vmem:[%s728 + $0x14] sm:$0xf]
      %v1232 = vld [vmem:[%s728 + $0x18] sm:$0xff]
      %v1233 = vld [vmem:[%s728 + $0x20] sm:$0xf]
      %v1234 = vld [vmem:[%s728 + $0x24] sm:$0xff]
      %v1235 = vld [vmem:[%s728 + $0x2c] sm:$0xf]
      %v1236 = vld [vmem:[%s728 + $0x30] sm:$0xff]
      %v1237 = vld [vmem:[%s728 + $0x38] sm:$0xf]
      %v1238 = vld [vmem:[%s728 + $0x3c] sm:$0xff]
      %v1239 = vld [vmem:[%s728 + $0x44] sm:$0xf]
      %v1240 = vld [vmem:[%s728 + $0x48] sm:$0xff]
      %v1241 = vld [vmem:[%s728 + $0x50] sm:$0xf]
      %v1242 = vld [vmem:[%s728 + $0x54] sm:$0xff]
      %v1243 = vld [vmem:[%s728 + $0x5c] sm:$0xf]
      %v1244 = vld [vmem:[%s728 + $0x60] sm:$0xff]
      %v1245 = vld [vmem:[%s728 + $0x68] sm:$0xf]
      %v1246 = vld [vmem:[%s728 + $0x6c] sm:$0xff]
      %v1247 = vld [vmem:[%s728 + $0x74] sm:$0xf]
      %v1248 = vld [vmem:[%s728 + $0x78] sm:$0xff]
      %v1249 = vld [vmem:[%s728 + $0x80] sm:$0xf]
      %v1250 = vld [vmem:[%s728 + $0x84] sm:$0xff]
      %v1251 = vld [vmem:[%s728 + $0x8c] sm:$0xf]
      %v1252 = vld [vmem:[%s728 + $0x90] sm:$0xff]
      %v1253 = vld [vmem:[%s728 + $0x98] sm:$0xf]
      %v1254 = vld [vmem:[%s728 + $0x9c] sm:$0xff]
      %v1255 = vld [vmem:[%s728 + $0xa4] sm:$0xf]
      %v1256 = vld [vmem:[%s728 + $0xa8] sm:$0xff]
      %v1257 = vld [vmem:[%s728 + $0xb0] sm:$0xf]
      %v1258 = vld [vmem:[%s728 + $0xb4] sm:$0xff]
      %v1259 = vld [vmem:[%s728 + $0xbc] sm:$0xf]
      %v1260 = vld [vmem:[%s728 + $0xc0] sm:$0xff]
      %v1261 = vld [vmem:[%s728 + $0xc8] sm:$0xf]
      %v1262 = vld [vmem:[%s728 + $0xcc] sm:$0xff]
      %v1263 = vld [vmem:[%s728 + $0xd4] sm:$0xf]
      %v1264 = vld [vmem:[%s728 + $0xd8] sm:$0xff]
      %v1265 = vld [vmem:[%s728 + $0xe0] sm:$0xf]
      %v1266 = vld [vmem:[%s728 + $0xe4] sm:$0xff]
      %v1267 = vld [vmem:[%s728 + $0xec] sm:$0xf]
      %v1268 = vld [vmem:[%s728 + $0xf0] sm:$0xff]
      %v1269 = vld [vmem:[%s728 + $0xf8] sm:$0xf]
      %v1270 = vld [vmem:[%s728 + $0xfc] sm:$0xff]
      %v1271 = vld [vmem:[%s728 + $0x104] sm:$0xf]
      %v1272 = vld [vmem:[%s728 + $0x108] sm:$0xff]
      %v1273 = vld [vmem:[%s728 + $0x110] sm:$0xf]
      %v1274 = vld [vmem:[%s728 + $0x114] sm:$0xff]
      %v1275 = vld [vmem:[%s728 + $0x11c] sm:$0xf]
      %v1276 = vld [vmem:[%s728 + $0x120] sm:$0xff]
      %v1277 = vld [vmem:[%s728 + $0x128] sm:$0xf]
      %v1278 = vld [vmem:[%s728 + $0x12c] sm:$0xff]
      %v1279 = vld [vmem:[%s728 + $0x134] sm:$0xf]
      %v1280 = vld [vmem:[%s728 + $0x138] sm:$0xff]
      %v1281 = vld [vmem:[%s728 + $0x140] sm:$0xf]
      %v1282 = vld [vmem:[%s728 + $0x144] sm:$0xff]
      %v1283 = vld [vmem:[%s728 + $0x14c] sm:$0xf]
      %v1284 = vld [vmem:[%s728 + $0x150] sm:$0xff]
      %v1285 = vld [vmem:[%s728 + $0x158] sm:$0xf]
      %v1286 = vld [vmem:[%s728 + $0x15c] sm:$0xff]
      %v1287 = vld [vmem:[%s728 + $0x164] sm:$0xf]
      %v1288 = vld [vmem:[%s728 + $0x168] sm:$0xff]
      %v1289 = vld [vmem:[%s728 + $0x170] sm:$0xf]
      %v1290 = vld [vmem:[%s728 + $0x174] sm:$0xff]
      %v1291 = vld [vmem:[%s728 + $0x17c] sm:$0xf]
      %s1292 = scalar_lea.vmem %s3, 192
      %v1293 = vld [vmem:[%s1292] sm:$0xf]
      %v1294 = vld [vmem:[%s1292 + $0x4] sm:$0xf]
      %v1295 = vld [vmem:[%s1292 + $0x8] sm:$0xf]
      %v1296 = vld [vmem:[%s1292 + $0xc] sm:$0xf]
      %v1297 = vld [vmem:[%s1292 + $0x10] sm:$0xf]
      %v1298 = vld [vmem:[%s1292 + $0x14] sm:$0xf]
      %v1299 = vld [vmem:[%s1292 + $0x18] sm:$0xf]
      %v1300 = vld [vmem:[%s1292 + $0x1c] sm:$0xf]
      %v1301 = vld [vmem:[%s1292 + $0x20] sm:$0xf]
      %v1302 = vld [vmem:[%s1292 + $0x24] sm:$0xf]
      %v1303 = vld [vmem:[%s1292 + $0x28] sm:$0xf]
      %v1304 = vld [vmem:[%s1292 + $0x2c] sm:$0xf]
      %v1305 = vld [vmem:[%s1292 + $0x30] sm:$0xf]
      %v1306 = vld [vmem:[%s1292 + $0x34] sm:$0xf]
      %v1307 = vld [vmem:[%s1292 + $0x38] sm:$0xf]
      %v1308 = vld [vmem:[%s1292 + $0x3c] sm:$0xf]
      %v1309 = vld [vmem:[%s1292 + $0x40] sm:$0xf]
      %v1310 = vld [vmem:[%s1292 + $0x44] sm:$0xf]
      %v1311 = vld [vmem:[%s1292 + $0x48] sm:$0xf]
      %v1312 = vld [vmem:[%s1292 + $0x4c] sm:$0xf]
      %v1313 = vld [vmem:[%s1292 + $0x50] sm:$0xf]
      %v1314 = vld [vmem:[%s1292 + $0x54] sm:$0xf]
      %v1315 = vld [vmem:[%s1292 + $0x58] sm:$0xf]
      %v1316 = vld [vmem:[%s1292 + $0x5c] sm:$0xf]
      %v1317 = vld [vmem:[%s1292 + $0x60] sm:$0xf]
      %v1318 = vld [vmem:[%s1292 + $0x64] sm:$0xf]
      %v1319 = vld [vmem:[%s1292 + $0x68] sm:$0xf]
      %v1320 = vld [vmem:[%s1292 + $0x6c] sm:$0xf]
      %v1321 = vld [vmem:[%s1292 + $0x70] sm:$0xf]
      %v1322 = vld [vmem:[%s1292 + $0x74] sm:$0xf]
      %v1323 = vld [vmem:[%s1292 + $0x78] sm:$0xf]
      %v1324 = vld [vmem:[%s1292 + $0x7c] sm:$0xf]
      %v1325 = vld [vmem:[%s1292 + $0x80] sm:$0xf]
      %v1326 = vld [vmem:[%s1292 + $0x84] sm:$0xf]
      %v1327 = vld [vmem:[%s1292 + $0x88] sm:$0xf]
      %v1328 = vld [vmem:[%s1292 + $0x8c] sm:$0xf]
      %v1329 = vld [vmem:[%s1292 + $0x90] sm:$0xf]
      %v1330 = vld [vmem:[%s1292 + $0x94] sm:$0xf]
      %v1331 = vld [vmem:[%s1292 + $0x98] sm:$0xf]
      %v1332 = vld [vmem:[%s1292 + $0x9c] sm:$0xf]
      %v1333 = vld [vmem:[%s1292 + $0xa0] sm:$0xf]
      %v1334 = vld [vmem:[%s1292 + $0xa4] sm:$0xf]
      %v1335 = vld [vmem:[%s1292 + $0xa8] sm:$0xf]
      %v1336 = vld [vmem:[%s1292 + $0xac] sm:$0xf]
      %v1337 = vld [vmem:[%s1292 + $0xb0] sm:$0xf]
      %v1338 = vld [vmem:[%s1292 + $0xb4] sm:$0xf]
      %v1339 = vld [vmem:[%s1292 + $0xb8] sm:$0xf]
      %v1340 = vld [vmem:[%s1292 + $0xbc] sm:$0xf]
      %v1405 = vunpack.c.l.b16 %v1228
      %v1406 = vunpack.c.h.b16 %v1228
      %v1407 = vunpack.c.l.b16 %v1229
      %v1408 = vunpack.c.l.b16 %v1230
      %v1409 = vunpack.c.h.b16 %v1230
      %v1410 = vunpack.c.l.b16 %v1231
      %v1411 = vunpack.c.l.b16 %v1232
      %v1412 = vunpack.c.h.b16 %v1232
      %v1413 = vunpack.c.l.b16 %v1233
      %v1414 = vunpack.c.l.b16 %v1234
      %v1415 = vunpack.c.h.b16 %v1234
      %v1416 = vunpack.c.l.b16 %v1235
      %v1417 = vunpack.c.l.b16 %v1236
      %v1418 = vunpack.c.h.b16 %v1236
      %v1419 = vunpack.c.l.b16 %v1237
      %v1420 = vunpack.c.l.b16 %v1238
      %v1421 = vunpack.c.h.b16 %v1238
      %v1422 = vunpack.c.l.b16 %v1239
      %v1423 = vunpack.c.l.b16 %v1240
      %v1424 = vunpack.c.h.b16 %v1240
      %v1425 = vunpack.c.l.b16 %v1241
      %v1426 = vunpack.c.l.b16 %v1242
      %v1427 = vunpack.c.h.b16 %v1242
      %v1428 = vunpack.c.l.b16 %v1243
      %v1429 = vunpack.c.l.b16 %v1244
      %v1430 = vunpack.c.h.b16 %v1244
      %v1431 = vunpack.c.l.b16 %v1245
      %v1432 = vunpack.c.l.b16 %v1246
      %v1433 = vunpack.c.h.b16 %v1246
      %v1434 = vunpack.c.l.b16 %v1247
      %v1435 = vunpack.c.l.b16 %v1248
      %v1436 = vunpack.c.h.b16 %v1248
      %v1437 = vunpack.c.l.b16 %v1249
      %v1438 = vunpack.c.l.b16 %v1250
      %v1439 = vunpack.c.h.b16 %v1250
      %v1440 = vunpack.c.l.b16 %v1251
      %v1441 = vunpack.c.l.b16 %v1252
      %v1442 = vunpack.c.h.b16 %v1252
      %v1443 = vunpack.c.l.b16 %v1253
      %v1444 = vunpack.c.l.b16 %v1254
      %v1445 = vunpack.c.h.b16 %v1254
      %v1446 = vunpack.c.l.b16 %v1255
      %v1447 = vunpack.c.l.b16 %v1256
      %v1448 = vunpack.c.h.b16 %v1256
      %v1449 = vunpack.c.l.b16 %v1257
      %v1450 = vunpack.c.l.b16 %v1258
      %v1451 = vunpack.c.h.b16 %v1258
      %v1452 = vunpack.c.l.b16 %v1259
      %v1453 = vunpack.c.l.b16 %v1260
      %v1454 = vunpack.c.h.b16 %v1260
      %v1455 = vunpack.c.l.b16 %v1261
      %v1456 = vunpack.c.l.b16 %v1262
      %v1457 = vunpack.c.h.b16 %v1262
      %v1458 = vunpack.c.l.b16 %v1263
      %v1459 = vunpack.c.l.b16 %v1264
      %v1460 = vunpack.c.h.b16 %v1264
      %v1461 = vunpack.c.l.b16 %v1265
      %v1462 = vunpack.c.l.b16 %v1266
      %v1463 = vunpack.c.h.b16 %v1266
      %v1464 = vunpack.c.l.b16 %v1267
      %v1465 = vunpack.c.l.b16 %v1268
      %v1466 = vunpack.c.h.b16 %v1268
      %v1467 = vunpack.c.l.b16 %v1269
      %v1468 = vunpack.c.l.b16 %v1270
      %v1469 = vunpack.c.h.b16 %v1270
      %v1470 = vunpack.c.l.b16 %v1271
      %v1471 = vunpack.c.l.b16 %v1272
      %v1472 = vunpack.c.h.b16 %v1272
      %v1473 = vunpack.c.l.b16 %v1273
      %v1474 = vunpack.c.l.b16 %v1274
      %v1475 = vunpack.c.h.b16 %v1274
      %v1476 = vunpack.c.l.b16 %v1275
      %v1477 = vunpack.c.l.b16 %v1276
      %v1478 = vunpack.c.h.b16 %v1276
      %v1479 = vunpack.c.l.b16 %v1277
      %v1480 = vunpack.c.l.b16 %v1278
      %v1481 = vunpack.c.h.b16 %v1278
      %v1482 = vunpack.c.l.b16 %v1279
      %v1483 = vunpack.c.l.b16 %v1280
      %v1484 = vunpack.c.h.b16 %v1280
      %v1485 = vunpack.c.l.b16 %v1281
      %v1486 = vunpack.c.l.b16 %v1282
      %v1487 = vunpack.c.h.b16 %v1282
      %v1488 = vunpack.c.l.b16 %v1283
      %v1489 = vunpack.c.l.b16 %v1284
      %v1490 = vunpack.c.h.b16 %v1284
      %v1491 = vunpack.c.l.b16 %v1285
      %v1492 = vunpack.c.l.b16 %v1286
      %v1493 = vunpack.c.h.b16 %v1286
      %v1494 = vunpack.c.l.b16 %v1287
      %v1495 = vunpack.c.l.b16 %v1288
      %v1496 = vunpack.c.h.b16 %v1288
      %v1497 = vunpack.c.l.b16 %v1289
      %v1498 = vunpack.c.l.b16 %v1290
      %v1499 = vunpack.c.h.b16 %v1290
      %v1500 = vunpack.c.l.b16 %v1291
      %v1501 = vpack.c.b16 %v1408, %v1405
      %v1502 = vpack.c.b16 %v1409, %v1406
      %v1503 = vpack.c.b16 %v1410, %v1407
      %v1504 = vpack.c.b16 %v1414, %v1411
      %v1505 = vpack.c.b16 %v1415, %v1412
      %v1506 = vpack.c.b16 %v1416, %v1413
      %v1507 = vpack.c.b16 %v1420, %v1417
      %v1508 = vpack.c.b16 %v1421, %v1418
      %v1509 = vpack.c.b16 %v1422, %v1419
      %v1510 = vpack.c.b16 %v1426, %v1423
      %v1511 = vpack.c.b16 %v1427, %v1424
      %v1512 = vpack.c.b16 %v1428, %v1425
      %v1513 = vpack.c.b16 %v1432, %v1429
      %v1514 = vpack.c.b16 %v1433, %v1430
      %v1515 = vpack.c.b16 %v1434, %v1431
      %v1516 = vpack.c.b16 %v1438, %v1435
      %v1517 = vpack.c.b16 %v1439, %v1436
      %v1518 = vpack.c.b16 %v1440, %v1437
      %v1519 = vpack.c.b16 %v1444, %v1441
      %v1520 = vpack.c.b16 %v1445, %v1442
      %v1521 = vpack.c.b16 %v1446, %v1443
      %v1522 = vpack.c.b16 %v1450, %v1447
      %v1523 = vpack.c.b16 %v1451, %v1448
      %v1524 = vpack.c.b16 %v1452, %v1449
      %v1525 = vpack.c.b16 %v1456, %v1453
      %v1526 = vpack.c.b16 %v1457, %v1454
      %v1527 = vpack.c.b16 %v1458, %v1455
      %v1528 = vpack.c.b16 %v1462, %v1459
      %v1529 = vpack.c.b16 %v1463, %v1460
      %v1530 = vpack.c.b16 %v1464, %v1461
      %v1531 = vpack.c.b16 %v1468, %v1465
      %v1532 = vpack.c.b16 %v1469, %v1466
      %v1533 = vpack.c.b16 %v1470, %v1467
      %v1534 = vpack.c.b16 %v1474, %v1471
      %v1535 = vpack.c.b16 %v1475, %v1472
      %v1536 = vpack.c.b16 %v1476, %v1473
      %v1537 = vpack.c.b16 %v1480, %v1477
      %v1538 = vpack.c.b16 %v1481, %v1478
      %v1539 = vpack.c.b16 %v1482, %v1479
      %v1540 = vpack.c.b16 %v1486, %v1483
      %v1541 = vpack.c.b16 %v1487, %v1484
      %v1542 = vpack.c.b16 %v1488, %v1485
      %v1543 = vpack.c.b16 %v1492, %v1489
      %v1544 = vpack.c.b16 %v1493, %v1490
      %v1545 = vpack.c.b16 %v1494, %v1491
      %v1546 = vpack.c.b16 %v1498, %v1495
      %v1547 = vpack.c.b16 %v1499, %v1496
      %v1548 = vpack.c.b16 %v1500, %v1497
      %v1645 = vunpack.c.l.b16 %v1293
      %v1646 = vunpack.c.l.b16 %v1294
      %v1647 = vunpack.c.l.b16 %v1295
      %v1648 = vunpack.c.l.b16 %v1296
      %v1649 = vunpack.c.l.b16 %v1297
      %v1650 = vunpack.c.l.b16 %v1298
      %v1651 = vunpack.c.l.b16 %v1299
      %v1652 = vunpack.c.l.b16 %v1300
      %v1653 = vunpack.c.l.b16 %v1301
      %v1654 = vunpack.c.l.b16 %v1302
      %v1655 = vunpack.c.l.b16 %v1303
      %v1656 = vunpack.c.l.b16 %v1304
      %v1657 = vunpack.c.l.b16 %v1305
      %v1658 = vunpack.c.l.b16 %v1306
      %v1659 = vunpack.c.l.b16 %v1307
      %v1660 = vunpack.c.l.b16 %v1308
      %v1661 = vunpack.c.l.b16 %v1309
      %v1662 = vunpack.c.l.b16 %v1310
      %v1663 = vunpack.c.l.b16 %v1311
      %v1664 = vunpack.c.l.b16 %v1312
      %v1665 = vunpack.c.l.b16 %v1313
      %v1666 = vunpack.c.l.b16 %v1314
      %v1667 = vunpack.c.l.b16 %v1315
      %v1668 = vunpack.c.l.b16 %v1316
      %v1669 = vunpack.c.l.b16 %v1317
      %v1670 = vunpack.c.l.b16 %v1318
      %v1671 = vunpack.c.l.b16 %v1319
      %v1672 = vunpack.c.l.b16 %v1320
      %v1673 = vunpack.c.l.b16 %v1321
      %v1674 = vunpack.c.l.b16 %v1322
      %v1675 = vunpack.c.l.b16 %v1323
      %v1676 = vunpack.c.l.b16 %v1324
      %v1677 = vunpack.c.l.b16 %v1325
      %v1678 = vunpack.c.l.b16 %v1326
      %v1679 = vunpack.c.l.b16 %v1327
      %v1680 = vunpack.c.l.b16 %v1328
      %v1681 = vunpack.c.l.b16 %v1329
      %v1682 = vunpack.c.l.b16 %v1330
      %v1683 = vunpack.c.l.b16 %v1331
      %v1684 = vunpack.c.l.b16 %v1332
      %v1685 = vunpack.c.l.b16 %v1333
      %v1686 = vunpack.c.l.b16 %v1334
      %v1687 = vunpack.c.l.b16 %v1335
      %v1688 = vunpack.c.l.b16 %v1336
      %v1689 = vunpack.c.l.b16 %v1337
      %v1690 = vunpack.c.l.b16 %v1338
      %v1691 = vunpack.c.l.b16 %v1339
      %v1692 = vunpack.c.l.b16 %v1340
      %v1693 = vpack.c.b16 %v1646, %v1645
      %v1694 = vpack.c.b16 %v1648, %v1647
      %v1695 = vpack.c.b16 %v1650, %v1649
      %v1696 = vpack.c.b16 %v1652, %v1651
      %v1697 = vpack.c.b16 %v1654, %v1653
      %v1698 = vpack.c.b16 %v1656, %v1655
      %v1699 = vpack.c.b16 %v1658, %v1657
      %v1700 = vpack.c.b16 %v1660, %v1659
      %v1701 = vpack.c.b16 %v1662, %v1661
      %v1702 = vpack.c.b16 %v1664, %v1663
      %v1703 = vpack.c.b16 %v1666, %v1665
      %v1704 = vpack.c.b16 %v1668, %v1667
      %v1705 = vpack.c.b16 %v1670, %v1669
      %v1706 = vpack.c.b16 %v1672, %v1671
      %v1707 = vpack.c.b16 %v1674, %v1673
      %v1708 = vpack.c.b16 %v1676, %v1675
      %v1709 = vpack.c.b16 %v1678, %v1677
      %v1710 = vpack.c.b16 %v1680, %v1679
      %v1711 = vpack.c.b16 %v1682, %v1681
      %v1712 = vpack.c.b16 %v1684, %v1683
      %v1713 = vpack.c.b16 %v1686, %v1685
      %v1714 = vpack.c.b16 %v1688, %v1687
      %v1715 = vpack.c.b16 %v1690, %v1689
      %v1716 = vpack.c.b16 %v1692, %v1691
      %1741 = vmatprep.subr.bf16.mxu0 0
      %1742 = vmatpush1.bf16.msra.mxu0 %v1700
      %1743 = vmatprep.subr.bf16.mxu0 0
      %1744 = vmatpush1.bf16.msra.mxu0 %v1699
      %1745 = vmatprep.subr.bf16.mxu0 0
      %1746 = vmatpush1.bf16.msra.mxu0 %v1698
      %1747 = vmatprep.subr.bf16.mxu0 0
      %1748 = vmatpush1.bf16.msra.mxu0 %v1697
      %1749 = vmatprep.subr.bf16.mxu0 0
      %1750 = vmatpush1.bf16.msra.mxu0 %v1696
      %1751 = vmatprep.subr.bf16.mxu0 0
      %1752 = vmatpush1.bf16.msra.mxu0 %v1695
      %1753 = vmatprep.subr.bf16.mxu0 0
      %1754 = vmatpush1.bf16.msra.mxu0 %v1694
      %1755 = vmatprep.subr.bf16.mxu0 0
      %1756 = vmatpush1.bf16.msra.mxu0 %v1693
      %1757 = vmatprep.subr.bf16.mxu0 0
      %1758 = vmatpush2.bf16.msra.mxu0 %v1708
      %1759 = vmatprep.subr.bf16.mxu0 0
      %1760 = vmatpush2.bf16.msra.mxu0 %v1707
      %1761 = vmatprep.subr.bf16.mxu0 0
      %1762 = vmatpush2.bf16.msra.mxu0 %v1706
      %1763 = vmatprep.subr.bf16.mxu0 0
      %1764 = vmatpush2.bf16.msra.mxu0 %v1705
      %1765 = vmatprep.subr.bf16.mxu0 0
      %1766 = vmatpush2.bf16.msra.mxu0 %v1704
      %1767 = vmatprep.subr.bf16.mxu0 0
      %1768 = vmatpush2.bf16.msra.mxu0 %v1703
      %1769 = vmatprep.subr.bf16.mxu0 0
      %1770 = vmatpush2.bf16.msra.mxu0 %v1702
      %1771 = vmatprep.subr.bf16.mxu0 0
      %1772 = vmatpush2.bf16.msra.mxu0 %v1701
      %1773 = vmatprep.mubr.bf16.mxu0 %v1502
      %1774 = vmatmul.mubr.bf16.gmra.mxu0 %v1501
      %v1775 = vpop.f32.mrf.mxu0
      %v1776 = vadd.f32 0.0, %v1775
      %v1777 = vpop.f32.mrf.mxu0
      %v1778 = vpop.f32.mrf.mxu0
      %v1779 = vadd.f32 0.0, %v1778
      %v1780 = vpop.f32.mrf.mxu0
      %1781 = vmatprep.mubr.bf16.mxu0 %v1505
      %1782 = vmatmul.mubr.bf16.gmra.mxu0 %v1504
      %v1783 = vpop.f32.mrf.mxu0
      %v1784 = vadd.f32 0.0, %v1783
      %v1785 = vpop.f32.mrf.mxu0
      %v1786 = vpop.f32.mrf.mxu0
      %v1787 = vadd.f32 0.0, %v1786
      %v1788 = vpop.f32.mrf.mxu0
      %1789 = vmatprep.mubr.bf16.mxu0 %v1508
      %1790 = vmatmul.mubr.bf16.gmra.mxu0 %v1507
      %v1791 = vpop.f32.mrf.mxu0
      %v1792 = vadd.f32 0.0, %v1791
      %v1793 = vpop.f32.mrf.mxu0
      %v1794 = vpop.f32.mrf.mxu0
      %v1795 = vadd.f32 0.0, %v1794
      %v1796 = vpop.f32.mrf.mxu0
      %1797 = vmatprep.mubr.bf16.mxu0 %v1511
      %1798 = vmatmul.mubr.bf16.gmra.mxu0 %v1510
      %v1799 = vpop.f32.mrf.mxu0
      %v1800 = vadd.f32 0.0, %v1799
      %v1801 = vpop.f32.mrf.mxu0
      %v1802 = vpop.f32.mrf.mxu0
      %v1803 = vadd.f32 0.0, %v1802
      %v1804 = vpop.f32.mrf.mxu0
      %1805 = vmatprep.mubr.bf16.mxu0 %v1514
      %1806 = vmatmul.mubr.bf16.gmra.mxu0 %v1513
      %v1807 = vpop.f32.mrf.mxu0
      %v1808 = vadd.f32 0.0, %v1807
      %v1809 = vpop.f32.mrf.mxu0
      %v1810 = vpop.f32.mrf.mxu0
      %v1811 = vadd.f32 0.0, %v1810
      %v1812 = vpop.f32.mrf.mxu0
      %1813 = vmatprep.mubr.bf16.mxu0 %v1517
      %1814 = vmatmul.mubr.bf16.gmra.mxu0 %v1516
      %v1815 = vpop.f32.mrf.mxu0
      %v1816 = vadd.f32 0.0, %v1815
      %v1817 = vpop.f32.mrf.mxu0
      %v1818 = vpop.f32.mrf.mxu0
      %v1819 = vadd.f32 0.0, %v1818
      %v1820 = vpop.f32.mrf.mxu0
      %1821 = vmatprep.mubr.bf16.mxu0 %v1520
      %1822 = vmatmul.mubr.bf16.gmra.mxu0 %v1519
      %v1823 = vpop.f32.mrf.mxu0
      %v1824 = vadd.f32 0.0, %v1823
      %v1825 = vpop.f32.mrf.mxu0
      %v1826 = vpop.f32.mrf.mxu0
      %v1827 = vadd.f32 0.0, %v1826
      %v1828 = vpop.f32.mrf.mxu0
      %1829 = vmatprep.mubr.bf16.mxu0 %v1523
      %1830 = vmatmul.mubr.bf16.gmra.mxu0 %v1522
      %v1831 = vpop.f32.mrf.mxu0
      %v1832 = vadd.f32 0.0, %v1831
      %v1833 = vpop.f32.mrf.mxu0
      %v1834 = vpop.f32.mrf.mxu0
      %v1835 = vadd.f32 0.0, %v1834
      %v1836 = vpop.f32.mrf.mxu0
      %1837 = vmatprep.mubr.bf16.mxu0 %v1526
      %1838 = vmatmul.mubr.bf16.gmra.mxu0 %v1525
      %v1839 = vpop.f32.mrf.mxu0
      %v1840 = vadd.f32 0.0, %v1839
      %v1841 = vpop.f32.mrf.mxu0
      %v1842 = vpop.f32.mrf.mxu0
      %v1843 = vadd.f32 0.0, %v1842
      %v1844 = vpop.f32.mrf.mxu0
      %1845 = vmatprep.mubr.bf16.mxu0 %v1529
      %1846 = vmatmul.mubr.bf16.gmra.mxu0 %v1528
      %v1847 = vpop.f32.mrf.mxu0
      %v1848 = vadd.f32 0.0, %v1847
      %v1849 = vpop.f32.mrf.mxu0
      %v1850 = vpop.f32.mrf.mxu0
      %v1851 = vadd.f32 0.0, %v1850
      %v1852 = vpop.f32.mrf.mxu0
      %1853 = vmatprep.mubr.bf16.mxu0 %v1532
      %1854 = vmatmul.mubr.bf16.gmra.mxu0 %v1531
      %v1855 = vpop.f32.mrf.mxu0
      %v1856 = vadd.f32 0.0, %v1855
      %v1857 = vpop.f32.mrf.mxu0
      %v1858 = vpop.f32.mrf.mxu0
      %v1859 = vadd.f32 0.0, %v1858
      %v1860 = vpop.f32.mrf.mxu0
      %1861 = vmatprep.mubr.bf16.mxu0 %v1535
      %1862 = vmatmul.mubr.bf16.gmra.mxu0 %v1534
      %v1863 = vpop.f32.mrf.mxu0
      %v1864 = vadd.f32 0.0, %v1863
      %v1865 = vpop.f32.mrf.mxu0
      %v1866 = vpop.f32.mrf.mxu0
      %v1867 = vadd.f32 0.0, %v1866
      %v1868 = vpop.f32.mrf.mxu0
      %1869 = vmatprep.mubr.bf16.mxu0 %v1538
      %1870 = vmatmul.mubr.bf16.gmra.mxu0 %v1537
      %v1871 = vpop.f32.mrf.mxu0
      %v1872 = vadd.f32 0.0, %v1871
      %v1873 = vpop.f32.mrf.mxu0
      %v1874 = vpop.f32.mrf.mxu0
      %v1875 = vadd.f32 0.0, %v1874
      %v1876 = vpop.f32.mrf.mxu0
      %1877 = vmatprep.mubr.bf16.mxu0 %v1541
      %1878 = vmatmul.mubr.bf16.gmra.mxu0 %v1540
      %v1879 = vpop.f32.mrf.mxu0
      %v1880 = vadd.f32 0.0, %v1879
      %v1881 = vpop.f32.mrf.mxu0
      %v1882 = vpop.f32.mrf.mxu0
      %v1883 = vadd.f32 0.0, %v1882
      %v1884 = vpop.f32.mrf.mxu0
      %1885 = vmatprep.mubr.bf16.mxu0 %v1544
      %1886 = vmatmul.mubr.bf16.gmra.mxu0 %v1543
      %v1887 = vpop.f32.mrf.mxu0
      %v1888 = vadd.f32 0.0, %v1887
      %v1889 = vpop.f32.mrf.mxu0
      %v1890 = vpop.f32.mrf.mxu0
      %v1891 = vadd.f32 0.0, %v1890
      %v1892 = vpop.f32.mrf.mxu0
      %1893 = vmatprep.mubr.bf16.mxu0 %v1547
      %1894 = vmatmul.mubr.bf16.gmra.mxu0 %v1546
      %v1895 = vpop.f32.mrf.mxu0
      %v1896 = vadd.f32 0.0, %v1895
      %v1897 = vpop.f32.mrf.mxu0
      %v1898 = vpop.f32.mrf.mxu0
      %v1899 = vadd.f32 0.0, %v1898
      %v1900 = vpop.f32.mrf.mxu0
      %1901 = vdwg.mxu0
      %1902 = vmatprep.subr.bf16.mxu0 0
      %1903 = vmatpush1.bf16.msra.mxu0 %v1716
      %1904 = vmatprep.subr.bf16.mxu0 0
      %1905 = vmatpush1.bf16.msra.mxu0 %v1715
      %1906 = vmatprep.subr.bf16.mxu0 0
      %1907 = vmatpush1.bf16.msra.mxu0 %v1714
      %1908 = vmatprep.subr.bf16.mxu0 0
      %1909 = vmatpush1.bf16.msra.mxu0 %v1713
      %1910 = vmatprep.subr.bf16.mxu0 0
      %1911 = vmatpush1.bf16.msra.mxu0 %v1712
      %1912 = vmatprep.subr.bf16.mxu0 0
      %1913 = vmatpush1.bf16.msra.mxu0 %v1711
      %1914 = vmatprep.subr.bf16.mxu0 0
      %1915 = vmatpush1.bf16.msra.mxu0 %v1710
      %1916 = vmatprep.subr.bf16.mxu0 0
      %1917 = vmatpush1.bf16.msra.mxu0 %v1709
      %1918 = vmatprep.subr.bf16.mxu0 0
      %1919 = vmatpush2.bf16.msra.mxu0 0
      %1920 = vmatprep.subr.bf16.mxu0 0
      %1921 = vmatpush2.bf16.msra.mxu0 0
      %1922 = vmatprep.subr.bf16.mxu0 0
      %1923 = vmatpush2.bf16.msra.mxu0 0
      %1924 = vmatprep.subr.bf16.mxu0 0
      %1925 = vmatpush2.bf16.msra.mxu0 0
      %1926 = vmatprep.subr.bf16.mxu0 0
      %1927 = vmatpush2.bf16.msra.mxu0 0
      %1928 = vmatprep.subr.bf16.mxu0 0
      %1929 = vmatpush2.bf16.msra.mxu0 0
      %1930 = vmatprep.subr.bf16.mxu0 0
      %1931 = vmatpush2.bf16.msra.mxu0 0
      %1932 = vmatprep.subr.bf16.mxu0 0
      %1933 = vmatpush2.bf16.msra.mxu0 0
      %1934 = vmatprep.mubr.bf16.mxu0 0
      %1935 = vmatmul.mubr.bf16.gmra.mxu0 %v1503
      %v1936 = vpop.f32.mrf.mxu0
      %v1937 = vadd.f32 %v1776, %v1936
      %v1938 = vpop.f32.mrf.mxu0
      %v1939 = vpop.f32.mrf.mxu0
      %v1940 = vadd.f32 %v1779, %v1939
      %v1941 = vpop.f32.mrf.mxu0
      %1942 = vmatprep.mubr.bf16.mxu0 0
      %1943 = vmatmul.mubr.bf16.gmra.mxu0 %v1506
      %v1944 = vpop.f32.mrf.mxu0
      %v1945 = vadd.f32 %v1784, %v1944
      %v1946 = vpop.f32.mrf.mxu0
      %v1947 = vpop.f32.mrf.mxu0
      %v1948 = vadd.f32 %v1787, %v1947
      %v1949 = vpop.f32.mrf.mxu0
      %1950 = vmatprep.mubr.bf16.mxu0 0
      %1951 = vmatmul.mubr.bf16.gmra.mxu0 %v1509
      %v1952 = vpop.f32.mrf.mxu0
      %v1953 = vadd.f32 %v1792, %v1952
      %v1954 = vpop.f32.mrf.mxu0
      %v1955 = vpop.f32.mrf.mxu0
      %v1956 = vadd.f32 %v1795, %v1955
      %v1957 = vpop.f32.mrf.mxu0
      %1958 = vmatprep.mubr.bf16.mxu0 0
      %1959 = vmatmul.mubr.bf16.gmra.mxu0 %v1512
      %v1960 = vpop.f32.mrf.mxu0
      %v1961 = vadd.f32 %v1800, %v1960
      %v1962 = vpop.f32.mrf.mxu0
      %v1963 = vpop.f32.mrf.mxu0
      %v1964 = vadd.f32 %v1803, %v1963
      %v1965 = vpop.f32.mrf.mxu0
      %1966 = vmatprep.mubr.bf16.mxu0 0
      %1967 = vmatmul.mubr.bf16.gmra.mxu0 %v1515
      %v1968 = vpop.f32.mrf.mxu0
      %v1969 = vadd.f32 %v1808, %v1968
      %v1970 = vpop.f32.mrf.mxu0
      %v1971 = vpop.f32.mrf.mxu0
      %v1972 = vadd.f32 %v1811, %v1971
      %v1973 = vpop.f32.mrf.mxu0
      %1974 = vmatprep.mubr.bf16.mxu0 0
      %1975 = vmatmul.mubr.bf16.gmra.mxu0 %v1518
      %v1976 = vpop.f32.mrf.mxu0
      %v1977 = vadd.f32 %v1816, %v1976
      %v1978 = vpop.f32.mrf.mxu0
      %v1979 = vpop.f32.mrf.mxu0
      %v1980 = vadd.f32 %v1819, %v1979
      %v1981 = vpop.f32.mrf.mxu0
      %1982 = vmatprep.mubr.bf16.mxu0 0
      %1983 = vmatmul.mubr.bf16.gmra.mxu0 %v1521
      %v1984 = vpop.f32.mrf.mxu0
      %v1985 = vadd.f32 %v1824, %v1984
      %v1986 = vpop.f32.mrf.mxu0
      %v1987 = vpop.f32.mrf.mxu0
      %v1988 = vadd.f32 %v1827, %v1987
      %v1989 = vpop.f32.mrf.mxu0
      %1990 = vmatprep.mubr.bf16.mxu0 0
      %1991 = vmatmul.mubr.bf16.gmra.mxu0 %v1524
      %v1992 = vpop.f32.mrf.mxu0
      %v1993 = vadd.f32 %v1832, %v1992
      %v1994 = vpop.f32.mrf.mxu0
      %v1995 = vpop.f32.mrf.mxu0
      %v1996 = vadd.f32 %v1835, %v1995
      %v1997 = vpop.f32.mrf.mxu0
      %1998 = vmatprep.mubr.bf16.mxu0 0
      %1999 = vmatmul.mubr.bf16.gmra.mxu0 %v1527
      %v2000 = vpop.f32.mrf.mxu0
      %v2001 = vadd.f32 %v1840, %v2000
      %v2002 = vpop.f32.mrf.mxu0
      %v2003 = vpop.f32.mrf.mxu0
      %v2004 = vadd.f32 %v1843, %v2003
      %v2005 = vpop.f32.mrf.mxu0
      %2006 = vmatprep.mubr.bf16.mxu0 0
      %2007 = vmatmul.mubr.bf16.gmra.mxu0 %v1530
      %v2008 = vpop.f32.mrf.mxu0
      %v2009 = vadd.f32 %v1848, %v2008
      %v2010 = vpop.f32.mrf.mxu0
      %v2011 = vpop.f32.mrf.mxu0
      %v2012 = vadd.f32 %v1851, %v2011
      %v2013 = vpop.f32.mrf.mxu0
      %2014 = vmatprep.mubr.bf16.mxu0 0
      %2015 = vmatmul.mubr.bf16.gmra.mxu0 %v1533
      %v2016 = vpop.f32.mrf.mxu0
      %v2017 = vadd.f32 %v1856, %v2016
      %v2018 = vpop.f32.mrf.mxu0
      %v2019 = vpop.f32.mrf.mxu0
      %v2020 = vadd.f32 %v1859, %v2019
      %v2021 = vpop.f32.mrf.mxu0
      %2022 = vmatprep.mubr.bf16.mxu0 0
      %2023 = vmatmul.mubr.bf16.gmra.mxu0 %v1536
      %v2024 = vpop.f32.mrf.mxu0
      %v2025 = vadd.f32 %v1864, %v2024
      %v2026 = vpop.f32.mrf.mxu0
      %v2027 = vpop.f32.mrf.mxu0
      %v2028 = vadd.f32 %v1867, %v2027
      %v2029 = vpop.f32.mrf.mxu0
      %2030 = vmatprep.mubr.bf16.mxu0 0
      %2031 = vmatmul.mubr.bf16.gmra.mxu0 %v1539
      %v2032 = vpop.f32.mrf.mxu0
      %v2033 = vadd.f32 %v1872, %v2032
      %v2034 = vpop.f32.mrf.mxu0
      %v2035 = vpop.f32.mrf.mxu0
      %v2036 = vadd.f32 %v1875, %v2035
      %v2037 = vpop.f32.mrf.mxu0
      %2038 = vmatprep.mubr.bf16.mxu0 0
      %2039 = vmatmul.mubr.bf16.gmra.mxu0 %v1542
      %v2040 = vpop.f32.mrf.mxu0
      %v2041 = vadd.f32 %v1880, %v2040
      %v2042 = vpop.f32.mrf.mxu0
      %v2043 = vpop.f32.mrf.mxu0
      %v2044 = vadd.f32 %v1883, %v2043
      %v2045 = vpop.f32.mrf.mxu0
      %2046 = vmatprep.mubr.bf16.mxu0 0
      %2047 = vmatmul.mubr.bf16.gmra.mxu0 %v1545
      %v2048 = vpop.f32.mrf.mxu0
      %v2049 = vadd.f32 %v1888, %v2048
      %v2050 = vpop.f32.mrf.mxu0
      %v2051 = vpop.f32.mrf.mxu0
      %v2052 = vadd.f32 %v1891, %v2051
      %v2053 = vpop.f32.mrf.mxu0
      %2054 = vmatprep.mubr.bf16.mxu0 0
      %2055 = vmatmul.mubr.bf16.gmra.mxu0 %v1548
      %v2056 = vpop.f32.mrf.mxu0
      %v2057 = vadd.f32 %v1896, %v2056
      %v2058 = vpop.f32.mrf.mxu0
      %v2059 = vpop.f32.mrf.mxu0
      %v2060 = vadd.f32 %v1899, %v2059
      %v2061 = vpop.f32.mrf.mxu0
      %2062 = vdwg.mxu0
      %v2127 = vunpack.c.l.b16 %v1116
      %v2128 = vunpack.c.h.b16 %v1116
      %v2129 = vunpack.c.l.b16 %v1117
      %v2130 = vunpack.c.l.b16 %v1118
      %v2131 = vunpack.c.h.b16 %v1118
      %v2132 = vunpack.c.l.b16 %v1119
      %v2133 = vunpack.c.l.b16 %v1120
      %v2134 = vunpack.c.h.b16 %v1120
      %v2135 = vunpack.c.l.b16 %v1121
      %v2136 = vunpack.c.l.b16 %v1122
      %v2137 = vunpack.c.h.b16 %v1122
      %v2138 = vunpack.c.l.b16 %v1123
      %v2139 = vunpack.c.l.b16 %v1124
      %v2140 = vunpack.c.h.b16 %v1124
      %v2141 = vunpack.c.l.b16 %v1125
      %v2142 = vunpack.c.l.b16 %v1126
      %v2143 = vunpack.c.h.b16 %v1126
      %v2144 = vunpack.c.l.b16 %v1127
      %v2145 = vunpack.c.l.b16 %v1128
      %v2146 = vunpack.c.h.b16 %v1128
      %v2147 = vunpack.c.l.b16 %v1129
      %v2148 = vunpack.c.l.b16 %v1130
      %v2149 = vunpack.c.h.b16 %v1130
      %v2150 = vunpack.c.l.b16 %v1131
      %v2151 = vunpack.c.l.b16 %v1132
      %v2152 = vunpack.c.h.b16 %v1132
      %v2153 = vunpack.c.l.b16 %v1133
      %v2154 = vunpack.c.l.b16 %v1134
      %v2155 = vunpack.c.h.b16 %v1134
      %v2156 = vunpack.c.l.b16 %v1135
      %v2157 = vunpack.c.l.b16 %v1136
      %v2158 = vunpack.c.h.b16 %v1136
      %v2159 = vunpack.c.l.b16 %v1137
      %v2160 = vunpack.c.l.b16 %v1138
      %v2161 = vunpack.c.h.b16 %v1138
      %v2162 = vunpack.c.l.b16 %v1139
      %v2163 = vunpack.c.l.b16 %v1140
      %v2164 = vunpack.c.h.b16 %v1140
      %v2165 = vunpack.c.l.b16 %v1141
      %v2166 = vunpack.c.l.b16 %v1142
      %v2167 = vunpack.c.h.b16 %v1142
      %v2168 = vunpack.c.l.b16 %v1143
      %v2169 = vunpack.c.l.b16 %v1144
      %v2170 = vunpack.c.h.b16 %v1144
      %v2171 = vunpack.c.l.b16 %v1145
      %v2172 = vunpack.c.l.b16 %v1146
      %v2173 = vunpack.c.h.b16 %v1146
      %v2174 = vunpack.c.l.b16 %v1147
      %v2175 = vunpack.c.l.b16 %v1148
      %v2176 = vunpack.c.h.b16 %v1148
      %v2177 = vunpack.c.l.b16 %v1149
      %v2178 = vunpack.c.l.b16 %v1150
      %v2179 = vunpack.c.h.b16 %v1150
      %v2180 = vunpack.c.l.b16 %v1151
      %v2181 = vunpack.c.l.b16 %v1152
      %v2182 = vunpack.c.h.b16 %v1152
      %v2183 = vunpack.c.l.b16 %v1153
      %v2184 = vunpack.c.l.b16 %v1154
      %v2185 = vunpack.c.h.b16 %v1154
      %v2186 = vunpack.c.l.b16 %v1155
      %v2187 = vunpack.c.l.b16 %v1156
      %v2188 = vunpack.c.h.b16 %v1156
      %v2189 = vunpack.c.l.b16 %v1157
      %v2190 = vunpack.c.l.b16 %v1158
      %v2191 = vunpack.c.h.b16 %v1158
      %v2192 = vunpack.c.l.b16 %v1159
      %v2193 = vunpack.c.l.b16 %v1160
      %v2194 = vunpack.c.h.b16 %v1160
      %v2195 = vunpack.c.l.b16 %v1161
      %v2196 = vunpack.c.l.b16 %v1162
      %v2197 = vunpack.c.h.b16 %v1162
      %v2198 = vunpack.c.l.b16 %v1163
      %v2199 = vunpack.c.l.b16 %v1164
      %v2200 = vunpack.c.h.b16 %v1164
      %v2201 = vunpack.c.l.b16 %v1165
      %v2202 = vunpack.c.l.b16 %v1166
      %v2203 = vunpack.c.h.b16 %v1166
      %v2204 = vunpack.c.l.b16 %v1167
      %v2205 = vunpack.c.l.b16 %v1168
      %v2206 = vunpack.c.h.b16 %v1168
      %v2207 = vunpack.c.l.b16 %v1169
      %v2208 = vunpack.c.l.b16 %v1170
      %v2209 = vunpack.c.h.b16 %v1170
      %v2210 = vunpack.c.l.b16 %v1171
      %v2211 = vunpack.c.l.b16 %v1172
      %v2212 = vunpack.c.h.b16 %v1172
      %v2213 = vunpack.c.l.b16 %v1173
      %v2214 = vunpack.c.l.b16 %v1174
      %v2215 = vunpack.c.h.b16 %v1174
      %v2216 = vunpack.c.l.b16 %v1175
      %v2217 = vunpack.c.l.b16 %v1176
      %v2218 = vunpack.c.h.b16 %v1176
      %v2219 = vunpack.c.l.b16 %v1177
      %v2220 = vunpack.c.l.b16 %v1178
      %v2221 = vunpack.c.h.b16 %v1178
      %v2222 = vunpack.c.l.b16 %v1179
      %v2223 = vpack.c.b16 %v2130, %v2127
      %v2224 = vpack.c.b16 %v2131, %v2128
      %v2225 = vpack.c.b16 %v2132, %v2129
      %v2226 = vpack.c.b16 %v2136, %v2133
      %v2227 = vpack.c.b16 %v2137, %v2134
      %v2228 = vpack.c.b16 %v2138, %v2135
      %v2229 = vpack.c.b16 %v2142, %v2139
      %v2230 = vpack.c.b16 %v2143, %v2140
      %v2231 = vpack.c.b16 %v2144, %v2141
      %v2232 = vpack.c.b16 %v2148, %v2145
      %v2233 = vpack.c.b16 %v2149, %v2146
      %v2234 = vpack.c.b16 %v2150, %v2147
      %v2235 = vpack.c.b16 %v2154, %v2151
      %v2236 = vpack.c.b16 %v2155, %v2152
      %v2237 = vpack.c.b16 %v2156, %v2153
      %v2238 = vpack.c.b16 %v2160, %v2157
      %v2239 = vpack.c.b16 %v2161, %v2158
      %v2240 = vpack.c.b16 %v2162, %v2159
      %v2241 = vpack.c.b16 %v2166, %v2163
      %v2242 = vpack.c.b16 %v2167, %v2164
      %v2243 = vpack.c.b16 %v2168, %v2165
      %v2244 = vpack.c.b16 %v2172, %v2169
      %v2245 = vpack.c.b16 %v2173, %v2170
      %v2246 = vpack.c.b16 %v2174, %v2171
      %v2247 = vpack.c.b16 %v2178, %v2175
      %v2248 = vpack.c.b16 %v2179, %v2176
      %v2249 = vpack.c.b16 %v2180, %v2177
      %v2250 = vpack.c.b16 %v2184, %v2181
      %v2251 = vpack.c.b16 %v2185, %v2182
      %v2252 = vpack.c.b16 %v2186, %v2183
      %v2253 = vpack.c.b16 %v2190, %v2187
      %v2254 = vpack.c.b16 %v2191, %v2188
      %v2255 = vpack.c.b16 %v2192, %v2189
      %v2256 = vpack.c.b16 %v2196, %v2193
      %v2257 = vpack.c.b16 %v2197, %v2194
      %v2258 = vpack.c.b16 %v2198, %v2195
      %v2259 = vpack.c.b16 %v2202, %v2199
      %v2260 = vpack.c.b16 %v2203, %v2200
      %v2261 = vpack.c.b16 %v2204, %v2201
      %v2262 = vpack.c.b16 %v2208, %v2205
      %v2263 = vpack.c.b16 %v2209, %v2206
      %v2264 = vpack.c.b16 %v2210, %v2207
      %v2265 = vpack.c.b16 %v2214, %v2211
      %v2266 = vpack.c.b16 %v2215, %v2212
      %v2267 = vpack.c.b16 %v2216, %v2213
      %v2268 = vpack.c.b16 %v2220, %v2217
      %v2269 = vpack.c.b16 %v2221, %v2218
      %v2270 = vpack.c.b16 %v2222, %v2219
      %v2367 = vunpack.c.l.b16 %v1180
      %v2368 = vunpack.c.l.b16 %v1181
      %v2369 = vunpack.c.l.b16 %v1182
      %v2370 = vunpack.c.l.b16 %v1183
      %v2371 = vunpack.c.l.b16 %v1184
      %v2372 = vunpack.c.l.b16 %v1185
      %v2373 = vunpack.c.l.b16 %v1186
      %v2374 = vunpack.c.l.b16 %v1187
      %v2375 = vunpack.c.l.b16 %v1188
      %v2376 = vunpack.c.l.b16 %v1189
      %v2377 = vunpack.c.l.b16 %v1190
      %v2378 = vunpack.c.l.b16 %v1191
      %v2379 = vunpack.c.l.b16 %v1192
      %v2380 = vunpack.c.l.b16 %v1193
      %v2381 = vunpack.c.l.b16 %v1194
      %v2382 = vunpack.c.l.b16 %v1195
      %v2383 = vunpack.c.l.b16 %v1196
      %v2384 = vunpack.c.l.b16 %v1197
      %v2385 = vunpack.c.l.b16 %v1198
      %v2386 = vunpack.c.l.b16 %v1199
      %v2387 = vunpack.c.l.b16 %v1200
      %v2388 = vunpack.c.l.b16 %v1201
      %v2389 = vunpack.c.l.b16 %v1202
      %v2390 = vunpack.c.l.b16 %v1203
      %v2391 = vunpack.c.l.b16 %v1204
      %v2392 = vunpack.c.l.b16 %v1205
      %v2393 = vunpack.c.l.b16 %v1206
      %v2394 = vunpack.c.l.b16 %v1207
      %v2395 = vunpack.c.l.b16 %v1208
      %v2396 = vunpack.c.l.b16 %v1209
      %v2397 = vunpack.c.l.b16 %v1210
      %v2398 = vunpack.c.l.b16 %v1211
      %v2399 = vunpack.c.l.b16 %v1212
      %v2400 = vunpack.c.l.b16 %v1213
      %v2401 = vunpack.c.l.b16 %v1214
      %v2402 = vunpack.c.l.b16 %v1215
      %v2403 = vunpack.c.l.b16 %v1216
      %v2404 = vunpack.c.l.b16 %v1217
      %v2405 = vunpack.c.l.b16 %v1218
      %v2406 = vunpack.c.l.b16 %v1219
      %v2407 = vunpack.c.l.b16 %v1220
      %v2408 = vunpack.c.l.b16 %v1221
      %v2409 = vunpack.c.l.b16 %v1222
      %v2410 = vunpack.c.l.b16 %v1223
      %v2411 = vunpack.c.l.b16 %v1224
      %v2412 = vunpack.c.l.b16 %v1225
      %v2413 = vunpack.c.l.b16 %v1226
      %v2414 = vunpack.c.l.b16 %v1227
      %v2415 = vpack.c.b16 %v2368, %v2367
      %v2416 = vpack.c.b16 %v2370, %v2369
      %v2417 = vpack.c.b16 %v2372, %v2371
      %v2418 = vpack.c.b16 %v2374, %v2373
      %v2419 = vpack.c.b16 %v2376, %v2375
      %v2420 = vpack.c.b16 %v2378, %v2377
      %v2421 = vpack.c.b16 %v2380, %v2379
      %v2422 = vpack.c.b16 %v2382, %v2381
      %v2423 = vpack.c.b16 %v2384, %v2383
      %v2424 = vpack.c.b16 %v2386, %v2385
      %v2425 = vpack.c.b16 %v2388, %v2387
      %v2426 = vpack.c.b16 %v2390, %v2389
      %v2427 = vpack.c.b16 %v2392, %v2391
      %v2428 = vpack.c.b16 %v2394, %v2393
      %v2429 = vpack.c.b16 %v2396, %v2395
      %v2430 = vpack.c.b16 %v2398, %v2397
      %v2431 = vpack.c.b16 %v2400, %v2399
      %v2432 = vpack.c.b16 %v2402, %v2401
      %v2433 = vpack.c.b16 %v2404, %v2403
      %v2434 = vpack.c.b16 %v2406, %v2405
      %v2435 = vpack.c.b16 %v2408, %v2407
      %v2436 = vpack.c.b16 %v2410, %v2409
      %v2437 = vpack.c.b16 %v2412, %v2411
      %v2438 = vpack.c.b16 %v2414, %v2413
      %2463 = vmatprep.subr.bf16.mxu0 0
      %2464 = vmatpush1.bf16.msra.mxu0 %v2422
      %2465 = vmatprep.subr.bf16.mxu0 0
      %2466 = vmatpush1.bf16.msra.mxu0 %v2421
      %2467 = vmatprep.subr.bf16.mxu0 0
      %2468 = vmatpush1.bf16.msra.mxu0 %v2420
      %2469 = vmatprep.subr.bf16.mxu0 0
      %2470 = vmatpush1.bf16.msra.mxu0 %v2419
      %2471 = vmatprep.subr.bf16.mxu0 0
      %2472 = vmatpush1.bf16.msra.mxu0 %v2418
      %2473 = vmatprep.subr.bf16.mxu0 0
      %2474 = vmatpush1.bf16.msra.mxu0 %v2417
      %2475 = vmatprep.subr.bf16.mxu0 0
      %2476 = vmatpush1.bf16.msra.mxu0 %v2416
      %2477 = vmatprep.subr.bf16.mxu0 0
      %2478 = vmatpush1.bf16.msra.mxu0 %v2415
      %2479 = vmatprep.subr.bf16.mxu0 0
      %2480 = vmatpush2.bf16.msra.mxu0 %v2430
      %2481 = vmatprep.subr.bf16.mxu0 0
      %2482 = vmatpush2.bf16.msra.mxu0 %v2429
      %2483 = vmatprep.subr.bf16.mxu0 0
      %2484 = vmatpush2.bf16.msra.mxu0 %v2428
      %2485 = vmatprep.subr.bf16.mxu0 0
      %2486 = vmatpush2.bf16.msra.mxu0 %v2427
      %2487 = vmatprep.subr.bf16.mxu0 0
      %2488 = vmatpush2.bf16.msra.mxu0 %v2426
      %2489 = vmatprep.subr.bf16.mxu0 0
      %2490 = vmatpush2.bf16.msra.mxu0 %v2425
      %2491 = vmatprep.subr.bf16.mxu0 0
      %2492 = vmatpush2.bf16.msra.mxu0 %v2424
      %2493 = vmatprep.subr.bf16.mxu0 0
      %2494 = vmatpush2.bf16.msra.mxu0 %v2423
      %2495 = vmatprep.mubr.bf16.mxu0 %v2224
      %2496 = vmatmul.mubr.bf16.gmra.mxu0 %v2223
      %v2497 = vpop.f32.mrf.mxu0
      %v2498 = vadd.f32 %v1937, %v2497
      %v2499 = vpop.f32.mrf.mxu0
      %v2500 = vpop.f32.mrf.mxu0
      %v2501 = vadd.f32 %v1940, %v2500
      %v2502 = vpop.f32.mrf.mxu0
      %2503 = vmatprep.mubr.bf16.mxu0 %v2227
      %2504 = vmatmul.mubr.bf16.gmra.mxu0 %v2226
      %v2505 = vpop.f32.mrf.mxu0
      %v2506 = vadd.f32 %v1945, %v2505
      %v2507 = vpop.f32.mrf.mxu0
      %v2508 = vpop.f32.mrf.mxu0
      %v2509 = vadd.f32 %v1948, %v2508
      %v2510 = vpop.f32.mrf.mxu0
      %2511 = vmatprep.mubr.bf16.mxu0 %v2230
      %2512 = vmatmul.mubr.bf16.gmra.mxu0 %v2229
      %v2513 = vpop.f32.mrf.mxu0
      %v2514 = vadd.f32 %v1953, %v2513
      %v2515 = vpop.f32.mrf.mxu0
      %v2516 = vpop.f32.mrf.mxu0
      %v2517 = vadd.f32 %v1956, %v2516
      %v2518 = vpop.f32.mrf.mxu0
      %2519 = vmatprep.mubr.bf16.mxu0 %v2233
      %2520 = vmatmul.mubr.bf16.gmra.mxu0 %v2232
      %v2521 = vpop.f32.mrf.mxu0
      %v2522 = vadd.f32 %v1961, %v2521
      %v2523 = vpop.f32.mrf.mxu0
      %v2524 = vpop.f32.mrf.mxu0
      %v2525 = vadd.f32 %v1964, %v2524
      %v2526 = vpop.f32.mrf.mxu0
      %2527 = vmatprep.mubr.bf16.mxu0 %v2236
      %2528 = vmatmul.mubr.bf16.gmra.mxu0 %v2235
      %v2529 = vpop.f32.mrf.mxu0
      %v2530 = vadd.f32 %v1969, %v2529
      %v2531 = vpop.f32.mrf.mxu0
      %v2532 = vpop.f32.mrf.mxu0
      %v2533 = vadd.f32 %v1972, %v2532
      %v2534 = vpop.f32.mrf.mxu0
      %2535 = vmatprep.mubr.bf16.mxu0 %v2239
      %2536 = vmatmul.mubr.bf16.gmra.mxu0 %v2238
      %v2537 = vpop.f32.mrf.mxu0
      %v2538 = vadd.f32 %v1977, %v2537
      %v2539 = vpop.f32.mrf.mxu0
      %v2540 = vpop.f32.mrf.mxu0
      %v2541 = vadd.f32 %v1980, %v2540
      %v2542 = vpop.f32.mrf.mxu0
      %2543 = vmatprep.mubr.bf16.mxu0 %v2242
      %2544 = vmatmul.mubr.bf16.gmra.mxu0 %v2241
      %v2545 = vpop.f32.mrf.mxu0
      %v2546 = vadd.f32 %v1985, %v2545
      %v2547 = vpop.f32.mrf.mxu0
      %v2548 = vpop.f32.mrf.mxu0
      %v2549 = vadd.f32 %v1988, %v2548
      %v2550 = vpop.f32.mrf.mxu0
      %2551 = vmatprep.mubr.bf16.mxu0 %v2245
      %2552 = vmatmul.mubr.bf16.gmra.mxu0 %v2244
      %v2553 = vpop.f32.mrf.mxu0
      %v2554 = vadd.f32 %v1993, %v2553
      %v2555 = vpop.f32.mrf.mxu0
      %v2556 = vpop.f32.mrf.mxu0
      %v2557 = vadd.f32 %v1996, %v2556
      %v2558 = vpop.f32.mrf.mxu0
      %2559 = vmatprep.mubr.bf16.mxu0 %v2248
      %2560 = vmatmul.mubr.bf16.gmra.mxu0 %v2247
      %v2561 = vpop.f32.mrf.mxu0
      %v2562 = vadd.f32 %v2001, %v2561
      %v2563 = vpop.f32.mrf.mxu0
      %v2564 = vpop.f32.mrf.mxu0
      %v2565 = vadd.f32 %v2004, %v2564
      %v2566 = vpop.f32.mrf.mxu0
      %2567 = vmatprep.mubr.bf16.mxu0 %v2251
      %2568 = vmatmul.mubr.bf16.gmra.mxu0 %v2250
      %v2569 = vpop.f32.mrf.mxu0
      %v2570 = vadd.f32 %v2009, %v2569
      %v2571 = vpop.f32.mrf.mxu0
      %v2572 = vpop.f32.mrf.mxu0
      %v2573 = vadd.f32 %v2012, %v2572
      %v2574 = vpop.f32.mrf.mxu0
      %2575 = vmatprep.mubr.bf16.mxu0 %v2254
      %2576 = vmatmul.mubr.bf16.gmra.mxu0 %v2253
      %v2577 = vpop.f32.mrf.mxu0
      %v2578 = vadd.f32 %v2017, %v2577
      %v2579 = vpop.f32.mrf.mxu0
      %v2580 = vpop.f32.mrf.mxu0
      %v2581 = vadd.f32 %v2020, %v2580
      %v2582 = vpop.f32.mrf.mxu0
      %2583 = vmatprep.mubr.bf16.mxu0 %v2257
      %2584 = vmatmul.mubr.bf16.gmra.mxu0 %v2256
      %v2585 = vpop.f32.mrf.mxu0
      %v2586 = vadd.f32 %v2025, %v2585
      %v2587 = vpop.f32.mrf.mxu0
      %v2588 = vpop.f32.mrf.mxu0
      %v2589 = vadd.f32 %v2028, %v2588
      %v2590 = vpop.f32.mrf.mxu0
      %2591 = vmatprep.mubr.bf16.mxu0 %v2260
      %2592 = vmatmul.mubr.bf16.gmra.mxu0 %v2259
      %v2593 = vpop.f32.mrf.mxu0
      %v2594 = vadd.f32 %v2033, %v2593
      %v2595 = vpop.f32.mrf.mxu0
      %v2596 = vpop.f32.mrf.mxu0
      %v2597 = vadd.f32 %v2036, %v2596
      %v2598 = vpop.f32.mrf.mxu0
      %2599 = vmatprep.mubr.bf16.mxu0 %v2263
      %2600 = vmatmul.mubr.bf16.gmra.mxu0 %v2262
      %v2601 = vpop.f32.mrf.mxu0
      %v2602 = vadd.f32 %v2041, %v2601
      %v2603 = vpop.f32.mrf.mxu0
      %v2604 = vpop.f32.mrf.mxu0
      %v2605 = vadd.f32 %v2044, %v2604
      %v2606 = vpop.f32.mrf.mxu0
      %2607 = vmatprep.mubr.bf16.mxu0 %v2266
      %2608 = vmatmul.mubr.bf16.gmra.mxu0 %v2265
      %v2609 = vpop.f32.mrf.mxu0
      %v2610 = vadd.f32 %v2049, %v2609
      %v2611 = vpop.f32.mrf.mxu0
      %v2612 = vpop.f32.mrf.mxu0
      %v2613 = vadd.f32 %v2052, %v2612
      %v2614 = vpop.f32.mrf.mxu0
      %2615 = vmatprep.mubr.bf16.mxu0 %v2269
      %2616 = vmatmul.mubr.bf16.gmra.mxu0 %v2268
      %v2617 = vpop.f32.mrf.mxu0
      %v2618 = vadd.f32 %v2057, %v2617
      %v2619 = vpop.f32.mrf.mxu0
      %v2620 = vpop.f32.mrf.mxu0
      %v2621 = vadd.f32 %v2060, %v2620
      %v2622 = vpop.f32.mrf.mxu0
      %2623 = vdwg.mxu0
      %2624 = vmatprep.subr.bf16.mxu0 0
      %2625 = vmatpush1.bf16.msra.mxu0 %v2438
      %2626 = vmatprep.subr.bf16.mxu0 0
      %2627 = vmatpush1.bf16.msra.mxu0 %v2437
      %2628 = vmatprep.subr.bf16.mxu0 0
      %2629 = vmatpush1.bf16.msra.mxu0 %v2436
      %2630 = vmatprep.subr.bf16.mxu0 0
      %2631 = vmatpush1.bf16.msra.mxu0 %v2435
      %2632 = vmatprep.subr.bf16.mxu0 0
      %2633 = vmatpush1.bf16.msra.mxu0 %v2434
      %2634 = vmatprep.subr.bf16.mxu0 0
      %2635 = vmatpush1.bf16.msra.mxu0 %v2433
      %2636 = vmatprep.subr.bf16.mxu0 0
      %2637 = vmatpush1.bf16.msra.mxu0 %v2432
      %2638 = vmatprep.subr.bf16.mxu0 0
      %2639 = vmatpush1.bf16.msra.mxu0 %v2431
      %2640 = vmatprep.subr.bf16.mxu0 0
      %2641 = vmatpush2.bf16.msra.mxu0 0
      %2642 = vmatprep.subr.bf16.mxu0 0
      %2643 = vmatpush2.bf16.msra.mxu0 0
      %2644 = vmatprep.subr.bf16.mxu0 0
      %2645 = vmatpush2.bf16.msra.mxu0 0
      %2646 = vmatprep.subr.bf16.mxu0 0
      %2647 = vmatpush2.bf16.msra.mxu0 0
      %2648 = vmatprep.subr.bf16.mxu0 0
      %2649 = vmatpush2.bf16.msra.mxu0 0
      %2650 = vmatprep.subr.bf16.mxu0 0
      %2651 = vmatpush2.bf16.msra.mxu0 0
      %2652 = vmatprep.subr.bf16.mxu0 0
      %2653 = vmatpush2.bf16.msra.mxu0 0
      %2654 = vmatprep.subr.bf16.mxu0 0
      %2655 = vmatpush2.bf16.msra.mxu0 0
      %2656 = vmatprep.mubr.bf16.mxu0 0
      %2657 = vmatmul.mubr.bf16.gmra.mxu0 %v2225
      %v2658 = vpop.f32.mrf.mxu0
      %v2659 = vadd.f32 %v2498, %v2658
      %v2660 = vpop.f32.mrf.mxu0
      %v2661 = vpop.f32.mrf.mxu0
      %v2662 = vadd.f32 %v2501, %v2661
      %v2663 = vpop.f32.mrf.mxu0
      %2664 = vmatprep.mubr.bf16.mxu0 0
      %2665 = vmatmul.mubr.bf16.gmra.mxu0 %v2228
      %v2666 = vpop.f32.mrf.mxu0
      %v2667 = vadd.f32 %v2506, %v2666
      %v2668 = vpop.f32.mrf.mxu0
      %v2669 = vpop.f32.mrf.mxu0
      %v2670 = vadd.f32 %v2509, %v2669
      %v2671 = vpop.f32.mrf.mxu0
      %2672 = vmatprep.mubr.bf16.mxu0 0
      %2673 = vmatmul.mubr.bf16.gmra.mxu0 %v2231
      %v2674 = vpop.f32.mrf.mxu0
      %v2675 = vadd.f32 %v2514, %v2674
      %v2676 = vpop.f32.mrf.mxu0
      %v2677 = vpop.f32.mrf.mxu0
      %v2678 = vadd.f32 %v2517, %v2677
      %v2679 = vpop.f32.mrf.mxu0
      %2680 = vmatprep.mubr.bf16.mxu0 0
      %2681 = vmatmul.mubr.bf16.gmra.mxu0 %v2234
      %v2682 = vpop.f32.mrf.mxu0
      %v2683 = vadd.f32 %v2522, %v2682
      %v2684 = vpop.f32.mrf.mxu0
      %v2685 = vpop.f32.mrf.mxu0
      %v2686 = vadd.f32 %v2525, %v2685
      %v2687 = vpop.f32.mrf.mxu0
      %2688 = vmatprep.mubr.bf16.mxu0 0
      %2689 = vmatmul.mubr.bf16.gmra.mxu0 %v2237
      %v2690 = vpop.f32.mrf.mxu0
      %v2691 = vadd.f32 %v2530, %v2690
      %v2692 = vpop.f32.mrf.mxu0
      %v2693 = vpop.f32.mrf.mxu0
      %v2694 = vadd.f32 %v2533, %v2693
      %v2695 = vpop.f32.mrf.mxu0
      %2696 = vmatprep.mubr.bf16.mxu0 0
      %2697 = vmatmul.mubr.bf16.gmra.mxu0 %v2240
      %v2698 = vpop.f32.mrf.mxu0
      %v2699 = vadd.f32 %v2538, %v2698
      %v2700 = vpop.f32.mrf.mxu0
      %v2701 = vpop.f32.mrf.mxu0
      %v2702 = vadd.f32 %v2541, %v2701
      %v2703 = vpop.f32.mrf.mxu0
      %2704 = vmatprep.mubr.bf16.mxu0 0
      %2705 = vmatmul.mubr.bf16.gmra.mxu0 %v2243
      %v2706 = vpop.f32.mrf.mxu0
      %v2707 = vadd.f32 %v2546, %v2706
      %v2708 = vpop.f32.mrf.mxu0
      %v2709 = vpop.f32.mrf.mxu0
      %v2710 = vadd.f32 %v2549, %v2709
      %v2711 = vpop.f32.mrf.mxu0
      %2712 = vmatprep.mubr.bf16.mxu0 0
      %2713 = vmatmul.mubr.bf16.gmra.mxu0 %v2246
      %v2714 = vpop.f32.mrf.mxu0
      %v2715 = vadd.f32 %v2554, %v2714
      %v2716 = vpop.f32.mrf.mxu0
      %v2717 = vpop.f32.mrf.mxu0
      %v2718 = vadd.f32 %v2557, %v2717
      %v2719 = vpop.f32.mrf.mxu0
      %2720 = vmatprep.mubr.bf16.mxu0 0
      %2721 = vmatmul.mubr.bf16.gmra.mxu0 %v2249
      %v2722 = vpop.f32.mrf.mxu0
      %v2723 = vadd.f32 %v2562, %v2722
      %v2724 = vpop.f32.mrf.mxu0
      %v2725 = vpop.f32.mrf.mxu0
      %v2726 = vadd.f32 %v2565, %v2725
      %v2727 = vpop.f32.mrf.mxu0
      %2728 = vmatprep.mubr.bf16.mxu0 0
      %2729 = vmatmul.mubr.bf16.gmra.mxu0 %v2252
      %v2730 = vpop.f32.mrf.mxu0
      %v2731 = vadd.f32 %v2570, %v2730
      %v2732 = vpop.f32.mrf.mxu0
      %v2733 = vpop.f32.mrf.mxu0
      %v2734 = vadd.f32 %v2573, %v2733
      %v2735 = vpop.f32.mrf.mxu0
      %2736 = vmatprep.mubr.bf16.mxu0 0
      %2737 = vmatmul.mubr.bf16.gmra.mxu0 %v2255
      %v2738 = vpop.f32.mrf.mxu0
      %v2739 = vadd.f32 %v2578, %v2738
      %v2740 = vpop.f32.mrf.mxu0
      %v2741 = vpop.f32.mrf.mxu0
      %v2742 = vadd.f32 %v2581, %v2741
      %v2743 = vpop.f32.mrf.mxu0
      %2744 = vmatprep.mubr.bf16.mxu0 0
      %2745 = vmatmul.mubr.bf16.gmra.mxu0 %v2258
      %v2746 = vpop.f32.mrf.mxu0
      %v2747 = vadd.f32 %v2586, %v2746
      %v2748 = vpop.f32.mrf.mxu0
      %v2749 = vpop.f32.mrf.mxu0
      %v2750 = vadd.f32 %v2589, %v2749
      %v2751 = vpop.f32.mrf.mxu0
      %2752 = vmatprep.mubr.bf16.mxu0 0
      %2753 = vmatmul.mubr.bf16.gmra.mxu0 %v2261
      %v2754 = vpop.f32.mrf.mxu0
      %v2755 = vadd.f32 %v2594, %v2754
      %v2756 = vpop.f32.mrf.mxu0
      %v2757 = vpop.f32.mrf.mxu0
      %v2758 = vadd.f32 %v2597, %v2757
      %v2759 = vpop.f32.mrf.mxu0
      %2760 = vmatprep.mubr.bf16.mxu0 0
      %2761 = vmatmul.mubr.bf16.gmra.mxu0 %v2264
      %v2762 = vpop.f32.mrf.mxu0
      %v2763 = vadd.f32 %v2602, %v2762
      %v2764 = vpop.f32.mrf.mxu0
      %v2765 = vpop.f32.mrf.mxu0
      %v2766 = vadd.f32 %v2605, %v2765
      %v2767 = vpop.f32.mrf.mxu0
      %2768 = vmatprep.mubr.bf16.mxu0 0
      %2769 = vmatmul.mubr.bf16.gmra.mxu0 %v2267
      %v2770 = vpop.f32.mrf.mxu0
      %v2771 = vadd.f32 %v2610, %v2770
      %v2772 = vpop.f32.mrf.mxu0
      %v2773 = vpop.f32.mrf.mxu0
      %v2774 = vadd.f32 %v2613, %v2773
      %v2775 = vpop.f32.mrf.mxu0
      %2776 = vmatprep.mubr.bf16.mxu0 0
      %2777 = vmatmul.mubr.bf16.gmra.mxu0 %v2270
      %v2778 = vpop.f32.mrf.mxu0
      %v2779 = vadd.f32 %v2618, %v2778
      %v2780 = vpop.f32.mrf.mxu0
      %v2781 = vpop.f32.mrf.mxu0
      %v2782 = vadd.f32 %v2621, %v2781
      %v2783 = vpop.f32.mrf.mxu0
      %2784 = vdwg.mxu0
      %s2785 = scalar_lea.vmem [#allocation2], 48
      %v2786 = vld [vmem:[%s2785] sm:$0xff]
      %v2787 = vld [vmem:[%s2785 + $0x8] sm:$0xf]
      %v2788 = vld [vmem:[%s2785 + $0xc] sm:$0xff]
      %v2789 = vld [vmem:[%s2785 + $0x14] sm:$0xf]
      %v2790 = vld [vmem:[%s2785 + $0x18] sm:$0xff]
      %v2791 = vld [vmem:[%s2785 + $0x20] sm:$0xf]
      %v2792 = vld [vmem:[%s2785 + $0x24] sm:$0xff]
      %v2793 = vld [vmem:[%s2785 + $0x2c] sm:$0xf]
      %v2794 = vld [vmem:[%s2785 + $0x30] sm:$0xff]
      %v2795 = vld [vmem:[%s2785 + $0x38] sm:$0xf]
      %v2796 = vld [vmem:[%s2785 + $0x3c] sm:$0xff]
      %v2797 = vld [vmem:[%s2785 + $0x44] sm:$0xf]
      %v2798 = vld [vmem:[%s2785 + $0x48] sm:$0xff]
      %v2799 = vld [vmem:[%s2785 + $0x50] sm:$0xf]
      %v2800 = vld [vmem:[%s2785 + $0x54] sm:$0xff]
      %v2801 = vld [vmem:[%s2785 + $0x5c] sm:$0xf]
      %v2802 = vld [vmem:[%s2785 + $0x60] sm:$0xff]
      %v2803 = vld [vmem:[%s2785 + $0x68] sm:$0xf]
      %v2804 = vld [vmem:[%s2785 + $0x6c] sm:$0xff]
      %v2805 = vld [vmem:[%s2785 + $0x74] sm:$0xf]
      %v2806 = vld [vmem:[%s2785 + $0x78] sm:$0xff]
      %v2807 = vld [vmem:[%s2785 + $0x80] sm:$0xf]
      %v2808 = vld [vmem:[%s2785 + $0x84] sm:$0xff]
      %v2809 = vld [vmem:[%s2785 + $0x8c] sm:$0xf]
      %v2810 = vld [vmem:[%s2785 + $0x90] sm:$0xff]
      %v2811 = vld [vmem:[%s2785 + $0x98] sm:$0xf]
      %v2812 = vld [vmem:[%s2785 + $0x9c] sm:$0xff]
      %v2813 = vld [vmem:[%s2785 + $0xa4] sm:$0xf]
      %v2814 = vld [vmem:[%s2785 + $0xa8] sm:$0xff]
      %v2815 = vld [vmem:[%s2785 + $0xb0] sm:$0xf]
      %v2816 = vld [vmem:[%s2785 + $0xb4] sm:$0xff]
      %v2817 = vld [vmem:[%s2785 + $0xbc] sm:$0xf]
      %v2818 = vld [vmem:[%s2785 + $0xc0] sm:$0xff]
      %v2819 = vld [vmem:[%s2785 + $0xc8] sm:$0xf]
      %v2820 = vld [vmem:[%s2785 + $0xcc] sm:$0xff]
      %v2821 = vld [vmem:[%s2785 + $0xd4] sm:$0xf]
      %v2822 = vld [vmem:[%s2785 + $0xd8] sm:$0xff]
      %v2823 = vld [vmem:[%s2785 + $0xe0] sm:$0xf]
      %v2824 = vld [vmem:[%s2785 + $0xe4] sm:$0xff]
      %v2825 = vld [vmem:[%s2785 + $0xec] sm:$0xf]
      %v2826 = vld [vmem:[%s2785 + $0xf0] sm:$0xff]
      %v2827 = vld [vmem:[%s2785 + $0xf8] sm:$0xf]
      %v2828 = vld [vmem:[%s2785 + $0xfc] sm:$0xff]
      %v2829 = vld [vmem:[%s2785 + $0x104] sm:$0xf]
      %v2830 = vld [vmem:[%s2785 + $0x108] sm:$0xff]
      %v2831 = vld [vmem:[%s2785 + $0x110] sm:$0xf]
      %v2832 = vld [vmem:[%s2785 + $0x114] sm:$0xff]
      %v2833 = vld [vmem:[%s2785 + $0x11c] sm:$0xf]
      %v2834 = vld [vmem:[%s2785 + $0x120] sm:$0xff]
      %v2835 = vld [vmem:[%s2785 + $0x128] sm:$0xf]
      %v2836 = vld [vmem:[%s2785 + $0x12c] sm:$0xff]
      %v2837 = vld [vmem:[%s2785 + $0x134] sm:$0xf]
      %v2838 = vld [vmem:[%s2785 + $0x138] sm:$0xff]
      %v2839 = vld [vmem:[%s2785 + $0x140] sm:$0xf]
      %v2840 = vld [vmem:[%s2785 + $0x144] sm:$0xff]
      %v2841 = vld [vmem:[%s2785 + $0x14c] sm:$0xf]
      %v2842 = vld [vmem:[%s2785 + $0x150] sm:$0xff]
      %v2843 = vld [vmem:[%s2785 + $0x158] sm:$0xf]
      %v2844 = vld [vmem:[%s2785 + $0x15c] sm:$0xff]
      %v2845 = vld [vmem:[%s2785 + $0x164] sm:$0xf]
      %v2846 = vld [vmem:[%s2785 + $0x168] sm:$0xff]
      %v2847 = vld [vmem:[%s2785 + $0x170] sm:$0xf]
      %v2848 = vld [vmem:[%s2785 + $0x174] sm:$0xff]
      %v2849 = vld [vmem:[%s2785 + $0x17c] sm:$0xf]
      %s2850 = scalar_lea.vmem %s3, 384
      %v2851 = vld [vmem:[%s2850] sm:$0xf]
      %v2852 = vld [vmem:[%s2850 + $0x4] sm:$0xf]
      %v2853 = vld [vmem:[%s2850 + $0x8] sm:$0xf]
      %v2854 = vld [vmem:[%s2850 + $0xc] sm:$0xf]
      %v2855 = vld [vmem:[%s2850 + $0x10] sm:$0xf]
      %v2856 = vld [vmem:[%s2850 + $0x14] sm:$0xf]
      %v2857 = vld [vmem:[%s2850 + $0x18] sm:$0xf]
      %v2858 = vld [vmem:[%s2850 + $0x1c] sm:$0xf]
      %v2859 = vld [vmem:[%s2850 + $0x20] sm:$0xf]
      %v2860 = vld [vmem:[%s2850 + $0x24] sm:$0xf]
      %v2861 = vld [vmem:[%s2850 + $0x28] sm:$0xf]
      %v2862 = vld [vmem:[%s2850 + $0x2c] sm:$0xf]
      %v2863 = vld [vmem:[%s2850 + $0x30] sm:$0xf]
      %v2864 = vld [vmem:[%s2850 + $0x34] sm:$0xf]
      %v2865 = vld [vmem:[%s2850 + $0x38] sm:$0xf]
      %v2866 = vld [vmem:[%s2850 + $0x3c] sm:$0xf]
      %v2867 = vld [vmem:[%s2850 + $0x40] sm:$0xf]
      %v2868 = vld [vmem:[%s2850 + $0x44] sm:$0xf]
      %v2869 = vld [vmem:[%s2850 + $0x48] sm:$0xf]
      %v2870 = vld [vmem:[%s2850 + $0x4c] sm:$0xf]
      %v2871 = vld [vmem:[%s2850 + $0x50] sm:$0xf]
      %v2872 = vld [vmem:[%s2850 + $0x54] sm:$0xf]
      %v2873 = vld [vmem:[%s2850 + $0x58] sm:$0xf]
      %v2874 = vld [vmem:[%s2850 + $0x5c] sm:$0xf]
      %v2875 = vld [vmem:[%s2850 + $0x60] sm:$0xf]
      %v2876 = vld [vmem:[%s2850 + $0x64] sm:$0xf]
      %v2877 = vld [vmem:[%s2850 + $0x68] sm:$0xf]
      %v2878 = vld [vmem:[%s2850 + $0x6c] sm:$0xf]
      %v2879 = vld [vmem:[%s2850 + $0x70] sm:$0xf]
      %v2880 = vld [vmem:[%s2850 + $0x74] sm:$0xf]
      %v2881 = vld [vmem:[%s2850 + $0x78] sm:$0xf]
      %v2882 = vld [vmem:[%s2850 + $0x7c] sm:$0xf]
      %v2883 = vld [vmem:[%s2850 + $0x80] sm:$0xf]
      %v2884 = vld [vmem:[%s2850 + $0x84] sm:$0xf]
      %v2885 = vld [vmem:[%s2850 + $0x88] sm:$0xf]
      %v2886 = vld [vmem:[%s2850 + $0x8c] sm:$0xf]
      %v2887 = vld [vmem:[%s2850 + $0x90] sm:$0xf]
      %v2888 = vld [vmem:[%s2850 + $0x94] sm:$0xf]
      %v2889 = vld [vmem:[%s2850 + $0x98] sm:$0xf]
      %v2890 = vld [vmem:[%s2850 + $0x9c] sm:$0xf]
      %v2891 = vld [vmem:[%s2850 + $0xa0] sm:$0xf]
      %v2892 = vld [vmem:[%s2850 + $0xa4] sm:$0xf]
      %v2893 = vld [vmem:[%s2850 + $0xa8] sm:$0xf]
      %v2894 = vld [vmem:[%s2850 + $0xac] sm:$0xf]
      %v2895 = vld [vmem:[%s2850 + $0xb0] sm:$0xf]
      %v2896 = vld [vmem:[%s2850 + $0xb4] sm:$0xf]
      %v2897 = vld [vmem:[%s2850 + $0xb8] sm:$0xf]
      %v2898 = vld [vmem:[%s2850 + $0xbc] sm:$0xf]
      %v2963 = vunpack.c.l.b16 %v2786
      %v2964 = vunpack.c.h.b16 %v2786
      %v2965 = vunpack.c.l.b16 %v2787
      %v2966 = vunpack.c.l.b16 %v2788
      %v2967 = vunpack.c.h.b16 %v2788
      %v2968 = vunpack.c.l.b16 %v2789
      %v2969 = vunpack.c.l.b16 %v2790
      %v2970 = vunpack.c.h.b16 %v2790
      %v2971 = vunpack.c.l.b16 %v2791
      %v2972 = vunpack.c.l.b16 %v2792
      %v2973 = vunpack.c.h.b16 %v2792
      %v2974 = vunpack.c.l.b16 %v2793
      %v2975 = vunpack.c.l.b16 %v2794
      %v2976 = vunpack.c.h.b16 %v2794
      %v2977 = vunpack.c.l.b16 %v2795
      %v2978 = vunpack.c.l.b16 %v2796
      %v2979 = vunpack.c.h.b16 %v2796
      %v2980 = vunpack.c.l.b16 %v2797
      %v2981 = vunpack.c.l.b16 %v2798
      %v2982 = vunpack.c.h.b16 %v2798
      %v2983 = vunpack.c.l.b16 %v2799
      %v2984 = vunpack.c.l.b16 %v2800
      %v2985 = vunpack.c.h.b16 %v2800
      %v2986 = vunpack.c.l.b16 %v2801
      %v2987 = vunpack.c.l.b16 %v2802
      %v2988 = vunpack.c.h.b16 %v2802
      %v2989 = vunpack.c.l.b16 %v2803
      %v2990 = vunpack.c.l.b16 %v2804
      %v2991 = vunpack.c.h.b16 %v2804
      %v2992 = vunpack.c.l.b16 %v2805
      %v2993 = vunpack.c.l.b16 %v2806
      %v2994 = vunpack.c.h.b16 %v2806
      %v2995 = vunpack.c.l.b16 %v2807
      %v2996 = vunpack.c.l.b16 %v2808
      %v2997 = vunpack.c.h.b16 %v2808
      %v2998 = vunpack.c.l.b16 %v2809
      %v2999 = vunpack.c.l.b16 %v2810
      %v3000 = vunpack.c.h.b16 %v2810
      %v3001 = vunpack.c.l.b16 %v2811
      %v3002 = vunpack.c.l.b16 %v2812
      %v3003 = vunpack.c.h.b16 %v2812
      %v3004 = vunpack.c.l.b16 %v2813
      %v3005 = vunpack.c.l.b16 %v2814
      %v3006 = vunpack.c.h.b16 %v2814
      %v3007 = vunpack.c.l.b16 %v2815
      %v3008 = vunpack.c.l.b16 %v2816
      %v3009 = vunpack.c.h.b16 %v2816
      %v3010 = vunpack.c.l.b16 %v2817
      %v3011 = vunpack.c.l.b16 %v2818
      %v3012 = vunpack.c.h.b16 %v2818
      %v3013 = vunpack.c.l.b16 %v2819
      %v3014 = vunpack.c.l.b16 %v2820
      %v3015 = vunpack.c.h.b16 %v2820
      %v3016 = vunpack.c.l.b16 %v2821
      %v3017 = vunpack.c.l.b16 %v2822
      %v3018 = vunpack.c.h.b16 %v2822
      %v3019 = vunpack.c.l.b16 %v2823
      %v3020 = vunpack.c.l.b16 %v2824
      %v3021 = vunpack.c.h.b16 %v2824
      %v3022 = vunpack.c.l.b16 %v2825
      %v3023 = vunpack.c.l.b16 %v2826
      %v3024 = vunpack.c.h.b16 %v2826
      %v3025 = vunpack.c.l.b16 %v2827
      %v3026 = vunpack.c.l.b16 %v2828
      %v3027 = vunpack.c.h.b16 %v2828
      %v3028 = vunpack.c.l.b16 %v2829
      %v3029 = vunpack.c.l.b16 %v2830
      %v3030 = vunpack.c.h.b16 %v2830
      %v3031 = vunpack.c.l.b16 %v2831
      %v3032 = vunpack.c.l.b16 %v2832
      %v3033 = vunpack.c.h.b16 %v2832
      %v3034 = vunpack.c.l.b16 %v2833
      %v3035 = vunpack.c.l.b16 %v2834
      %v3036 = vunpack.c.h.b16 %v2834
      %v3037 = vunpack.c.l.b16 %v2835
      %v3038 = vunpack.c.l.b16 %v2836
      %v3039 = vunpack.c.h.b16 %v2836
      %v3040 = vunpack.c.l.b16 %v2837
      %v3041 = vunpack.c.l.b16 %v2838
      %v3042 = vunpack.c.h.b16 %v2838
      %v3043 = vunpack.c.l.b16 %v2839
      %v3044 = vunpack.c.l.b16 %v2840
      %v3045 = vunpack.c.h.b16 %v2840
      %v3046 = vunpack.c.l.b16 %v2841
      %v3047 = vunpack.c.l.b16 %v2842
      %v3048 = vunpack.c.h.b16 %v2842
      %v3049 = vunpack.c.l.b16 %v2843
      %v3050 = vunpack.c.l.b16 %v2844
      %v3051 = vunpack.c.h.b16 %v2844
      %v3052 = vunpack.c.l.b16 %v2845
      %v3053 = vunpack.c.l.b16 %v2846
      %v3054 = vunpack.c.h.b16 %v2846
      %v3055 = vunpack.c.l.b16 %v2847
      %v3056 = vunpack.c.l.b16 %v2848
      %v3057 = vunpack.c.h.b16 %v2848
      %v3058 = vunpack.c.l.b16 %v2849
      %v3059 = vpack.c.b16 %v2966, %v2963
      %v3060 = vpack.c.b16 %v2967, %v2964
      %v3061 = vpack.c.b16 %v2968, %v2965
      %v3062 = vpack.c.b16 %v2972, %v2969
      %v3063 = vpack.c.b16 %v2973, %v2970
      %v3064 = vpack.c.b16 %v2974, %v2971
      %v3065 = vpack.c.b16 %v2978, %v2975
      %v3066 = vpack.c.b16 %v2979, %v2976
      %v3067 = vpack.c.b16 %v2980, %v2977
      %v3068 = vpack.c.b16 %v2984, %v2981
      %v3069 = vpack.c.b16 %v2985, %v2982
      %v3070 = vpack.c.b16 %v2986, %v2983
      %v3071 = vpack.c.b16 %v2990, %v2987
      %v3072 = vpack.c.b16 %v2991, %v2988
      %v3073 = vpack.c.b16 %v2992, %v2989
      %v3074 = vpack.c.b16 %v2996, %v2993
      %v3075 = vpack.c.b16 %v2997, %v2994
      %v3076 = vpack.c.b16 %v2998, %v2995
      %v3077 = vpack.c.b16 %v3002, %v2999
      %v3078 = vpack.c.b16 %v3003, %v3000
      %v3079 = vpack.c.b16 %v3004, %v3001
      %v3080 = vpack.c.b16 %v3008, %v3005
      %v3081 = vpack.c.b16 %v3009, %v3006
      %v3082 = vpack.c.b16 %v3010, %v3007
      %v3083 = vpack.c.b16 %v3014, %v3011
      %v3084 = vpack.c.b16 %v3015, %v3012
      %v3085 = vpack.c.b16 %v3016, %v3013
      %v3086 = vpack.c.b16 %v3020, %v3017
      %v3087 = vpack.c.b16 %v3021, %v3018
      %v3088 = vpack.c.b16 %v3022, %v3019
      %v3089 = vpack.c.b16 %v3026, %v3023
      %v3090 = vpack.c.b16 %v3027, %v3024
      %v3091 = vpack.c.b16 %v3028, %v3025
      %v3092 = vpack.c.b16 %v3032, %v3029
      %v3093 = vpack.c.b16 %v3033, %v3030
      %v3094 = vpack.c.b16 %v3034, %v3031
      %v3095 = vpack.c.b16 %v3038, %v3035
      %v3096 = vpack.c.b16 %v3039, %v3036
      %v3097 = vpack.c.b16 %v3040, %v3037
      %v3098 = vpack.c.b16 %v3044, %v3041
      %v3099 = vpack.c.b16 %v3045, %v3042
      %v3100 = vpack.c.b16 %v3046, %v3043
      %v3101 = vpack.c.b16 %v3050, %v3047
      %v3102 = vpack.c.b16 %v3051, %v3048
      %v3103 = vpack.c.b16 %v3052, %v3049
      %v3104 = vpack.c.b16 %v3056, %v3053
      %v3105 = vpack.c.b16 %v3057, %v3054
      %v3106 = vpack.c.b16 %v3058, %v3055
      %v3203 = vunpack.c.l.b16 %v2851
      %v3204 = vunpack.c.l.b16 %v2852
      %v3205 = vunpack.c.l.b16 %v2853
      %v3206 = vunpack.c.l.b16 %v2854
      %v3207 = vunpack.c.l.b16 %v2855
      %v3208 = vunpack.c.l.b16 %v2856
      %v3209 = vunpack.c.l.b16 %v2857
      %v3210 = vunpack.c.l.b16 %v2858
      %v3211 = vunpack.c.l.b16 %v2859
      %v3212 = vunpack.c.l.b16 %v2860
      %v3213 = vunpack.c.l.b16 %v2861
      %v3214 = vunpack.c.l.b16 %v2862
      %v3215 = vunpack.c.l.b16 %v2863
      %v3216 = vunpack.c.l.b16 %v2864
      %v3217 = vunpack.c.l.b16 %v2865
      %v3218 = vunpack.c.l.b16 %v2866
      %v3219 = vunpack.c.l.b16 %v2867
      %v3220 = vunpack.c.l.b16 %v2868
      %v3221 = vunpack.c.l.b16 %v2869
      %v3222 = vunpack.c.l.b16 %v2870
      %v3223 = vunpack.c.l.b16 %v2871
      %v3224 = vunpack.c.l.b16 %v2872
      %v3225 = vunpack.c.l.b16 %v2873
      %v3226 = vunpack.c.l.b16 %v2874
      %v3227 = vunpack.c.l.b16 %v2875
      %v3228 = vunpack.c.l.b16 %v2876
      %v3229 = vunpack.c.l.b16 %v2877
      %v3230 = vunpack.c.l.b16 %v2878
      %v3231 = vunpack.c.l.b16 %v2879
      %v3232 = vunpack.c.l.b16 %v2880
      %v3233 = vunpack.c.l.b16 %v2881
      %v3234 = vunpack.c.l.b16 %v2882
      %v3235 = vunpack.c.l.b16 %v2883
      %v3236 = vunpack.c.l.b16 %v2884
      %v3237 = vunpack.c.l.b16 %v2885
      %v3238 = vunpack.c.l.b16 %v2886
      %v3239 = vunpack.c.l.b16 %v2887
      %v3240 = vunpack.c.l.b16 %v2888
      %v3241 = vunpack.c.l.b16 %v2889
      %v3242 = vunpack.c.l.b16 %v2890
      %v3243 = vunpack.c.l.b16 %v2891
      %v3244 = vunpack.c.l.b16 %v2892
      %v3245 = vunpack.c.l.b16 %v2893
      %v3246 = vunpack.c.l.b16 %v2894
      %v3247 = vunpack.c.l.b16 %v2895
      %v3248 = vunpack.c.l.b16 %v2896
      %v3249 = vunpack.c.l.b16 %v2897
      %v3250 = vunpack.c.l.b16 %v2898
      %v3251 = vpack.c.b16 %v3204, %v3203
      %v3252 = vpack.c.b16 %v3206, %v3205
      %v3253 = vpack.c.b16 %v3208, %v3207
      %v3254 = vpack.c.b16 %v3210, %v3209
      %v3255 = vpack.c.b16 %v3212, %v3211
      %v3256 = vpack.c.b16 %v3214, %v3213
      %v3257 = vpack.c.b16 %v3216, %v3215
      %v3258 = vpack.c.b16 %v3218, %v3217
      %v3259 = vpack.c.b16 %v3220, %v3219
      %v3260 = vpack.c.b16 %v3222, %v3221
      %v3261 = vpack.c.b16 %v3224, %v3223
      %v3262 = vpack.c.b16 %v3226, %v3225
      %v3263 = vpack.c.b16 %v3228, %v3227
      %v3264 = vpack.c.b16 %v3230, %v3229
      %v3265 = vpack.c.b16 %v3232, %v3231
      %v3266 = vpack.c.b16 %v3234, %v3233
      %v3267 = vpack.c.b16 %v3236, %v3235
      %v3268 = vpack.c.b16 %v3238, %v3237
      %v3269 = vpack.c.b16 %v3240, %v3239
      %v3270 = vpack.c.b16 %v3242, %v3241
      %v3271 = vpack.c.b16 %v3244, %v3243
      %v3272 = vpack.c.b16 %v3246, %v3245
      %v3273 = vpack.c.b16 %v3248, %v3247
      %v3274 = vpack.c.b16 %v3250, %v3249
      %3299 = vmatprep.subr.bf16.mxu0 0
      %3300 = vmatpush1.bf16.msra.mxu0 %v3258
      %3301 = vmatprep.subr.bf16.mxu0 0
      %3302 = vmatpush1.bf16.msra.mxu0 %v3257
      %3303 = vmatprep.subr.bf16.mxu0 0
      %3304 = vmatpush1.bf16.msra.mxu0 %v3256
      %3305 = vmatprep.subr.bf16.mxu0 0
      %3306 = vmatpush1.bf16.msra.mxu0 %v3255
      %3307 = vmatprep.subr.bf16.mxu0 0
      %3308 = vmatpush1.bf16.msra.mxu0 %v3254
      %3309 = vmatprep.subr.bf16.mxu0 0
      %3310 = vmatpush1.bf16.msra.mxu0 %v3253
      %3311 = vmatprep.subr.bf16.mxu0 0
      %3312 = vmatpush1.bf16.msra.mxu0 %v3252
      %3313 = vmatprep.subr.bf16.mxu0 0
      %3314 = vmatpush1.bf16.msra.mxu0 %v3251
      %3315 = vmatprep.subr.bf16.mxu0 0
      %3316 = vmatpush2.bf16.msra.mxu0 %v3266
      %3317 = vmatprep.subr.bf16.mxu0 0
      %3318 = vmatpush2.bf16.msra.mxu0 %v3265
      %3319 = vmatprep.subr.bf16.mxu0 0
      %3320 = vmatpush2.bf16.msra.mxu0 %v3264
      %3321 = vmatprep.subr.bf16.mxu0 0
      %3322 = vmatpush2.bf16.msra.mxu0 %v3263
      %3323 = vmatprep.subr.bf16.mxu0 0
      %3324 = vmatpush2.bf16.msra.mxu0 %v3262
      %3325 = vmatprep.subr.bf16.mxu0 0
      %3326 = vmatpush2.bf16.msra.mxu0 %v3261
      %3327 = vmatprep.subr.bf16.mxu0 0
      %3328 = vmatpush2.bf16.msra.mxu0 %v3260
      %3329 = vmatprep.subr.bf16.mxu0 0
      %3330 = vmatpush2.bf16.msra.mxu0 %v3259
      %3331 = vmatprep.mubr.bf16.mxu0 %v3060
      %3332 = vmatmul.mubr.bf16.gmra.mxu0 %v3059
      %v3333 = vpop.f32.mrf.mxu0
      %v3334 = vadd.f32 0.0, %v3333
      %v3335 = vpop.f32.mrf.mxu0
      %v3336 = vpop.f32.mrf.mxu0
      %v3337 = vadd.f32 0.0, %v3336
      %v3338 = vpop.f32.mrf.mxu0
      %3339 = vmatprep.mubr.bf16.mxu0 %v3063
      %3340 = vmatmul.mubr.bf16.gmra.mxu0 %v3062
      %v3341 = vpop.f32.mrf.mxu0
      %v3342 = vadd.f32 0.0, %v3341
      %v3343 = vpop.f32.mrf.mxu0
      %v3344 = vpop.f32.mrf.mxu0
      %v3345 = vadd.f32 0.0, %v3344
      %v3346 = vpop.f32.mrf.mxu0
      %3347 = vmatprep.mubr.bf16.mxu0 %v3066
      %3348 = vmatmul.mubr.bf16.gmra.mxu0 %v3065
      %v3349 = vpop.f32.mrf.mxu0
      %v3350 = vadd.f32 0.0, %v3349
      %v3351 = vpop.f32.mrf.mxu0
      %v3352 = vpop.f32.mrf.mxu0
      %v3353 = vadd.f32 0.0, %v3352
      %v3354 = vpop.f32.mrf.mxu0
      %3355 = vmatprep.mubr.bf16.mxu0 %v3069
      %3356 = vmatmul.mubr.bf16.gmra.mxu0 %v3068
      %v3357 = vpop.f32.mrf.mxu0
      %v3358 = vadd.f32 0.0, %v3357
      %v3359 = vpop.f32.mrf.mxu0
      %v3360 = vpop.f32.mrf.mxu0
      %v3361 = vadd.f32 0.0, %v3360
      %v3362 = vpop.f32.mrf.mxu0
      %3363 = vmatprep.mubr.bf16.mxu0 %v3072
      %3364 = vmatmul.mubr.bf16.gmra.mxu0 %v3071
      %v3365 = vpop.f32.mrf.mxu0
      %v3366 = vadd.f32 0.0, %v3365
      %v3367 = vpop.f32.mrf.mxu0
      %v3368 = vpop.f32.mrf.mxu0
      %v3369 = vadd.f32 0.0, %v3368
      %v3370 = vpop.f32.mrf.mxu0
      %3371 = vmatprep.mubr.bf16.mxu0 %v3075
      %3372 = vmatmul.mubr.bf16.gmra.mxu0 %v3074
      %v3373 = vpop.f32.mrf.mxu0
      %v3374 = vadd.f32 0.0, %v3373
      %v3375 = vpop.f32.mrf.mxu0
      %v3376 = vpop.f32.mrf.mxu0
      %v3377 = vadd.f32 0.0, %v3376
      %v3378 = vpop.f32.mrf.mxu0
      %3379 = vmatprep.mubr.bf16.mxu0 %v3078
      %3380 = vmatmul.mubr.bf16.gmra.mxu0 %v3077
      %v3381 = vpop.f32.mrf.mxu0
      %v3382 = vadd.f32 0.0, %v3381
      %v3383 = vpop.f32.mrf.mxu0
      %v3384 = vpop.f32.mrf.mxu0
      %v3385 = vadd.f32 0.0, %v3384
      %v3386 = vpop.f32.mrf.mxu0
      %3387 = vmatprep.mubr.bf16.mxu0 %v3081
      %3388 = vmatmul.mubr.bf16.gmra.mxu0 %v3080
      %v3389 = vpop.f32.mrf.mxu0
      %v3390 = vadd.f32 0.0, %v3389
      %v3391 = vpop.f32.mrf.mxu0
      %v3392 = vpop.f32.mrf.mxu0
      %v3393 = vadd.f32 0.0, %v3392
      %v3394 = vpop.f32.mrf.mxu0
      %3395 = vmatprep.mubr.bf16.mxu0 %v3084
      %3396 = vmatmul.mubr.bf16.gmra.mxu0 %v3083
      %v3397 = vpop.f32.mrf.mxu0
      %v3398 = vadd.f32 0.0, %v3397
      %v3399 = vpop.f32.mrf.mxu0
      %v3400 = vpop.f32.mrf.mxu0
      %v3401 = vadd.f32 0.0, %v3400
      %v3402 = vpop.f32.mrf.mxu0
      %3403 = vmatprep.mubr.bf16.mxu0 %v3087
      %3404 = vmatmul.mubr.bf16.gmra.mxu0 %v3086
      %v3405 = vpop.f32.mrf.mxu0
      %v3406 = vadd.f32 0.0, %v3405
      %v3407 = vpop.f32.mrf.mxu0
      %v3408 = vpop.f32.mrf.mxu0
      %v3409 = vadd.f32 0.0, %v3408
      %v3410 = vpop.f32.mrf.mxu0
      %3411 = vmatprep.mubr.bf16.mxu0 %v3090
      %3412 = vmatmul.mubr.bf16.gmra.mxu0 %v3089
      %v3413 = vpop.f32.mrf.mxu0
      %v3414 = vadd.f32 0.0, %v3413
      %v3415 = vpop.f32.mrf.mxu0
      %v3416 = vpop.f32.mrf.mxu0
      %v3417 = vadd.f32 0.0, %v3416
      %v3418 = vpop.f32.mrf.mxu0
      %3419 = vmatprep.mubr.bf16.mxu0 %v3093
      %3420 = vmatmul.mubr.bf16.gmra.mxu0 %v3092
      %v3421 = vpop.f32.mrf.mxu0
      %v3422 = vadd.f32 0.0, %v3421
      %v3423 = vpop.f32.mrf.mxu0
      %v3424 = vpop.f32.mrf.mxu0
      %v3425 = vadd.f32 0.0, %v3424
      %v3426 = vpop.f32.mrf.mxu0
      %3427 = vmatprep.mubr.bf16.mxu0 %v3096
      %3428 = vmatmul.mubr.bf16.gmra.mxu0 %v3095
      %v3429 = vpop.f32.mrf.mxu0
      %v3430 = vadd.f32 0.0, %v3429
      %v3431 = vpop.f32.mrf.mxu0
      %v3432 = vpop.f32.mrf.mxu0
      %v3433 = vadd.f32 0.0, %v3432
      %v3434 = vpop.f32.mrf.mxu0
      %3435 = vmatprep.mubr.bf16.mxu0 %v3099
      %3436 = vmatmul.mubr.bf16.gmra.mxu0 %v3098
      %v3437 = vpop.f32.mrf.mxu0
      %v3438 = vadd.f32 0.0, %v3437
      %v3439 = vpop.f32.mrf.mxu0
      %v3440 = vpop.f32.mrf.mxu0
      %v3441 = vadd.f32 0.0, %v3440
      %v3442 = vpop.f32.mrf.mxu0
      %3443 = vmatprep.mubr.bf16.mxu0 %v3102
      %3444 = vmatmul.mubr.bf16.gmra.mxu0 %v3101
      %v3445 = vpop.f32.mrf.mxu0
      %v3446 = vadd.f32 0.0, %v3445
      %v3447 = vpop.f32.mrf.mxu0
      %v3448 = vpop.f32.mrf.mxu0
      %v3449 = vadd.f32 0.0, %v3448
      %v3450 = vpop.f32.mrf.mxu0
      %3451 = vmatprep.mubr.bf16.mxu0 %v3105
      %3452 = vmatmul.mubr.bf16.gmra.mxu0 %v3104
      %v3453 = vpop.f32.mrf.mxu0
      %v3454 = vadd.f32 0.0, %v3453
      %v3455 = vpop.f32.mrf.mxu0
      %v3456 = vpop.f32.mrf.mxu0
      %v3457 = vadd.f32 0.0, %v3456
      %v3458 = vpop.f32.mrf.mxu0
      %3459 = vdwg.mxu0
      %3460 = vmatprep.subr.bf16.mxu0 0
      %3461 = vmatpush1.bf16.msra.mxu0 %v3274
      %3462 = vmatprep.subr.bf16.mxu0 0
      %3463 = vmatpush1.bf16.msra.mxu0 %v3273
      %3464 = vmatprep.subr.bf16.mxu0 0
      %3465 = vmatpush1.bf16.msra.mxu0 %v3272
      %3466 = vmatprep.subr.bf16.mxu0 0
      %3467 = vmatpush1.bf16.msra.mxu0 %v3271
      %3468 = vmatprep.subr.bf16.mxu0 0
      %3469 = vmatpush1.bf16.msra.mxu0 %v3270
      %3470 = vmatprep.subr.bf16.mxu0 0
      %3471 = vmatpush1.bf16.msra.mxu0 %v3269
      %3472 = vmatprep.subr.bf16.mxu0 0
      %3473 = vmatpush1.bf16.msra.mxu0 %v3268
      %3474 = vmatprep.subr.bf16.mxu0 0
      %3475 = vmatpush1.bf16.msra.mxu0 %v3267
      %3476 = vmatprep.subr.bf16.mxu0 0
      %3477 = vmatpush2.bf16.msra.mxu0 0
      %3478 = vmatprep.subr.bf16.mxu0 0
      %3479 = vmatpush2.bf16.msra.mxu0 0
      %3480 = vmatprep.subr.bf16.mxu0 0
      %3481 = vmatpush2.bf16.msra.mxu0 0
      %3482 = vmatprep.subr.bf16.mxu0 0
      %3483 = vmatpush2.bf16.msra.mxu0 0
      %3484 = vmatprep.subr.bf16.mxu0 0
      %3485 = vmatpush2.bf16.msra.mxu0 0
      %3486 = vmatprep.subr.bf16.mxu0 0
      %3487 = vmatpush2.bf16.msra.mxu0 0
      %3488 = vmatprep.subr.bf16.mxu0 0
      %3489 = vmatpush2.bf16.msra.mxu0 0
      %3490 = vmatprep.subr.bf16.mxu0 0
      %3491 = vmatpush2.bf16.msra.mxu0 0
      %3492 = vmatprep.mubr.bf16.mxu0 0
      %3493 = vmatmul.mubr.bf16.gmra.mxu0 %v3061
      %v3494 = vpop.f32.mrf.mxu0
      %v3495 = vadd.f32 %v3334, %v3494
      %v3496 = vpop.f32.mrf.mxu0
      %v3497 = vpop.f32.mrf.mxu0
      %v3498 = vadd.f32 %v3337, %v3497
      %v3499 = vpop.f32.mrf.mxu0
      %3500 = vmatprep.mubr.bf16.mxu0 0
      %3501 = vmatmul.mubr.bf16.gmra.mxu0 %v3064
      %v3502 = vpop.f32.mrf.mxu0
      %v3503 = vadd.f32 %v3342, %v3502
      %v3504 = vpop.f32.mrf.mxu0
      %v3505 = vpop.f32.mrf.mxu0
      %v3506 = vadd.f32 %v3345, %v3505
      %v3507 = vpop.f32.mrf.mxu0
      %3508 = vmatprep.mubr.bf16.mxu0 0
      %3509 = vmatmul.mubr.bf16.gmra.mxu0 %v3067
      %v3510 = vpop.f32.mrf.mxu0
      %v3511 = vadd.f32 %v3350, %v3510
      %v3512 = vpop.f32.mrf.mxu0
      %v3513 = vpop.f32.mrf.mxu0
      %v3514 = vadd.f32 %v3353, %v3513
      %v3515 = vpop.f32.mrf.mxu0
      %3516 = vmatprep.mubr.bf16.mxu0 0
      %3517 = vmatmul.mubr.bf16.gmra.mxu0 %v3070
      %v3518 = vpop.f32.mrf.mxu0
      %v3519 = vadd.f32 %v3358, %v3518
      %v3520 = vpop.f32.mrf.mxu0
      %v3521 = vpop.f32.mrf.mxu0
      %v3522 = vadd.f32 %v3361, %v3521
      %v3523 = vpop.f32.mrf.mxu0
      %3524 = vmatprep.mubr.bf16.mxu0 0
      %3525 = vmatmul.mubr.bf16.gmra.mxu0 %v3073
      %v3526 = vpop.f32.mrf.mxu0
      %v3527 = vadd.f32 %v3366, %v3526
      %v3528 = vpop.f32.mrf.mxu0
      %v3529 = vpop.f32.mrf.mxu0
      %v3530 = vadd.f32 %v3369, %v3529
      %v3531 = vpop.f32.mrf.mxu0
      %3532 = vmatprep.mubr.bf16.mxu0 0
      %3533 = vmatmul.mubr.bf16.gmra.mxu0 %v3076
      %v3534 = vpop.f32.mrf.mxu0
      %v3535 = vadd.f32 %v3374, %v3534
      %v3536 = vpop.f32.mrf.mxu0
      %v3537 = vpop.f32.mrf.mxu0
      %v3538 = vadd.f32 %v3377, %v3537
      %v3539 = vpop.f32.mrf.mxu0
      %3540 = vmatprep.mubr.bf16.mxu0 0
      %3541 = vmatmul.mubr.bf16.gmra.mxu0 %v3079
      %v3542 = vpop.f32.mrf.mxu0
      %v3543 = vadd.f32 %v3382, %v3542
      %v3544 = vpop.f32.mrf.mxu0
      %v3545 = vpop.f32.mrf.mxu0
      %v3546 = vadd.f32 %v3385, %v3545
      %v3547 = vpop.f32.mrf.mxu0
      %3548 = vmatprep.mubr.bf16.mxu0 0
      %3549 = vmatmul.mubr.bf16.gmra.mxu0 %v3082
      %v3550 = vpop.f32.mrf.mxu0
      %v3551 = vadd.f32 %v3390, %v3550
      %v3552 = vpop.f32.mrf.mxu0
      %v3553 = vpop.f32.mrf.mxu0
      %v3554 = vadd.f32 %v3393, %v3553
      %v3555 = vpop.f32.mrf.mxu0
      %3556 = vmatprep.mubr.bf16.mxu0 0
      %3557 = vmatmul.mubr.bf16.gmra.mxu0 %v3085
      %v3558 = vpop.f32.mrf.mxu0
      %v3559 = vadd.f32 %v3398, %v3558
      %v3560 = vpop.f32.mrf.mxu0
      %v3561 = vpop.f32.mrf.mxu0
      %v3562 = vadd.f32 %v3401, %v3561
      %v3563 = vpop.f32.mrf.mxu0
      %3564 = vmatprep.mubr.bf16.mxu0 0
      %3565 = vmatmul.mubr.bf16.gmra.mxu0 %v3088
      %v3566 = vpop.f32.mrf.mxu0
      %v3567 = vadd.f32 %v3406, %v3566
      %v3568 = vpop.f32.mrf.mxu0
      %v3569 = vpop.f32.mrf.mxu0
      %v3570 = vadd.f32 %v3409, %v3569
      %v3571 = vpop.f32.mrf.mxu0
      %3572 = vmatprep.mubr.bf16.mxu0 0
      %3573 = vmatmul.mubr.bf16.gmra.mxu0 %v3091
      %v3574 = vpop.f32.mrf.mxu0
      %v3575 = vadd.f32 %v3414, %v3574
      %v3576 = vpop.f32.mrf.mxu0
      %v3577 = vpop.f32.mrf.mxu0
      %v3578 = vadd.f32 %v3417, %v3577
      %v3579 = vpop.f32.mrf.mxu0
      %3580 = vmatprep.mubr.bf16.mxu0 0
      %3581 = vmatmul.mubr.bf16.gmra.mxu0 %v3094
      %v3582 = vpop.f32.mrf.mxu0
      %v3583 = vadd.f32 %v3422, %v3582
      %v3584 = vpop.f32.mrf.mxu0
      %v3585 = vpop.f32.mrf.mxu0
      %v3586 = vadd.f32 %v3425, %v3585
      %v3587 = vpop.f32.mrf.mxu0
      %3588 = vmatprep.mubr.bf16.mxu0 0
      %3589 = vmatmul.mubr.bf16.gmra.mxu0 %v3097
      %v3590 = vpop.f32.mrf.mxu0
      %v3591 = vadd.f32 %v3430, %v3590
      %v3592 = vpop.f32.mrf.mxu0
      %v3593 = vpop.f32.mrf.mxu0
      %v3594 = vadd.f32 %v3433, %v3593
      %v3595 = vpop.f32.mrf.mxu0
      %3596 = vmatprep.mubr.bf16.mxu0 0
      %3597 = vmatmul.mubr.bf16.gmra.mxu0 %v3100
      %v3598 = vpop.f32.mrf.mxu0
      %v3599 = vadd.f32 %v3438, %v3598
      %v3600 = vpop.f32.mrf.mxu0
      %v3601 = vpop.f32.mrf.mxu0
      %v3602 = vadd.f32 %v3441, %v3601
      %v3603 = vpop.f32.mrf.mxu0
      %3604 = vmatprep.mubr.bf16.mxu0 0
      %3605 = vmatmul.mubr.bf16.gmra.mxu0 %v3103
      %v3606 = vpop.f32.mrf.mxu0
      %v3607 = vadd.f32 %v3446, %v3606
      %v3608 = vpop.f32.mrf.mxu0
      %v3609 = vpop.f32.mrf.mxu0
      %v3610 = vadd.f32 %v3449, %v3609
      %v3611 = vpop.f32.mrf.mxu0
      %3612 = vmatprep.mubr.bf16.mxu0 0
      %3613 = vmatmul.mubr.bf16.gmra.mxu0 %v3106
      %v3614 = vpop.f32.mrf.mxu0
      %v3615 = vadd.f32 %v3454, %v3614
      %v3616 = vpop.f32.mrf.mxu0
      %v3617 = vpop.f32.mrf.mxu0
      %v3618 = vadd.f32 %v3457, %v3617
      %v3619 = vpop.f32.mrf.mxu0
      %3620 = vdwg.mxu0
      %v3621 = vadd.f32 %v2659, %v3495
      %v3622 = vadd.f32 %v2662, %v3498
      %v3623 = vadd.f32 %v2667, %v3503
      %v3624 = vadd.f32 %v2670, %v3506
      %v3625 = vadd.f32 %v2675, %v3511
      %v3626 = vadd.f32 %v2678, %v3514
      %v3627 = vadd.f32 %v2683, %v3519
      %v3628 = vadd.f32 %v2686, %v3522
      %v3629 = vadd.f32 %v2691, %v3527
      %v3630 = vadd.f32 %v2694, %v3530
      %v3631 = vadd.f32 %v2699, %v3535
      %v3632 = vadd.f32 %v2702, %v3538
      %v3633 = vadd.f32 %v2707, %v3543
      %v3634 = vadd.f32 %v2710, %v3546
      %v3635 = vadd.f32 %v2715, %v3551
      %v3636 = vadd.f32 %v2718, %v3554
      %v3637 = vadd.f32 %v2723, %v3559
      %v3638 = vadd.f32 %v2726, %v3562
      %v3639 = vadd.f32 %v2731, %v3567
      %v3640 = vadd.f32 %v2734, %v3570
      %v3641 = vadd.f32 %v2739, %v3575
      %v3642 = vadd.f32 %v2742, %v3578
      %v3643 = vadd.f32 %v2747, %v3583
      %v3644 = vadd.f32 %v2750, %v3586
      %v3645 = vadd.f32 %v2755, %v3591
      %v3646 = vadd.f32 %v2758, %v3594
      %v3647 = vadd.f32 %v2763, %v3599
      %v3648 = vadd.f32 %v2766, %v3602
      %v3649 = vadd.f32 %v2771, %v3607
      %v3650 = vadd.f32 %v2774, %v3610
      %v3651 = vadd.f32 %v2779, %v3615
      %v3652 = vadd.f32 %v2782, %v3618
      %v3653 = vpack.c.bf16 %v3622, %v3621
      %v3654 = vpack.c.bf16 %v3624, %v3623
      %v3655 = vpack.c.bf16 %v3626, %v3625
      %v3656 = vpack.c.bf16 %v3628, %v3627
      %v3657 = vpack.c.bf16 %v3630, %v3629
      %v3658 = vpack.c.bf16 %v3632, %v3631
      %v3659 = vpack.c.bf16 %v3634, %v3633
      %v3660 = vpack.c.bf16 %v3636, %v3635
      %v3661 = vpack.c.bf16 %v3638, %v3637
      %v3662 = vpack.c.bf16 %v3640, %v3639
      %v3663 = vpack.c.bf16 %v3642, %v3641
      %v3664 = vpack.c.bf16 %v3644, %v3643
      %v3665 = vpack.c.bf16 %v3646, %v3645
      %v3666 = vpack.c.bf16 %v3648, %v3647
      %v3667 = vpack.c.bf16 %v3650, %v3649
      %v3668 = vpack.c.bf16 %v3652, %v3651
      %v3685 = vunpack.c.l.b16 %v3653
      %v3686 = vunpack.c.h.b16 %v3653
      %v3687 = vunpack.c.l.b16 %v3654
      %v3688 = vunpack.c.h.b16 %v3654
      %v3689 = vunpack.c.l.b16 %v3655
      %v3690 = vunpack.c.h.b16 %v3655
      %v3691 = vunpack.c.l.b16 %v3656
      %v3692 = vunpack.c.h.b16 %v3656
      %v3693 = vunpack.c.l.b16 %v3657
      %v3694 = vunpack.c.h.b16 %v3657
      %v3695 = vunpack.c.l.b16 %v3658
      %v3696 = vunpack.c.h.b16 %v3658
      %v3697 = vunpack.c.l.b16 %v3659
      %v3698 = vunpack.c.h.b16 %v3659
      %v3699 = vunpack.c.l.b16 %v3660
      %v3700 = vunpack.c.h.b16 %v3660
      %v3701 = vunpack.c.l.b16 %v3661
      %v3702 = vunpack.c.h.b16 %v3661
      %v3703 = vunpack.c.l.b16 %v3662
      %v3704 = vunpack.c.h.b16 %v3662
      %v3705 = vunpack.c.l.b16 %v3663
      %v3706 = vunpack.c.h.b16 %v3663
      %v3707 = vunpack.c.l.b16 %v3664
      %v3708 = vunpack.c.h.b16 %v3664
      %v3709 = vunpack.c.l.b16 %v3665
      %v3710 = vunpack.c.h.b16 %v3665
      %v3711 = vunpack.c.l.b16 %v3666
      %v3712 = vunpack.c.h.b16 %v3666
      %v3713 = vunpack.c.l.b16 %v3667
      %v3714 = vunpack.c.h.b16 %v3667
      %v3715 = vunpack.c.l.b16 %v3668
      %v3716 = vunpack.c.h.b16 %v3668
      %v3717 = vpack.c.b16 %v3685, %v3685
      %v3718 = vpack.c.b16 %v3686, %v3686
      %v3719 = vpack.c.b16 %v3687, %v3687
      %v3720 = vpack.c.b16 %v3688, %v3688
      %v3721 = vpack.c.b16 %v3689, %v3689
      %v3722 = vpack.c.b16 %v3690, %v3690
      %v3723 = vpack.c.b16 %v3691, %v3691
      %v3724 = vpack.c.b16 %v3692, %v3692
      %v3725 = vpack.c.b16 %v3693, %v3693
      %v3726 = vpack.c.b16 %v3694, %v3694
      %v3727 = vpack.c.b16 %v3695, %v3695
      %v3728 = vpack.c.b16 %v3696, %v3696
      %v3729 = vpack.c.b16 %v3697, %v3697
      %v3730 = vpack.c.b16 %v3698, %v3698
      %v3731 = vpack.c.b16 %v3699, %v3699
      %v3732 = vpack.c.b16 %v3700, %v3700
      %v3733 = vpack.c.b16 %v3701, %v3701
      %v3734 = vpack.c.b16 %v3702, %v3702
      %v3735 = vpack.c.b16 %v3703, %v3703
      %v3736 = vpack.c.b16 %v3704, %v3704
      %v3737 = vpack.c.b16 %v3705, %v3705
      %v3738 = vpack.c.b16 %v3706, %v3706
      %v3739 = vpack.c.b16 %v3707, %v3707
      %v3740 = vpack.c.b16 %v3708, %v3708
      %v3741 = vpack.c.b16 %v3709, %v3709
      %v3742 = vpack.c.b16 %v3710, %v3710
      %v3743 = vpack.c.b16 %v3711, %v3711
      %v3744 = vpack.c.b16 %v3712, %v3712
      %v3745 = vpack.c.b16 %v3713, %v3713
      %v3746 = vpack.c.b16 %v3714, %v3714
      %v3747 = vpack.c.b16 %v3715, %v3715
      %v3748 = vpack.c.b16 %v3716, %v3716
      %3781 = vst [vmem:[%s262] sm:$0xf] %v3717
      %3782 = vst [vmem:[%s262 + $0x4] sm:$0xf] %v3718
      %3783 = vst [vmem:[%s262 + $0x8] sm:$0xf] %v3719
      %3784 = vst [vmem:[%s262 + $0xc] sm:$0xf] %v3720
      %3785 = vst [vmem:[%s262 + $0x10] sm:$0xf] %v3721
      %3786 = vst [vmem:[%s262 + $0x14] sm:$0xf] %v3722
      %3787 = vst [vmem:[%s262 + $0x18] sm:$0xf] %v3723
      %3788 = vst [vmem:[%s262 + $0x1c] sm:$0xf] %v3724
      %3789 = vst [vmem:[%s262 + $0x20] sm:$0xf] %v3725
      %3790 = vst [vmem:[%s262 + $0x24] sm:$0xf] %v3726
      %3791 = vst [vmem:[%s262 + $0x28] sm:$0xf] %v3727
      %3792 = vst [vmem:[%s262 + $0x2c] sm:$0xf] %v3728
      %3793 = vst [vmem:[%s262 + $0x30] sm:$0xf] %v3729
      %3794 = vst [vmem:[%s262 + $0x34] sm:$0xf] %v3730
      %3795 = vst [vmem:[%s262 + $0x38] sm:$0xf] %v3731
      %3796 = vst [vmem:[%s262 + $0x3c] sm:$0xf] %v3732
      %3797 = vst [vmem:[%s262 + $0x40] sm:$0xf] %v3733
      %3798 = vst [vmem:[%s262 + $0x44] sm:$0xf] %v3734
      %3799 = vst [vmem:[%s262 + $0x48] sm:$0xf] %v3735
      %3800 = vst [vmem:[%s262 + $0x4c] sm:$0xf] %v3736
      %3801 = vst [vmem:[%s262 + $0x50] sm:$0xf] %v3737
      %3802 = vst [vmem:[%s262 + $0x54] sm:$0xf] %v3738
      %3803 = vst [vmem:[%s262 + $0x58] sm:$0xf] %v3739
      %3804 = vst [vmem:[%s262 + $0x5c] sm:$0xf] %v3740
      %3805 = vst [vmem:[%s262 + $0x60] sm:$0xf] %v3741
      %3806 = vst [vmem:[%s262 + $0x64] sm:$0xf] %v3742
      %3807 = vst [vmem:[%s262 + $0x68] sm:$0xf] %v3743
      %3808 = vst [vmem:[%s262 + $0x6c] sm:$0xf] %v3744
      %3809 = vst [vmem:[%s262 + $0x70] sm:$0xf] %v3745
      %3810 = vst [vmem:[%s262 + $0x74] sm:$0xf] %v3746
      %3811 = vst [vmem:[%s262 + $0x78] sm:$0xf] %v3747
      %3812 = vst [vmem:[%s262 + $0x7c] sm:$0xf] %v3748
      %v3813 = vadd.f32 %v3621, %v3622
      %v3814 = vadd.f32 %v3813, %v3623
      %v3815 = vadd.f32 %v3814, %v3624
      %v3816 = vadd.f32 %v3815, %v3625
      %v3817 = vadd.f32 %v3816, %v3626
      %v3818 = vadd.f32 %v3817, %v3627
      %v3819 = vadd.f32 %v3818, %v3628
      %v3820 = vadd.f32 %v3819, %v3629
      %v3821 = vadd.f32 %v3820, %v3630
      %v3822 = vadd.f32 %v3821, %v3631
      %v3823 = vadd.f32 %v3822, %v3632
      %v3824 = vadd.f32 %v3823, %v3633
      %v3825 = vadd.f32 %v3824, %v3634
      %v3826 = vadd.f32 %v3825, %v3635
      %v3827 = vadd.f32 %v3826, %v3636
      %v3828 = vadd.f32 %v3827, %v3637
      %v3829 = vadd.f32 %v3828, %v3638
      %v3830 = vadd.f32 %v3829, %v3639
      %v3831 = vadd.f32 %v3830, %v3640
      %v3832 = vadd.f32 %v3831, %v3641
      %v3833 = vadd.f32 %v3832, %v3642
      %v3834 = vadd.f32 %v3833, %v3643
      %v3835 = vadd.f32 %v3834, %v3644
      %v3836 = vadd.f32 %v3835, %v3645
      %v3837 = vadd.f32 %v3836, %v3646
      %v3838 = vadd.f32 %v3837, %v3647
      %v3839 = vadd.f32 %v3838, %v3648
      %v3840 = vadd.f32 %v3839, %v3649
      %v3841 = vadd.f32 %v3840, %v3650
      %v3842 = vadd.f32 %v3841, %v3651
      %v3843 = vadd.f32 %v3842, %v3652
      %v3844 = vrot.slane %v3843, 4
      %v3845 = vadd.f32 %v3843, %v3844
      %v3846 = vrot.slane %v3845, 2
      %v3847 = vadd.f32 %v3845, %v3846
      %v3848 = vrot.slane %v3847, 1
      %v3849 = vadd.f32 %v3847, %v3848
      %3850 = vst [vmem:[%s265] sm:$0x1] %v3849
      %v3851 = vmul.f32 %v3621, %v3621
      %v3852 = vmul.f32 %v3622, %v3622
      %v3853 = vmul.f32 %v3623, %v3623
      %v3854 = vmul.f32 %v3624, %v3624
      %v3855 = vmul.f32 %v3625, %v3625
      %v3856 = vmul.f32 %v3626, %v3626
      %v3857 = vmul.f32 %v3627, %v3627
      %v3858 = vmul.f32 %v3628, %v3628
      %v3859 = vmul.f32 %v3629, %v3629
      %v3860 = vmul.f32 %v3630, %v3630
      %v3861 = vmul.f32 %v3631, %v3631
      %v3862 = vmul.f32 %v3632, %v3632
      %v3863 = vmul.f32 %v3633, %v3633
      %v3864 = vmul.f32 %v3634, %v3634
      %v3865 = vmul.f32 %v3635, %v3635
      %v3866 = vmul.f32 %v3636, %v3636
      %v3867 = vmul.f32 %v3637, %v3637
      %v3868 = vmul.f32 %v3638, %v3638
      %v3869 = vmul.f32 %v3639, %v3639
      %v3870 = vmul.f32 %v3640, %v3640
      %v3871 = vmul.f32 %v3641, %v3641
      %v3872 = vmul.f32 %v3642, %v3642
      %v3873 = vmul.f32 %v3643, %v3643
      %v3874 = vmul.f32 %v3644, %v3644
      %v3875 = vmul.f32 %v3645, %v3645
      %v3876 = vmul.f32 %v3646, %v3646
      %v3877 = vmul.f32 %v3647, %v3647
      %v3878 = vmul.f32 %v3648, %v3648
      %v3879 = vmul.f32 %v3649, %v3649
      %v3880 = vmul.f32 %v3650, %v3650
      %v3881 = vmul.f32 %v3651, %v3651
      %v3882 = vmul.f32 %v3652, %v3652
      %v3883 = vadd.f32 %v3851, %v3852
      %v3884 = vadd.f32 %v3883, %v3853
      %v3885 = vadd.f32 %v3884, %v3854
      %v3886 = vadd.f32 %v3885, %v3855
      %v3887 = vadd.f32 %v3886, %v3856
      %v3888 = vadd.f32 %v3887, %v3857
      %v3889 = vadd.f32 %v3888, %v3858
      %v3890 = vadd.f32 %v3889, %v3859
      %v3891 = vadd.f32 %v3890, %v3860
      %v3892 = vadd.f32 %v3891, %v3861
      %v3893 = vadd.f32 %v3892, %v3862
      %v3894 = vadd.f32 %v3893, %v3863
      %v3895 = vadd.f32 %v3894, %v3864
      %v3896 = vadd.f32 %v3895, %v3865
      %v3897 = vadd.f32 %v3896, %v3866
      %v3898 = vadd.f32 %v3897, %v3867
      %v3899 = vadd.f32 %v3898, %v3868
      %v3900 = vadd.f32 %v3899, %v3869
      %v3901 = vadd.f32 %v3900, %v3870
      %v3902 = vadd.f32 %v3901, %v3871
      %v3903 = vadd.f32 %v3902, %v3872
      %v3904 = vadd.f32 %v3903, %v3873
      %v3905 = vadd.f32 %v3904, %v3874
      %v3906 = vadd.f32 %v3905, %v3875
      %v3907 = vadd.f32 %v3906, %v3876
      %v3908 = vadd.f32 %v3907, %v3877
      %v3909 = vadd.f32 %v3908, %v3878
      %v3910 = vadd.f32 %v3909, %v3879
      %v3911 = vadd.f32 %v3910, %v3880
      %v3912 = vadd.f32 %v3911, %v3881
      %v3913 = vadd.f32 %v3912, %v3882
      %v3914 = vrot.slane %v3913, 4
      %v3915 = vadd.f32 %v3913, %v3914
      %v3916 = vrot.slane %v3915, 2
      %v3917 = vadd.f32 %v3915, %v3916
      %v3918 = vrot.slane %v3917, 1
      %v3919 = vadd.f32 %v3917, %v3918
      %3920 = vst [vmem:[%s268] sm:$0x1] %v3919
      %p3921 = scmp.lt.s32.totalorder %s18, 1
      %s3922 = scalar_select %p3921, %s18, 1
      %s3923 = smul.addr %s3922, 32
      %s3924 = smul.addr %s3923, 4
      %s3925 = scalar_lea.vmem %s4, %s3924
      %p3926 = scmp.lt.s32.totalorder %s18, 1
      %s3927 = scalar_select %p3926, %s18, 1
      %s3928 = scalar_lea.vmem %s5, %s3927
      %p3929 = scmp.lt.s32.totalorder %s18, 1
      %s3930 = scalar_select %p3929, %s18, 1
      %s3931 = scalar_lea.vmem %s6, %s3930
      // Predicated region
      $region37: #{bottleneck_forward.5} parent=35 // pred_check
        %p3932 = pneg %p125
      $region38: #{bottleneck_forward.5} parent=35 // pred_check_branch
        %3934 = sbr.rel (%p3932) target = $region40
      $region39: #{bottleneck_forward.5} parent=35 // pred_region
        _
      $region40: #{bottleneck_forward.5} parent=35 // pred_fallthru
        _
      // Predicated region
      $region41: #{bottleneck_forward.5} parent=35 // pred_check
        %p3935 = pneg %p151
      $region42: #{bottleneck_forward.5} parent=35 // pred_check_branch
        %3937 = sbr.rel (%p3935) target = $region44
      $region43: #{bottleneck_forward.5} parent=35 // pred_region
        _
      $region44: #{bottleneck_forward.5} parent=35 // pred_fallthru
        _
      // Predicated region
      $region45: #{bottleneck_forward.5} parent=35 // pred_check
        %p3938 = pneg %p177
      $region46: #{bottleneck_forward.5} parent=35 // pred_check_branch
        %3940 = sbr.rel (%p3938) target = $region48
      $region47: #{bottleneck_forward.5} parent=35 // pred_region
        _
      $region48: #{bottleneck_forward.5} parent=35 // pred_fallthru
        _
    $region36: #{bottleneck_forward.5} parent=5 // pred_fallthru
      _
    %p3941 = scmp.le.s32.totalorder 2, %s13
    // Predicated region
    $region49: #{bottleneck_forward.5} parent=5 // pred_check
      %p3942 = pneg %p3941
    $region50: #{bottleneck_forward.5} parent=5 // pred_check_branch
      %3944 = sbr.rel (%p3942) target = $region52
    $region51: #{bottleneck_forward.5} parent=5 // pred_region
      %s3945 = ssub.s32 %s13, 2
      // Predicated region
      $region53: #{bottleneck_forward.5} parent=51 // pred_check
        %p3946 = pneg %p131
      $region54: #{bottleneck_forward.5} parent=51 // pred_check_branch
        %3948 = sbr.rel (%p3946) target = $region56
      $region55: #{bottleneck_forward.5} parent=51 // pred_region
        %p3949 = scmp.lt.s32.totalorder %s19, 1
        %s3950 = scalar_select %p3949, %s19, 1
        %s3951 = smul.addr %s3950, 32
        %s3952 = smul.addr %s3951, 4
        %s3953 = scalar_lea.vmem %s4, %s3952
      $region56: #{bottleneck_forward.5} parent=51 // pred_fallthru
        _
      // Predicated region
      $region57: #{bottleneck_forward.5} parent=51 // pred_check
        %p3954 = pneg %p157
      $region58: #{bottleneck_forward.5} parent=51 // pred_check_branch
        %3956 = sbr.rel (%p3954) target = $region60
      $region59: #{bottleneck_forward.5} parent=51 // pred_region
        %p3957 = scmp.lt.s32.totalorder %s19, 1
        %s3958 = scalar_select %p3957, %s19, 1
        %s3959 = scalar_lea.vmem %s5, %s3958
      $region60: #{bottleneck_forward.5} parent=51 // pred_fallthru
        _
      // Predicated region
      $region61: #{bottleneck_forward.5} parent=51 // pred_check
        %p3960 = pneg %p183
      $region62: #{bottleneck_forward.5} parent=51 // pred_check_branch
        %3962 = sbr.rel (%p3960) target = $region64
      $region63: #{bottleneck_forward.5} parent=51 // pred_region
        %p3963 = scmp.lt.s32.totalorder %s19, 1
        %s3964 = scalar_select %p3963, %s19, 1
        %s3965 = scalar_lea.vmem %s6, %s3964
      $region64: #{bottleneck_forward.5} parent=51 // pred_fallthru
        _
    $region52: #{bottleneck_forward.5} parent=5 // pred_fallthru
      _
  $region6: #{bottleneck_forward.5} parent=0 // loop_footer
    %s17 = sadd.s32 1, %s13
  $region7: #{bottleneck_forward.5} parent=0 // loop_footer_branch
    %12 = sbr.rel target = $region3
  $region8: #{bottleneck_forward.5} parent=0 // loop_exit
    _

</llo_original>
